<compile_context>
chip_gen: v6e
topology: v6e:2x2x1
jax: 0.10.0
libtpu: 0.0.40
codegen_flags: <defaults>
</compile_context>

<pallas_src>
import functools

import jax
import jax.numpy as jnp
from jax.experimental import pallas as pl
from jax.experimental.pallas import tpu as pltpu

C_DIM = 128           # feature dim fixed by the architecture
TILE_POINTS = 1024    # row tile for the per-point MLP over B*N rows (mem-bound)
TILE_HEAD = 512       # row tile for the heads (multiple of 256 fills the
                      # v6e/v7x 256-wide MXU; >=128 is also fine on v5e)


def _round_up(x, m):
    return ((x + m - 1) // m) * m


_VMEM_LIMIT_CACHE = []


def _vmem_limit_bytes():
    """Device-derived VMEM budget: <=48 MiB and <=60% of physical VMEM."""
    if not _VMEM_LIMIT_CACHE:
        limit = 48 * 1024 * 1024
        try:
            cap = int(pltpu.get_tpu_info().vmem_capacity_bytes)
            limit = min(limit, int(0.6 * cap))
        except Exception:
            pass
        _VMEM_LIMIT_CACHE.append(limit)
    return _VMEM_LIMIT_CACHE[0]


def _effective_tile(m, tile_m):
    # Cap the row tile at the (16-aligned) row count so tiny problems do not
    # pay for a huge padded tile, and force >=2 grid steps for mid-size row
    # counts so both v7x TensorCores get work on the "parallel" grid axis.
    cap = _round_up(m, 16)
    if m > 16:
        cap = min(cap, _round_up(pl.cdiv(m, 2), 16))
    return min(tile_m, cap)


def _head_tile(m, kc):
    # Shrink the head row tile until the double-buffered bf16 x tile fits a
    # quarter of the VMEM budget (keeps local_point_num=100-class models safe
    # on v7x's 64 MiB VMEM); then apply the generic cap / 2-step rule.
    t = TILE_HEAD
    budget = _vmem_limit_bytes() // 4
    while t > 64 and 2 * t * kc * 2 > budget:
        t //= 2
    return _effective_tile(m, t)


def _weight_pipeline_mode():
    # Constant-index weight blocks are not re-DMA'd per grid step regardless;
    # pl.Buffered(1) only trims their VMEM to a single buffer.  No runtime
    # probe compile -- the attribute either exists or we silently fall back.
    try:
        return pl.Buffered(1)
    except Exception:
        return None


# ----------------------------------------------------------------------------
# In-kernel building blocks (bf16 operands, f32 MXU accumulation, f32 VPU math)
# ----------------------------------------------------------------------------
def _dense_relu(x, w, b):
    return jnp.maximum(
        jnp.dot(x, w, preferred_element_type=jnp.float32) + b, 0.0)


def _dense(x, w, b):
    return jnp.dot(x, w, preferred_element_type=jnp.float32) + b


# ----------------------------------------------------------------------------
# Pallas kernels
# ----------------------------------------------------------------------------
def mlp2_kernel(x_ref, w1_ref, b1_ref, w2_ref, b2_ref, o_ref):
    """Two pointwise Conv1d layers (dense over channels) with ReLU each."""
    h = _dense_relu(x_ref[...], w1_ref[...], b1_ref[...])
    h = _dense_relu(h.astype(jnp.bfloat16), w2_ref[...], b2_ref[...])
    o_ref[...] = h.astype(o_ref.dtype)


def fused_ap_pose_kernel(m_pose, tile_m, x_ref,
                         wm_ref, bwm_ref,
                         a_w1, a_b1, a_ws1, a_bs1, a_ws2, a_bs2,
                         p_w1, p_b1, p_woa1, p_boa1, p_w2, p_b2,
                         score_ref, pose_ref):
    """AntipodalPredictBatch + PosePredictBatch on one x tile.

    wm_ref holds [a_wwm | p_wwm] (K*C, 256): one 256-wide MXU pass computes
    both heads' weighted_mean on pose tiles; non-pose tiles only run the
    128-wide antipodal half (aligned lane slice of the fused weight).
    Outputs: score (tm, 1) and [offset(3) | angle(1)] (tm, 4); the pose
    output is only written for tiles intersecting the row prefix [0, m_pose).
    """
    row0 = pl.program_id(0) * tile_m

    def ap_tail(h_ap):                                             # (tm,128) bf16
        h = _dense_relu(h_ap, a_w1[...], a_b1[...])                # (tm, 512)
        s = _dense_relu(h.astype(jnp.bfloat16), a_ws1[...], a_bs1[...])
        s = _dense(s.astype(jnp.bfloat16), a_ws2[...], a_bs2[...])
        score_ref[...] = jax.nn.sigmoid(s)

    @pl.when(row0 < m_pose)
    def _():
        hh = jnp.maximum(
            jnp.dot(x_ref[...], wm_ref[...],
                    preferred_element_type=jnp.float32) + bwm_ref[...],
            0.0).astype(jnp.bfloat16)                              # (tm, 256)
        ap_tail(hh[:, :C_DIM])
        t = _dense_relu(hh[:, C_DIM:], p_w1[...], p_b1[...])       # (tm, 512)
        oa = _dense_relu(t.astype(jnp.bfloat16), p_woa1[...], p_boa1[...])
        pose_ref[...] = _dense(oa.astype(jnp.bfloat16), p_w2[...], p_b2[...])

    @pl.when(row0 >= m_pose)
    def _():
        h = jnp.maximum(
            jnp.dot(x_ref[...], wm_ref[:, :C_DIM],
                    preferred_element_type=jnp.float32) + bwm_ref[:, :C_DIM],
            0.0).astype(jnp.bfloat16)
        ap_tail(h)


def grasp_head_kernel(x_ref, gaf_ref,
                      wwm, bwm, w_sum, w1, b1, ws1, bs1, ws2, bs2, o_ref):
    """GraspClassifier head.

    The grid-angle broadcast-add is folded through the weighted_mean:
      (x + tile_K(gaf)) @ W == x @ W + gaf @ (sum_k W_k),
    so a tiny (128, 128) matmul replaces the (tm, K*C) temporary + wide add.
    """
    h = (jnp.dot(x_ref[...], wwm[...], preferred_element_type=jnp.float32)
         + jnp.dot(gaf_ref[...], w_sum[...], preferred_element_type=jnp.float32)
         + bwm[...])
    h = jnp.maximum(h, 0.0)
    h = _dense_relu(h.astype(jnp.bfloat16), w1[...], b1[...])
    s = _dense_relu(h.astype(jnp.bfloat16), ws1[...], bs1[...])
    s = _dense(s.astype(jnp.bfloat16), ws2[...], bs2[...])
    o_ref[...] = jax.nn.sigmoid(s)


# ----------------------------------------------------------------------------
# Generic row-tiled pallas_call wrapper
# ----------------------------------------------------------------------------
def _run_rowwise(kernel, row_inputs, params, out_dims, *, tile_m,
                 out_dtype=jnp.float32):
    """Run `kernel(*row_tiles, *param_blocks, *out_tiles)` tiled over rows.

    row_inputs: (M, d_i) arrays tiled together along rows (bf16 storage).
                Large inputs should already arrive row-padded to a multiple of
                tile_m (padding here would re-copy the whole slab through HBM);
                small inputs are padded in place (cheap).
    params:     full-block (constant index_map) weight/bias arrays.
    out_dims:   int, or tuple of ints -> one (Mp, dim) padded output each;
                callers slice the logical rows they need.
    """
    m = row_inputs[0].shape[0]
    mp = _round_up(m, tile_m)
    rows = []
    for r in row_inputs:
        r = r.astype(jnp.bfloat16)
        if mp != m:
            r = jnp.pad(r, ((0, mp - m), (0, 0)))
        rows.append(r)

    wmode = _weight_pipeline_mode()
    in_specs = [pl.BlockSpec((tile_m, r.shape[1]), lambda i: (i, 0))
                for r in rows]
    for p in params:
        if wmode is not None:
            in_specs.append(pl.BlockSpec(p.shape, lambda i: (0, 0),
                                         pipeline_mode=wmode))
        else:
            in_specs.append(pl.BlockSpec(p.shape, lambda i: (0, 0)))

    single = isinstance(out_dims, int)
    dims = (out_dims,) if single else tuple(out_dims)
    out_shape = tuple(jax.ShapeDtypeStruct((mp, d), out_dtype) for d in dims)
    out_specs = tuple(pl.BlockSpec((tile_m, d), lambda i: (i, 0)) for d in dims)
    if single:
        out_shape, out_specs = out_shape[0], out_specs[0]

    return pl.pallas_call(
        kernel,
        out_shape=out_shape,
        grid=(mp // tile_m,),
        in_specs=in_specs,
        out_specs=out_specs,
        compiler_params=pltpu.CompilerParams(
            dimension_semantics=("parallel",),
            vmem_limit_bytes=_vmem_limit_bytes()),
    )(*rows, *params)


# ----------------------------------------------------------------------------
# Deterministic parameter construction (bf16 weights, f32 biases)
# ----------------------------------------------------------------------------
def _dense_init(key, din, dout):
    kw, kb = jax.random.split(key)
    w = (jax.random.normal(kw, (din, dout), jnp.float32) * (din ** -0.5)
         ).astype(jnp.bfloat16)
    b = jax.random.normal(kb, (1, dout), jnp.float32) * 0.01
    return w, b


def init_params(key, point_num):
    ks = jax.random.split(key, 32)
    # The Conv2d(C, C, (1, K)) "weighted_mean" weight is stored pre-permuted so
    # the gathered (.., K, C) features flatten C-last (row index k*C + c) with
    # no transpose; for synthetic weights this is simply the native layout.
    kc = point_num * C_DIM
    pf = _dense_init(ks[0], 3, 64) + _dense_init(ks[1], 64, C_DIM)
    ga = _dense_init(ks[2], 4, 64) + _dense_init(ks[3], 64, C_DIM)
    ap = (_dense_init(ks[4], kc, C_DIM) + _dense_init(ks[5], C_DIM, 512)
          + _dense_init(ks[6], 512, 256) + _dense_init(ks[7], 256, 1))
    gc = (_dense_init(ks[8], kc, C_DIM) + _dense_init(ks[9], C_DIM, 512)
          + _dense_init(ks[10], 512, 256) + _dense_init(ks[11], 256, 1))
    pose = (_dense_init(ks[12], kc, C_DIM) + _dense_init(ks[13], C_DIM, 512)
            + _dense_init(ks[14], 512, 256) + _dense_init(ks[15], 256, 3)
            + _dense_init(ks[16], 512, 256) + _dense_init(ks[17], 256, 1))
    return dict(pointfeat=pf, grid_angle=ga, ap=ap, grasp=gc, pose=pose)


def _pack_ap_pose_params(params):
    """Fuse the antipodal + pose head weights for the fused head kernel."""
    a_wwm, a_bwm, a_w1, a_b1, a_ws1, a_bs1, a_ws2, a_bs2 = params["ap"]
    (p_wwm, p_bwm, p_w1, p_b1, p_wo1, p_bo1, p_wo2, p_bo2,
     p_wa1, p_ba1, p_wa2, p_ba2) = params["pose"]
    wm = jnp.concatenate([a_wwm, p_wwm], axis=1)                  # (K*C, 256)
    bwm = jnp.concatenate([a_bwm, p_bwm], axis=1)                 # (1, 256)
    p_woa1 = jnp.concatenate([p_wo1, p_wa1], axis=1)              # (512, 512)
    p_boa1 = jnp.concatenate([p_bo1, p_ba1], axis=1)              # (1, 512)
    p_w2 = jnp.zeros((512, 4), jnp.bfloat16)                      # block-diag
    p_w2 = p_w2.at[:256, :3].set(p_wo2).at[256:, 3:].set(p_wa2)   # (512, 4)
    p_b2 = jnp.concatenate([p_bo2, p_ba2], axis=1)                # (1, 4)
    return (wm, bwm, a_w1, a_b1, a_ws1, a_bs1, a_ws2, a_bs2,
            p_w1, p_b1, p_woa1, p_boa1, p_w2, p_b2)


def _grasp_wsum(params, point_num):
    """sum_k W_k of the grasp weighted_mean (folds the grid-angle add)."""
    wwm = params["grasp"][0]                                      # (K*C, 128)
    return (wwm.astype(jnp.float32)
            .reshape(point_num, C_DIM, C_DIM).sum(0).astype(jnp.bfloat16))


# ----------------------------------------------------------------------------
# Feature preparation (backbone stand-in + padded gathers), shared w/ ref check
# ----------------------------------------------------------------------------
def _prepare_features(params, pc, prop_local_points, posi_prop_idx,
                      nega_prop_idx, grasp_centers, grasp_angles,
                      grasp_local_points):
    B, N, _ = pc.shape
    K = prop_local_points.shape[-1]
    C = C_DIM

    # point features (stand-in backbone) -> (mp_pts, C) bf16, kept row-padded
    m_pts = B * N
    tile_p = _effective_tile(m_pts, TILE_POINTS)
    feat_flat = _run_rowwise(mlp2_kernel, [pc.reshape(m_pts, 3)],
                             params["pointfeat"], C, tile_m=tile_p,
                             out_dtype=jnp.bfloat16)               # (mp_pts, C)

    # proposal selection (indices taken as given)
    sel = jnp.concatenate([posi_prop_idx, nega_prop_idx], 0)
    local_points = prop_local_points[:, sel]                       # (B, P, K)
    P = local_points.shape[1]

    # proposal-major row order (row = p*B + b) so the pose rows [0, m_pose)
    # form a global row prefix; the int32 gather indices (not the K*C slab)
    # are padded to the head tile, so the gather already emits a padded slab.
    m_a = P * B
    tile_a = _head_tile(m_a, K * C)
    mp_a = _round_up(m_a, tile_a)
    b_off = jnp.arange(B, dtype=jnp.int32) * N
    prop_rows = (b_off[None, :, None]
                 + local_points.transpose(1, 0, 2)).reshape(m_a, K)
    prop_rows = jnp.pad(prop_rows, ((0, mp_a - m_a), (0, 0)))
    x_prop = feat_flat[prop_rows].reshape(mp_a, K * C)             # bf16

    # grid-angle features + grasp-local gather, batch-major rows (row = b*G+g),
    # both padded to the same grasp-head tile so they line up per row.
    G = grasp_centers.shape[1]
    m_g = B * G
    tile_g = _head_tile(m_g, K * C)
    mp_g = _round_up(m_g, tile_g)
    cent_ang = jnp.concatenate([grasp_centers, grasp_angles], -1)  # (B, G, 4)
    gaf = _run_rowwise(mlp2_kernel, [cent_ang.reshape(m_g, 4)],
                       params["grid_angle"], C, tile_m=tile_g,
                       out_dtype=jnp.bfloat16)                     # (mp_g, C)
    grasp_rows = (b_off[:, None, None] + grasp_local_points).reshape(m_g, K)
    grasp_rows = jnp.pad(grasp_rows, ((0, mp_g - m_g), (0, 0)))
    x_grasp = feat_flat[grasp_rows].reshape(mp_g, K * C)           # bf16

    return x_prop, x_grasp, gaf, P, G, K, tile_a, tile_g


# ----------------------------------------------------------------------------
# GraspPoseNet training-mode forward (grid=False, use_angle=True, bn=False)
# ----------------------------------------------------------------------------
def grasp_pose_net_forward(params, pc, prop_local_points, prop_pair,
                           posi_prop_idx, nega_prop_idx, posi_idx, nega_idx,
                           grasp_centers, grasp_angles, grasp_local_points):
    del prop_pair   # only feeds GridFeat when grid=True; unused in this config
    B = pc.shape[0]
    # NOTE: as in the original, posi_idx/nega_idx act as a count -- the pose
    # head runs on the first (len(posi_idx)+len(nega_idx)) selected proposals.
    posi_prop_num = int(posi_idx.shape[0]) + int(nega_idx.shape[0])

    (x_prop, x_grasp, gaf, P, G, K,
     tile_a, tile_g) = _prepare_features(
        params, pc, prop_local_points, posi_prop_idx, nega_prop_idx,
        grasp_centers, grasp_angles, grasp_local_points)

    # fused AntipodalPredictBatch + PosePredictBatch heads: x_prop is read from
    # HBM once; pose tiles use a single 256-wide fused weighted_mean matmul.
    m_all = P * B
    m_pose = posi_prop_num * B
    score_all, pose_all = _run_rowwise(
        functools.partial(fused_ap_pose_kernel, m_pose, tile_a),
        [x_prop], _pack_ap_pose_params(params), (1, 4), tile_m=tile_a)

    prop_score = score_all[:m_all, 0].reshape(P, B).T               # (B, P)
    pose = pose_all[:m_pose].reshape(posi_prop_num, B, 4).transpose(1, 0, 2)
    pred_offset = pose[..., :3]                                     # (B, P', 3)
    pred_angle = pose[..., 3]                                       # (B, P')

    # GraspClassifier head; grid-angle add folded through the weighted_mean.
    w_sum = _grasp_wsum(params, K)
    grasp_params = params["grasp"][:2] + (w_sum,) + params["grasp"][2:]
    grasp_score = _run_rowwise(
        grasp_head_kernel, [x_grasp, gaf], grasp_params, 1,
        tile_m=tile_g)[:B * G].reshape(B, G)

    return (prop_score, grasp_score, pred_offset, pred_angle,
            posi_prop_idx, nega_prop_idx, posi_idx, nega_idx)


# ----------------------------------------------------------------------------
# Pure-JAX references (same bf16-storage / f32-accumulate recipe)
# ----------------------------------------------------------------------------
def _ref_score_head(x, p):
    wwm, bwm, w1, b1, ws1, bs1, ws2, bs2 = p
    h = _dense_relu(x, wwm, bwm)
    h = _dense_relu(h.astype(jnp.bfloat16), w1, b1)
    s = _dense_relu(h.astype(jnp.bfloat16), ws1, bs1)
    return jax.nn.sigmoid(_dense(s.astype(jnp.bfloat16), ws2, bs2))


def _ref_pose_head(x, p):
    wwm, bwm, w1, b1, wo1, bo1, wo2, bo2, wa1, ba1, wa2, ba2 = p
    t = _dense_relu(x, wwm, bwm)
    t = _dense_relu(t.astype(jnp.bfloat16), w1, b1)
    off = _dense_relu(t.astype(jnp.bfloat16), wo1, bo1)
    off = _dense(off.astype(jnp.bfloat16), wo2, bo2)
    ang = _dense_relu(t.astype(jnp.bfloat16), wa1, ba1)
    ang = _dense(ang.astype(jnp.bfloat16), wa2, ba2)
    return off, ang


def _ref_grasp_head(x, gaf, w_sum, p):
    # (x + tile_K(gaf)) @ W == x @ W + gaf @ sum_k W_k : identical math to the
    # original pre-matmul add, expressed the way the kernel computes it.
    wwm, bwm, w1, b1, ws1, bs1, ws2, bs2 = p
    h = jnp.maximum(
        jnp.dot(x, wwm, preferred_element_type=jnp.float32)
        + jnp.dot(gaf, w_sum, preferred_element_type=jnp.float32) + bwm, 0.0)
    h = _dense_relu(h.astype(jnp.bfloat16), w1, b1)
    s = _dense_relu(h.astype(jnp.bfloat16), ws1, bs1)
    return jax.nn.sigmoid(_dense(s.astype(jnp.bfloat16), ws2, bs2))


if __name__ == "__main__":
    import numpy as np

    B, N, K, G = 2, 64, 16, 4       # small synthetic shapes; local_point_num=K
    key = jax.random.PRNGKey(0)
    k = jax.random.split(key, 10)

    pc = jax.random.normal(k[0], (B, N, 3), jnp.float32)
    prop_local_points = jax.random.randint(k[1], (B, 10, K), 0, N, jnp.int32)
    prop_pair = jax.random.normal(k[2], (B, 10, 2, 3), jnp.float32)
    posi_prop_idx = jnp.array([0, 1, 2], jnp.int32)
    nega_prop_idx = jnp.array([5, 6, 7], jnp.int32)
    posi_idx = jnp.array([0, 1], jnp.int32)
    nega_idx = jnp.array([2, 3], jnp.int32)
    grasp_centers = jax.random.normal(k[3], (B, G, 3), jnp.float32)
    grasp_angles = jax.random.normal(k[4], (B, G, 1), jnp.float32)
    grasp_local_points = jax.random.randint(k[5], (B, G, K), 0, N, jnp.int32)

    params = init_params(jax.random.PRNGKey(1234), K)

    fwd = jax.jit(grasp_pose_net_forward)
    out = fwd(params, pc, prop_local_points, prop_pair,
              posi_prop_idx, nega_prop_idx, posi_idx, nega_idx,
              grasp_centers, grasp_angles, grasp_local_points)
    out = jax.block_until_ready(out)
    prop_score, grasp_score, pred_offset, pred_angle = out[:4]

    # shape checks
    P = posi_prop_idx.shape[0] + nega_prop_idx.shape[0]
    Pp = posi_idx.shape[0] + nega_idx.shape[0]
    assert prop_score.shape == (B, P)
    assert grasp_score.shape == (B, G)
    assert pred_offset.shape == (B, Pp, 3)
    assert pred_angle.shape == (B, Pp)

    # numerical sanity checks against pure-JAX (XLA) references
    (x_prop, x_grasp, gaf, P_, G_, K_, _, _) = _prepare_features(
        params, pc, prop_local_points, posi_prop_idx, nega_prop_idx,
        grasp_centers, grasp_angles, grasp_local_points)
    m_all = P_ * B
    m_pose = Pp * B

    ref_prop = _ref_score_head(x_prop[:m_all], params["ap"]).reshape(P_, B).T
    np.testing.assert_allclose(np.asarray(prop_score), np.asarray(ref_prop),
                               rtol=2e-2, atol=2e-2)

    ref_off, ref_ang = _ref_pose_head(x_prop[:m_pose], params["pose"])
    ref_off = ref_off.reshape(Pp, B, 3).transpose(1, 0, 2)
    ref_ang = ref_ang.reshape(Pp, B).T
    np.testing.assert_allclose(np.asarray(pred_offset), np.asarray(ref_off),
                               rtol=2e-2, atol=2e-2)
    np.testing.assert_allclose(np.asarray(pred_angle), np.asarray(ref_ang),
                               rtol=2e-2, atol=2e-2)

    w_sum = _grasp_wsum(params, K_)
    ref_grasp = _ref_grasp_head(x_grasp[:B * G_], gaf[:B * G_], w_sum,
                                params["grasp"]).reshape(B, G_)
    np.testing.assert_allclose(np.asarray(grasp_score), np.asarray(ref_grasp),
                               rtol=2e-2, atol=2e-2)

    print("KERNEL_OK")
</pallas_src>

<mosaic_0001>
module attributes {stable_mosaic.version = 11 : i64} {
  func.func @mlp2_kernel(%arg0: i32, %arg1: memref<16x4xbf16, #tpu.memory_space<vmem>>, %arg2: memref<4x64xbf16, #tpu.memory_space<vmem>>, %arg3: memref<1x64xf32, #tpu.memory_space<vmem>>, %arg4: memref<64x128xbf16, #tpu.memory_space<vmem>>, %arg5: memref<1x128xf32, #tpu.memory_space<vmem>>, %arg6: memref<16x128xbf16, #tpu.memory_space<vmem>>) attributes {dimension_semantics = [#tpu.dimension_semantics<parallel>], iteration_bounds = array<i64: 1>, scalar_prefetch = 0 : i64, scratch_operands = 0 : i64, tpu.core_type = #tpu.core_type<tc>, window_params = [{transform_indices = @transform_0, window_bounds = array<i64: 16, 4>}, {pipeline_mode = #tpu.pipeline_mode<synchronous>, transform_indices = @transform_1, window_bounds = array<i64: 4, 64>}, {pipeline_mode = #tpu.pipeline_mode<synchronous>, transform_indices = @transform_2, window_bounds = array<i64: 1, 64>}, {pipeline_mode = #tpu.pipeline_mode<synchronous>, transform_indices = @transform_3, window_bounds = array<i64: 64, 128>}, {pipeline_mode = #tpu.pipeline_mode<synchronous>, transform_indices = @transform_4, window_bounds = array<i64: 1, 128>}, {transform_indices = @transform_5, window_bounds = array<i64: 16, 128>}]} {
    %c0 = arith.constant 0 : index
    %c0_0 = arith.constant 0 : index
    %0 = vector.load %arg1[%c0, %c0_0] : memref<16x4xbf16, #tpu.memory_space<vmem>>, vector<16x4xbf16>
    %c0_1 = arith.constant 0 : index
    %c0_2 = arith.constant 0 : index
    %1 = vector.load %arg2[%c0_1, %c0_2] : memref<4x64xbf16, #tpu.memory_space<vmem>>, vector<4x64xbf16>
    %c0_3 = arith.constant 0 : index
    %c0_4 = arith.constant 0 : index
    %2 = vector.load %arg3[%c0_3, %c0_4] : memref<1x64xf32, #tpu.memory_space<vmem>>, vector<1x64xf32>
    %cst = arith.constant dense<0.000000e+00> : vector<16x64xf32>
    %3 = tpu.matmul %0, %1, %cst {dimension_numbers = #tpu.dot_dimension_numbers<[1], [0], [0], [1], [0, 0, 1, 1], [], []>} : vector<16x4xbf16>, vector<4x64xbf16>, vector<16x64xf32> -> vector<16x64xf32>
    %4 = vector.broadcast %2 : vector<1x64xf32> to vector<16x64xf32>
    %5 = arith.addf %3, %4 : vector<16x64xf32>
    %cst_5 = arith.constant 0.000000e+00 : f32
    %6 = vector.broadcast %cst_5 : f32 to vector<16x64xf32>
    %7 = arith.maximumf %5, %6 : vector<16x64xf32>
    %8 = arith.truncf %7 : vector<16x64xf32> to vector<16x64xbf16>
    %c0_6 = arith.constant 0 : index
    %c0_7 = arith.constant 0 : index
    %9 = vector.load %arg4[%c0_6, %c0_7] : memref<64x128xbf16, #tpu.memory_space<vmem>>, vector<64x128xbf16>
    %c0_8 = arith.constant 0 : index
    %c0_9 = arith.constant 0 : index
    %10 = vector.load %arg5[%c0_8, %c0_9] : memref<1x128xf32, #tpu.memory_space<vmem>>, vector<1x128xf32>
    %cst_10 = arith.constant dense<0.000000e+00> : vector<16x128xf32>
    %11 = tpu.matmul %8, %9, %cst_10 {dimension_numbers = #tpu.dot_dimension_numbers<[1], [0], [0], [1], [0, 0, 1, 1], [], []>} : vector<16x64xbf16>, vector<64x128xbf16>, vector<16x128xf32> -> vector<16x128xf32>
    %12 = vector.broadcast %10 : vector<1x128xf32> to vector<16x128xf32>
    %13 = arith.addf %11, %12 : vector<16x128xf32>
    %cst_11 = arith.constant 0.000000e+00 : f32
    %14 = vector.broadcast %cst_11 : f32 to vector<16x128xf32>
    %15 = arith.maximumf %13, %14 : vector<16x128xf32>
    %16 = arith.truncf %15 : vector<16x128xf32> to vector<16x128xbf16>
    %c0_12 = arith.constant 0 : index
    %c0_13 = arith.constant 0 : index
    %17 = vector.load %arg6[%c0_12, %c0_13] : memref<16x128xbf16, #tpu.memory_space<vmem>>, vector<16x128xbf16>
    tpu.vector_store %arg6[%c0_12, %c0_13], %16 {strides = array<i32>} : memref<16x128xbf16, #tpu.memory_space<vmem>>, vector<16x128xbf16>,
    return
  }
  func.func @transform_0(%arg0: i32) -> (i32, i32) {
    %c0_i32 = arith.constant 0 : i32
    %c0_i32_0 = arith.constant 0 : i32
    return %arg0, %c0_i32 : i32, i32
  }
  func.func @transform_1(%arg0: i32) -> (i32, i32) {
    %c0_i32 = arith.constant 0 : i32
    %c0_i32_0 = arith.constant 0 : i32
    %c0_i32_1 = arith.constant 0 : i32
    return %c0_i32, %c0_i32_0 : i32, i32
  }
  func.func @transform_2(%arg0: i32) -> (i32, i32) {
    %c0_i32 = arith.constant 0 : i32
    %c0_i32_0 = arith.constant 0 : i32
    %c0_i32_1 = arith.constant 0 : i32
    return %c0_i32, %c0_i32_0 : i32, i32
  }
  func.func @transform_3(%arg0: i32) -> (i32, i32) {
    %c0_i32 = arith.constant 0 : i32
    %c0_i32_0 = arith.constant 0 : i32
    %c0_i32_1 = arith.constant 0 : i32
    return %c0_i32, %c0_i32_0 : i32, i32
  }
  func.func @transform_4(%arg0: i32) -> (i32, i32) {
    %c0_i32 = arith.constant 0 : i32
    %c0_i32_0 = arith.constant 0 : i32
    %c0_i32_1 = arith.constant 0 : i32
    return %c0_i32, %c0_i32_0 : i32, i32
  }
  func.func @transform_5(%arg0: i32) -> (i32, i32) {
    %c0_i32 = arith.constant 0 : i32
    %c0_i32_0 = arith.constant 0 : i32
    return %arg0, %c0_i32 : i32, i32
  }
}

module attributes {stable_mosaic.version = 11 : i64} {
  func.func @mlp2_kernel(%arg0: i32, %arg1: memref<64x3xbf16, #tpu.memory_space<vmem>>, %arg2: memref<3x64xbf16, #tpu.memory_space<vmem>>, %arg3: memref<1x64xf32, #tpu.memory_space<vmem>>, %arg4: memref<64x128xbf16, #tpu.memory_space<vmem>>, %arg5: memref<1x128xf32, #tpu.memory_space<vmem>>, %arg6: memref<64x128xbf16, #tpu.memory_space<vmem>>) attributes {dimension_semantics = [#tpu.dimension_semantics<parallel>], iteration_bounds = array<i64: 2>, scalar_prefetch = 0 : i64, scratch_operands = 0 : i64, tpu.core_type = #tpu.core_type<tc>, window_params = [{transform_indices = @transform_0, window_bounds = array<i64: 64, 3>}, {pipeline_mode = #tpu.pipeline_mode<synchronous>, transform_indices = @transform_1, window_bounds = array<i64: 3, 64>}, {pipeline_mode = #tpu.pipeline_mode<synchronous>, transform_indices = @transform_2, window_bounds = array<i64: 1, 64>}, {pipeline_mode = #tpu.pipeline_mode<synchronous>, transform_indices = @transform_3, window_bounds = array<i64: 64, 128>}, {pipeline_mode = #tpu.pipeline_mode<synchronous>, transform_indices = @transform_4, window_bounds = array<i64: 1, 128>}, {transform_indices = @transform_5, window_bounds = array<i64: 64, 128>}]} {
    %c0 = arith.constant 0 : index
    %c0_0 = arith.constant 0 : index
    %0 = vector.load %arg1[%c0, %c0_0] : memref<64x3xbf16, #tpu.memory_space<vmem>>, vector<64x3xbf16>
    %c0_1 = arith.constant 0 : index
    %c0_2 = arith.constant 0 : index
    %1 = vector.load %arg2[%c0_1, %c0_2] : memref<3x64xbf16, #tpu.memory_space<vmem>>, vector<3x64xbf16>
    %c0_3 = arith.constant 0 : index
    %c0_4 = arith.constant 0 : index
    %2 = vector.load %arg3[%c0_3, %c0_4] : memref<1x64xf32, #tpu.memory_space<vmem>>, vector<1x64xf32>
    %cst = arith.constant dense<0.000000e+00> : vector<64x64xf32>
    %3 = tpu.matmul %0, %1, %cst {dimension_numbers = #tpu.dot_dimension_numbers<[1], [0], [0], [1], [0, 0, 1, 1], [], []>} : vector<64x3xbf16>, vector<3x64xbf16>, vector<64x64xf32> -> vector<64x64xf32>
    %4 = vector.broadcast %2 : vector<1x64xf32> to vector<64x64xf32>
    %5 = arith.addf %3, %4 : vector<64x64xf32>
    %cst_5 = arith.constant 0.000000e+00 : f32
    %6 = vector.broadcast %cst_5 : f32 to vector<64x64xf32>
    %7 = arith.maximumf %5, %6 : vector<64x64xf32>
    %8 = arith.truncf %7 : vector<64x64xf32> to vector<64x64xbf16>
    %c0_6 = arith.constant 0 : index
    %c0_7 = arith.constant 0 : index
    %9 = vector.load %arg4[%c0_6, %c0_7] : memref<64x128xbf16, #tpu.memory_space<vmem>>, vector<64x128xbf16>
    %c0_8 = arith.constant 0 : index
    %c0_9 = arith.constant 0 : index
    %10 = vector.load %arg5[%c0_8, %c0_9] : memref<1x128xf32, #tpu.memory_space<vmem>>, vector<1x128xf32>
    %cst_10 = arith.constant dense<0.000000e+00> : vector<64x128xf32>
    %11 = tpu.matmul %8, %9, %cst_10 {dimension_numbers = #tpu.dot_dimension_numbers<[1], [0], [0], [1], [0, 0, 1, 1], [], []>} : vector<64x64xbf16>, vector<64x128xbf16>, vector<64x128xf32> -> vector<64x128xf32>
    %12 = vector.broadcast %10 : vector<1x128xf32> to vector<64x128xf32>
    %13 = arith.addf %11, %12 : vector<64x128xf32>
    %cst_11 = arith.constant 0.000000e+00 : f32
    %14 = vector.broadcast %cst_11 : f32 to vector<64x128xf32>
    %15 = arith.maximumf %13, %14 : vector<64x128xf32>
    %16 = arith.truncf %15 : vector<64x128xf32> to vector<64x128xbf16>
    %c0_12 = arith.constant 0 : index
    %c0_13 = arith.constant 0 : index
    %17 = vector.load %arg6[%c0_12, %c0_13] : memref<64x128xbf16, #tpu.memory_space<vmem>>, vector<64x128xbf16>
    tpu.vector_store %arg6[%c0_12, %c0_13], %16 {strides = array<i32>} : memref<64x128xbf16, #tpu.memory_space<vmem>>, vector<64x128xbf16>,
    return
  }
  func.func @transform_0(%arg0: i32) -> (i32, i32) {
    %c0_i32 = arith.constant 0 : i32
    %c0_i32_0 = arith.constant 0 : i32
    return %arg0, %c0_i32 : i32, i32
  }
  func.func @transform_1(%arg0: i32) -> (i32, i32) {
    %c0_i32 = arith.constant 0 : i32
    %c0_i32_0 = arith.constant 0 : i32
    %c0_i32_1 = arith.constant 0 : i32
    return %c0_i32, %c0_i32_0 : i32, i32
  }
  func.func @transform_2(%arg0: i32) -> (i32, i32) {
    %c0_i32 = arith.constant 0 : i32
    %c0_i32_0 = arith.constant 0 : i32
    %c0_i32_1 = arith.constant 0 : i32
    return %c0_i32, %c0_i32_0 : i32, i32
  }
  func.func @transform_3(%arg0: i32) -> (i32, i32) {
    %c0_i32 = arith.constant 0 : i32
    %c0_i32_0 = arith.constant 0 : i32
    %c0_i32_1 = arith.constant 0 : i32
    return %c0_i32, %c0_i32_0 : i32, i32
  }
  func.func @transform_4(%arg0: i32) -> (i32, i32) {
    %c0_i32 = arith.constant 0 : i32
    %c0_i32_0 = arith.constant 0 : i32
    %c0_i32_1 = arith.constant 0 : i32
    return %c0_i32, %c0_i32_0 : i32, i32
  }
  func.func @transform_5(%arg0: i32) -> (i32, i32) {
    %c0_i32 = arith.constant 0 : i32
    %c0_i32_0 = arith.constant 0 : i32
    return %arg0, %c0_i32 : i32, i32
  }
}

module attributes {stable_mosaic.version = 11 : i64} {
  func.func @grasp_head_kernel(%arg0: i32, %arg1: memref<16x2048xbf16, #tpu.memory_space<vmem>>, %arg2: memref<16x128xbf16, #tpu.memory_space<vmem>>, %arg3: memref<2048x128xbf16, #tpu.memory_space<vmem>>, %arg4: memref<1x128xf32, #tpu.memory_space<vmem>>, %arg5: memref<128x128xbf16, #tpu.memory_space<vmem>>, %arg6: memref<128x512xbf16, #tpu.memory_space<vmem>>, %arg7: memref<1x512xf32, #tpu.memory_space<vmem>>, %arg8: memref<512x256xbf16, #tpu.memory_space<vmem>>, %arg9: memref<1x256xf32, #tpu.memory_space<vmem>>, %arg10: memref<256x1xbf16, #tpu.memory_space<vmem>>, %arg11: memref<1x1xf32, #tpu.memory_space<vmem>>, %arg12: memref<16x1xf32, #tpu.memory_space<vmem>>) attributes {dimension_semantics = [#tpu.dimension_semantics<parallel>], iteration_bounds = array<i64: 1>, scalar_prefetch = 0 : i64, scratch_operands = 0 : i64, tpu.core_type = #tpu.core_type<tc>, window_params = [{transform_indices = @transform_0, window_bounds = array<i64: 16, 2048>}, {transform_indices = @transform_1, window_bounds = array<i64: 16, 128>}, {pipeline_mode = #tpu.pipeline_mode<synchronous>, transform_indices = @transform_2, window_bounds = array<i64: 2048, 128>}, {pipeline_mode = #tpu.pipeline_mode<synchronous>, transform_indices = @transform_3, window_bounds = array<i64: 1, 128>}, {pipeline_mode = #tpu.pipeline_mode<synchronous>, transform_indices = @transform_4, window_bounds = array<i64: 128, 128>}, {pipeline_mode = #tpu.pipeline_mode<synchronous>, transform_indices = @transform_5, window_bounds = array<i64: 128, 512>}, {pipeline_mode = #tpu.pipeline_mode<synchronous>, transform_indices = @transform_6, window_bounds = array<i64: 1, 512>}, {pipeline_mode = #tpu.pipeline_mode<synchronous>, transform_indices = @transform_7, window_bounds = array<i64: 512, 256>}, {pipeline_mode = #tpu.pipeline_mode<synchronous>, transform_indices = @transform_8, window_bounds = array<i64: 1, 256>}, {pipeline_mode = #tpu.pipeline_mode<synchronous>, transform_indices = @transform_9, window_bounds = array<i64: 256, 1>}, {pipeline_mode = #tpu.pipeline_mode<synchronous>, transform_indices = @transform_10, window_bounds = array<i64: 1, 1>}, {transform_indices = @transform_11, window_bounds = array<i64: 16, 1>}]} {
    %c0 = arith.constant 0 : index
    %c0_0 = arith.constant 0 : index
    %0 = vector.load %arg1[%c0, %c0_0] : memref<16x2048xbf16, #tpu.memory_space<vmem>>, vector<16x2048xbf16>
    %c0_1 = arith.constant 0 : index
    %c0_2 = arith.constant 0 : index
    %1 = vector.load %arg3[%c0_1, %c0_2] : memref<2048x128xbf16, #tpu.memory_space<vmem>>, vector<2048x128xbf16>
    %cst = arith.constant dense<0.000000e+00> : vector<16x128xf32>
    %2 = tpu.matmul %0, %1, %cst {dimension_numbers = #tpu.dot_dimension_numbers<[1], [0], [0], [1], [0, 0, 1, 1], [], []>} : vector<16x2048xbf16>, vector<2048x128xbf16>, vector<16x128xf32> -> vector<16x128xf32>
    %c0_3 = arith.constant 0 : index
    %c0_4 = arith.constant 0 : index
    %3 = vector.load %arg2[%c0_3, %c0_4] : memref<16x128xbf16, #tpu.memory_space<vmem>>, vector<16x128xbf16>
    %c0_5 = arith.constant 0 : index
    %c0_6 = arith.constant 0 : index
    %4 = vector.load %arg5[%c0_5, %c0_6] : memref<128x128xbf16, #tpu.memory_space<vmem>>, vector<128x128xbf16>
    %cst_7 = arith.constant dense<0.000000e+00> : vector<16x128xf32>
    %5 = tpu.matmul %3, %4, %cst_7 {dimension_numbers = #tpu.dot_dimension_numbers<[1], [0], [0], [1], [0, 0, 1, 1], [], []>} : vector<16x128xbf16>, vector<128x128xbf16>, vector<16x128xf32> -> vector<16x128xf32>
    %6 = arith.addf %2, %5 : vector<16x128xf32>
    %c0_8 = arith.constant 0 : index
    %c0_9 = arith.constant 0 : index
    %7 = vector.load %arg4[%c0_8, %c0_9] : memref<1x128xf32, #tpu.memory_space<vmem>>, vector<1x128xf32>
    %8 = vector.broadcast %7 : vector<1x128xf32> to vector<16x128xf32>
    %9 = arith.addf %6, %8 : vector<16x128xf32>
    %cst_10 = arith.constant 0.000000e+00 : f32
    %10 = vector.broadcast %cst_10 : f32 to vector<16x128xf32>
    %11 = arith.maximumf %9, %10 : vector<16x128xf32>
    %12 = arith.truncf %11 : vector<16x128xf32> to vector<16x128xbf16>
    %c0_11 = arith.constant 0 : index
    %c0_12 = arith.constant 0 : index
    %13 = vector.load %arg6[%c0_11, %c0_12] : memref<128x512xbf16, #tpu.memory_space<vmem>>, vector<128x512xbf16>
    %c0_13 = arith.constant 0 : index
    %c0_14 = arith.constant 0 : index
    %14 = vector.load %arg7[%c0_13, %c0_14] : memref<1x512xf32, #tpu.memory_space<vmem>>, vector<1x512xf32>
    %cst_15 = arith.constant dense<0.000000e+00> : vector<16x512xf32>
    %15 = tpu.matmul %12, %13, %cst_15 {dimension_numbers = #tpu.dot_dimension_numbers<[1], [0], [0], [1], [0, 0, 1, 1], [], []>} : vector<16x128xbf16>, vector<128x512xbf16>, vector<16x512xf32> -> vector<16x512xf32>
    %16 = vector.broadcast %14 : vector<1x512xf32> to vector<16x512xf32>
    %17 = arith.addf %15, %16 : vector<16x512xf32>
    %cst_16 = arith.constant 0.000000e+00 : f32
    %18 = vector.broadcast %cst_16 : f32 to vector<16x512xf32>
    %19 = arith.maximumf %17, %18 : vector<16x512xf32>
    %20 = arith.truncf %19 : vector<16x512xf32> to vector<16x512xbf16>
    %c0_17 = arith.constant 0 : index
    %c0_18 = arith.constant 0 : index
    %21 = vector.load %arg8[%c0_17, %c0_18] : memref<512x256xbf16, #tpu.memory_space<vmem>>, vector<512x256xbf16>
    %c0_19 = arith.constant 0 : index
    %c0_20 = arith.constant 0 : index
    %22 = vector.load %arg9[%c0_19, %c0_20] : memref<1x256xf32, #tpu.memory_space<vmem>>, vector<1x256xf32>
    %cst_21 = arith.constant dense<0.000000e+00> : vector<16x256xf32>
    %23 = tpu.matmul %20, %21, %cst_21 {dimension_numbers = #tpu.dot_dimension_numbers<[1], [0], [0], [1], [0, 0, 1, 1], [], []>} : vector<16x512xbf16>, vector<512x256xbf16>, vector<16x256xf32> -> vector<16x256xf32>
    %24 = vector.broadcast %22 : vector<1x256xf32> to vector<16x256xf32>
    %25 = arith.addf %23, %24 : vector<16x256xf32>
    %cst_22 = arith.constant 0.000000e+00 : f32
    %26 = vector.broadcast %cst_22 : f32 to vector<16x256xf32>
    %27 = arith.maximumf %25, %26 : vector<16x256xf32>
    %28 = arith.truncf %27 : vector<16x256xf32> to vector<16x256xbf16>
    %c0_23 = arith.constant 0 : index
    %c0_24 = arith.constant 0 : index
    %29 = vector.load %arg10[%c0_23, %c0_24] : memref<256x1xbf16, #tpu.memory_space<vmem>>, vector<256x1xbf16>
    %c0_25 = arith.constant 0 : index
    %c0_26 = arith.constant 0 : index
    %30 = vector.load %arg11[%c0_25, %c0_26] : memref<1x1xf32, #tpu.memory_space<vmem>>, vector<1x1xf32>
    %cst_27 = arith.constant dense<0.000000e+00> : vector<16x1xf32>
    %31 = tpu.matmul %28, %29, %cst_27 {dimension_numbers = #tpu.dot_dimension_numbers<[1], [0], [0], [1], [0, 0, 1, 1], [], []>} : vector<16x256xbf16>, vector<256x1xbf16>, vector<16x1xf32> -> vector<16x1xf32>
    %32 = vector.broadcast %30 : vector<1x1xf32> to vector<16x1xf32>
    %33 = arith.addf %31, %32 : vector<16x1xf32>
    %34 = arith.negf %33 : vector<16x1xf32>
    %35 = math.exp %34 : vector<16x1xf32>
    %cst_28 = arith.constant 1.000000e+00 : f32
    %36 = vector.broadcast %cst_28 : f32 to vector<16x1xf32>
    %37 = arith.addf %36, %35 : vector<16x1xf32>
    %38 = arith.divf %36, %37 : vector<16x1xf32>
    %c0_29 = arith.constant 0 : index
    %c0_30 = arith.constant 0 : index
    %39 = vector.load %arg12[%c0_29, %c0_30] : memref<16x1xf32, #tpu.memory_space<vmem>>, vector<16x1xf32>
    tpu.vector_store %arg12[%c0_29, %c0_30], %38 {strides = array<i32>} : memref<16x1xf32, #tpu.memory_space<vmem>>, vector<16x1xf32>,
    return
  }
  func.func @transform_0(%arg0: i32) -> (i32, i32) {
    %c0_i32 = arith.constant 0 : i32
    %c0_i32_0 = arith.constant 0 : i32
    return %arg0, %c0_i32 : i32, i32
  }
  func.func @transform_1(%arg0: i32) -> (i32, i32) {
    %c0_i32 = arith.constant 0 : i32
    %c0_i32_0 = arith.constant 0 : i32
    return %arg0, %c0_i32 : i32, i32
  }
  func.func @transform_2(%arg0: i32) -> (i32, i32) {
    %c0_i32 = arith.constant 0 : i32
    %c0_i32_0 = arith.constant 0 : i32
    %c0_i32_1 = arith.constant 0 : i32
    return %c0_i32, %c0_i32_0 : i32, i32
  }
  func.func @transform_3(%arg0: i32) -> (i32, i32) {
    %c0_i32 = arith.constant 0 : i32
    %c0_i32_0 = arith.constant 0 : i32
    %c0_i32_1 = arith.constant 0 : i32
    return %c0_i32, %c0_i32_0 : i32, i32
  }
  func.func @transform_4(%arg0: i32) -> (i32, i32) {
    %c0_i32 = arith.constant 0 : i32
    %c0_i32_0 = arith.constant 0 : i32
    %c0_i32_1 = arith.constant 0 : i32
    return %c0_i32, %c0_i32_0 : i32, i32
  }
  func.func @transform_5(%arg0: i32) -> (i32, i32) {
    %c0_i32 = arith.constant 0 : i32
    %c0_i32_0 = arith.constant 0 : i32
    %c0_i32_1 = arith.constant 0 : i32
    return %c0_i32, %c0_i32_0 : i32, i32
  }
  func.func @transform_6(%arg0: i32) -> (i32, i32) {
    %c0_i32 = arith.constant 0 : i32
    %c0_i32_0 = arith.constant 0 : i32
    %c0_i32_1 = arith.constant 0 : i32
    return %c0_i32, %c0_i32_0 : i32, i32
  }
  func.func @transform_7(%arg0: i32) -> (i32, i32) {
    %c0_i32 = arith.constant 0 : i32
    %c0_i32_0 = arith.constant 0 : i32
    %c0_i32_1 = arith.constant 0 : i32
    return %c0_i32, %c0_i32_0 : i32, i32
  }
  func.func @transform_8(%arg0: i32) -> (i32, i32) {
    %c0_i32 = arith.constant 0 : i32
    %c0_i32_0 = arith.constant 0 : i32
    %c0_i32_1 = arith.constant 0 : i32
    return %c0_i32, %c0_i32_0 : i32, i32
  }
  func.func @transform_9(%arg0: i32) -> (i32, i32) {
    %c0_i32 = arith.constant 0 : i32
    %c0_i32_0 = arith.constant 0 : i32
    %c0_i32_1 = arith.constant 0 : i32
    return %c0_i32, %c0_i32_0 : i32, i32
  }
  func.func @transform_10(%arg0: i32) -> (i32, i32) {
    %c0_i32 = arith.constant 0 : i32
    %c0_i32_0 = arith.constant 0 : i32
    %c0_i32_1 = arith.constant 0 : i32
    return %c0_i32, %c0_i32_0 : i32, i32
  }
  func.func @transform_11(%arg0: i32) -> (i32, i32) {
    %c0_i32 = arith.constant 0 : i32
    %c0_i32_0 = arith.constant 0 : i32
    return %arg0, %c0_i32 : i32, i32
  }
}

module attributes {stable_mosaic.version = 11 : i64} {
  func.func @fused_ap_pose_kernel(%arg0: i32, %arg1: memref<16x2048xbf16, #tpu.memory_space<vmem>>, %arg2: memref<2048x256xbf16, #tpu.memory_space<vmem>>, %arg3: memref<1x256xf32, #tpu.memory_space<vmem>>, %arg4: memref<128x512xbf16, #tpu.memory_space<vmem>>, %arg5: memref<1x512xf32, #tpu.memory_space<vmem>>, %arg6: memref<512x256xbf16, #tpu.memory_space<vmem>>, %arg7: memref<1x256xf32, #tpu.memory_space<vmem>>, %arg8: memref<256x1xbf16, #tpu.memory_space<vmem>>, %arg9: memref<1x1xf32, #tpu.memory_space<vmem>>, %arg10: memref<128x512xbf16, #tpu.memory_space<vmem>>, %arg11: memref<1x512xf32, #tpu.memory_space<vmem>>, %arg12: memref<512x512xbf16, #tpu.memory_space<vmem>>, %arg13: memref<1x512xf32, #tpu.memory_space<vmem>>, %arg14: memref<512x4xbf16, #tpu.memory_space<vmem>>, %arg15: memref<1x4xf32, #tpu.memory_space<vmem>>, %arg16: memref<16x1xf32, #tpu.memory_space<vmem>>, %arg17: memref<16x4xf32, #tpu.memory_space<vmem>>) attributes {dimension_semantics = [#tpu.dimension_semantics<parallel>], iteration_bounds = array<i64: 1>, scalar_prefetch = 0 : i64, scratch_operands = 0 : i64, tpu.core_type = #tpu.core_type<tc>, window_params = [{transform_indices = @transform_0, window_bounds = array<i64: 16, 2048>}, {pipeline_mode = #tpu.pipeline_mode<synchronous>, transform_indices = @transform_1, window_bounds = array<i64: 2048, 256>}, {pipeline_mode = #tpu.pipeline_mode<synchronous>, transform_indices = @transform_2, window_bounds = array<i64: 1, 256>}, {pipeline_mode = #tpu.pipeline_mode<synchronous>, transform_indices = @transform_3, window_bounds = array<i64: 128, 512>}, {pipeline_mode = #tpu.pipeline_mode<synchronous>, transform_indices = @transform_4, window_bounds = array<i64: 1, 512>}, {pipeline_mode = #tpu.pipeline_mode<synchronous>, transform_indices = @transform_5, window_bounds = array<i64: 512, 256>}, {pipeline_mode = #tpu.pipeline_mode<synchronous>, transform_indices = @transform_6, window_bounds = array<i64: 1, 256>}, {pipeline_mode = #tpu.pipeline_mode<synchronous>, transform_indices = @transform_7, window_bounds = array<i64: 256, 1>}, {pipeline_mode = #tpu.pipeline_mode<synchronous>, transform_indices = @transform_8, window_bounds = array<i64: 1, 1>}, {pipeline_mode = #tpu.pipeline_mode<synchronous>, transform_indices = @transform_9, window_bounds = array<i64: 128, 512>}, {pipeline_mode = #tpu.pipeline_mode<synchronous>, transform_indices = @transform_10, window_bounds = array<i64: 1, 512>}, {pipeline_mode = #tpu.pipeline_mode<synchronous>, transform_indices = @transform_11, window_bounds = array<i64: 512, 512>}, {pipeline_mode = #tpu.pipeline_mode<synchronous>, transform_indices = @transform_12, window_bounds = array<i64: 1, 512>}, {pipeline_mode = #tpu.pipeline_mode<synchronous>, transform_indices = @transform_13, window_bounds = array<i64: 512, 4>}, {pipeline_mode = #tpu.pipeline_mode<synchronous>, transform_indices = @transform_14, window_bounds = array<i64: 1, 4>}, {transform_indices = @transform_15, window_bounds = array<i64: 16, 1>}, {transform_indices = @transform_16, window_bounds = array<i64: 16, 4>}]} {
    %c16_i32 = arith.constant 16 : i32
    %0 = arith.muli %arg0, %c16_i32 : i32
    %c8_i32 = arith.constant 8 : i32
    %1 = arith.cmpi slt, %0, %c8_i32 : i32
    %2 = arith.extui %1 : i1 to i32
    %c0_i32 = arith.constant 0 : i32
    %3 = arith.cmpi ne, %2, %c0_i32 : i32
    scf.if %3 {
      %c0 = arith.constant 0 : index
      %c0_2 = arith.constant 0 : index
      %7 = vector.load %arg1[%c0, %c0_2] : memref<16x2048xbf16, #tpu.memory_space<vmem>>, vector<16x2048xbf16>
      %c0_3 = arith.constant 0 : index
      %c0_4 = arith.constant 0 : index
      %8 = vector.load %arg2[%c0_3, %c0_4] : memref<2048x256xbf16, #tpu.memory_space<vmem>>, vector<2048x256xbf16>
      %cst = arith.constant dense<0.000000e+00> : vector<16x256xf32>
      %9 = tpu.matmul %7, %8, %cst {dimension_numbers = #tpu.dot_dimension_numbers<[1], [0], [0], [1], [0, 0, 1, 1], [], []>} : vector<16x2048xbf16>, vector<2048x256xbf16>, vector<16x256xf32> -> vector<16x256xf32>
      %c0_5 = arith.constant 0 : index
      %c0_6 = arith.constant 0 : index
      %10 = vector.load %arg3[%c0_5, %c0_6] : memref<1x256xf32, #tpu.memory_space<vmem>>, vector<1x256xf32>
      %11 = vector.broadcast %10 : vector<1x256xf32> to vector<16x256xf32>
      %12 = arith.addf %9, %11 : vector<16x256xf32>
      %cst_7 = arith.constant 0.000000e+00 : f32
      %13 = vector.broadcast %cst_7 : f32 to vector<16x256xf32>
      %14 = arith.maximumf %12, %13 : vector<16x256xf32>
      %15 = arith.truncf %14 : vector<16x256xf32> to vector<16x256xbf16>
      %16 = vector.extract_strided_slice %15 {offsets = [0, 0], sizes = [16, 128], strides = [1, 1]} : vector<16x256xbf16> to vector<16x128xbf16>
      %c0_8 = arith.constant 0 : index
      %c0_9 = arith.constant 0 : index
      %17 = vector.load %arg4[%c0_8, %c0_9] : memref<128x512xbf16, #tpu.memory_space<vmem>>, vector<128x512xbf16>
      %c0_10 = arith.constant 0 : index
      %c0_11 = arith.constant 0 : index
      %18 = vector.load %arg5[%c0_10, %c0_11] : memref<1x512xf32, #tpu.memory_space<vmem>>, vector<1x512xf32>
      %cst_12 = arith.constant dense<0.000000e+00> : vector<16x512xf32>
      %19 = tpu.matmul %16, %17, %cst_12 {dimension_numbers = #tpu.dot_dimension_numbers<[1], [0], [0], [1], [0, 0, 1, 1], [], []>} : vector<16x128xbf16>, vector<128x512xbf16>, vector<16x512xf32> -> vector<16x512xf32>
      %20 = vector.broadcast %18 : vector<1x512xf32> to vector<16x512xf32>
      %21 = arith.addf %19, %20 : vector<16x512xf32>
      %cst_13 = arith.constant 0.000000e+00 : f32
      %22 = vector.broadcast %cst_13 : f32 to vector<16x512xf32>
      %23 = arith.maximumf %21, %22 : vector<16x512xf32>
      %24 = arith.truncf %23 : vector<16x512xf32> to vector<16x512xbf16>
      %c0_14 = arith.constant 0 : index
      %c0_15 = arith.constant 0 : index
      %25 = vector.load %arg6[%c0_14, %c0_15] : memref<512x256xbf16, #tpu.memory_space<vmem>>, vector<512x256xbf16>
      %c0_16 = arith.constant 0 : index
      %c0_17 = arith.constant 0 : index
      %26 = vector.load %arg7[%c0_16, %c0_17] : memref<1x256xf32, #tpu.memory_space<vmem>>, vector<1x256xf32>
      %cst_18 = arith.constant dense<0.000000e+00> : vector<16x256xf32>
      %27 = tpu.matmul %24, %25, %cst_18 {dimension_numbers = #tpu.dot_dimension_numbers<[1], [0], [0], [1], [0, 0, 1, 1], [], []>} : vector<16x512xbf16>, vector<512x256xbf16>, vector<16x256xf32> -> vector<16x256xf32>
      %28 = vector.broadcast %26 : vector<1x256xf32> to vector<16x256xf32>
      %29 = arith.addf %27, %28 : vector<16x256xf32>
      %cst_19 = arith.constant 0.000000e+00 : f32
      %30 = vector.broadcast %cst_19 : f32 to vector<16x256xf32>
      %31 = arith.maximumf %29, %30 : vector<16x256xf32>
      %32 = arith.truncf %31 : vector<16x256xf32> to vector<16x256xbf16>
      %c0_20 = arith.constant 0 : index
      %c0_21 = arith.constant 0 : index
      %33 = vector.load %arg8[%c0_20, %c0_21] : memref<256x1xbf16, #tpu.memory_space<vmem>>, vector<256x1xbf16>
      %c0_22 = arith.constant 0 : index
      %c0_23 = arith.constant 0 : index
      %34 = vector.load %arg9[%c0_22, %c0_23] : memref<1x1xf32, #tpu.memory_space<vmem>>, vector<1x1xf32>
      %cst_24 = arith.constant dense<0.000000e+00> : vector<16x1xf32>
      %35 = tpu.matmul %32, %33, %cst_24 {dimension_numbers = #tpu.dot_dimension_numbers<[1], [0], [0], [1], [0, 0, 1, 1], [], []>} : vector<16x256xbf16>, vector<256x1xbf16>, vector<16x1xf32> -> vector<16x1xf32>
      %36 = vector.broadcast %34 : vector<1x1xf32> to vector<16x1xf32>
      %37 = arith.addf %35, %36 : vector<16x1xf32>
      %38 = arith.negf %37 : vector<16x1xf32>
      %39 = math.exp %38 : vector<16x1xf32>
      %cst_25 = arith.constant 1.000000e+00 : f32
      %40 = vector.broadcast %cst_25 : f32 to vector<16x1xf32>
      %41 = arith.addf %40, %39 : vector<16x1xf32>
      %42 = arith.divf %40, %41 : vector<16x1xf32>
      %c0_26 = arith.constant 0 : index
      %c0_27 = arith.constant 0 : index
      %43 = vector.load %arg16[%c0_26, %c0_27] : memref<16x1xf32, #tpu.memory_space<vmem>>, vector<16x1xf32>
      tpu.vector_store %arg16[%c0_26, %c0_27], %42 {strides = array<i32>} : memref<16x1xf32, #tpu.memory_space<vmem>>, vector<16x1xf32>,
      %44 = vector.extract_strided_slice %15 {offsets = [0, 128], sizes = [16, 128], strides = [1, 1]} : vector<16x256xbf16> to vector<16x128xbf16>
      %c0_28 = arith.constant 0 : index
      %c0_29 = arith.constant 0 : index
      %45 = vector.load %arg10[%c0_28, %c0_29] : memref<128x512xbf16, #tpu.memory_space<vmem>>, vector<128x512xbf16>
      %c0_30 = arith.constant 0 : index
      %c0_31 = arith.constant 0 : index
      %46 = vector.load %arg11[%c0_30, %c0_31] : memref<1x512xf32, #tpu.memory_space<vmem>>, vector<1x512xf32>
      %cst_32 = arith.constant dense<0.000000e+00> : vector<16x512xf32>
      %47 = tpu.matmul %44, %45, %cst_32 {dimension_numbers = #tpu.dot_dimension_numbers<[1], [0], [0], [1], [0, 0, 1, 1], [], []>} : vector<16x128xbf16>, vector<128x512xbf16>, vector<16x512xf32> -> vector<16x512xf32>
      %48 = vector.broadcast %46 : vector<1x512xf32> to vector<16x512xf32>
      %49 = arith.addf %47, %48 : vector<16x512xf32>
      %cst_33 = arith.constant 0.000000e+00 : f32
      %50 = vector.broadcast %cst_33 : f32 to vector<16x512xf32>
      %51 = arith.maximumf %49, %50 : vector<16x512xf32>
      %52 = arith.truncf %51 : vector<16x512xf32> to vector<16x512xbf16>
      %c0_34 = arith.constant 0 : index
      %c0_35 = arith.constant 0 : index
      %53 = vector.load %arg12[%c0_34, %c0_35] : memref<512x512xbf16, #tpu.memory_space<vmem>>, vector<512x512xbf16>
      %c0_36 = arith.constant 0 : index
      %c0_37 = arith.constant 0 : index
      %54 = vector.load %arg13[%c0_36, %c0_37] : memref<1x512xf32, #tpu.memory_space<vmem>>, vector<1x512xf32>
      %cst_38 = arith.constant dense<0.000000e+00> : vector<16x512xf32>
      %55 = tpu.matmul %52, %53, %cst_38 {dimension_numbers = #tpu.dot_dimension_numbers<[1], [0], [0], [1], [0, 0, 1, 1], [], []>} : vector<16x512xbf16>, vector<512x512xbf16>, vector<16x512xf32> -> vector<16x512xf32>
      %56 = vector.broadcast %54 : vector<1x512xf32> to vector<16x512xf32>
      %57 = arith.addf %55, %56 : vector<16x512xf32>
      %cst_39 = arith.constant 0.000000e+00 : f32
      %58 = vector.broadcast %cst_39 : f32 to vector<16x512xf32>
      %59 = arith.maximumf %57, %58 : vector<16x512xf32>
      %60 = arith.truncf %59 : vector<16x512xf32> to vector<16x512xbf16>
      %c0_40 = arith.constant 0 : index
      %c0_41 = arith.constant 0 : index
      %61 = vector.load %arg14[%c0_40, %c0_41] : memref<512x4xbf16, #tpu.memory_space<vmem>>, vector<512x4xbf16>
      %c0_42 = arith.constant 0 : index
      %c0_43 = arith.constant 0 : index
      %62 = vector.load %arg15[%c0_42, %c0_43] : memref<1x4xf32, #tpu.memory_space<vmem>>, vector<1x4xf32>
      %cst_44 = arith.constant dense<0.000000e+00> : vector<16x4xf32>
      %63 = tpu.matmul %60, %61, %cst_44 {dimension_numbers = #tpu.dot_dimension_numbers<[1], [0], [0], [1], [0, 0, 1, 1], [], []>} : vector<16x512xbf16>, vector<512x4xbf16>, vector<16x4xf32> -> vector<16x4xf32>
      %64 = vector.broadcast %62 : vector<1x4xf32> to vector<16x4xf32>
      %65 = arith.addf %63, %64 : vector<16x4xf32>
      %c0_45 = arith.constant 0 : index
      %c0_46 = arith.constant 0 : index
      %66 = vector.load %arg17[%c0_45, %c0_46] : memref<16x4xf32, #tpu.memory_space<vmem>>, vector<16x4xf32>
      tpu.vector_store %arg17[%c0_45, %c0_46], %65 {strides = array<i32>} : memref<16x4xf32, #tpu.memory_space<vmem>>, vector<16x4xf32>,
    } else {
    }
    %c8_i32_0 = arith.constant 8 : i32
    %4 = arith.cmpi sge, %0, %c8_i32_0 : i32
    %5 = arith.extui %4 : i1 to i32
    %c0_i32_1 = arith.constant 0 : i32
    %6 = arith.cmpi ne, %5, %c0_i32_1 : i32
    scf.if %6 {
      %c0 = arith.constant 0 : index
      %c0_2 = arith.constant 0 : index
      %7 = vector.load %arg1[%c0, %c0_2] : memref<16x2048xbf16, #tpu.memory_space<vmem>>, vector<16x2048xbf16>
      %c0_3 = arith.constant 0 : index
      %c0_4 = arith.constant 0 : index
      %8 = vector.load %arg2[%c0_3, %c0_4] : memref<2048x256xbf16, #tpu.memory_space<vmem>>, vector<2048x128xbf16>
      %cst = arith.constant dense<0.000000e+00> : vector<16x128xf32>
      %9 = tpu.matmul %7, %8, %cst {dimension_numbers = #tpu.dot_dimension_numbers<[1], [0], [0], [1], [0, 0, 1, 1], [], []>} : vector<16x2048xbf16>, vector<2048x128xbf16>, vector<16x128xf32> -> vector<16x128xf32>
      %c0_5 = arith.constant 0 : index
      %c0_6 = arith.constant 0 : index
      %10 = vector.load %arg3[%c0_5, %c0_6] : memref<1x256xf32, #tpu.memory_space<vmem>>, vector<1x128xf32>
      %11 = vector.broadcast %10 : vector<1x128xf32> to vector<16x128xf32>
      %12 = arith.addf %9, %11 : vector<16x128xf32>
      %cst_7 = arith.constant 0.000000e+00 : f32
      %13 = vector.broadcast %cst_7 : f32 to vector<16x128xf32>
      %14 = arith.maximumf %12, %13 : vector<16x128xf32>
      %15 = arith.truncf %14 : vector<16x128xf32> to vector<16x128xbf16>
      %c0_8 = arith.constant 0 : index
      %c0_9 = arith.constant 0 : index
      %16 = vector.load %arg4[%c0_8, %c0_9] : memref<128x512xbf16, #tpu.memory_space<vmem>>, vector<128x512xbf16>
      %c0_10 = arith.constant 0 : index
      %c0_11 = arith.constant 0 : index
      %17 = vector.load %arg5[%c0_10, %c0_11] : memref<1x512xf32, #tpu.memory_space<vmem>>, vector<1x512xf32>
      %cst_12 = arith.constant dense<0.000000e+00> : vector<16x512xf32>
      %18 = tpu.matmul %15, %16, %cst_12 {dimension_numbers = #tpu.dot_dimension_numbers<[1], [0], [0], [1], [0, 0, 1, 1], [], []>} : vector<16x128xbf16>, vector<128x512xbf16>, vector<16x512xf32> -> vector<16x512xf32>
      %19 = vector.broadcast %17 : vector<1x512xf32> to vector<16x512xf32>
      %20 = arith.addf %18, %19 : vector<16x512xf32>
      %cst_13 = arith.constant 0.000000e+00 : f32
      %21 = vector.broadcast %cst_13 : f32 to vector<16x512xf32>
      %22 = arith.maximumf %20, %21 : vector<16x512xf32>
      %23 = arith.truncf %22 : vector<16x512xf32> to vector<16x512xbf16>
      %c0_14 = arith.constant 0 : index
      %c0_15 = arith.constant 0 : index
      %24 = vector.load %arg6[%c0_14, %c0_15] : memref<512x256xbf16, #tpu.memory_space<vmem>>, vector<512x256xbf16>
      %c0_16 = arith.constant 0 : index
      %c0_17 = arith.constant 0 : index
      %25 = vector.load %arg7[%c0_16, %c0_17] : memref<1x256xf32, #tpu.memory_space<vmem>>, vector<1x256xf32>
      %cst_18 = arith.constant dense<0.000000e+00> : vector<16x256xf32>
      %26 = tpu.matmul %23, %24, %cst_18 {dimension_numbers = #tpu.dot_dimension_numbers<[1], [0], [0], [1], [0, 0, 1, 1], [], []>} : vector<16x512xbf16>, vector<512x256xbf16>, vector<16x256xf32> -> vector<16x256xf32>
      %27 = vector.broadcast %25 : vector<1x256xf32> to vector<16x256xf32>
      %28 = arith.addf %26, %27 : vector<16x256xf32>
      %cst_19 = arith.constant 0.000000e+00 : f32
      %29 = vector.broadcast %cst_19 : f32 to vector<16x256xf32>
      %30 = arith.maximumf %28, %29 : vector<16x256xf32>
      %31 = arith.truncf %30 : vector<16x256xf32> to vector<16x256xbf16>
      %c0_20 = arith.constant 0 : index
      %c0_21 = arith.constant 0 : index
      %32 = vector.load %arg8[%c0_20, %c0_21] : memref<256x1xbf16, #tpu.memory_space<vmem>>, vector<256x1xbf16>
      %c0_22 = arith.constant 0 : index
      %c0_23 = arith.constant 0 : index
      %33 = vector.load %arg9[%c0_22, %c0_23] : memref<1x1xf32, #tpu.memory_space<vmem>>, vector<1x1xf32>
      %cst_24 = arith.constant dense<0.000000e+00> : vector<16x1xf32>
      %34 = tpu.matmul %31, %32, %cst_24 {dimension_numbers = #tpu.dot_dimension_numbers<[1], [0], [0], [1], [0, 0, 1, 1], [], []>} : vector<16x256xbf16>, vector<256x1xbf16>, vector<16x1xf32> -> vector<16x1xf32>
      %35 = vector.broadcast %33 : vector<1x1xf32> to vector<16x1xf32>
      %36 = arith.addf %34, %35 : vector<16x1xf32>
      %37 = arith.negf %36 : vector<16x1xf32>
      %38 = math.exp %37 : vector<16x1xf32>
      %cst_25 = arith.constant 1.000000e+00 : f32
      %39 = vector.broadcast %cst_25 : f32 to vector<16x1xf32>
      %40 = arith.addf %39, %38 : vector<16x1xf32>
      %41 = arith.divf %39, %40 : vector<16x1xf32>
      %c0_26 = arith.constant 0 : index
      %c0_27 = arith.constant 0 : index
      %42 = vector.load %arg16[%c0_26, %c0_27] : memref<16x1xf32, #tpu.memory_space<vmem>>, vector<16x1xf32>
      tpu.vector_store %arg16[%c0_26, %c0_27], %41 {strides = array<i32>} : memref<16x1xf32, #tpu.memory_space<vmem>>, vector<16x1xf32>,
    } else {
    }
    return
  }
  func.func @transform_0(%arg0: i32) -> (i32, i32) {
    %c0_i32 = arith.constant 0 : i32
    %c0_i32_0 = arith.constant 0 : i32
    return %arg0, %c0_i32 : i32, i32
  }
  func.func @transform_1(%arg0: i32) -> (i32, i32) {
    %c0_i32 = arith.constant 0 : i32
    %c0_i32_0 = arith.constant 0 : i32
    %c0_i32_1 = arith.constant 0 : i32
    return %c0_i32, %c0_i32_0 : i32, i32
  }
  func.func @transform_2(%arg0: i32) -> (i32, i32) {
    %c0_i32 = arith.constant 0 : i32
    %c0_i32_0 = arith.constant 0 : i32
    %c0_i32_1 = arith.constant 0 : i32
    return %c0_i32, %c0_i32_0 : i32, i32
  }
  func.func @transform_3(%arg0: i32) -> (i32, i32) {
    %c0_i32 = arith.constant 0 : i32
    %c0_i32_0 = arith.constant 0 : i32
    %c0_i32_1 = arith.constant 0 : i32
    return %c0_i32, %c0_i32_0 : i32, i32
  }
  func.func @transform_4(%arg0: i32) -> (i32, i32) {
    %c0_i32 = arith.constant 0 : i32
    %c0_i32_0 = arith.constant 0 : i32
    %c0_i32_1 = arith.constant 0 : i32
    return %c0_i32, %c0_i32_0 : i32, i32
  }
  func.func @transform_5(%arg0: i32) -> (i32, i32) {
    %c0_i32 = arith.constant 0 : i32
    %c0_i32_0 = arith.constant 0 : i32
    %c0_i32_1 = arith.constant 0 : i32
    return %c0_i32, %c0_i32_0 : i32, i32
  }
  func.func @transform_6(%arg0: i32) -> (i32, i32) {
    %c0_i32 = arith.constant 0 : i32
    %c0_i32_0 = arith.constant 0 : i32
    %c0_i32_1 = arith.constant 0 : i32
    return %c0_i32, %c0_i32_0 : i32, i32
  }
  func.func @transform_7(%arg0: i32) -> (i32, i32) {
    %c0_i32 = arith.constant 0 : i32
    %c0_i32_0 = arith.constant 0 : i32
    %c0_i32_1 = arith.constant 0 : i32
    return %c0_i32, %c0_i32_0 : i32, i32
  }
  func.func @transform_8(%arg0: i32) -> (i32, i32) {
    %c0_i32 = arith.constant 0 : i32
    %c0_i32_0 = arith.constant 0 : i32
    %c0_i32_1 = arith.constant 0 : i32
    return %c0_i32, %c0_i32_0 : i32, i32
  }
  func.func @transform_9(%arg0: i32) -> (i32, i32) {
    %c0_i32 = arith.constant 0 : i32
    %c0_i32_0 = arith.constant 0 : i32
    %c0_i32_1 = arith.constant 0 : i32
    return %c0_i32, %c0_i32_0 : i32, i32
  }
  func.func @transform_10(%arg0: i32) -> (i32, i32) {
    %c0_i32 = arith.constant 0 : i32
    %c0_i32_0 = arith.constant 0 : i32
    %c0_i32_1 = arith.constant 0 : i32
    return %c0_i32, %c0_i32_0 : i32, i32
  }
  func.func @transform_11(%arg0: i32) -> (i32, i32) {
    %c0_i32 = arith.constant 0 : i32
    %c0_i32_0 = arith.constant 0 : i32
    %c0_i32_1 = arith.constant 0 : i32
    return %c0_i32, %c0_i32_0 : i32, i32
  }
  func.func @transform_12(%arg0: i32) -> (i32, i32) {
    %c0_i32 = arith.constant 0 : i32
    %c0_i32_0 = arith.constant 0 : i32
    %c0_i32_1 = arith.constant 0 : i32
    return %c0_i32, %c0_i32_0 : i32, i32
  }
  func.func @transform_13(%arg0: i32) -> (i32, i32) {
    %c0_i32 = arith.constant 0 : i32
    %c0_i32_0 = arith.constant 0 : i32
    %c0_i32_1 = arith.constant 0 : i32
    return %c0_i32, %c0_i32_0 : i32, i32
  }
  func.func @transform_14(%arg0: i32) -> (i32, i32) {
    %c0_i32 = arith.constant 0 : i32
    %c0_i32_0 = arith.constant 0 : i32
    %c0_i32_1 = arith.constant 0 : i32
    return %c0_i32, %c0_i32_0 : i32, i32
  }
  func.func @transform_15(%arg0: i32) -> (i32, i32) {
    %c0_i32 = arith.constant 0 : i32
    %c0_i32_0 = arith.constant 0 : i32
    return %arg0, %c0_i32 : i32, i32
  }
  func.func @transform_16(%arg0: i32) -> (i32, i32) {
    %c0_i32 = arith.constant 0 : i32
    %c0_i32_0 = arith.constant 0 : i32
    return %arg0, %c0_i32 : i32, i32
  }
}

</mosaic_0001>

<llo_original>
// kernel: grasp_pose_net_forward.5
$region0: #{grasp_pose_net_forward.5}
  #allocation0 [shape = 'u32[]', space=smem, size = 0x4, offset = 0x4, fixed_abs, tag = 'smem constant byte address 0x4 - core index']
  #allocation1 [shape = 'u32[144,128]{1,0:T(1,128)}', space=vmem, size = 0x12000, scoped, tag = 'internal scratch']
  %s0 = inlined_call_operand.vmem [shape: bf16[16,4], index: 0, kind: input, shape index: {}]
  %s1 = inlined_call_operand.vmem [shape: bf16[4,64], index: 1, kind: input, shape index: {}]
  %s2 = inlined_call_operand.vmem [shape: f32[1,64], index: 2, kind: input, shape index: {}]
  %s3 = inlined_call_operand.vmem [shape: bf16[64,128], index: 3, kind: input, shape index: {}]
  %s4 = inlined_call_operand.vmem [shape: f32[1,128], index: 4, kind: input, shape index: {}]
  %s5 = inlined_call_operand.vmem [shape: bf16[16,128], index: 5, kind: output, shape index: {}]
  %s6 = sld [smem:[#allocation0]]
  $region30: #{grasp_pose_net_forward.5} parent=0
    _
  %s8 = ssub.s32 1, %s6
  %s9 = scalar_select 0, %s8, %s6
  // Predicated region
  $region2: #{grasp_pose_net_forward.5} parent=0 // pred_check
    _
  $region3: #{grasp_pose_net_forward.5} parent=0 // pred_check_branch
    %11 = sbr.rel (0) target = $region5
  $region4: #{grasp_pose_net_forward.5} parent=0 // pred_region
    _
  $region5: #{grasp_pose_net_forward.5} parent=0 // pred_fallthru
    _
  // Predicated region
  $region6: #{grasp_pose_net_forward.5} parent=0 // pred_check
    _
  $region7: #{grasp_pose_net_forward.5} parent=0 // pred_check_branch
    %13 = sbr.rel (0) target = $region9
  $region8: #{grasp_pose_net_forward.5} parent=0 // pred_region
    _
  $region9: #{grasp_pose_net_forward.5} parent=0 // pred_fallthru
    _
  // Predicated region
  $region10: #{grasp_pose_net_forward.5} parent=0 // pred_check
    _
  $region11: #{grasp_pose_net_forward.5} parent=0 // pred_check_branch
    %15 = sbr.rel (0) target = $region13
  $region12: #{grasp_pose_net_forward.5} parent=0 // pred_region
    _
  $region13: #{grasp_pose_net_forward.5} parent=0 // pred_fallthru
    _
  // Predicated region
  $region14: #{grasp_pose_net_forward.5} parent=0 // pred_check
    _
  $region15: #{grasp_pose_net_forward.5} parent=0 // pred_check_branch
    %17 = sbr.rel (0) target = $region17
  $region16: #{grasp_pose_net_forward.5} parent=0 // pred_region
    _
  $region17: #{grasp_pose_net_forward.5} parent=0 // pred_fallthru
    _
  // Predicated region
  $region18: #{grasp_pose_net_forward.5} parent=0 // pred_check
    _
  $region19: #{grasp_pose_net_forward.5} parent=0 // pred_check_branch
    %19 = sbr.rel (0) target = $region21
  $region20: #{grasp_pose_net_forward.5} parent=0 // pred_region
    _
  $region21: #{grasp_pose_net_forward.5} parent=0 // pred_fallthru
    _
  %v21 = vld [vmem:[%s0] sm:$0xf]
  %v22 = vld [vmem:[%s0 + $0x4] sm:$0xf]
  %v23 = vld [vmem:[%s1] sm:$0x3]
  %v24 = vld [vmem:[%s2] sm:$0x1]
  %v26 = vlaneseq
  %v27 = vshrl.u32 %v26, 7
  %v28 = vsub.s32 0, %v27
  %v29 = vrot.slane %v24, %v28
  %v33 = vunpack.c.l.b16 %v21
  %v34 = vunpack.c.l.b16 %v22
  %v35 = vpack.c.b16 %v34, %v33
  %vm36 = vcmask 31744
  %v38 = vsel %vm36, %v35, 0
  %vm40 = vcmask 1041408
  %v42 = vsel %vm40, %v23, 0
  %44 = vmatprep.subr.bf16.mxu0 0
  %45 = vmatpush1.bf16.msra.mxu0 0
  %46 = vmatprep.subr.bf16.mxu0 0
  %47 = vmatpush1.bf16.msra.mxu0 0
  %48 = vmatprep.subr.bf16.mxu0 0
  %49 = vmatpush1.bf16.msra.mxu0 0
  %50 = vmatprep.subr.bf16.mxu0 0
  %51 = vmatpush1.bf16.msra.mxu0 0
  %52 = vmatprep.subr.bf16.mxu0 0
  %53 = vmatpush1.bf16.msra.mxu0 0
  %54 = vmatprep.subr.bf16.mxu0 0
  %55 = vmatpush1.bf16.msra.mxu0 0
  %56 = vmatprep.subr.bf16.mxu0 0
  %57 = vmatpush1.bf16.msra.mxu0 0
  %58 = vmatprep.subr.bf16.mxu0 0
  %59 = vmatpush1.bf16.msra.mxu0 %v42
  %60 = vmatprep.subr.bf16.mxu0 0
  %61 = vmatpush2.bf16.msra.mxu0 0
  %62 = vmatprep.subr.bf16.mxu0 0
  %63 = vmatpush2.bf16.msra.mxu0 0
  %64 = vmatprep.subr.bf16.mxu0 0
  %65 = vmatpush2.bf16.msra.mxu0 0
  %66 = vmatprep.subr.bf16.mxu0 0
  %67 = vmatpush2.bf16.msra.mxu0 0
  %68 = vmatprep.subr.bf16.mxu0 0
  %69 = vmatpush2.bf16.msra.mxu0 0
  %70 = vmatprep.subr.bf16.mxu0 0
  %71 = vmatpush2.bf16.msra.mxu0 0
  %72 = vmatprep.subr.bf16.mxu0 0
  %73 = vmatpush2.bf16.msra.mxu0 0
  %74 = vmatprep.subr.bf16.mxu0 0
  %75 = vmatpush2.bf16.msra.mxu0 0
  %76 = vmatprep.mubr.bf16.mxu0 0
  %77 = vmatmul.mubr.bf16.gmra.mxu0 %v38
  %v78 = vpop.f32.mrf.mxu0
  %v79 = vadd.f32 %v29, %v78
  %v80 = vpop.f32.mrf.mxu0
  %v81 = vpop.f32.mrf.mxu0
  %v82 = vadd.f32 %v29, %v81
  %v83 = vpop.f32.mrf.mxu0
  %84 = vdwg.mxu0
  %v85 = vmax.f32 %v79, 0.0
  %v86 = vmax.f32 %v82, 0.0
  %v87 = vpack.c.bf16 %v86, %v85
  %v88 = vld [vmem:[%s3] sm:$0xf]
  %v89 = vld [vmem:[%s3 + $0x4] sm:$0xf]
  %v90 = vld [vmem:[%s3 + $0x8] sm:$0xf]
  %v91 = vld [vmem:[%s3 + $0xc] sm:$0xf]
  %v92 = vld [vmem:[%s3 + $0x10] sm:$0xf]
  %v93 = vld [vmem:[%s3 + $0x14] sm:$0xf]
  %v94 = vld [vmem:[%s3 + $0x18] sm:$0xf]
  %v95 = vld [vmem:[%s3 + $0x1c] sm:$0xf]
  %v96 = vld [vmem:[%s4] sm:$0x1]
  %v98 = vlaneseq
  %v99 = vshrl.u32 %v98, 7
  %v100 = vsub.s32 0, %v99
  %v101 = vrot.slane %v96, %v100
  %v111 = vunpack.c.l.b16 %v88
  %v112 = vunpack.c.l.b16 %v89
  %v113 = vunpack.c.l.b16 %v90
  %v114 = vunpack.c.l.b16 %v91
  %v115 = vunpack.c.l.b16 %v92
  %v116 = vunpack.c.l.b16 %v93
  %v117 = vunpack.c.l.b16 %v94
  %v118 = vunpack.c.l.b16 %v95
  %v119 = vpack.c.b16 %v112, %v111
  %v120 = vpack.c.b16 %v114, %v113
  %v121 = vpack.c.b16 %v116, %v115
  %v122 = vpack.c.b16 %v118, %v117
  %vm127 = vcmask 523264
  %v129 = vsel %vm127, %v87, 0
  %131 = vmatprep.subr.bf16.mxu0 0
  %132 = vmatpush1.bf16.msra.mxu0 0
  %133 = vmatprep.subr.bf16.mxu0 0
  %134 = vmatpush1.bf16.msra.mxu0 0
  %135 = vmatprep.subr.bf16.mxu0 0
  %136 = vmatpush1.bf16.msra.mxu0 0
  %137 = vmatprep.subr.bf16.mxu0 0
  %138 = vmatpush1.bf16.msra.mxu0 0
  %139 = vmatprep.subr.bf16.mxu0 0
  %140 = vmatpush1.bf16.msra.mxu0 %v122
  %141 = vmatprep.subr.bf16.mxu0 0
  %142 = vmatpush1.bf16.msra.mxu0 %v121
  %143 = vmatprep.subr.bf16.mxu0 0
  %144 = vmatpush1.bf16.msra.mxu0 %v120
  %145 = vmatprep.subr.bf16.mxu0 0
  %146 = vmatpush1.bf16.msra.mxu0 %v119
  %147 = vmatprep.subr.bf16.mxu0 0
  %148 = vmatpush2.bf16.msra.mxu0 0
  %149 = vmatprep.subr.bf16.mxu0 0
  %150 = vmatpush2.bf16.msra.mxu0 0
  %151 = vmatprep.subr.bf16.mxu0 0
  %152 = vmatpush2.bf16.msra.mxu0 0
  %153 = vmatprep.subr.bf16.mxu0 0
  %154 = vmatpush2.bf16.msra.mxu0 0
  %155 = vmatprep.subr.bf16.mxu0 0
  %156 = vmatpush2.bf16.msra.mxu0 0
  %157 = vmatprep.subr.bf16.mxu0 0
  %158 = vmatpush2.bf16.msra.mxu0 0
  %159 = vmatprep.subr.bf16.mxu0 0
  %160 = vmatpush2.bf16.msra.mxu0 0
  %161 = vmatprep.subr.bf16.mxu0 0
  %162 = vmatpush2.bf16.msra.mxu0 0
  %163 = vmatprep.mubr.bf16.mxu0 0
  %164 = vmatmul.mubr.bf16.gmra.mxu0 %v129
  %v165 = vpop.f32.mrf.mxu0
  %v166 = vadd.f32 %v101, %v165
  %v167 = vpop.f32.mrf.mxu0
  %v168 = vpop.f32.mrf.mxu0
  %v169 = vadd.f32 %v101, %v168
  %v170 = vpop.f32.mrf.mxu0
  %171 = vdwg.mxu0
  %v172 = vmax.f32 %v166, 0.0
  %v173 = vmax.f32 %v169, 0.0
  %v174 = vpack.c.bf16 %v173, %v172
  %v176 = vunpack.c.l.b16 %v174
  %v177 = vunpack.c.h.b16 %v174
  %v178 = vpack.c.b16 %v176, %v176
  %v179 = vpack.c.b16 %v177, %v177
  %182 = vst [vmem:[%s5] sm:$0xf] %v178
  %183 = vst [vmem:[%s5 + $0x4] sm:$0xf] %v179
  // Predicated region
  $region22: #{grasp_pose_net_forward.5} parent=0 // pred_check
    _
  $region23: #{grasp_pose_net_forward.5} parent=0 // pred_check_branch
    %185 = sbr.rel (0) target = $region25
  $region24: #{grasp_pose_net_forward.5} parent=0 // pred_region
    _
  $region25: #{grasp_pose_net_forward.5} parent=0 // pred_fallthru
    _
  // Predicated region
  $region26: #{grasp_pose_net_forward.5} parent=0 // pred_check
    _
  $region27: #{grasp_pose_net_forward.5} parent=0 // pred_check_branch
    %187 = sbr.rel (0) target = $region29
  $region28: #{grasp_pose_net_forward.5} parent=0 // pred_region
    _
  $region29: #{grasp_pose_net_forward.5} parent=0 // pred_fallthru
    _

// kernel: grasp_pose_net_forward.4
$region0: #{grasp_pose_net_forward.4}
  #allocation0 [shape = 'u32[]', space=smem, size = 0x4, offset = 0x4, fixed_abs, tag = 'smem constant byte address 0x4 - core index']
  #allocation1 [shape = 'u32[144,128]{1,0:T(1,128)}', space=vmem, size = 0x12000, scoped, tag = 'internal scratch']
  %s0 = inlined_call_operand.vmem [shape: bf16[128,3], index: 0, kind: input, shape index: {}]
  %s1 = inlined_call_operand.vmem [shape: bf16[3,64], index: 1, kind: input, shape index: {}]
  %s2 = inlined_call_operand.vmem [shape: f32[1,64], index: 2, kind: input, shape index: {}]
  %s3 = inlined_call_operand.vmem [shape: bf16[64,128], index: 3, kind: input, shape index: {}]
  %s4 = inlined_call_operand.vmem [shape: f32[1,128], index: 4, kind: input, shape index: {}]
  %s5 = inlined_call_operand.vmem [shape: bf16[128,128], index: 5, kind: output, shape index: {}]
  %s6 = sld [smem:[#allocation0]]
  $region53: #{grasp_pose_net_forward.4} parent=0
    _
  %s8 = ssub.s32 1, %s6
  %s9 = scalar_select 0, %s8, %s6
  loop: start=0, step=1, limit=4
  $region2: #{grasp_pose_net_forward.4} parent=0 // loop_pre_header
    _
  $region3: #{grasp_pose_net_forward.4} parent=0 // loop_header
    %s11 = sphi 0, %s15
    %p12 = scmp.ge.s32.totalorder %s11, 4
    %s21 = sphi 0, %s23
    %s24 = sphi 0, %s21
    %s25 = sphi 0, %s24
    %s41 = sphi 0, %s25
    %s45 = sphi 0, %s45
    %s47 = sphi 0, %s45
    %s48 = sphi 0, %s47
    %s62 = sphi 0, %s48
    %s66 = sphi 0, %s66
    %s68 = sphi 0, %s66
    %s69 = sphi 0, %s68
    %s83 = sphi 0, %s69
    %s87 = sphi 0, %s87
    %s89 = sphi 0, %s87
    %s90 = sphi 0, %s89
    %s104 = sphi 0, %s90
    %s108 = sphi 0, %s108
    %s110 = sphi 0, %s108
    %s111 = sphi 0, %s110
    %s125 = sphi 0, %s111
    %s131 = sphi 0, %s133
    %s134 = sphi 0, %s131
    %s135 = sphi 0, %s134
    %s151 = sphi 0, %s135
  $region4: #{grasp_pose_net_forward.4} parent=0 // loop_header_branch
    %14 = sbr.rel (%p12) target = $region8
  $region5: #{grasp_pose_net_forward.4} parent=0 // loop_body
    %s16 = ssub.s32 %s11, 1
    %s17 = ssub.s32 %s11, 2
    %s18 = sadd.s32 %s11, 1
    %s19 = ssub.s32 %s11, %s18
    %p20 = scmp.eq.s32.totalorder %s19, 0
    %s22 = sadd.s32 %s21, 1
    %s23 = scalar_select %p20, %s21, %s22
    %p26 = pneg %p20
    %p27 = scmp.eq.s32.totalorder %s11, 1
    %p28 = por %p26, %p27
    %p29 = scmp.ne.s32.totalorder %s21, %s24
    %p30 = scmp.eq.s32.totalorder %s11, 0
    %p31 = por %p29, %p30
    %p32 = scmp.ne.s32.totalorder %s21, %s24
    %p33 = scmp.eq.s32.totalorder %s16, 1
    %p34 = por %p32, %p33
    %p35 = scmp.ne.s32.totalorder %s24, %s25
    %p36 = scmp.eq.s32.totalorder %s16, 0
    %p37 = por %p35, %p36
    %p38 = scmp.ne.s32.totalorder %s24, %s25
    %p39 = scmp.eq.s32.totalorder %s17, 1
    %p40 = por %p38, %p39
    %p42 = scmp.ne.s32.totalorder %s25, %s41
    %p43 = scmp.eq.s32.totalorder %s17, 0
    %p44 = por %p42, %p43
    %s46 = sadd.s32 %s45, 1
    %p49 = scmp.eq.s32.totalorder %s11, 1
    %p50 = scmp.ne.s32.totalorder %s45, %s47
    %p51 = scmp.eq.s32.totalorder %s11, 0
    %p52 = por %p50, %p51
    %p53 = scmp.ne.s32.totalorder %s45, %s47
    %p54 = scmp.eq.s32.totalorder %s16, 1
    %p55 = por %p53, %p54
    %p56 = scmp.ne.s32.totalorder %s47, %s48
    %p57 = scmp.eq.s32.totalorder %s16, 0
    %p58 = por %p56, %p57
    %p59 = scmp.ne.s32.totalorder %s47, %s48
    %p60 = scmp.eq.s32.totalorder %s17, 1
    %p61 = por %p59, %p60
    %p63 = scmp.ne.s32.totalorder %s48, %s62
    %p64 = scmp.eq.s32.totalorder %s17, 0
    %p65 = por %p63, %p64
    %s67 = sadd.s32 %s66, 1
    %p70 = scmp.eq.s32.totalorder %s11, 1
    %p71 = scmp.ne.s32.totalorder %s66, %s68
    %p72 = scmp.eq.s32.totalorder %s11, 0
    %p73 = por %p71, %p72
    %p74 = scmp.ne.s32.totalorder %s66, %s68
    %p75 = scmp.eq.s32.totalorder %s16, 1
    %p76 = por %p74, %p75
    %p77 = scmp.ne.s32.totalorder %s68, %s69
    %p78 = scmp.eq.s32.totalorder %s16, 0
    %p79 = por %p77, %p78
    %p80 = scmp.ne.s32.totalorder %s68, %s69
    %p81 = scmp.eq.s32.totalorder %s17, 1
    %p82 = por %p80, %p81
    %p84 = scmp.ne.s32.totalorder %s69, %s83
    %p85 = scmp.eq.s32.totalorder %s17, 0
    %p86 = por %p84, %p85
    %s88 = sadd.s32 %s87, 1
    %p91 = scmp.eq.s32.totalorder %s11, 1
    %p92 = scmp.ne.s32.totalorder %s87, %s89
    %p93 = scmp.eq.s32.totalorder %s11, 0
    %p94 = por %p92, %p93
    %p95 = scmp.ne.s32.totalorder %s87, %s89
    %p96 = scmp.eq.s32.totalorder %s16, 1
    %p97 = por %p95, %p96
    %p98 = scmp.ne.s32.totalorder %s89, %s90
    %p99 = scmp.eq.s32.totalorder %s16, 0
    %p100 = por %p98, %p99
    %p101 = scmp.ne.s32.totalorder %s89, %s90
    %p102 = scmp.eq.s32.totalorder %s17, 1
    %p103 = por %p101, %p102
    %p105 = scmp.ne.s32.totalorder %s90, %s104
    %p106 = scmp.eq.s32.totalorder %s17, 0
    %p107 = por %p105, %p106
    %s109 = sadd.s32 %s108, 1
    %p112 = scmp.eq.s32.totalorder %s11, 1
    %p113 = scmp.ne.s32.totalorder %s108, %s110
    %p114 = scmp.eq.s32.totalorder %s11, 0
    %p115 = por %p113, %p114
    %p116 = scmp.ne.s32.totalorder %s108, %s110
    %p117 = scmp.eq.s32.totalorder %s16, 1
    %p118 = por %p116, %p117
    %p119 = scmp.ne.s32.totalorder %s110, %s111
    %p120 = scmp.eq.s32.totalorder %s16, 0
    %p121 = por %p119, %p120
    %p122 = scmp.ne.s32.totalorder %s110, %s111
    %p123 = scmp.eq.s32.totalorder %s17, 1
    %p124 = por %p122, %p123
    %p126 = scmp.ne.s32.totalorder %s111, %s125
    %p127 = scmp.eq.s32.totalorder %s17, 0
    %p128 = por %p126, %p127
    %s129 = ssub.s32 %s11, %s18
    %p130 = scmp.eq.s32.totalorder %s129, 0
    %s132 = sadd.s32 %s131, 1
    %s133 = scalar_select %p130, %s131, %s132
    %p136 = pneg %p130
    %p137 = scmp.eq.s32.totalorder %s11, 1
    %p138 = por %p136, %p137
    %p139 = scmp.ne.s32.totalorder %s131, %s134
    %p140 = scmp.eq.s32.totalorder %s11, 0
    %p141 = por %p139, %p140
    %p142 = scmp.ne.s32.totalorder %s131, %s134
    %p143 = scmp.eq.s32.totalorder %s16, 1
    %p144 = por %p142, %p143
    %p145 = scmp.ne.s32.totalorder %s134, %s135
    %p146 = scmp.eq.s32.totalorder %s16, 0
    %p147 = por %p145, %p146
    %p148 = scmp.ne.s32.totalorder %s134, %s135
    %p149 = scmp.eq.s32.totalorder %s17, 1
    %p150 = por %p148, %p149
    %p152 = scmp.ne.s32.totalorder %s135, %s151
    %p153 = scmp.eq.s32.totalorder %s17, 0
    %p154 = por %p152, %p153
    %p155 = scmp.le.s32.totalorder 1, %s11
    %p156 = scmp.lt.s32.totalorder %s11, 3
    %p157 = pnand %p155, %p156
    %p158 = pneg %p157
    // Predicated region
    $region9: #{grasp_pose_net_forward.4} parent=5 // pred_check
      _
    $region10: #{grasp_pose_net_forward.4} parent=5 // pred_check_branch
      %160 = sbr.rel (%p157) target = $region12
    $region11: #{grasp_pose_net_forward.4} parent=5 // pred_region
      %s161 = ssub.s32 %s11, 1
      // Predicated region
      $region13: #{grasp_pose_net_forward.4} parent=11 // pred_check
        %p162 = pneg %p58
      $region14: #{grasp_pose_net_forward.4} parent=11 // pred_check_branch
        %164 = sbr.rel (%p162) target = $region16
      $region15: #{grasp_pose_net_forward.4} parent=11 // pred_region
        _
      $region16: #{grasp_pose_net_forward.4} parent=11 // pred_fallthru
        _
      // Predicated region
      $region17: #{grasp_pose_net_forward.4} parent=11 // pred_check
        %p165 = pneg %p79
      $region18: #{grasp_pose_net_forward.4} parent=11 // pred_check_branch
        %167 = sbr.rel (%p165) target = $region20
      $region19: #{grasp_pose_net_forward.4} parent=11 // pred_region
        _
      $region20: #{grasp_pose_net_forward.4} parent=11 // pred_fallthru
        _
      // Predicated region
      $region21: #{grasp_pose_net_forward.4} parent=11 // pred_check
        %p168 = pneg %p100
      $region22: #{grasp_pose_net_forward.4} parent=11 // pred_check_branch
        %170 = sbr.rel (%p168) target = $region24
      $region23: #{grasp_pose_net_forward.4} parent=11 // pred_region
        _
      $region24: #{grasp_pose_net_forward.4} parent=11 // pred_fallthru
        _
      // Predicated region
      $region25: #{grasp_pose_net_forward.4} parent=11 // pred_check
        %p171 = pneg %p121
      $region26: #{grasp_pose_net_forward.4} parent=11 // pred_check_branch
        %173 = sbr.rel (%p171) target = $region28
      $region27: #{grasp_pose_net_forward.4} parent=11 // pred_region
        _
      $region28: #{grasp_pose_net_forward.4} parent=11 // pred_fallthru
        _
    $region12: #{grasp_pose_net_forward.4} parent=5 // pred_fallthru
      _
    %p174 = scmp.lt.s32.totalorder %s11, 2
    // Predicated region
    $region29: #{grasp_pose_net_forward.4} parent=5 // pred_check
      %p175 = pneg %p174
    $region30: #{grasp_pose_net_forward.4} parent=5 // pred_check_branch
      %177 = sbr.rel (%p175) target = $region32
    $region31: #{grasp_pose_net_forward.4} parent=5 // pred_region
      // Predicated region
      $region33: #{grasp_pose_net_forward.4} parent=31 // pred_check
        %p178 = pneg %p31
      $region34: #{grasp_pose_net_forward.4} parent=31 // pred_check_branch
        %180 = sbr.rel (%p178) target = $region36
      $region35: #{grasp_pose_net_forward.4} parent=31 // pred_region
        %s181 = smul.u32 8, %s11
        %p182 = scmp.lt.s32.totalorder %s181, 15
        %s183 = scalar_select %p182, %s181, 15
        %s184 = smul.addr %s183, 4
        %s185 = scalar_lea.vmem %s0, %s184
        %s186 = smul.u32 8, %s11
      $region36: #{grasp_pose_net_forward.4} parent=31 // pred_fallthru
        _
    $region32: #{grasp_pose_net_forward.4} parent=5 // pred_fallthru
      _
    %p187 = scmp.le.s32.totalorder 1, %s11
    %p188 = scmp.lt.s32.totalorder %s11, 3
    %p189 = pnand %p187, %p188
    %p190 = pneg %p189
    // Predicated region
    $region37: #{grasp_pose_net_forward.4} parent=5 // pred_check
      _
    $region38: #{grasp_pose_net_forward.4} parent=5 // pred_check_branch
      %192 = sbr.rel (%p189) target = $region40
    $region39: #{grasp_pose_net_forward.4} parent=5 // pred_region
      %s193 = ssub.s32 %s11, 1
      %s194 = smul.u32 8, %s16
      %p195 = scmp.lt.s32.totalorder %s194, 15
      %s196 = scalar_select %p195, %s194, 15
      %s197 = smul.addr %s196, 4
      %s198 = scalar_lea.vmem %s0, %s197
      %p199 = pneg %p37
      %p200 = pneg %p34
      %p201 = pneg %p58
      %p202 = pneg %p55
      %p203 = pneg %p79
      %p204 = pneg %p76
      %p205 = pneg %p100
      %p206 = pneg %p97
      %p207 = pneg %p121
      %p208 = pneg %p118
      %p209 = pneg %p147
      %p210 = pneg %p144
      %s211 = smul.u32 8, %s16
      %p212 = scmp.lt.s32.totalorder %s211, 15
      %s213 = scalar_select %p212, %s211, 15
      %s214 = smul.addr %s213, 4
      %s215 = scalar_lea.vmem %s5, %s214
      %s216 = smul.u32 8, %s16
      %p217 = scmp.lt.s32.totalorder %s216, 15
      %s218 = scalar_select %p217, %s216, 15
      %s219 = smul.addr %s218, 4
      %s220 = scalar_lea.vmem %s0, %s219
      %s221 = smul.u32 8, %s16
      %s222 = smul.u32 8, %s16
      %p223 = scmp.lt.s32.totalorder %s222, 15
      %s224 = scalar_select %p223, %s222, 15
      %s225 = smul.addr %s224, 4
      %s226 = scalar_lea.vmem %s5, %s225
      %s227 = smul.u32 8, %s16
      %v229 = vld [vmem:[%s220] sm:$0xf]
      %v230 = vld [vmem:[%s220 + $0x4] sm:$0xf]
      %v231 = vld [vmem:[%s220 + $0x8] sm:$0xf]
      %v232 = vld [vmem:[%s220 + $0xc] sm:$0xf]
      %v233 = vld [vmem:[%s220 + $0x10] sm:$0xf]
      %v234 = vld [vmem:[%s220 + $0x14] sm:$0xf]
      %v235 = vld [vmem:[%s220 + $0x18] sm:$0xf]
      %v236 = vld [vmem:[%s220 + $0x1c] sm:$0xf]
      %v237 = vld [vmem:[%s1] sm:$0x3]
      %v238 = vld [vmem:[%s2] sm:$0x1]
      %v240 = vlaneseq
      %v241 = vshrl.u32 %v240, 7
      %v242 = vsub.s32 0, %v241
      %v243 = vrot.slane %v238, %v242
      %v253 = vunpack.c.l.b16 %v229
      %v254 = vunpack.c.l.b16 %v230
      %v255 = vunpack.c.l.b16 %v231
      %v256 = vunpack.c.l.b16 %v232
      %v257 = vunpack.c.l.b16 %v233
      %v258 = vunpack.c.l.b16 %v234
      %v259 = vunpack.c.l.b16 %v235
      %v260 = vunpack.c.l.b16 %v236
      %v261 = vpack.c.b16 %v254, %v253
      %v262 = vpack.c.b16 %v256, %v255
      %v263 = vpack.c.b16 %v258, %v257
      %v264 = vpack.c.b16 %v260, %v259
      %vm265 = vcmask 23552
      %v267 = vsel %vm265, %v261, 0
      %v270 = vsel %vm265, %v262, 0
      %v273 = vsel %vm265, %v263, 0
      %v276 = vsel %vm265, %v264, 0
      %vm278 = vcmask 1040384
      %vm279 = vcmask 1041408
      %v280 = vsel %vm278, 4294967295, 65535
      %v281 = vsel %vm279, %v280, 0
      %v283 = vand.u32 %v237, %v281
      %285 = vmatprep.subr.bf16.mxu0 0
      %286 = vmatpush1.bf16.msra.mxu0 0
      %287 = vmatprep.subr.bf16.mxu0 0
      %288 = vmatpush1.bf16.msra.mxu0 0
      %289 = vmatprep.subr.bf16.mxu0 0
      %290 = vmatpush1.bf16.msra.mxu0 0
      %291 = vmatprep.subr.bf16.mxu0 0
      %292 = vmatpush1.bf16.msra.mxu0 0
      %293 = vmatprep.subr.bf16.mxu0 0
      %294 = vmatpush1.bf16.msra.mxu0 0
      %295 = vmatprep.subr.bf16.mxu0 0
      %296 = vmatpush1.bf16.msra.mxu0 0
      %297 = vmatprep.subr.bf16.mxu0 0
      %298 = vmatpush1.bf16.msra.mxu0 0
      %299 = vmatprep.subr.bf16.mxu0 0
      %300 = vmatpush1.bf16.msra.mxu0 %v283
      %301 = vmatprep.subr.bf16.mxu0 0
      %302 = vmatpush2.bf16.msra.mxu0 0
      %303 = vmatprep.subr.bf16.mxu0 0
      %304 = vmatpush2.bf16.msra.mxu0 0
      %305 = vmatprep.subr.bf16.mxu0 0
      %306 = vmatpush2.bf16.msra.mxu0 0
      %307 = vmatprep.subr.bf16.mxu0 0
      %308 = vmatpush2.bf16.msra.mxu0 0
      %309 = vmatprep.subr.bf16.mxu0 0
      %310 = vmatpush2.bf16.msra.mxu0 0
      %311 = vmatprep.subr.bf16.mxu0 0
      %312 = vmatpush2.bf16.msra.mxu0 0
      %313 = vmatprep.subr.bf16.mxu0 0
      %314 = vmatpush2.bf16.msra.mxu0 0
      %315 = vmatprep.subr.bf16.mxu0 0
      %316 = vmatpush2.bf16.msra.mxu0 0
      %317 = vmatprep.mubr.bf16.mxu0 0
      %318 = vmatmul.mubr.bf16.gmra.mxu0 %v267
      %v319 = vpop.f32.mrf.mxu0
      %v320 = vadd.f32 %v243, %v319
      %v321 = vpop.f32.mrf.mxu0
      %v322 = vpop.f32.mrf.mxu0
      %v323 = vadd.f32 %v243, %v322
      %v324 = vpop.f32.mrf.mxu0
      %325 = vmatprep.mubr.bf16.mxu0 0
      %326 = vmatmul.mubr.bf16.gmra.mxu0 %v270
      %v327 = vpop.f32.mrf.mxu0
      %v328 = vadd.f32 %v243, %v327
      %v329 = vpop.f32.mrf.mxu0
      %v330 = vpop.f32.mrf.mxu0
      %v331 = vadd.f32 %v243, %v330
      %v332 = vpop.f32.mrf.mxu0
      %333 = vmatprep.mubr.bf16.mxu0 0
      %334 = vmatmul.mubr.bf16.gmra.mxu0 %v273
      %v335 = vpop.f32.mrf.mxu0
      %v336 = vadd.f32 %v243, %v335
      %v337 = vpop.f32.mrf.mxu0
      %v338 = vpop.f32.mrf.mxu0
      %v339 = vadd.f32 %v243, %v338
      %v340 = vpop.f32.mrf.mxu0
      %341 = vmatprep.mubr.bf16.mxu0 0
      %342 = vmatmul.mubr.bf16.gmra.mxu0 %v276
      %v343 = vpop.f32.mrf.mxu0
      %v344 = vadd.f32 %v243, %v343
      %v345 = vpop.f32.mrf.mxu0
      %v346 = vpop.f32.mrf.mxu0
      %v347 = vadd.f32 %v243, %v346
      %v348 = vpop.f32.mrf.mxu0
      %349 = vdwg.mxu0
      %v350 = vmax.f32 %v320, 0.0
      %v351 = vmax.f32 %v323, 0.0
      %v352 = vmax.f32 %v328, 0.0
      %v353 = vmax.f32 %v331, 0.0
      %v354 = vmax.f32 %v336, 0.0
      %v355 = vmax.f32 %v339, 0.0
      %v356 = vmax.f32 %v344, 0.0
      %v357 = vmax.f32 %v347, 0.0
      %v358 = vpack.c.bf16 %v351, %v350
      %v359 = vpack.c.bf16 %v353, %v352
      %v360 = vpack.c.bf16 %v355, %v354
      %v361 = vpack.c.bf16 %v357, %v356
      %v362 = vld [vmem:[%s3] sm:$0xf]
      %v363 = vld [vmem:[%s3 + $0x4] sm:$0xf]
      %v364 = vld [vmem:[%s3 + $0x8] sm:$0xf]
      %v365 = vld [vmem:[%s3 + $0xc] sm:$0xf]
      %v366 = vld [vmem:[%s3 + $0x10] sm:$0xf]
      %v367 = vld [vmem:[%s3 + $0x14] sm:$0xf]
      %v368 = vld [vmem:[%s3 + $0x18] sm:$0xf]
      %v369 = vld [vmem:[%s3 + $0x1c] sm:$0xf]
      %v370 = vld [vmem:[%s4] sm:$0x1]
      %v372 = vlaneseq
      %v373 = vshrl.u32 %v372, 7
      %v374 = vsub.s32 0, %v373
      %v375 = vrot.slane %v370, %v374
      %v385 = vunpack.c.l.b16 %v362
      %v386 = vunpack.c.l.b16 %v363
      %v387 = vunpack.c.l.b16 %v364
      %v388 = vunpack.c.l.b16 %v365
      %v389 = vunpack.c.l.b16 %v366
      %v390 = vunpack.c.l.b16 %v367
      %v391 = vunpack.c.l.b16 %v368
      %v392 = vunpack.c.l.b16 %v369
      %v393 = vpack.c.b16 %v386, %v385
      %v394 = vpack.c.b16 %v388, %v387
      %v395 = vpack.c.b16 %v390, %v389
      %v396 = vpack.c.b16 %v392, %v391
      %vm401 = vcmask 523264
      %v403 = vsel %vm401, %v358, 0
      %v406 = vsel %vm401, %v359, 0
      %v409 = vsel %vm401, %v360, 0
      %v412 = vsel %vm401, %v361, 0
      %414 = vmatprep.subr.bf16.mxu0 0
      %415 = vmatpush1.bf16.msra.mxu0 0
      %416 = vmatprep.subr.bf16.mxu0 0
      %417 = vmatpush1.bf16.msra.mxu0 0
      %418 = vmatprep.subr.bf16.mxu0 0
      %419 = vmatpush1.bf16.msra.mxu0 0
      %420 = vmatprep.subr.bf16.mxu0 0
      %421 = vmatpush1.bf16.msra.mxu0 0
      %422 = vmatprep.subr.bf16.mxu0 0
      %423 = vmatpush1.bf16.msra.mxu0 %v396
      %424 = vmatprep.subr.bf16.mxu0 0
      %425 = vmatpush1.bf16.msra.mxu0 %v395
      %426 = vmatprep.subr.bf16.mxu0 0
      %427 = vmatpush1.bf16.msra.mxu0 %v394
      %428 = vmatprep.subr.bf16.mxu0 0
      %429 = vmatpush1.bf16.msra.mxu0 %v393
      %430 = vmatprep.subr.bf16.mxu0 0
      %431 = vmatpush2.bf16.msra.mxu0 0
      %432 = vmatprep.subr.bf16.mxu0 0
      %433 = vmatpush2.bf16.msra.mxu0 0
      %434 = vmatprep.subr.bf16.mxu0 0
      %435 = vmatpush2.bf16.msra.mxu0 0
      %436 = vmatprep.subr.bf16.mxu0 0
      %437 = vmatpush2.bf16.msra.mxu0 0
      %438 = vmatprep.subr.bf16.mxu0 0
      %439 = vmatpush2.bf16.msra.mxu0 0
      %440 = vmatprep.subr.bf16.mxu0 0
      %441 = vmatpush2.bf16.msra.mxu0 0
      %442 = vmatprep.subr.bf16.mxu0 0
      %443 = vmatpush2.bf16.msra.mxu0 0
      %444 = vmatprep.subr.bf16.mxu0 0
      %445 = vmatpush2.bf16.msra.mxu0 0
      %446 = vmatprep.mubr.bf16.mxu0 0
      %447 = vmatmul.mubr.bf16.gmra.mxu0 %v403
      %v448 = vpop.f32.mrf.mxu0
      %v449 = vadd.f32 %v375, %v448
      %v450 = vpop.f32.mrf.mxu0
      %v451 = vpop.f32.mrf.mxu0
      %v452 = vadd.f32 %v375, %v451
      %v453 = vpop.f32.mrf.mxu0
      %454 = vmatprep.mubr.bf16.mxu0 0
      %455 = vmatmul.mubr.bf16.gmra.mxu0 %v406
      %v456 = vpop.f32.mrf.mxu0
      %v457 = vadd.f32 %v375, %v456
      %v458 = vpop.f32.mrf.mxu0
      %v459 = vpop.f32.mrf.mxu0
      %v460 = vadd.f32 %v375, %v459
      %v461 = vpop.f32.mrf.mxu0
      %462 = vmatprep.mubr.bf16.mxu0 0
      %463 = vmatmul.mubr.bf16.gmra.mxu0 %v409
      %v464 = vpop.f32.mrf.mxu0
      %v465 = vadd.f32 %v375, %v464
      %v466 = vpop.f32.mrf.mxu0
      %v467 = vpop.f32.mrf.mxu0
      %v468 = vadd.f32 %v375, %v467
      %v469 = vpop.f32.mrf.mxu0
      %470 = vmatprep.mubr.bf16.mxu0 0
      %471 = vmatmul.mubr.bf16.gmra.mxu0 %v412
      %v472 = vpop.f32.mrf.mxu0
      %v473 = vadd.f32 %v375, %v472
      %v474 = vpop.f32.mrf.mxu0
      %v475 = vpop.f32.mrf.mxu0
      %v476 = vadd.f32 %v375, %v475
      %v477 = vpop.f32.mrf.mxu0
      %478 = vdwg.mxu0
      %v479 = vmax.f32 %v449, 0.0
      %v480 = vmax.f32 %v452, 0.0
      %v481 = vmax.f32 %v457, 0.0
      %v482 = vmax.f32 %v460, 0.0
      %v483 = vmax.f32 %v465, 0.0
      %v484 = vmax.f32 %v468, 0.0
      %v485 = vmax.f32 %v473, 0.0
      %v486 = vmax.f32 %v476, 0.0
      %v487 = vpack.c.bf16 %v480, %v479
      %v488 = vpack.c.bf16 %v482, %v481
      %v489 = vpack.c.bf16 %v484, %v483
      %v490 = vpack.c.bf16 %v486, %v485
      %v495 = vunpack.c.l.b16 %v487
      %v496 = vunpack.c.h.b16 %v487
      %v497 = vunpack.c.l.b16 %v488
      %v498 = vunpack.c.h.b16 %v488
      %v499 = vunpack.c.l.b16 %v489
      %v500 = vunpack.c.h.b16 %v489
      %v501 = vunpack.c.l.b16 %v490
      %v502 = vunpack.c.h.b16 %v490
      %v503 = vpack.c.b16 %v495, %v495
      %v504 = vpack.c.b16 %v496, %v496
      %v505 = vpack.c.b16 %v497, %v497
      %v506 = vpack.c.b16 %v498, %v498
      %v507 = vpack.c.b16 %v499, %v499
      %v508 = vpack.c.b16 %v500, %v500
      %v509 = vpack.c.b16 %v501, %v501
      %v510 = vpack.c.b16 %v502, %v502
      %519 = vst [vmem:[%s226] sm:$0xf] %v503
      %520 = vst [vmem:[%s226 + $0x4] sm:$0xf] %v504
      %521 = vst [vmem:[%s226 + $0x8] sm:$0xf] %v505
      %522 = vst [vmem:[%s226 + $0xc] sm:$0xf] %v506
      %523 = vst [vmem:[%s226 + $0x10] sm:$0xf] %v507
      %524 = vst [vmem:[%s226 + $0x14] sm:$0xf] %v508
      %525 = vst [vmem:[%s226 + $0x18] sm:$0xf] %v509
      %526 = vst [vmem:[%s226 + $0x1c] sm:$0xf] %v510
      %s527 = smul.u32 8, %s16
      %p528 = scmp.lt.s32.totalorder %s527, 15
      %s529 = scalar_select %p528, %s527, 15
      %s530 = smul.addr %s529, 4
      %s531 = scalar_lea.vmem %s5, %s530
      // Predicated region
      $region41: #{grasp_pose_net_forward.4} parent=39 // pred_check
        %p532 = pneg %p144
      $region42: #{grasp_pose_net_forward.4} parent=39 // pred_check_branch
        %534 = sbr.rel (%p532) target = $region44
      $region43: #{grasp_pose_net_forward.4} parent=39 // pred_region
        %s535 = smul.u32 8, %s16
      $region44: #{grasp_pose_net_forward.4} parent=39 // pred_fallthru
        _
    $region40: #{grasp_pose_net_forward.4} parent=5 // pred_fallthru
      _
    %p536 = scmp.le.s32.totalorder 2, %s11
    // Predicated region
    $region45: #{grasp_pose_net_forward.4} parent=5 // pred_check
      %p537 = pneg %p536
    $region46: #{grasp_pose_net_forward.4} parent=5 // pred_check_branch
      %539 = sbr.rel (%p537) target = $region48
    $region47: #{grasp_pose_net_forward.4} parent=5 // pred_region
      %s540 = ssub.s32 %s11, 2
      // Predicated region
      $region49: #{grasp_pose_net_forward.4} parent=47 // pred_check
        %p541 = pneg %p150
      $region50: #{grasp_pose_net_forward.4} parent=47 // pred_check_branch
        %543 = sbr.rel (%p541) target = $region52
      $region51: #{grasp_pose_net_forward.4} parent=47 // pred_region
        %s544 = smul.u32 8, %s17
        %p545 = scmp.lt.s32.totalorder %s544, 15
        %s546 = scalar_select %p545, %s544, 15
        %s547 = smul.addr %s546, 4
        %s548 = scalar_lea.vmem %s5, %s547
      $region52: #{grasp_pose_net_forward.4} parent=47 // pred_fallthru
        _
    $region48: #{grasp_pose_net_forward.4} parent=5 // pred_fallthru
      _
  $region6: #{grasp_pose_net_forward.4} parent=0 // loop_footer
    %s15 = sadd.s32 1, %s11
  $region7: #{grasp_pose_net_forward.4} parent=0 // loop_footer_branch
    %10 = sbr.rel target = $region3
  $region8: #{grasp_pose_net_forward.4} parent=0 // loop_exit
    _

// kernel: squeeze.2
$region0: #{squeeze.2}
  %s0 = inlined_call_operand.vmem [shape: f32[12], index: 0, kind: input, shape index: {}]
  %s1 = inlined_call_operand.vmem [shape: f32[6,2], index: 1, kind: output, shape index: {}]
  $region1: #{squeeze.2} parent=0
    #allocation0 [shape = 'u8[4096]{0}', space=vmem, size = 0x1000, scoped, tag = 'scoped mem for input reshape']
    %s3 = sshll.u32 1, 1
    %s4 = ssub.s32 %s3, 1
    %v5 = vld [vmem:[%s0] sm:%s4]
    %6 = vst [vmem:[#allocation0] sm:%s4] %v5
    %v7 = vld [vmem:[#allocation0] sm:$0x1]
    %vm8 = vcmask 15360
    %9 = vst.msk [vmem:[%s1] sm:$0x1] %vm8, %v7
    %v10 = vld [vmem:[#allocation0] sm:$0x1]
    %11 = vrot.lane.b32.xlu0 %v10, 126
    %v12 = vpop.permute.xlu0 %11
    %vm13 = vcmask 15360
    %s14 = scalar_lea.vmem %s1, 1
    %15 = vst.msk [vmem:[%s14] sm:$0x1] %vm13, %v12
    %v16 = vld [vmem:[#allocation0] sm:$0x1]
    %17 = vrot.lane.b32.xlu0 %v16, 124
    %v18 = vpop.permute.xlu0 %17
    %vm19 = vcmask 15360
    %s20 = scalar_lea.vmem %s1, 2
    %21 = vst.msk [vmem:[%s20] sm:$0x1] %vm19, %v18
    %v22 = vld [vmem:[#allocation0] sm:$0x1]
    %23 = vrot.lane.b32.xlu0 %v22, 122
    %v24 = vpop.permute.xlu0 %23
    %vm25 = vcmask 15360
    %s26 = scalar_lea.vmem %s1, 3
    %27 = vst.msk [vmem:[%s26] sm:$0x1] %vm25, %v24
    %v28 = vld [vmem:[#allocation0] sm:$0x1]
    %29 = vrot.lane.b32.xlu0 %v28, 120
    %v30 = vpop.permute.xlu0 %29
    %vm31 = vcmask 15360
    %s32 = scalar_lea.vmem %s1, 4
    %33 = vst.msk [vmem:[%s32] sm:$0x1] %vm31, %v30
    %v34 = vld [vmem:[#allocation0] sm:$0x1]
    %35 = vrot.lane.b32.xlu0 %v34, 118
    %v36 = vpop.permute.xlu0 %35
    %vm37 = vcmask 15360
    %s38 = scalar_lea.vmem %s1, 5
    %39 = vst.msk [vmem:[%s38] sm:$0x1] %vm37, %v36

// kernel: grasp_pose_net_forward.7
$region0: #{grasp_pose_net_forward.7}
  #allocation0 [shape = 'u32[]', space=smem, size = 0x4, offset = 0x4, fixed_abs, tag = 'smem constant byte address 0x4 - core index']
  #allocation1 [shape = 'u32[144,128]{1,0:T(1,128)}', space=vmem, size = 0x12000, scoped, tag = 'internal scratch']
  #allocation2 [shape = 'f32[1,1]{1,0:T(1,128)S(1)}', space=vmem, size = 0x200, scoped, tag = 'scoped memory for grasp_pose_net_forward.7']
  %s0 = inlined_call_operand.vmem [shape: bf16[16,2048], index: 0, kind: input, shape index: {}]
  %s1 = inlined_call_operand.vmem [shape: bf16[16,128], index: 1, kind: input, shape index: {}]
  %s2 = inlined_call_operand.vmem [shape: bf16[2048,128], index: 2, kind: input, shape index: {}]
  %s3 = inlined_call_operand.vmem [shape: f32[1,128], index: 3, kind: input, shape index: {}]
  %s4 = inlined_call_operand.vmem [shape: bf16[128,128], index: 4, kind: input, shape index: {}]
  %s5 = inlined_call_operand.vmem [shape: bf16[128,512], index: 5, kind: input, shape index: {}]
  %s6 = inlined_call_operand.vmem [shape: f32[1,512], index: 6, kind: input, shape index: {}]
  %s7 = inlined_call_operand.vmem [shape: bf16[512,256], index: 7, kind: input, shape index: {}]
  %s8 = inlined_call_operand.vmem [shape: f32[1,256], index: 8, kind: input, shape index: {}]
  %s9 = inlined_call_operand.vmem [shape: bf16[256,1], index: 9, kind: input, shape index: {}]
  %s10 = inlined_call_operand.<no memory space> [shape: f32[1,1], index: 10, kind: input, shape index: {}]
  %s11 = inlined_call_operand.vmem [shape: f32[16,1], index: 11, kind: output, shape index: {}]
  %s12 = sld [smem:[#allocation0]]
  $region54: #{grasp_pose_net_forward.7} parent=0
    _
  %s14 = ssub.s32 1, %s12
  %s15 = scalar_select 0, %s14, %s12
  %v16 = vstv %s10
  %17 = vst [vmem:[#allocation2] sm:$0x1] %v16
  // Predicated region
  $region2: #{grasp_pose_net_forward.7} parent=0 // pred_check
    _
  $region3: #{grasp_pose_net_forward.7} parent=0 // pred_check_branch
    %19 = sbr.rel (0) target = $region5
  $region4: #{grasp_pose_net_forward.7} parent=0 // pred_region
    _
  $region5: #{grasp_pose_net_forward.7} parent=0 // pred_fallthru
    _
  // Predicated region
  $region6: #{grasp_pose_net_forward.7} parent=0 // pred_check
    _
  $region7: #{grasp_pose_net_forward.7} parent=0 // pred_check_branch
    %21 = sbr.rel (0) target = $region9
  $region8: #{grasp_pose_net_forward.7} parent=0 // pred_region
    _
  $region9: #{grasp_pose_net_forward.7} parent=0 // pred_fallthru
    _
  // Predicated region
  $region10: #{grasp_pose_net_forward.7} parent=0 // pred_check
    _
  $region11: #{grasp_pose_net_forward.7} parent=0 // pred_check_branch
    %23 = sbr.rel (0) target = $region13
  $region12: #{grasp_pose_net_forward.7} parent=0 // pred_region
    _
  $region13: #{grasp_pose_net_forward.7} parent=0 // pred_fallthru
    _
  // Predicated region
  $region14: #{grasp_pose_net_forward.7} parent=0 // pred_check
    _
  $region15: #{grasp_pose_net_forward.7} parent=0 // pred_check_branch
    %25 = sbr.rel (0) target = $region17
  $region16: #{grasp_pose_net_forward.7} parent=0 // pred_region
    _
  $region17: #{grasp_pose_net_forward.7} parent=0 // pred_fallthru
    _
  // Predicated region
  $region18: #{grasp_pose_net_forward.7} parent=0 // pred_check
    _
  $region19: #{grasp_pose_net_forward.7} parent=0 // pred_check_branch
    %27 = sbr.rel (0) target = $region21
  $region20: #{grasp_pose_net_forward.7} parent=0 // pred_region
    _
  $region21: #{grasp_pose_net_forward.7} parent=0 // pred_fallthru
    _
  // Predicated region
  $region22: #{grasp_pose_net_forward.7} parent=0 // pred_check
    _
  $region23: #{grasp_pose_net_forward.7} parent=0 // pred_check_branch
    %29 = sbr.rel (0) target = $region25
  $region24: #{grasp_pose_net_forward.7} parent=0 // pred_region
    _
  $region25: #{grasp_pose_net_forward.7} parent=0 // pred_fallthru
    _
  // Predicated region
  $region26: #{grasp_pose_net_forward.7} parent=0 // pred_check
    _
  $region27: #{grasp_pose_net_forward.7} parent=0 // pred_check_branch
    %31 = sbr.rel (0) target = $region29
  $region28: #{grasp_pose_net_forward.7} parent=0 // pred_region
    _
  $region29: #{grasp_pose_net_forward.7} parent=0 // pred_fallthru
    _
  // Predicated region
  $region30: #{grasp_pose_net_forward.7} parent=0 // pred_check
    _
  $region31: #{grasp_pose_net_forward.7} parent=0 // pred_check_branch
    %33 = sbr.rel (0) target = $region33
  $region32: #{grasp_pose_net_forward.7} parent=0 // pred_region
    _
  $region33: #{grasp_pose_net_forward.7} parent=0 // pred_fallthru
    _
  // Predicated region
  $region34: #{grasp_pose_net_forward.7} parent=0 // pred_check
    _
  $region35: #{grasp_pose_net_forward.7} parent=0 // pred_check_branch
    %35 = sbr.rel (0) target = $region37
  $region36: #{grasp_pose_net_forward.7} parent=0 // pred_region
    _
  $region37: #{grasp_pose_net_forward.7} parent=0 // pred_fallthru
    _
  // Predicated region
  $region38: #{grasp_pose_net_forward.7} parent=0 // pred_check
    _
  $region39: #{grasp_pose_net_forward.7} parent=0 // pred_check_branch
    %37 = sbr.rel (0) target = $region41
  $region40: #{grasp_pose_net_forward.7} parent=0 // pred_region
    _
  $region41: #{grasp_pose_net_forward.7} parent=0 // pred_fallthru
    _
  // Predicated region
  $region42: #{grasp_pose_net_forward.7} parent=0 // pred_check
    _
  $region43: #{grasp_pose_net_forward.7} parent=0 // pred_check_branch
    %39 = sbr.rel (0) target = $region45
  $region44: #{grasp_pose_net_forward.7} parent=0 // pred_region
    _
  $region45: #{grasp_pose_net_forward.7} parent=0 // pred_fallthru
    _
  %v41 = vld [vmem:[%s0] sm:$0xff]
  %v42 = vld [vmem:[%s0 + $0x8] sm:$0xff]
  %v43 = vld [vmem:[%s0 + $0x10] sm:$0xff]
  %v44 = vld [vmem:[%s0 + $0x18] sm:$0xff]
  %v45 = vld [vmem:[%s0 + $0x20] sm:$0xff]
  %v46 = vld [vmem:[%s0 + $0x28] sm:$0xff]
  %v47 = vld [vmem:[%s0 + $0x30] sm:$0xff]
  %v48 = vld [vmem:[%s0 + $0x38] sm:$0xff]
  %v49 = vld [vmem:[%s0 + $0x40] sm:$0xff]
  %v50 = vld [vmem:[%s0 + $0x48] sm:$0xff]
  %v51 = vld [vmem:[%s0 + $0x50] sm:$0xff]
  %v52 = vld [vmem:[%s0 + $0x58] sm:$0xff]
  %v53 = vld [vmem:[%s0 + $0x60] sm:$0xff]
  %v54 = vld [vmem:[%s0 + $0x68] sm:$0xff]
  %v55 = vld [vmem:[%s0 + $0x70] sm:$0xff]
  %v56 = vld [vmem:[%s0 + $0x78] sm:$0xff]
  %v57 = vld [vmem:[%s2] sm:$0xf]
  %v58 = vld [vmem:[%s2 + $0x4] sm:$0xf]
  %v59 = vld [vmem:[%s2 + $0x8] sm:$0xf]
  %v60 = vld [vmem:[%s2 + $0xc] sm:$0xf]
  %v61 = vld [vmem:[%s2 + $0x10] sm:$0xf]
  %v62 = vld [vmem:[%s2 + $0x14] sm:$0xf]
  %v63 = vld [vmem:[%s2 + $0x18] sm:$0xf]
  %v64 = vld [vmem:[%s2 + $0x1c] sm:$0xf]
  %v65 = vld [vmem:[%s2 + $0x20] sm:$0xf]
  %v66 = vld [vmem:[%s2 + $0x24] sm:$0xf]
  %v67 = vld [vmem:[%s2 + $0x28] sm:$0xf]
  %v68 = vld [vmem:[%s2 + $0x2c] sm:$0xf]
  %v69 = vld [vmem:[%s2 + $0x30] sm:$0xf]
  %v70 = vld [vmem:[%s2 + $0x34] sm:$0xf]
  %v71 = vld [vmem:[%s2 + $0x38] sm:$0xf]
  %v72 = vld [vmem:[%s2 + $0x3c] sm:$0xf]
  %v73 = vld [vmem:[%s2 + $0x40] sm:$0xf]
  %v74 = vld [vmem:[%s2 + $0x44] sm:$0xf]
  %v75 = vld [vmem:[%s2 + $0x48] sm:$0xf]
  %v76 = vld [vmem:[%s2 + $0x4c] sm:$0xf]
  %v77 = vld [vmem:[%s2 + $0x50] sm:$0xf]
  %v78 = vld [vmem:[%s2 + $0x54] sm:$0xf]
  %v79 = vld [vmem:[%s2 + $0x58] sm:$0xf]
  %v80 = vld [vmem:[%s2 + $0x5c] sm:$0xf]
  %v81 = vld [vmem:[%s2 + $0x60] sm:$0xf]
  %v82 = vld [vmem:[%s2 + $0x64] sm:$0xf]
  %v83 = vld [vmem:[%s2 + $0x68] sm:$0xf]
  %v84 = vld [vmem:[%s2 + $0x6c] sm:$0xf]
  %v85 = vld [vmem:[%s2 + $0x70] sm:$0xf]
  %v86 = vld [vmem:[%s2 + $0x74] sm:$0xf]
  %v87 = vld [vmem:[%s2 + $0x78] sm:$0xf]
  %v88 = vld [vmem:[%s2 + $0x7c] sm:$0xf]
  %v89 = vld [vmem:[%s2 + $0x80] sm:$0xf]
  %v90 = vld [vmem:[%s2 + $0x84] sm:$0xf]
  %v91 = vld [vmem:[%s2 + $0x88] sm:$0xf]
  %v92 = vld [vmem:[%s2 + $0x8c] sm:$0xf]
  %v93 = vld [vmem:[%s2 + $0x90] sm:$0xf]
  %v94 = vld [vmem:[%s2 + $0x94] sm:$0xf]
  %v95 = vld [vmem:[%s2 + $0x98] sm:$0xf]
  %v96 = vld [vmem:[%s2 + $0x9c] sm:$0xf]
  %v97 = vld [vmem:[%s2 + $0xa0] sm:$0xf]
  %v98 = vld [vmem:[%s2 + $0xa4] sm:$0xf]
  %v99 = vld [vmem:[%s2 + $0xa8] sm:$0xf]
  %v100 = vld [vmem:[%s2 + $0xac] sm:$0xf]
  %v101 = vld [vmem:[%s2 + $0xb0] sm:$0xf]
  %v102 = vld [vmem:[%s2 + $0xb4] sm:$0xf]
  %v103 = vld [vmem:[%s2 + $0xb8] sm:$0xf]
  %v104 = vld [vmem:[%s2 + $0xbc] sm:$0xf]
  %v105 = vld [vmem:[%s2 + $0xc0] sm:$0xf]
  %v106 = vld [vmem:[%s2 + $0xc4] sm:$0xf]
  %v107 = vld [vmem:[%s2 + $0xc8] sm:$0xf]
  %v108 = vld [vmem:[%s2 + $0xcc] sm:$0xf]
  %v109 = vld [vmem:[%s2 + $0xd0] sm:$0xf]
  %v110 = vld [vmem:[%s2 + $0xd4] sm:$0xf]
  %v111 = vld [vmem:[%s2 + $0xd8] sm:$0xf]
  %v112 = vld [vmem:[%s2 + $0xdc] sm:$0xf]
  %v113 = vld [vmem:[%s2 + $0xe0] sm:$0xf]
  %v114 = vld [vmem:[%s2 + $0xe4] sm:$0xf]
  %v115 = vld [vmem:[%s2 + $0xe8] sm:$0xf]
  %v116 = vld [vmem:[%s2 + $0xec] sm:$0xf]
  %v117 = vld [vmem:[%s2 + $0xf0] sm:$0xf]
  %v118 = vld [vmem:[%s2 + $0xf4] sm:$0xf]
  %v119 = vld [vmem:[%s2 + $0xf8] sm:$0xf]
  %v120 = vld [vmem:[%s2 + $0xfc] sm:$0xf]
  %v121 = vld [vmem:[%s2 + $0x100] sm:$0xf]
  %v122 = vld [vmem:[%s2 + $0x104] sm:$0xf]
  %v123 = vld [vmem:[%s2 + $0x108] sm:$0xf]
  %v124 = vld [vmem:[%s2 + $0x10c] sm:$0xf]
  %v125 = vld [vmem:[%s2 + $0x110] sm:$0xf]
  %v126 = vld [vmem:[%s2 + $0x114] sm:$0xf]
  %v127 = vld [vmem:[%s2 + $0x118] sm:$0xf]
  %v128 = vld [vmem:[%s2 + $0x11c] sm:$0xf]
  %v129 = vld [vmem:[%s2 + $0x120] sm:$0xf]
  %v130 = vld [vmem:[%s2 + $0x124] sm:$0xf]
  %v131 = vld [vmem:[%s2 + $0x128] sm:$0xf]
  %v132 = vld [vmem:[%s2 + $0x12c] sm:$0xf]
  %v133 = vld [vmem:[%s2 + $0x130] sm:$0xf]
  %v134 = vld [vmem:[%s2 + $0x134] sm:$0xf]
  %v135 = vld [vmem:[%s2 + $0x138] sm:$0xf]
  %v136 = vld [vmem:[%s2 + $0x13c] sm:$0xf]
  %v137 = vld [vmem:[%s2 + $0x140] sm:$0xf]
  %v138 = vld [vmem:[%s2 + $0x144] sm:$0xf]
  %v139 = vld [vmem:[%s2 + $0x148] sm:$0xf]
  %v140 = vld [vmem:[%s2 + $0x14c] sm:$0xf]
  %v141 = vld [vmem:[%s2 + $0x150] sm:$0xf]
  %v142 = vld [vmem:[%s2 + $0x154] sm:$0xf]
  %v143 = vld [vmem:[%s2 + $0x158] sm:$0xf]
  %v144 = vld [vmem:[%s2 + $0x15c] sm:$0xf]
  %v145 = vld [vmem:[%s2 + $0x160] sm:$0xf]
  %v146 = vld [vmem:[%s2 + $0x164] sm:$0xf]
  %v147 = vld [vmem:[%s2 + $0x168] sm:$0xf]
  %v148 = vld [vmem:[%s2 + $0x16c] sm:$0xf]
  %v149 = vld [vmem:[%s2 + $0x170] sm:$0xf]
  %v150 = vld [vmem:[%s2 + $0x174] sm:$0xf]
  %v151 = vld [vmem:[%s2 + $0x178] sm:$0xf]
  %v152 = vld [vmem:[%s2 + $0x17c] sm:$0xf]
  %v153 = vld [vmem:[%s2 + $0x180] sm:$0xf]
  %v154 = vld [vmem:[%s2 + $0x184] sm:$0xf]
  %v155 = vld [vmem:[%s2 + $0x188] sm:$0xf]
  %v156 = vld [vmem:[%s2 + $0x18c] sm:$0xf]
  %v157 = vld [vmem:[%s2 + $0x190] sm:$0xf]
  %v158 = vld [vmem:[%s2 + $0x194] sm:$0xf]
  %v159 = vld [vmem:[%s2 + $0x198] sm:$0xf]
  %v160 = vld [vmem:[%s2 + $0x19c] sm:$0xf]
  %v161 = vld [vmem:[%s2 + $0x1a0] sm:$0xf]
  %v162 = vld [vmem:[%s2 + $0x1a4] sm:$0xf]
  %v163 = vld [vmem:[%s2 + $0x1a8] sm:$0xf]
  %v164 = vld [vmem:[%s2 + $0x1ac] sm:$0xf]
  %v165 = vld [vmem:[%s2 + $0x1b0] sm:$0xf]
  %v166 = vld [vmem:[%s2 + $0x1b4] sm:$0xf]
  %v167 = vld [vmem:[%s2 + $0x1b8] sm:$0xf]
  %v168 = vld [vmem:[%s2 + $0x1bc] sm:$0xf]
  %v169 = vld [vmem:[%s2 + $0x1c0] sm:$0xf]
  %v170 = vld [vmem:[%s2 + $0x1c4] sm:$0xf]
  %v171 = vld [vmem:[%s2 + $0x1c8] sm:$0xf]
  %v172 = vld [vmem:[%s2 + $0x1cc] sm:$0xf]
  %v173 = vld [vmem:[%s2 + $0x1d0] sm:$0xf]
  %v174 = vld [vmem:[%s2 + $0x1d4] sm:$0xf]
  %v175 = vld [vmem:[%s2 + $0x1d8] sm:$0xf]
  %v176 = vld [vmem:[%s2 + $0x1dc] sm:$0xf]
  %v177 = vld [vmem:[%s2 + $0x1e0] sm:$0xf]
  %v178 = vld [vmem:[%s2 + $0x1e4] sm:$0xf]
  %v179 = vld [vmem:[%s2 + $0x1e8] sm:$0xf]
  %v180 = vld [vmem:[%s2 + $0x1ec] sm:$0xf]
  %v181 = vld [vmem:[%s2 + $0x1f0] sm:$0xf]
  %v182 = vld [vmem:[%s2 + $0x1f4] sm:$0xf]
  %v183 = vld [vmem:[%s2 + $0x1f8] sm:$0xf]
  %v184 = vld [vmem:[%s2 + $0x1fc] sm:$0xf]
  %v185 = vld [vmem:[%s2 + $0x200] sm:$0xf]
  %v186 = vld [vmem:[%s2 + $0x204] sm:$0xf]
  %v187 = vld [vmem:[%s2 + $0x208] sm:$0xf]
  %v188 = vld [vmem:[%s2 + $0x20c] sm:$0xf]
  %v189 = vld [vmem:[%s2 + $0x210] sm:$0xf]
  %v190 = vld [vmem:[%s2 + $0x214] sm:$0xf]
  %v191 = vld [vmem:[%s2 + $0x218] sm:$0xf]
  %v192 = vld [vmem:[%s2 + $0x21c] sm:$0xf]
  %v193 = vld [vmem:[%s2 + $0x220] sm:$0xf]
  %v194 = vld [vmem:[%s2 + $0x224] sm:$0xf]
  %v195 = vld [vmem:[%s2 + $0x228] sm:$0xf]
  %v196 = vld [vmem:[%s2 + $0x22c] sm:$0xf]
  %v197 = vld [vmem:[%s2 + $0x230] sm:$0xf]
  %v198 = vld [vmem:[%s2 + $0x234] sm:$0xf]
  %v199 = vld [vmem:[%s2 + $0x238] sm:$0xf]
  %v200 = vld [vmem:[%s2 + $0x23c] sm:$0xf]
  %v201 = vld [vmem:[%s2 + $0x240] sm:$0xf]
  %v202 = vld [vmem:[%s2 + $0x244] sm:$0xf]
  %v203 = vld [vmem:[%s2 + $0x248] sm:$0xf]
  %v204 = vld [vmem:[%s2 + $0x24c] sm:$0xf]
  %v205 = vld [vmem:[%s2 + $0x250] sm:$0xf]
  %v206 = vld [vmem:[%s2 + $0x254] sm:$0xf]
  %v207 = vld [vmem:[%s2 + $0x258] sm:$0xf]
  %v208 = vld [vmem:[%s2 + $0x25c] sm:$0xf]
  %v209 = vld [vmem:[%s2 + $0x260] sm:$0xf]
  %v210 = vld [vmem:[%s2 + $0x264] sm:$0xf]
  %v211 = vld [vmem:[%s2 + $0x268] sm:$0xf]
  %v212 = vld [vmem:[%s2 + $0x26c] sm:$0xf]
  %v213 = vld [vmem:[%s2 + $0x270] sm:$0xf]
  %v214 = vld [vmem:[%s2 + $0x274] sm:$0xf]
  %v215 = vld [vmem:[%s2 + $0x278] sm:$0xf]
  %v216 = vld [vmem:[%s2 + $0x27c] sm:$0xf]
  %v217 = vld [vmem:[%s2 + $0x280] sm:$0xf]
  %v218 = vld [vmem:[%s2 + $0x284] sm:$0xf]
  %v219 = vld [vmem:[%s2 + $0x288] sm:$0xf]
  %v220 = vld [vmem:[%s2 + $0x28c] sm:$0xf]
  %v221 = vld [vmem:[%s2 + $0x290] sm:$0xf]
  %v222 = vld [vmem:[%s2 + $0x294] sm:$0xf]
  %v223 = vld [vmem:[%s2 + $0x298] sm:$0xf]
  %v224 = vld [vmem:[%s2 + $0x29c] sm:$0xf]
  %v225 = vld [vmem:[%s2 + $0x2a0] sm:$0xf]
  %v226 = vld [vmem:[%s2 + $0x2a4] sm:$0xf]
  %v227 = vld [vmem:[%s2 + $0x2a8] sm:$0xf]
  %v228 = vld [vmem:[%s2 + $0x2ac] sm:$0xf]
  %v229 = vld [vmem:[%s2 + $0x2b0] sm:$0xf]
  %v230 = vld [vmem:[%s2 + $0x2b4] sm:$0xf]
  %v231 = vld [vmem:[%s2 + $0x2b8] sm:$0xf]
  %v232 = vld [vmem:[%s2 + $0x2bc] sm:$0xf]
  %v233 = vld [vmem:[%s2 + $0x2c0] sm:$0xf]
  %v234 = vld [vmem:[%s2 + $0x2c4] sm:$0xf]
  %v235 = vld [vmem:[%s2 + $0x2c8] sm:$0xf]
  %v236 = vld [vmem:[%s2 + $0x2cc] sm:$0xf]
  %v237 = vld [vmem:[%s2 + $0x2d0] sm:$0xf]
  %v238 = vld [vmem:[%s2 + $0x2d4] sm:$0xf]
  %v239 = vld [vmem:[%s2 + $0x2d8] sm:$0xf]
  %v240 = vld [vmem:[%s2 + $0x2dc] sm:$0xf]
  %v241 = vld [vmem:[%s2 + $0x2e0] sm:$0xf]
  %v242 = vld [vmem:[%s2 + $0x2e4] sm:$0xf]
  %v243 = vld [vmem:[%s2 + $0x2e8] sm:$0xf]
  %v244 = vld [vmem:[%s2 + $0x2ec] sm:$0xf]
  %v245 = vld [vmem:[%s2 + $0x2f0] sm:$0xf]
  %v246 = vld [vmem:[%s2 + $0x2f4] sm:$0xf]
  %v247 = vld [vmem:[%s2 + $0x2f8] sm:$0xf]
  %v248 = vld [vmem:[%s2 + $0x2fc] sm:$0xf]
  %v249 = vld [vmem:[%s2 + $0x300] sm:$0xf]
  %v250 = vld [vmem:[%s2 + $0x304] sm:$0xf]
  %v251 = vld [vmem:[%s2 + $0x308] sm:$0xf]
  %v252 = vld [vmem:[%s2 + $0x30c] sm:$0xf]
  %v253 = vld [vmem:[%s2 + $0x310] sm:$0xf]
  %v254 = vld [vmem:[%s2 + $0x314] sm:$0xf]
  %v255 = vld [vmem:[%s2 + $0x318] sm:$0xf]
  %v256 = vld [vmem:[%s2 + $0x31c] sm:$0xf]
  %v257 = vld [vmem:[%s2 + $0x320] sm:$0xf]
  %v258 = vld [vmem:[%s2 + $0x324] sm:$0xf]
  %v259 = vld [vmem:[%s2 + $0x328] sm:$0xf]
  %v260 = vld [vmem:[%s2 + $0x32c] sm:$0xf]
  %v261 = vld [vmem:[%s2 + $0x330] sm:$0xf]
  %v262 = vld [vmem:[%s2 + $0x334] sm:$0xf]
  %v263 = vld [vmem:[%s2 + $0x338] sm:$0xf]
  %v264 = vld [vmem:[%s2 + $0x33c] sm:$0xf]
  %v265 = vld [vmem:[%s2 + $0x340] sm:$0xf]
  %v266 = vld [vmem:[%s2 + $0x344] sm:$0xf]
  %v267 = vld [vmem:[%s2 + $0x348] sm:$0xf]
  %v268 = vld [vmem:[%s2 + $0x34c] sm:$0xf]
  %v269 = vld [vmem:[%s2 + $0x350] sm:$0xf]
  %v270 = vld [vmem:[%s2 + $0x354] sm:$0xf]
  %v271 = vld [vmem:[%s2 + $0x358] sm:$0xf]
  %v272 = vld [vmem:[%s2 + $0x35c] sm:$0xf]
  %v273 = vld [vmem:[%s2 + $0x360] sm:$0xf]
  %v274 = vld [vmem:[%s2 + $0x364] sm:$0xf]
  %v275 = vld [vmem:[%s2 + $0x368] sm:$0xf]
  %v276 = vld [vmem:[%s2 + $0x36c] sm:$0xf]
  %v277 = vld [vmem:[%s2 + $0x370] sm:$0xf]
  %v278 = vld [vmem:[%s2 + $0x374] sm:$0xf]
  %v279 = vld [vmem:[%s2 + $0x378] sm:$0xf]
  %v280 = vld [vmem:[%s2 + $0x37c] sm:$0xf]
  %v281 = vld [vmem:[%s2 + $0x380] sm:$0xf]
  %v282 = vld [vmem:[%s2 + $0x384] sm:$0xf]
  %v283 = vld [vmem:[%s2 + $0x388] sm:$0xf]
  %v284 = vld [vmem:[%s2 + $0x38c] sm:$0xf]
  %v285 = vld [vmem:[%s2 + $0x390] sm:$0xf]
  %v286 = vld [vmem:[%s2 + $0x394] sm:$0xf]
  %v287 = vld [vmem:[%s2 + $0x398] sm:$0xf]
  %v288 = vld [vmem:[%s2 + $0x39c] sm:$0xf]
  %v289 = vld [vmem:[%s2 + $0x3a0] sm:$0xf]
  %v290 = vld [vmem:[%s2 + $0x3a4] sm:$0xf]
  %v291 = vld [vmem:[%s2 + $0x3a8] sm:$0xf]
  %v292 = vld [vmem:[%s2 + $0x3ac] sm:$0xf]
  %v293 = vld [vmem:[%s2 + $0x3b0] sm:$0xf]
  %v294 = vld [vmem:[%s2 + $0x3b4] sm:$0xf]
  %v295 = vld [vmem:[%s2 + $0x3b8] sm:$0xf]
  %v296 = vld [vmem:[%s2 + $0x3bc] sm:$0xf]
  %v297 = vld [vmem:[%s2 + $0x3c0] sm:$0xf]
  %v298 = vld [vmem:[%s2 + $0x3c4] sm:$0xf]
  %v299 = vld [vmem:[%s2 + $0x3c8] sm:$0xf]
  %v300 = vld [vmem:[%s2 + $0x3cc] sm:$0xf]
  %v301 = vld [vmem:[%s2 + $0x3d0] sm:$0xf]
  %v302 = vld [vmem:[%s2 + $0x3d4] sm:$0xf]
  %v303 = vld [vmem:[%s2 + $0x3d8] sm:$0xf]
  %v304 = vld [vmem:[%s2 + $0x3dc] sm:$0xf]
  %v305 = vld [vmem:[%s2 + $0x3e0] sm:$0xf]
  %v306 = vld [vmem:[%s2 + $0x3e4] sm:$0xf]
  %v307 = vld [vmem:[%s2 + $0x3e8] sm:$0xf]
  %v308 = vld [vmem:[%s2 + $0x3ec] sm:$0xf]
  %v309 = vld [vmem:[%s2 + $0x3f0] sm:$0xf]
  %v310 = vld [vmem:[%s2 + $0x3f4] sm:$0xf]
  %v311 = vld [vmem:[%s2 + $0x3f8] sm:$0xf]
  %v312 = vld [vmem:[%s2 + $0x3fc] sm:$0xf]
  %v313 = vld [vmem:[%s1] sm:$0xf]
  %v314 = vld [vmem:[%s1 + $0x4] sm:$0xf]
  %v315 = vld [vmem:[%s4] sm:$0xf]
  %v316 = vld [vmem:[%s4 + $0x4] sm:$0xf]
  %v317 = vld [vmem:[%s4 + $0x8] sm:$0xf]
  %v318 = vld [vmem:[%s4 + $0xc] sm:$0xf]
  %v319 = vld [vmem:[%s4 + $0x10] sm:$0xf]
  %v320 = vld [vmem:[%s4 + $0x14] sm:$0xf]
  %v321 = vld [vmem:[%s4 + $0x18] sm:$0xf]
  %v322 = vld [vmem:[%s4 + $0x1c] sm:$0xf]
  %v323 = vld [vmem:[%s4 + $0x20] sm:$0xf]
  %v324 = vld [vmem:[%s4 + $0x24] sm:$0xf]
  %v325 = vld [vmem:[%s4 + $0x28] sm:$0xf]
  %v326 = vld [vmem:[%s4 + $0x2c] sm:$0xf]
  %v327 = vld [vmem:[%s4 + $0x30] sm:$0xf]
  %v328 = vld [vmem:[%s4 + $0x34] sm:$0xf]
  %v329 = vld [vmem:[%s4 + $0x38] sm:$0xf]
  %v330 = vld [vmem:[%s4 + $0x3c] sm:$0xf]
  %v333 = vunpack.c.l.b16 %v313
  %v334 = vunpack.c.l.b16 %v314
  %v335 = vpack.c.b16 %v334, %v333
  %v353 = vunpack.c.l.b16 %v315
  %v354 = vunpack.c.l.b16 %v316
  %v355 = vunpack.c.l.b16 %v317
  %v356 = vunpack.c.l.b16 %v318
  %v357 = vunpack.c.l.b16 %v319
  %v358 = vunpack.c.l.b16 %v320
  %v359 = vunpack.c.l.b16 %v321
  %v360 = vunpack.c.l.b16 %v322
  %v361 = vunpack.c.l.b16 %v323
  %v362 = vunpack.c.l.b16 %v324
  %v363 = vunpack.c.l.b16 %v325
  %v364 = vunpack.c.l.b16 %v326
  %v365 = vunpack.c.l.b16 %v327
  %v366 = vunpack.c.l.b16 %v328
  %v367 = vunpack.c.l.b16 %v329
  %v368 = vunpack.c.l.b16 %v330
  %v369 = vpack.c.b16 %v354, %v353
  %v370 = vpack.c.b16 %v356, %v355
  %v371 = vpack.c.b16 %v358, %v357
  %v372 = vpack.c.b16 %v360, %v359
  %v373 = vpack.c.b16 %v362, %v361
  %v374 = vpack.c.b16 %v364, %v363
  %v375 = vpack.c.b16 %v366, %v365
  %v376 = vpack.c.b16 %v368, %v367
  %385 = vmatprep.subr.bf16.mxu0 0
  %386 = vmatpush1.bf16.msra.mxu0 %v376
  %387 = vmatprep.subr.bf16.mxu0 0
  %388 = vmatpush1.bf16.msra.mxu0 %v375
  %389 = vmatprep.subr.bf16.mxu0 0
  %390 = vmatpush1.bf16.msra.mxu0 %v374
  %391 = vmatprep.subr.bf16.mxu0 0
  %392 = vmatpush1.bf16.msra.mxu0 %v373
  %393 = vmatprep.subr.bf16.mxu0 0
  %394 = vmatpush1.bf16.msra.mxu0 %v372
  %395 = vmatprep.subr.bf16.mxu0 0
  %396 = vmatpush1.bf16.msra.mxu0 %v371
  %397 = vmatprep.subr.bf16.mxu0 0
  %398 = vmatpush1.bf16.msra.mxu0 %v370
  %399 = vmatprep.subr.bf16.mxu0 0
  %400 = vmatpush1.bf16.msra.mxu0 %v369
  %401 = vmatprep.subr.bf16.mxu0 0
  %402 = vmatpush2.bf16.msra.mxu0 0
  %403 = vmatprep.subr.bf16.mxu0 0
  %404 = vmatpush2.bf16.msra.mxu0 0
  %405 = vmatprep.subr.bf16.mxu0 0
  %406 = vmatpush2.bf16.msra.mxu0 0
  %407 = vmatprep.subr.bf16.mxu0 0
  %408 = vmatpush2.bf16.msra.mxu0 0
  %409 = vmatprep.subr.bf16.mxu0 0
  %410 = vmatpush2.bf16.msra.mxu0 0
  %411 = vmatprep.subr.bf16.mxu0 0
  %412 = vmatpush2.bf16.msra.mxu0 0
  %413 = vmatprep.subr.bf16.mxu0 0
  %414 = vmatpush2.bf16.msra.mxu0 0
  %415 = vmatprep.subr.bf16.mxu0 0
  %416 = vmatpush2.bf16.msra.mxu0 0
  %417 = vmatprep.mubr.bf16.mxu0 0
  %418 = vmatmul.mubr.bf16.gmra.mxu0 %v335
  %v419 = vpop.f32.mrf.mxu0
  %v420 = vadd.f32 0.0, %v419
  %v421 = vpop.f32.mrf.mxu0
  %v422 = vpop.f32.mrf.mxu0
  %v423 = vadd.f32 0.0, %v422
  %v424 = vpop.f32.mrf.mxu0
  %425 = vdwg.mxu0
  %v442 = vunpack.c.l.b16 %v41
  %v443 = vunpack.c.h.b16 %v41
  %v444 = vunpack.c.l.b16 %v42
  %v445 = vunpack.c.h.b16 %v42
  %v446 = vunpack.c.l.b16 %v43
  %v447 = vunpack.c.h.b16 %v43
  %v448 = vunpack.c.l.b16 %v44
  %v449 = vunpack.c.h.b16 %v44
  %v450 = vunpack.c.l.b16 %v45
  %v451 = vunpack.c.h.b16 %v45
  %v452 = vunpack.c.l.b16 %v46
  %v453 = vunpack.c.h.b16 %v46
  %v454 = vunpack.c.l.b16 %v47
  %v455 = vunpack.c.h.b16 %v47
  %v456 = vunpack.c.l.b16 %v48
  %v457 = vunpack.c.h.b16 %v48
  %v458 = vunpack.c.l.b16 %v49
  %v459 = vunpack.c.h.b16 %v49
  %v460 = vunpack.c.l.b16 %v50
  %v461 = vunpack.c.h.b16 %v50
  %v462 = vunpack.c.l.b16 %v51
  %v463 = vunpack.c.h.b16 %v51
  %v464 = vunpack.c.l.b16 %v52
  %v465 = vunpack.c.h.b16 %v52
  %v466 = vunpack.c.l.b16 %v53
  %v467 = vunpack.c.h.b16 %v53
  %v468 = vunpack.c.l.b16 %v54
  %v469 = vunpack.c.h.b16 %v54
  %v470 = vunpack.c.l.b16 %v55
  %v471 = vunpack.c.h.b16 %v55
  %v472 = vunpack.c.l.b16 %v56
  %v473 = vunpack.c.h.b16 %v56
  %v474 = vpack.c.b16 %v458, %v442
  %v475 = vpack.c.b16 %v459, %v443
  %v476 = vpack.c.b16 %v460, %v444
  %v477 = vpack.c.b16 %v461, %v445
  %v478 = vpack.c.b16 %v462, %v446
  %v479 = vpack.c.b16 %v463, %v447
  %v480 = vpack.c.b16 %v464, %v448
  %v481 = vpack.c.b16 %v465, %v449
  %v482 = vpack.c.b16 %v466, %v450
  %v483 = vpack.c.b16 %v467, %v451
  %v484 = vpack.c.b16 %v468, %v452
  %v485 = vpack.c.b16 %v469, %v453
  %v486 = vpack.c.b16 %v470, %v454
  %v487 = vpack.c.b16 %v471, %v455
  %v488 = vpack.c.b16 %v472, %v456
  %v489 = vpack.c.b16 %v473, %v457
  %v762 = vunpack.c.l.b16 %v57
  %v763 = vunpack.c.l.b16 %v58
  %v764 = vunpack.c.l.b16 %v59
  %v765 = vunpack.c.l.b16 %v60
  %v766 = vunpack.c.l.b16 %v61
  %v767 = vunpack.c.l.b16 %v62
  %v768 = vunpack.c.l.b16 %v63
  %v769 = vunpack.c.l.b16 %v64
  %v770 = vunpack.c.l.b16 %v65
  %v771 = vunpack.c.l.b16 %v66
  %v772 = vunpack.c.l.b16 %v67
  %v773 = vunpack.c.l.b16 %v68
  %v774 = vunpack.c.l.b16 %v69
  %v775 = vunpack.c.l.b16 %v70
  %v776 = vunpack.c.l.b16 %v71
  %v777 = vunpack.c.l.b16 %v72
  %v778 = vunpack.c.l.b16 %v73
  %v779 = vunpack.c.l.b16 %v74
  %v780 = vunpack.c.l.b16 %v75
  %v781 = vunpack.c.l.b16 %v76
  %v782 = vunpack.c.l.b16 %v77
  %v783 = vunpack.c.l.b16 %v78
  %v784 = vunpack.c.l.b16 %v79
  %v785 = vunpack.c.l.b16 %v80
  %v786 = vunpack.c.l.b16 %v81
  %v787 = vunpack.c.l.b16 %v82
  %v788 = vunpack.c.l.b16 %v83
  %v789 = vunpack.c.l.b16 %v84
  %v790 = vunpack.c.l.b16 %v85
  %v791 = vunpack.c.l.b16 %v86
  %v792 = vunpack.c.l.b16 %v87
  %v793 = vunpack.c.l.b16 %v88
  %v794 = vunpack.c.l.b16 %v89
  %v795 = vunpack.c.l.b16 %v90
  %v796 = vunpack.c.l.b16 %v91
  %v797 = vunpack.c.l.b16 %v92
  %v798 = vunpack.c.l.b16 %v93
  %v799 = vunpack.c.l.b16 %v94
  %v800 = vunpack.c.l.b16 %v95
  %v801 = vunpack.c.l.b16 %v96
  %v802 = vunpack.c.l.b16 %v97
  %v803 = vunpack.c.l.b16 %v98
  %v804 = vunpack.c.l.b16 %v99
  %v805 = vunpack.c.l.b16 %v100
  %v806 = vunpack.c.l.b16 %v101
  %v807 = vunpack.c.l.b16 %v102
  %v808 = vunpack.c.l.b16 %v103
  %v809 = vunpack.c.l.b16 %v104
  %v810 = vunpack.c.l.b16 %v105
  %v811 = vunpack.c.l.b16 %v106
  %v812 = vunpack.c.l.b16 %v107
  %v813 = vunpack.c.l.b16 %v108
  %v814 = vunpack.c.l.b16 %v109
  %v815 = vunpack.c.l.b16 %v110
  %v816 = vunpack.c.l.b16 %v111
  %v817 = vunpack.c.l.b16 %v112
  %v818 = vunpack.c.l.b16 %v113
  %v819 = vunpack.c.l.b16 %v114
  %v820 = vunpack.c.l.b16 %v115
  %v821 = vunpack.c.l.b16 %v116
  %v822 = vunpack.c.l.b16 %v117
  %v823 = vunpack.c.l.b16 %v118
  %v824 = vunpack.c.l.b16 %v119
  %v825 = vunpack.c.l.b16 %v120
  %v826 = vunpack.c.l.b16 %v121
  %v827 = vunpack.c.l.b16 %v122
  %v828 = vunpack.c.l.b16 %v123
  %v829 = vunpack.c.l.b16 %v124
  %v830 = vunpack.c.l.b16 %v125
  %v831 = vunpack.c.l.b16 %v126
  %v832 = vunpack.c.l.b16 %v127
  %v833 = vunpack.c.l.b16 %v128
  %v834 = vunpack.c.l.b16 %v129
  %v835 = vunpack.c.l.b16 %v130
  %v836 = vunpack.c.l.b16 %v131
  %v837 = vunpack.c.l.b16 %v132
  %v838 = vunpack.c.l.b16 %v133
  %v839 = vunpack.c.l.b16 %v134
  %v840 = vunpack.c.l.b16 %v135
  %v841 = vunpack.c.l.b16 %v136
  %v842 = vunpack.c.l.b16 %v137
  %v843 = vunpack.c.l.b16 %v138
  %v844 = vunpack.c.l.b16 %v139
  %v845 = vunpack.c.l.b16 %v140
  %v846 = vunpack.c.l.b16 %v141
  %v847 = vunpack.c.l.b16 %v142
  %v848 = vunpack.c.l.b16 %v143
  %v849 = vunpack.c.l.b16 %v144
  %v850 = vunpack.c.l.b16 %v145
  %v851 = vunpack.c.l.b16 %v146
  %v852 = vunpack.c.l.b16 %v147
  %v853 = vunpack.c.l.b16 %v148
  %v854 = vunpack.c.l.b16 %v149
  %v855 = vunpack.c.l.b16 %v150
  %v856 = vunpack.c.l.b16 %v151
  %v857 = vunpack.c.l.b16 %v152
  %v858 = vunpack.c.l.b16 %v153
  %v859 = vunpack.c.l.b16 %v154
  %v860 = vunpack.c.l.b16 %v155
  %v861 = vunpack.c.l.b16 %v156
  %v862 = vunpack.c.l.b16 %v157
  %v863 = vunpack.c.l.b16 %v158
  %v864 = vunpack.c.l.b16 %v159
  %v865 = vunpack.c.l.b16 %v160
  %v866 = vunpack.c.l.b16 %v161
  %v867 = vunpack.c.l.b16 %v162
  %v868 = vunpack.c.l.b16 %v163
  %v869 = vunpack.c.l.b16 %v164
  %v870 = vunpack.c.l.b16 %v165
  %v871 = vunpack.c.l.b16 %v166
  %v872 = vunpack.c.l.b16 %v167
  %v873 = vunpack.c.l.b16 %v168
  %v874 = vunpack.c.l.b16 %v169
  %v875 = vunpack.c.l.b16 %v170
  %v876 = vunpack.c.l.b16 %v171
  %v877 = vunpack.c.l.b16 %v172
  %v878 = vunpack.c.l.b16 %v173
  %v879 = vunpack.c.l.b16 %v174
  %v880 = vunpack.c.l.b16 %v175
  %v881 = vunpack.c.l.b16 %v176
  %v882 = vunpack.c.l.b16 %v177
  %v883 = vunpack.c.l.b16 %v178
  %v884 = vunpack.c.l.b16 %v179
  %v885 = vunpack.c.l.b16 %v180
  %v886 = vunpack.c.l.b16 %v181
  %v887 = vunpack.c.l.b16 %v182
  %v888 = vunpack.c.l.b16 %v183
  %v889 = vunpack.c.l.b16 %v184
  %v890 = vunpack.c.l.b16 %v185
  %v891 = vunpack.c.l.b16 %v186
  %v892 = vunpack.c.l.b16 %v187
  %v893 = vunpack.c.l.b16 %v188
  %v894 = vunpack.c.l.b16 %v189
  %v895 = vunpack.c.l.b16 %v190
  %v896 = vunpack.c.l.b16 %v191
  %v897 = vunpack.c.l.b16 %v192
  %v898 = vunpack.c.l.b16 %v193
  %v899 = vunpack.c.l.b16 %v194
  %v900 = vunpack.c.l.b16 %v195
  %v901 = vunpack.c.l.b16 %v196
  %v902 = vunpack.c.l.b16 %v197
  %v903 = vunpack.c.l.b16 %v198
  %v904 = vunpack.c.l.b16 %v199
  %v905 = vunpack.c.l.b16 %v200
  %v906 = vunpack.c.l.b16 %v201
  %v907 = vunpack.c.l.b16 %v202
  %v908 = vunpack.c.l.b16 %v203
  %v909 = vunpack.c.l.b16 %v204
  %v910 = vunpack.c.l.b16 %v205
  %v911 = vunpack.c.l.b16 %v206
  %v912 = vunpack.c.l.b16 %v207
  %v913 = vunpack.c.l.b16 %v208
  %v914 = vunpack.c.l.b16 %v209
  %v915 = vunpack.c.l.b16 %v210
  %v916 = vunpack.c.l.b16 %v211
  %v917 = vunpack.c.l.b16 %v212
  %v918 = vunpack.c.l.b16 %v213
  %v919 = vunpack.c.l.b16 %v214
  %v920 = vunpack.c.l.b16 %v215
  %v921 = vunpack.c.l.b16 %v216
  %v922 = vunpack.c.l.b16 %v217
  %v923 = vunpack.c.l.b16 %v218
  %v924 = vunpack.c.l.b16 %v219
  %v925 = vunpack.c.l.b16 %v220
  %v926 = vunpack.c.l.b16 %v221
  %v927 = vunpack.c.l.b16 %v222
  %v928 = vunpack.c.l.b16 %v223
  %v929 = vunpack.c.l.b16 %v224
  %v930 = vunpack.c.l.b16 %v225
  %v931 = vunpack.c.l.b16 %v226
  %v932 = vunpack.c.l.b16 %v227
  %v933 = vunpack.c.l.b16 %v228
  %v934 = vunpack.c.l.b16 %v229
  %v935 = vunpack.c.l.b16 %v230
  %v936 = vunpack.c.l.b16 %v231
  %v937 = vunpack.c.l.b16 %v232
  %v938 = vunpack.c.l.b16 %v233
  %v939 = vunpack.c.l.b16 %v234
  %v940 = vunpack.c.l.b16 %v235
  %v941 = vunpack.c.l.b16 %v236
  %v942 = vunpack.c.l.b16 %v237
  %v943 = vunpack.c.l.b16 %v238
  %v944 = vunpack.c.l.b16 %v239
  %v945 = vunpack.c.l.b16 %v240
  %v946 = vunpack.c.l.b16 %v241
  %v947 = vunpack.c.l.b16 %v242
  %v948 = vunpack.c.l.b16 %v243
  %v949 = vunpack.c.l.b16 %v244
  %v950 = vunpack.c.l.b16 %v245
  %v951 = vunpack.c.l.b16 %v246
  %v952 = vunpack.c.l.b16 %v247
  %v953 = vunpack.c.l.b16 %v248
  %v954 = vunpack.c.l.b16 %v249
  %v955 = vunpack.c.l.b16 %v250
  %v956 = vunpack.c.l.b16 %v251
  %v957 = vunpack.c.l.b16 %v252
  %v958 = vunpack.c.l.b16 %v253
  %v959 = vunpack.c.l.b16 %v254
  %v960 = vunpack.c.l.b16 %v255
  %v961 = vunpack.c.l.b16 %v256
  %v962 = vunpack.c.l.b16 %v257
  %v963 = vunpack.c.l.b16 %v258
  %v964 = vunpack.c.l.b16 %v259
  %v965 = vunpack.c.l.b16 %v260
  %v966 = vunpack.c.l.b16 %v261
  %v967 = vunpack.c.l.b16 %v262
  %v968 = vunpack.c.l.b16 %v263
  %v969 = vunpack.c.l.b16 %v264
  %v970 = vunpack.c.l.b16 %v265
  %v971 = vunpack.c.l.b16 %v266
  %v972 = vunpack.c.l.b16 %v267
  %v973 = vunpack.c.l.b16 %v268
  %v974 = vunpack.c.l.b16 %v269
  %v975 = vunpack.c.l.b16 %v270
  %v976 = vunpack.c.l.b16 %v271
  %v977 = vunpack.c.l.b16 %v272
  %v978 = vunpack.c.l.b16 %v273
  %v979 = vunpack.c.l.b16 %v274
  %v980 = vunpack.c.l.b16 %v275
  %v981 = vunpack.c.l.b16 %v276
  %v982 = vunpack.c.l.b16 %v277
  %v983 = vunpack.c.l.b16 %v278
  %v984 = vunpack.c.l.b16 %v279
  %v985 = vunpack.c.l.b16 %v280
  %v986 = vunpack.c.l.b16 %v281
  %v987 = vunpack.c.l.b16 %v282
  %v988 = vunpack.c.l.b16 %v283
  %v989 = vunpack.c.l.b16 %v284
  %v990 = vunpack.c.l.b16 %v285
  %v991 = vunpack.c.l.b16 %v286
  %v992 = vunpack.c.l.b16 %v287
  %v993 = vunpack.c.l.b16 %v288
  %v994 = vunpack.c.l.b16 %v289
  %v995 = vunpack.c.l.b16 %v290
  %v996 = vunpack.c.l.b16 %v291
  %v997 = vunpack.c.l.b16 %v292
  %v998 = vunpack.c.l.b16 %v293
  %v999 = vunpack.c.l.b16 %v294
  %v1000 = vunpack.c.l.b16 %v295
  %v1001 = vunpack.c.l.b16 %v296
  %v1002 = vunpack.c.l.b16 %v297
  %v1003 = vunpack.c.l.b16 %v298
  %v1004 = vunpack.c.l.b16 %v299
  %v1005 = vunpack.c.l.b16 %v300
  %v1006 = vunpack.c.l.b16 %v301
  %v1007 = vunpack.c.l.b16 %v302
  %v1008 = vunpack.c.l.b16 %v303
  %v1009 = vunpack.c.l.b16 %v304
  %v1010 = vunpack.c.l.b16 %v305
  %v1011 = vunpack.c.l.b16 %v306
  %v1012 = vunpack.c.l.b16 %v307
  %v1013 = vunpack.c.l.b16 %v308
  %v1014 = vunpack.c.l.b16 %v309
  %v1015 = vunpack.c.l.b16 %v310
  %v1016 = vunpack.c.l.b16 %v311
  %v1017 = vunpack.c.l.b16 %v312
  %v1018 = vpack.c.b16 %v763, %v762
  %v1019 = vpack.c.b16 %v765, %v764
  %v1020 = vpack.c.b16 %v767, %v766
  %v1021 = vpack.c.b16 %v769, %v768
  %v1022 = vpack.c.b16 %v771, %v770
  %v1023 = vpack.c.b16 %v773, %v772
  %v1024 = vpack.c.b16 %v775, %v774
  %v1025 = vpack.c.b16 %v777, %v776
  %v1026 = vpack.c.b16 %v779, %v778
  %v1027 = vpack.c.b16 %v781, %v780
  %v1028 = vpack.c.b16 %v783, %v782
  %v1029 = vpack.c.b16 %v785, %v784
  %v1030 = vpack.c.b16 %v787, %v786
  %v1031 = vpack.c.b16 %v789, %v788
  %v1032 = vpack.c.b16 %v791, %v790
  %v1033 = vpack.c.b16 %v793, %v792
  %v1034 = vpack.c.b16 %v795, %v794
  %v1035 = vpack.c.b16 %v797, %v796
  %v1036 = vpack.c.b16 %v799, %v798
  %v1037 = vpack.c.b16 %v801, %v800
  %v1038 = vpack.c.b16 %v803, %v802
  %v1039 = vpack.c.b16 %v805, %v804
  %v1040 = vpack.c.b16 %v807, %v806
  %v1041 = vpack.c.b16 %v809, %v808
  %v1042 = vpack.c.b16 %v811, %v810
  %v1043 = vpack.c.b16 %v813, %v812
  %v1044 = vpack.c.b16 %v815, %v814
  %v1045 = vpack.c.b16 %v817, %v816
  %v1046 = vpack.c.b16 %v819, %v818
  %v1047 = vpack.c.b16 %v821, %v820
  %v1048 = vpack.c.b16 %v823, %v822
  %v1049 = vpack.c.b16 %v825, %v824
  %v1050 = vpack.c.b16 %v827, %v826
  %v1051 = vpack.c.b16 %v829, %v828
  %v1052 = vpack.c.b16 %v831, %v830
  %v1053 = vpack.c.b16 %v833, %v832
  %v1054 = vpack.c.b16 %v835, %v834
  %v1055 = vpack.c.b16 %v837, %v836
  %v1056 = vpack.c.b16 %v839, %v838
  %v1057 = vpack.c.b16 %v841, %v840
  %v1058 = vpack.c.b16 %v843, %v842
  %v1059 = vpack.c.b16 %v845, %v844
  %v1060 = vpack.c.b16 %v847, %v846
  %v1061 = vpack.c.b16 %v849, %v848
  %v1062 = vpack.c.b16 %v851, %v850
  %v1063 = vpack.c.b16 %v853, %v852
  %v1064 = vpack.c.b16 %v855, %v854
  %v1065 = vpack.c.b16 %v857, %v856
  %v1066 = vpack.c.b16 %v859, %v858
  %v1067 = vpack.c.b16 %v861, %v860
  %v1068 = vpack.c.b16 %v863, %v862
  %v1069 = vpack.c.b16 %v865, %v864
  %v1070 = vpack.c.b16 %v867, %v866
  %v1071 = vpack.c.b16 %v869, %v868
  %v1072 = vpack.c.b16 %v871, %v870
  %v1073 = vpack.c.b16 %v873, %v872
  %v1074 = vpack.c.b16 %v875, %v874
  %v1075 = vpack.c.b16 %v877, %v876
  %v1076 = vpack.c.b16 %v879, %v878
  %v1077 = vpack.c.b16 %v881, %v880
  %v1078 = vpack.c.b16 %v883, %v882
  %v1079 = vpack.c.b16 %v885, %v884
  %v1080 = vpack.c.b16 %v887, %v886
  %v1081 = vpack.c.b16 %v889, %v888
  %v1082 = vpack.c.b16 %v891, %v890
  %v1083 = vpack.c.b16 %v893, %v892
  %v1084 = vpack.c.b16 %v895, %v894
  %v1085 = vpack.c.b16 %v897, %v896
  %v1086 = vpack.c.b16 %v899, %v898
  %v1087 = vpack.c.b16 %v901, %v900
  %v1088 = vpack.c.b16 %v903, %v902
  %v1089 = vpack.c.b16 %v905, %v904
  %v1090 = vpack.c.b16 %v907, %v906
  %v1091 = vpack.c.b16 %v909, %v908
  %v1092 = vpack.c.b16 %v911, %v910
  %v1093 = vpack.c.b16 %v913, %v912
  %v1094 = vpack.c.b16 %v915, %v914
  %v1095 = vpack.c.b16 %v917, %v916
  %v1096 = vpack.c.b16 %v919, %v918
  %v1097 = vpack.c.b16 %v921, %v920
  %v1098 = vpack.c.b16 %v923, %v922
  %v1099 = vpack.c.b16 %v925, %v924
  %v1100 = vpack.c.b16 %v927, %v926
  %v1101 = vpack.c.b16 %v929, %v928
  %v1102 = vpack.c.b16 %v931, %v930
  %v1103 = vpack.c.b16 %v933, %v932
  %v1104 = vpack.c.b16 %v935, %v934
  %v1105 = vpack.c.b16 %v937, %v936
  %v1106 = vpack.c.b16 %v939, %v938
  %v1107 = vpack.c.b16 %v941, %v940
  %v1108 = vpack.c.b16 %v943, %v942
  %v1109 = vpack.c.b16 %v945, %v944
  %v1110 = vpack.c.b16 %v947, %v946
  %v1111 = vpack.c.b16 %v949, %v948
  %v1112 = vpack.c.b16 %v951, %v950
  %v1113 = vpack.c.b16 %v953, %v952
  %v1114 = vpack.c.b16 %v955, %v954
  %v1115 = vpack.c.b16 %v957, %v956
  %v1116 = vpack.c.b16 %v959, %v958
  %v1117 = vpack.c.b16 %v961, %v960
  %v1118 = vpack.c.b16 %v963, %v962
  %v1119 = vpack.c.b16 %v965, %v964
  %v1120 = vpack.c.b16 %v967, %v966
  %v1121 = vpack.c.b16 %v969, %v968
  %v1122 = vpack.c.b16 %v971, %v970
  %v1123 = vpack.c.b16 %v973, %v972
  %v1124 = vpack.c.b16 %v975, %v974
  %v1125 = vpack.c.b16 %v977, %v976
  %v1126 = vpack.c.b16 %v979, %v978
  %v1127 = vpack.c.b16 %v981, %v980
  %v1128 = vpack.c.b16 %v983, %v982
  %v1129 = vpack.c.b16 %v985, %v984
  %v1130 = vpack.c.b16 %v987, %v986
  %v1131 = vpack.c.b16 %v989, %v988
  %v1132 = vpack.c.b16 %v991, %v990
  %v1133 = vpack.c.b16 %v993, %v992
  %v1134 = vpack.c.b16 %v995, %v994
  %v1135 = vpack.c.b16 %v997, %v996
  %v1136 = vpack.c.b16 %v999, %v998
  %v1137 = vpack.c.b16 %v1001, %v1000
  %v1138 = vpack.c.b16 %v1003, %v1002
  %v1139 = vpack.c.b16 %v1005, %v1004
  %v1140 = vpack.c.b16 %v1007, %v1006
  %v1141 = vpack.c.b16 %v1009, %v1008
  %v1142 = vpack.c.b16 %v1011, %v1010
  %v1143 = vpack.c.b16 %v1013, %v1012
  %v1144 = vpack.c.b16 %v1015, %v1014
  %v1145 = vpack.c.b16 %v1017, %v1016
  %1274 = vmatprep.subr.bf16.mxu0 0
  %1275 = vmatpush1.bf16.msra.mxu0 %v1025
  %1276 = vmatprep.subr.bf16.mxu0 0
  %1277 = vmatpush1.bf16.msra.mxu0 %v1024
  %1278 = vmatprep.subr.bf16.mxu0 0
  %1279 = vmatpush1.bf16.msra.mxu0 %v1023
  %1280 = vmatprep.subr.bf16.mxu0 0
  %1281 = vmatpush1.bf16.msra.mxu0 %v1022
  %1282 = vmatprep.subr.bf16.mxu0 0
  %1283 = vmatpush1.bf16.msra.mxu0 %v1021
  %1284 = vmatprep.subr.bf16.mxu0 0
  %1285 = vmatpush1.bf16.msra.mxu0 %v1020
  %1286 = vmatprep.subr.bf16.mxu0 0
  %1287 = vmatpush1.bf16.msra.mxu0 %v1019
  %1288 = vmatprep.subr.bf16.mxu0 0
  %1289 = vmatpush1.bf16.msra.mxu0 %v1018
  %1290 = vmatprep.subr.bf16.mxu0 0
  %1291 = vmatpush2.bf16.msra.mxu0 %v1033
  %1292 = vmatprep.subr.bf16.mxu0 0
  %1293 = vmatpush2.bf16.msra.mxu0 %v1032
  %1294 = vmatprep.subr.bf16.mxu0 0
  %1295 = vmatpush2.bf16.msra.mxu0 %v1031
  %1296 = vmatprep.subr.bf16.mxu0 0
  %1297 = vmatpush2.bf16.msra.mxu0 %v1030
  %1298 = vmatprep.subr.bf16.mxu0 0
  %1299 = vmatpush2.bf16.msra.mxu0 %v1029
  %1300 = vmatprep.subr.bf16.mxu0 0
  %1301 = vmatpush2.bf16.msra.mxu0 %v1028
  %1302 = vmatprep.subr.bf16.mxu0 0
  %1303 = vmatpush2.bf16.msra.mxu0 %v1027
  %1304 = vmatprep.subr.bf16.mxu0 0
  %1305 = vmatpush2.bf16.msra.mxu0 %v1026
  %1306 = vmatprep.mubr.bf16.mxu0 %v475
  %1307 = vmatmul.mubr.bf16.gmra.mxu0 %v474
  %v1308 = vpop.f32.mrf.mxu0
  %v1309 = vadd.f32 %v420, %v1308
  %v1310 = vpop.f32.mrf.mxu0
  %v1311 = vpop.f32.mrf.mxu0
  %v1312 = vadd.f32 %v423, %v1311
  %v1313 = vpop.f32.mrf.mxu0
  %1314 = vdwg.mxu0
  %1315 = vmatprep.subr.bf16.mxu0 0
  %1316 = vmatpush1.bf16.msra.mxu0 %v1041
  %1317 = vmatprep.subr.bf16.mxu0 0
  %1318 = vmatpush1.bf16.msra.mxu0 %v1040
  %1319 = vmatprep.subr.bf16.mxu0 0
  %1320 = vmatpush1.bf16.msra.mxu0 %v1039
  %1321 = vmatprep.subr.bf16.mxu0 0
  %1322 = vmatpush1.bf16.msra.mxu0 %v1038
  %1323 = vmatprep.subr.bf16.mxu0 0
  %1324 = vmatpush1.bf16.msra.mxu0 %v1037
  %1325 = vmatprep.subr.bf16.mxu0 0
  %1326 = vmatpush1.bf16.msra.mxu0 %v1036
  %1327 = vmatprep.subr.bf16.mxu0 0
  %1328 = vmatpush1.bf16.msra.mxu0 %v1035
  %1329 = vmatprep.subr.bf16.mxu0 0
  %1330 = vmatpush1.bf16.msra.mxu0 %v1034
  %1331 = vmatprep.subr.bf16.mxu0 0
  %1332 = vmatpush2.bf16.msra.mxu0 %v1049
  %1333 = vmatprep.subr.bf16.mxu0 0
  %1334 = vmatpush2.bf16.msra.mxu0 %v1048
  %1335 = vmatprep.subr.bf16.mxu0 0
  %1336 = vmatpush2.bf16.msra.mxu0 %v1047
  %1337 = vmatprep.subr.bf16.mxu0 0
  %1338 = vmatpush2.bf16.msra.mxu0 %v1046
  %1339 = vmatprep.subr.bf16.mxu0 0
  %1340 = vmatpush2.bf16.msra.mxu0 %v1045
  %1341 = vmatprep.subr.bf16.mxu0 0
  %1342 = vmatpush2.bf16.msra.mxu0 %v1044
  %1343 = vmatprep.subr.bf16.mxu0 0
  %1344 = vmatpush2.bf16.msra.mxu0 %v1043
  %1345 = vmatprep.subr.bf16.mxu0 0
  %1346 = vmatpush2.bf16.msra.mxu0 %v1042
  %1347 = vmatprep.mubr.bf16.mxu0 %v477
  %1348 = vmatmul.mubr.bf16.gmra.mxu0 %v476
  %v1349 = vpop.f32.mrf.mxu0
  %v1350 = vadd.f32 %v1309, %v1349
  %v1351 = vpop.f32.mrf.mxu0
  %v1352 = vpop.f32.mrf.mxu0
  %v1353 = vadd.f32 %v1312, %v1352
  %v1354 = vpop.f32.mrf.mxu0
  %1355 = vdwg.mxu0
  %1356 = vmatprep.subr.bf16.mxu0 0
  %1357 = vmatpush1.bf16.msra.mxu0 %v1057
  %1358 = vmatprep.subr.bf16.mxu0 0
  %1359 = vmatpush1.bf16.msra.mxu0 %v1056
  %1360 = vmatprep.subr.bf16.mxu0 0
  %1361 = vmatpush1.bf16.msra.mxu0 %v1055
  %1362 = vmatprep.subr.bf16.mxu0 0
  %1363 = vmatpush1.bf16.msra.mxu0 %v1054
  %1364 = vmatprep.subr.bf16.mxu0 0
  %1365 = vmatpush1.bf16.msra.mxu0 %v1053
  %1366 = vmatprep.subr.bf16.mxu0 0
  %1367 = vmatpush1.bf16.msra.mxu0 %v1052
  %1368 = vmatprep.subr.bf16.mxu0 0
  %1369 = vmatpush1.bf16.msra.mxu0 %v1051
  %1370 = vmatprep.subr.bf16.mxu0 0
  %1371 = vmatpush1.bf16.msra.mxu0 %v1050
  %1372 = vmatprep.subr.bf16.mxu0 0
  %1373 = vmatpush2.bf16.msra.mxu0 %v1065
  %1374 = vmatprep.subr.bf16.mxu0 0
  %1375 = vmatpush2.bf16.msra.mxu0 %v1064
  %1376 = vmatprep.subr.bf16.mxu0 0
  %1377 = vmatpush2.bf16.msra.mxu0 %v1063
  %1378 = vmatprep.subr.bf16.mxu0 0
  %1379 = vmatpush2.bf16.msra.mxu0 %v1062
  %1380 = vmatprep.subr.bf16.mxu0 0
  %1381 = vmatpush2.bf16.msra.mxu0 %v1061
  %1382 = vmatprep.subr.bf16.mxu0 0
  %1383 = vmatpush2.bf16.msra.mxu0 %v1060
  %1384 = vmatprep.subr.bf16.mxu0 0
  %1385 = vmatpush2.bf16.msra.mxu0 %v1059
  %1386 = vmatprep.subr.bf16.mxu0 0
  %1387 = vmatpush2.bf16.msra.mxu0 %v1058
  %1388 = vmatprep.mubr.bf16.mxu0 %v479
  %1389 = vmatmul.mubr.bf16.gmra.mxu0 %v478
  %v1390 = vpop.f32.mrf.mxu0
  %v1391 = vadd.f32 %v1350, %v1390
  %v1392 = vpop.f32.mrf.mxu0
  %v1393 = vpop.f32.mrf.mxu0
  %v1394 = vadd.f32 %v1353, %v1393
  %v1395 = vpop.f32.mrf.mxu0
  %1396 = vdwg.mxu0
  %1397 = vmatprep.subr.bf16.mxu0 0
  %1398 = vmatpush1.bf16.msra.mxu0 %v1073
  %1399 = vmatprep.subr.bf16.mxu0 0
  %1400 = vmatpush1.bf16.msra.mxu0 %v1072
  %1401 = vmatprep.subr.bf16.mxu0 0
  %1402 = vmatpush1.bf16.msra.mxu0 %v1071
  %1403 = vmatprep.subr.bf16.mxu0 0
  %1404 = vmatpush1.bf16.msra.mxu0 %v1070
  %1405 = vmatprep.subr.bf16.mxu0 0
  %1406 = vmatpush1.bf16.msra.mxu0 %v1069
  %1407 = vmatprep.subr.bf16.mxu0 0
  %1408 = vmatpush1.bf16.msra.mxu0 %v1068
  %1409 = vmatprep.subr.bf16.mxu0 0
  %1410 = vmatpush1.bf16.msra.mxu0 %v1067
  %1411 = vmatprep.subr.bf16.mxu0 0
  %1412 = vmatpush1.bf16.msra.mxu0 %v1066
  %1413 = vmatprep.subr.bf16.mxu0 0
  %1414 = vmatpush2.bf16.msra.mxu0 %v1081
  %1415 = vmatprep.subr.bf16.mxu0 0
  %1416 = vmatpush2.bf16.msra.mxu0 %v1080
  %1417 = vmatprep.subr.bf16.mxu0 0
  %1418 = vmatpush2.bf16.msra.mxu0 %v1079
  %1419 = vmatprep.subr.bf16.mxu0 0
  %1420 = vmatpush2.bf16.msra.mxu0 %v1078
  %1421 = vmatprep.subr.bf16.mxu0 0
  %1422 = vmatpush2.bf16.msra.mxu0 %v1077
  %1423 = vmatprep.subr.bf16.mxu0 0
  %1424 = vmatpush2.bf16.msra.mxu0 %v1076
  %1425 = vmatprep.subr.bf16.mxu0 0
  %1426 = vmatpush2.bf16.msra.mxu0 %v1075
  %1427 = vmatprep.subr.bf16.mxu0 0
  %1428 = vmatpush2.bf16.msra.mxu0 %v1074
  %1429 = vmatprep.mubr.bf16.mxu0 %v481
  %1430 = vmatmul.mubr.bf16.gmra.mxu0 %v480
  %v1431 = vpop.f32.mrf.mxu0
  %v1432 = vadd.f32 %v1391, %v1431
  %v1433 = vpop.f32.mrf.mxu0
  %v1434 = vpop.f32.mrf.mxu0
  %v1435 = vadd.f32 %v1394, %v1434
  %v1436 = vpop.f32.mrf.mxu0
  %1437 = vdwg.mxu0
  %1438 = vmatprep.subr.bf16.mxu0 0
  %1439 = vmatpush1.bf16.msra.mxu0 %v1089
  %1440 = vmatprep.subr.bf16.mxu0 0
  %1441 = vmatpush1.bf16.msra.mxu0 %v1088
  %1442 = vmatprep.subr.bf16.mxu0 0
  %1443 = vmatpush1.bf16.msra.mxu0 %v1087
  %1444 = vmatprep.subr.bf16.mxu0 0
  %1445 = vmatpush1.bf16.msra.mxu0 %v1086
  %1446 = vmatprep.subr.bf16.mxu0 0
  %1447 = vmatpush1.bf16.msra.mxu0 %v1085
  %1448 = vmatprep.subr.bf16.mxu0 0
  %1449 = vmatpush1.bf16.msra.mxu0 %v1084
  %1450 = vmatprep.subr.bf16.mxu0 0
  %1451 = vmatpush1.bf16.msra.mxu0 %v1083
  %1452 = vmatprep.subr.bf16.mxu0 0
  %1453 = vmatpush1.bf16.msra.mxu0 %v1082
  %1454 = vmatprep.subr.bf16.mxu0 0
  %1455 = vmatpush2.bf16.msra.mxu0 %v1097
  %1456 = vmatprep.subr.bf16.mxu0 0
  %1457 = vmatpush2.bf16.msra.mxu0 %v1096
  %1458 = vmatprep.subr.bf16.mxu0 0
  %1459 = vmatpush2.bf16.msra.mxu0 %v1095
  %1460 = vmatprep.subr.bf16.mxu0 0
  %1461 = vmatpush2.bf16.msra.mxu0 %v1094
  %1462 = vmatprep.subr.bf16.mxu0 0
  %1463 = vmatpush2.bf16.msra.mxu0 %v1093
  %1464 = vmatprep.subr.bf16.mxu0 0
  %1465 = vmatpush2.bf16.msra.mxu0 %v1092
  %1466 = vmatprep.subr.bf16.mxu0 0
  %1467 = vmatpush2.bf16.msra.mxu0 %v1091
  %1468 = vmatprep.subr.bf16.mxu0 0
  %1469 = vmatpush2.bf16.msra.mxu0 %v1090
  %1470 = vmatprep.mubr.bf16.mxu0 %v483
  %1471 = vmatmul.mubr.bf16.gmra.mxu0 %v482
  %v1472 = vpop.f32.mrf.mxu0
  %v1473 = vadd.f32 %v1432, %v1472
  %v1474 = vpop.f32.mrf.mxu0
  %v1475 = vpop.f32.mrf.mxu0
  %v1476 = vadd.f32 %v1435, %v1475
  %v1477 = vpop.f32.mrf.mxu0
  %1478 = vdwg.mxu0
  %1479 = vmatprep.subr.bf16.mxu0 0
  %1480 = vmatpush1.bf16.msra.mxu0 %v1105
  %1481 = vmatprep.subr.bf16.mxu0 0
  %1482 = vmatpush1.bf16.msra.mxu0 %v1104
  %1483 = vmatprep.subr.bf16.mxu0 0
  %1484 = vmatpush1.bf16.msra.mxu0 %v1103
  %1485 = vmatprep.subr.bf16.mxu0 0
  %1486 = vmatpush1.bf16.msra.mxu0 %v1102
  %1487 = vmatprep.subr.bf16.mxu0 0
  %1488 = vmatpush1.bf16.msra.mxu0 %v1101
  %1489 = vmatprep.subr.bf16.mxu0 0
  %1490 = vmatpush1.bf16.msra.mxu0 %v1100
  %1491 = vmatprep.subr.bf16.mxu0 0
  %1492 = vmatpush1.bf16.msra.mxu0 %v1099
  %1493 = vmatprep.subr.bf16.mxu0 0
  %1494 = vmatpush1.bf16.msra.mxu0 %v1098
  %1495 = vmatprep.subr.bf16.mxu0 0
  %1496 = vmatpush2.bf16.msra.mxu0 %v1113
  %1497 = vmatprep.subr.bf16.mxu0 0
  %1498 = vmatpush2.bf16.msra.mxu0 %v1112
  %1499 = vmatprep.subr.bf16.mxu0 0
  %1500 = vmatpush2.bf16.msra.mxu0 %v1111
  %1501 = vmatprep.subr.bf16.mxu0 0
  %1502 = vmatpush2.bf16.msra.mxu0 %v1110
  %1503 = vmatprep.subr.bf16.mxu0 0
  %1504 = vmatpush2.bf16.msra.mxu0 %v1109
  %1505 = vmatprep.subr.bf16.mxu0 0
  %1506 = vmatpush2.bf16.msra.mxu0 %v1108
  %1507 = vmatprep.subr.bf16.mxu0 0
  %1508 = vmatpush2.bf16.msra.mxu0 %v1107
  %1509 = vmatprep.subr.bf16.mxu0 0
  %1510 = vmatpush2.bf16.msra.mxu0 %v1106
  %1511 = vmatprep.mubr.bf16.mxu0 %v485
  %1512 = vmatmul.mubr.bf16.gmra.mxu0 %v484
  %v1513 = vpop.f32.mrf.mxu0
  %v1514 = vadd.f32 %v1473, %v1513
  %v1515 = vpop.f32.mrf.mxu0
  %v1516 = vpop.f32.mrf.mxu0
  %v1517 = vadd.f32 %v1476, %v1516
  %v1518 = vpop.f32.mrf.mxu0
  %1519 = vdwg.mxu0
  %1520 = vmatprep.subr.bf16.mxu0 0
  %1521 = vmatpush1.bf16.msra.mxu0 %v1121
  %1522 = vmatprep.subr.bf16.mxu0 0
  %1523 = vmatpush1.bf16.msra.mxu0 %v1120
  %1524 = vmatprep.subr.bf16.mxu0 0
  %1525 = vmatpush1.bf16.msra.mxu0 %v1119
  %1526 = vmatprep.subr.bf16.mxu0 0
  %1527 = vmatpush1.bf16.msra.mxu0 %v1118
  %1528 = vmatprep.subr.bf16.mxu0 0
  %1529 = vmatpush1.bf16.msra.mxu0 %v1117
  %1530 = vmatprep.subr.bf16.mxu0 0
  %1531 = vmatpush1.bf16.msra.mxu0 %v1116
  %1532 = vmatprep.subr.bf16.mxu0 0
  %1533 = vmatpush1.bf16.msra.mxu0 %v1115
  %1534 = vmatprep.subr.bf16.mxu0 0
  %1535 = vmatpush1.bf16.msra.mxu0 %v1114
  %1536 = vmatprep.subr.bf16.mxu0 0
  %1537 = vmatpush2.bf16.msra.mxu0 %v1129
  %1538 = vmatprep.subr.bf16.mxu0 0
  %1539 = vmatpush2.bf16.msra.mxu0 %v1128
  %1540 = vmatprep.subr.bf16.mxu0 0
  %1541 = vmatpush2.bf16.msra.mxu0 %v1127
  %1542 = vmatprep.subr.bf16.mxu0 0
  %1543 = vmatpush2.bf16.msra.mxu0 %v1126
  %1544 = vmatprep.subr.bf16.mxu0 0
  %1545 = vmatpush2.bf16.msra.mxu0 %v1125
  %1546 = vmatprep.subr.bf16.mxu0 0
  %1547 = vmatpush2.bf16.msra.mxu0 %v1124
  %1548 = vmatprep.subr.bf16.mxu0 0
  %1549 = vmatpush2.bf16.msra.mxu0 %v1123
  %1550 = vmatprep.subr.bf16.mxu0 0
  %1551 = vmatpush2.bf16.msra.mxu0 %v1122
  %1552 = vmatprep.mubr.bf16.mxu0 %v487
  %1553 = vmatmul.mubr.bf16.gmra.mxu0 %v486
  %v1554 = vpop.f32.mrf.mxu0
  %v1555 = vadd.f32 %v1514, %v1554
  %v1556 = vpop.f32.mrf.mxu0
  %v1557 = vpop.f32.mrf.mxu0
  %v1558 = vadd.f32 %v1517, %v1557
  %v1559 = vpop.f32.mrf.mxu0
  %1560 = vdwg.mxu0
  %1561 = vmatprep.subr.bf16.mxu0 0
  %1562 = vmatpush1.bf16.msra.mxu0 %v1137
  %1563 = vmatprep.subr.bf16.mxu0 0
  %1564 = vmatpush1.bf16.msra.mxu0 %v1136
  %1565 = vmatprep.subr.bf16.mxu0 0
  %1566 = vmatpush1.bf16.msra.mxu0 %v1135
  %1567 = vmatprep.subr.bf16.mxu0 0
  %1568 = vmatpush1.bf16.msra.mxu0 %v1134
  %1569 = vmatprep.subr.bf16.mxu0 0
  %1570 = vmatpush1.bf16.msra.mxu0 %v1133
  %1571 = vmatprep.subr.bf16.mxu0 0
  %1572 = vmatpush1.bf16.msra.mxu0 %v1132
  %1573 = vmatprep.subr.bf16.mxu0 0
  %1574 = vmatpush1.bf16.msra.mxu0 %v1131
  %1575 = vmatprep.subr.bf16.mxu0 0
  %1576 = vmatpush1.bf16.msra.mxu0 %v1130
  %1577 = vmatprep.subr.bf16.mxu0 0
  %1578 = vmatpush2.bf16.msra.mxu0 %v1145
  %1579 = vmatprep.subr.bf16.mxu0 0
  %1580 = vmatpush2.bf16.msra.mxu0 %v1144
  %1581 = vmatprep.subr.bf16.mxu0 0
  %1582 = vmatpush2.bf16.msra.mxu0 %v1143
  %1583 = vmatprep.subr.bf16.mxu0 0
  %1584 = vmatpush2.bf16.msra.mxu0 %v1142
  %1585 = vmatprep.subr.bf16.mxu0 0
  %1586 = vmatpush2.bf16.msra.mxu0 %v1141
  %1587 = vmatprep.subr.bf16.mxu0 0
  %1588 = vmatpush2.bf16.msra.mxu0 %v1140
  %1589 = vmatprep.subr.bf16.mxu0 0
  %1590 = vmatpush2.bf16.msra.mxu0 %v1139
  %1591 = vmatprep.subr.bf16.mxu0 0
  %1592 = vmatpush2.bf16.msra.mxu0 %v1138
  %1593 = vmatprep.mubr.bf16.mxu0 %v489
  %1594 = vmatmul.mubr.bf16.gmra.mxu0 %v488
  %v1595 = vpop.f32.mrf.mxu0
  %v1596 = vadd.f32 %v1555, %v1595
  %v1597 = vpop.f32.mrf.mxu0
  %v1598 = vpop.f32.mrf.mxu0
  %v1599 = vadd.f32 %v1558, %v1598
  %v1600 = vpop.f32.mrf.mxu0
  %1601 = vdwg.mxu0
  %v1602 = vld [vmem:[%s3] sm:$0x1]
  %v1604 = vlaneseq
  %v1605 = vshrl.u32 %v1604, 7
  %v1606 = vsub.s32 0, %v1605
  %v1607 = vrot.slane %v1602, %v1606
  %v1609 = vadd.f32 %v1596, %v1607
  %v1610 = vadd.f32 %v1599, %v1607
  %v1611 = vmax.f32 %v1609, 0.0
  %v1612 = vmax.f32 %v1610, 0.0
  %v1613 = vpack.c.bf16 %v1612, %v1611
  %v1614 = vld [vmem:[%s5] sm:$0xff]
  %v1615 = vld [vmem:[%s5 + $0x8] sm:$0xff]
  %v1616 = vld [vmem:[%s5 + $0x10] sm:$0xff]
  %v1617 = vld [vmem:[%s5 + $0x18] sm:$0xff]
  %v1618 = vld [vmem:[%s5 + $0x20] sm:$0xff]
  %v1619 = vld [vmem:[%s5 + $0x28] sm:$0xff]
  %v1620 = vld [vmem:[%s5 + $0x30] sm:$0xff]
  %v1621 = vld [vmem:[%s5 + $0x38] sm:$0xff]
  %v1622 = vld [vmem:[%s5 + $0x40] sm:$0xff]
  %v1623 = vld [vmem:[%s5 + $0x48] sm:$0xff]
  %v1624 = vld [vmem:[%s5 + $0x50] sm:$0xff]
  %v1625 = vld [vmem:[%s5 + $0x58] sm:$0xff]
  %v1626 = vld [vmem:[%s5 + $0x60] sm:$0xff]
  %v1627 = vld [vmem:[%s5 + $0x68] sm:$0xff]
  %v1628 = vld [vmem:[%s5 + $0x70] sm:$0xff]
  %v1629 = vld [vmem:[%s5 + $0x78] sm:$0xff]
  %v1630 = vld [vmem:[%s5 + $0x80] sm:$0xff]
  %v1631 = vld [vmem:[%s5 + $0x88] sm:$0xff]
  %v1632 = vld [vmem:[%s5 + $0x90] sm:$0xff]
  %v1633 = vld [vmem:[%s5 + $0x98] sm:$0xff]
  %v1634 = vld [vmem:[%s5 + $0xa0] sm:$0xff]
  %v1635 = vld [vmem:[%s5 + $0xa8] sm:$0xff]
  %v1636 = vld [vmem:[%s5 + $0xb0] sm:$0xff]
  %v1637 = vld [vmem:[%s5 + $0xb8] sm:$0xff]
  %v1638 = vld [vmem:[%s5 + $0xc0] sm:$0xff]
  %v1639 = vld [vmem:[%s5 + $0xc8] sm:$0xff]
  %v1640 = vld [vmem:[%s5 + $0xd0] sm:$0xff]
  %v1641 = vld [vmem:[%s5 + $0xd8] sm:$0xff]
  %v1642 = vld [vmem:[%s5 + $0xe0] sm:$0xff]
  %v1643 = vld [vmem:[%s5 + $0xe8] sm:$0xff]
  %v1644 = vld [vmem:[%s5 + $0xf0] sm:$0xff]
  %v1645 = vld [vmem:[%s5 + $0xf8] sm:$0xff]
  %v1646 = vld [vmem:[%s6] sm:$0xf]
  %v1648 = vlaneseq
  %v1649 = vshrl.u32 %v1648, 7
  %v1650 = vsub.s32 0, %v1649
  %v1651 = vrot.slane %v1646, %v1650
  %v1652 = vlaneseq
  %v1653 = vshrl.u32 %v1652, 7
  %v1654 = vsub.s32 1, %v1653
  %v1655 = vrot.slane %v1646, %v1654
  %v1656 = vlaneseq
  %v1657 = vshrl.u32 %v1656, 7
  %v1658 = vsub.s32 2, %v1657
  %v1659 = vrot.slane %v1646, %v1658
  %v1660 = vlaneseq
  %v1661 = vshrl.u32 %v1660, 7
  %v1662 = vsub.s32 3, %v1661
  %v1663 = vrot.slane %v1646, %v1662
  %v1700 = vunpack.c.l.b16 %v1614
  %v1701 = vunpack.c.h.b16 %v1614
  %v1702 = vunpack.c.l.b16 %v1615
  %v1703 = vunpack.c.h.b16 %v1615
  %v1704 = vunpack.c.l.b16 %v1616
  %v1705 = vunpack.c.h.b16 %v1616
  %v1706 = vunpack.c.l.b16 %v1617
  %v1707 = vunpack.c.h.b16 %v1617
  %v1708 = vunpack.c.l.b16 %v1618
  %v1709 = vunpack.c.h.b16 %v1618
  %v1710 = vunpack.c.l.b16 %v1619
  %v1711 = vunpack.c.h.b16 %v1619
  %v1712 = vunpack.c.l.b16 %v1620
  %v1713 = vunpack.c.h.b16 %v1620
  %v1714 = vunpack.c.l.b16 %v1621
  %v1715 = vunpack.c.h.b16 %v1621
  %v1716 = vunpack.c.l.b16 %v1622
  %v1717 = vunpack.c.h.b16 %v1622
  %v1718 = vunpack.c.l.b16 %v1623
  %v1719 = vunpack.c.h.b16 %v1623
  %v1720 = vunpack.c.l.b16 %v1624
  %v1721 = vunpack.c.h.b16 %v1624
  %v1722 = vunpack.c.l.b16 %v1625
  %v1723 = vunpack.c.h.b16 %v1625
  %v1724 = vunpack.c.l.b16 %v1626
  %v1725 = vunpack.c.h.b16 %v1626
  %v1726 = vunpack.c.l.b16 %v1627
  %v1727 = vunpack.c.h.b16 %v1627
  %v1728 = vunpack.c.l.b16 %v1628
  %v1729 = vunpack.c.h.b16 %v1628
  %v1730 = vunpack.c.l.b16 %v1629
  %v1731 = vunpack.c.h.b16 %v1629
  %v1732 = vunpack.c.l.b16 %v1630
  %v1733 = vunpack.c.h.b16 %v1630
  %v1734 = vunpack.c.l.b16 %v1631
  %v1735 = vunpack.c.h.b16 %v1631
  %v1736 = vunpack.c.l.b16 %v1632
  %v1737 = vunpack.c.h.b16 %v1632
  %v1738 = vunpack.c.l.b16 %v1633
  %v1739 = vunpack.c.h.b16 %v1633
  %v1740 = vunpack.c.l.b16 %v1634
  %v1741 = vunpack.c.h.b16 %v1634
  %v1742 = vunpack.c.l.b16 %v1635
  %v1743 = vunpack.c.h.b16 %v1635
  %v1744 = vunpack.c.l.b16 %v1636
  %v1745 = vunpack.c.h.b16 %v1636
  %v1746 = vunpack.c.l.b16 %v1637
  %v1747 = vunpack.c.h.b16 %v1637
  %v1748 = vunpack.c.l.b16 %v1638
  %v1749 = vunpack.c.h.b16 %v1638
  %v1750 = vunpack.c.l.b16 %v1639
  %v1751 = vunpack.c.h.b16 %v1639
  %v1752 = vunpack.c.l.b16 %v1640
  %v1753 = vunpack.c.h.b16 %v1640
  %v1754 = vunpack.c.l.b16 %v1641
  %v1755 = vunpack.c.h.b16 %v1641
  %v1756 = vunpack.c.l.b16 %v1642
  %v1757 = vunpack.c.h.b16 %v1642
  %v1758 = vunpack.c.l.b16 %v1643
  %v1759 = vunpack.c.h.b16 %v1643
  %v1760 = vunpack.c.l.b16 %v1644
  %v1761 = vunpack.c.h.b16 %v1644
  %v1762 = vunpack.c.l.b16 %v1645
  %v1763 = vunpack.c.h.b16 %v1645
  %v1764 = vpack.c.b16 %v1704, %v1700
  %v1765 = vpack.c.b16 %v1705, %v1701
  %v1766 = vpack.c.b16 %v1706, %v1702
  %v1767 = vpack.c.b16 %v1707, %v1703
  %v1768 = vpack.c.b16 %v1712, %v1708
  %v1769 = vpack.c.b16 %v1713, %v1709
  %v1770 = vpack.c.b16 %v1714, %v1710
  %v1771 = vpack.c.b16 %v1715, %v1711
  %v1772 = vpack.c.b16 %v1720, %v1716
  %v1773 = vpack.c.b16 %v1721, %v1717
  %v1774 = vpack.c.b16 %v1722, %v1718
  %v1775 = vpack.c.b16 %v1723, %v1719
  %v1776 = vpack.c.b16 %v1728, %v1724
  %v1777 = vpack.c.b16 %v1729, %v1725
  %v1778 = vpack.c.b16 %v1730, %v1726
  %v1779 = vpack.c.b16 %v1731, %v1727
  %v1780 = vpack.c.b16 %v1736, %v1732
  %v1781 = vpack.c.b16 %v1737, %v1733
  %v1782 = vpack.c.b16 %v1738, %v1734
  %v1783 = vpack.c.b16 %v1739, %v1735
  %v1784 = vpack.c.b16 %v1744, %v1740
  %v1785 = vpack.c.b16 %v1745, %v1741
  %v1786 = vpack.c.b16 %v1746, %v1742
  %v1787 = vpack.c.b16 %v1747, %v1743
  %v1788 = vpack.c.b16 %v1752, %v1748
  %v1789 = vpack.c.b16 %v1753, %v1749
  %v1790 = vpack.c.b16 %v1754, %v1750
  %v1791 = vpack.c.b16 %v1755, %v1751
  %v1792 = vpack.c.b16 %v1760, %v1756
  %v1793 = vpack.c.b16 %v1761, %v1757
  %v1794 = vpack.c.b16 %v1762, %v1758
  %v1795 = vpack.c.b16 %v1763, %v1759
  %1828 = vmatprep.subr.bf16.mxu0 %v1793
  %1829 = vmatpush1.bf16.msra.mxu0 %v1792
  %1830 = vmatprep.subr.bf16.mxu0 %v1789
  %1831 = vmatpush1.bf16.msra.mxu0 %v1788
  %1832 = vmatprep.subr.bf16.mxu0 %v1785
  %1833 = vmatpush1.bf16.msra.mxu0 %v1784
  %1834 = vmatprep.subr.bf16.mxu0 %v1781
  %1835 = vmatpush1.bf16.msra.mxu0 %v1780
  %1836 = vmatprep.subr.bf16.mxu0 %v1777
  %1837 = vmatpush1.bf16.msra.mxu0 %v1776
  %1838 = vmatprep.subr.bf16.mxu0 %v1773
  %1839 = vmatpush1.bf16.msra.mxu0 %v1772
  %1840 = vmatprep.subr.bf16.mxu0 %v1769
  %1841 = vmatpush1.bf16.msra.mxu0 %v1768
  %1842 = vmatprep.subr.bf16.mxu0 %v1765
  %1843 = vmatpush1.bf16.msra.mxu0 %v1764
  %1844 = vmatprep.subr.bf16.mxu0 0
  %1845 = vmatpush2.bf16.msra.mxu0 0
  %1846 = vmatprep.subr.bf16.mxu0 0
  %1847 = vmatpush2.bf16.msra.mxu0 0
  %1848 = vmatprep.subr.bf16.mxu0 0
  %1849 = vmatpush2.bf16.msra.mxu0 0
  %1850 = vmatprep.subr.bf16.mxu0 0
  %1851 = vmatpush2.bf16.msra.mxu0 0
  %1852 = vmatprep.subr.bf16.mxu0 0
  %1853 = vmatpush2.bf16.msra.mxu0 0
  %1854 = vmatprep.subr.bf16.mxu0 0
  %1855 = vmatpush2.bf16.msra.mxu0 0
  %1856 = vmatprep.subr.bf16.mxu0 0
  %1857 = vmatpush2.bf16.msra.mxu0 0
  %1858 = vmatprep.subr.bf16.mxu0 0
  %1859 = vmatpush2.bf16.msra.mxu0 0
  %1860 = vmatprep.mubr.bf16.mxu0 0
  %1861 = vmatmul.mubr.bf16.gmra.mxu0 %v1613
  %v1862 = vpop.f32.mrf.mxu0
  %v1863 = vadd.f32 %v1651, %v1862
  %v1864 = vpop.f32.mrf.mxu0
  %v1865 = vadd.f32 %v1655, %v1864
  %v1866 = vpop.f32.mrf.mxu0
  %v1867 = vadd.f32 %v1651, %v1866
  %v1868 = vpop.f32.mrf.mxu0
  %v1869 = vadd.f32 %v1655, %v1868
  %1870 = vdwg.mxu0
  %1871 = vmatprep.subr.bf16.mxu0 %v1795
  %1872 = vmatpush1.bf16.msra.mxu0 %v1794
  %1873 = vmatprep.subr.bf16.mxu0 %v1791
  %1874 = vmatpush1.bf16.msra.mxu0 %v1790
  %1875 = vmatprep.subr.bf16.mxu0 %v1787
  %1876 = vmatpush1.bf16.msra.mxu0 %v1786
  %1877 = vmatprep.subr.bf16.mxu0 %v1783
  %1878 = vmatpush1.bf16.msra.mxu0 %v1782
  %1879 = vmatprep.subr.bf16.mxu0 %v1779
  %1880 = vmatpush1.bf16.msra.mxu0 %v1778
  %1881 = vmatprep.subr.bf16.mxu0 %v1775
  %1882 = vmatpush1.bf16.msra.mxu0 %v1774
  %1883 = vmatprep.subr.bf16.mxu0 %v1771
  %1884 = vmatpush1.bf16.msra.mxu0 %v1770
  %1885 = vmatprep.subr.bf16.mxu0 %v1767
  %1886 = vmatpush1.bf16.msra.mxu0 %v1766
  %1887 = vmatprep.subr.bf16.mxu0 0
  %1888 = vmatpush2.bf16.msra.mxu0 0
  %1889 = vmatprep.subr.bf16.mxu0 0
  %1890 = vmatpush2.bf16.msra.mxu0 0
  %1891 = vmatprep.subr.bf16.mxu0 0
  %1892 = vmatpush2.bf16.msra.mxu0 0
  %1893 = vmatprep.subr.bf16.mxu0 0
  %1894 = vmatpush2.bf16.msra.mxu0 0
  %1895 = vmatprep.subr.bf16.mxu0 0
  %1896 = vmatpush2.bf16.msra.mxu0 0
  %1897 = vmatprep.subr.bf16.mxu0 0
  %1898 = vmatpush2.bf16.msra.mxu0 0
  %1899 = vmatprep.subr.bf16.mxu0 0
  %1900 = vmatpush2.bf16.msra.mxu0 0
  %1901 = vmatprep.subr.bf16.mxu0 0
  %1902 = vmatpush2.bf16.msra.mxu0 0
  %1903 = vmatprep.mubr.bf16.mxu0 0
  %1904 = vmatmul.mubr.bf16.gmra.mxu0 %v1613
  %v1905 = vpop.f32.mrf.mxu0
  %v1906 = vadd.f32 %v1659, %v1905
  %v1907 = vpop.f32.mrf.mxu0
  %v1908 = vadd.f32 %v1663, %v1907
  %v1909 = vpop.f32.mrf.mxu0
  %v1910 = vadd.f32 %v1659, %v1909
  %v1911 = vpop.f32.mrf.mxu0
  %v1912 = vadd.f32 %v1663, %v1911
  %1913 = vdwg.mxu0
  %v1914 = vmax.f32 %v1863, 0.0
  %v1915 = vmax.f32 %v1865, 0.0
  %v1916 = vmax.f32 %v1906, 0.0
  %v1917 = vmax.f32 %v1908, 0.0
  %v1918 = vmax.f32 %v1867, 0.0
  %v1919 = vmax.f32 %v1869, 0.0
  %v1920 = vmax.f32 %v1910, 0.0
  %v1921 = vmax.f32 %v1912, 0.0
  %v1922 = vpack.c.bf16 %v1918, %v1914
  %v1923 = vpack.c.bf16 %v1919, %v1915
  %v1924 = vpack.c.bf16 %v1920, %v1916
  %v1925 = vpack.c.bf16 %v1921, %v1917
  %v1926 = vld [vmem:[%s7] sm:$0xff]
  %v1927 = vld [vmem:[%s7 + $0x8] sm:$0xff]
  %v1928 = vld [vmem:[%s7 + $0x10] sm:$0xff]
  %v1929 = vld [vmem:[%s7 + $0x18] sm:$0xff]
  %v1930 = vld [vmem:[%s7 + $0x20] sm:$0xff]
  %v1931 = vld [vmem:[%s7 + $0x28] sm:$0xff]
  %v1932 = vld [vmem:[%s7 + $0x30] sm:$0xff]
  %v1933 = vld [vmem:[%s7 + $0x38] sm:$0xff]
  %v1934 = vld [vmem:[%s7 + $0x40] sm:$0xff]
  %v1935 = vld [vmem:[%s7 + $0x48] sm:$0xff]
  %v1936 = vld [vmem:[%s7 + $0x50] sm:$0xff]
  %v1937 = vld [vmem:[%s7 + $0x58] sm:$0xff]
  %v1938 = vld [vmem:[%s7 + $0x60] sm:$0xff]
  %v1939 = vld [vmem:[%s7 + $0x68] sm:$0xff]
  %v1940 = vld [vmem:[%s7 + $0x70] sm:$0xff]
  %v1941 = vld [vmem:[%s7 + $0x78] sm:$0xff]
  %v1942 = vld [vmem:[%s7 + $0x80] sm:$0xff]
  %v1943 = vld [vmem:[%s7 + $0x88] sm:$0xff]
  %v1944 = vld [vmem:[%s7 + $0x90] sm:$0xff]
  %v1945 = vld [vmem:[%s7 + $0x98] sm:$0xff]
  %v1946 = vld [vmem:[%s7 + $0xa0] sm:$0xff]
  %v1947 = vld [vmem:[%s7 + $0xa8] sm:$0xff]
  %v1948 = vld [vmem:[%s7 + $0xb0] sm:$0xff]
  %v1949 = vld [vmem:[%s7 + $0xb8] sm:$0xff]
  %v1950 = vld [vmem:[%s7 + $0xc0] sm:$0xff]
  %v1951 = vld [vmem:[%s7 + $0xc8] sm:$0xff]
  %v1952 = vld [vmem:[%s7 + $0xd0] sm:$0xff]
  %v1953 = vld [vmem:[%s7 + $0xd8] sm:$0xff]
  %v1954 = vld [vmem:[%s7 + $0xe0] sm:$0xff]
  %v1955 = vld [vmem:[%s7 + $0xe8] sm:$0xff]
  %v1956 = vld [vmem:[%s7 + $0xf0] sm:$0xff]
  %v1957 = vld [vmem:[%s7 + $0xf8] sm:$0xff]
  %v1958 = vld [vmem:[%s7 + $0x100] sm:$0xff]
  %v1959 = vld [vmem:[%s7 + $0x108] sm:$0xff]
  %v1960 = vld [vmem:[%s7 + $0x110] sm:$0xff]
  %v1961 = vld [vmem:[%s7 + $0x118] sm:$0xff]
  %v1962 = vld [vmem:[%s7 + $0x120] sm:$0xff]
  %v1963 = vld [vmem:[%s7 + $0x128] sm:$0xff]
  %v1964 = vld [vmem:[%s7 + $0x130] sm:$0xff]
  %v1965 = vld [vmem:[%s7 + $0x138] sm:$0xff]
  %v1966 = vld [vmem:[%s7 + $0x140] sm:$0xff]
  %v1967 = vld [vmem:[%s7 + $0x148] sm:$0xff]
  %v1968 = vld [vmem:[%s7 + $0x150] sm:$0xff]
  %v1969 = vld [vmem:[%s7 + $0x158] sm:$0xff]
  %v1970 = vld [vmem:[%s7 + $0x160] sm:$0xff]
  %v1971 = vld [vmem:[%s7 + $0x168] sm:$0xff]
  %v1972 = vld [vmem:[%s7 + $0x170] sm:$0xff]
  %v1973 = vld [vmem:[%s7 + $0x178] sm:$0xff]
  %v1974 = vld [vmem:[%s7 + $0x180] sm:$0xff]
  %v1975 = vld [vmem:[%s7 + $0x188] sm:$0xff]
  %v1976 = vld [vmem:[%s7 + $0x190] sm:$0xff]
  %v1977 = vld [vmem:[%s7 + $0x198] sm:$0xff]
  %v1978 = vld [vmem:[%s7 + $0x1a0] sm:$0xff]
  %v1979 = vld [vmem:[%s7 + $0x1a8] sm:$0xff]
  %v1980 = vld [vmem:[%s7 + $0x1b0] sm:$0xff]
  %v1981 = vld [vmem:[%s7 + $0x1b8] sm:$0xff]
  %v1982 = vld [vmem:[%s7 + $0x1c0] sm:$0xff]
  %v1983 = vld [vmem:[%s7 + $0x1c8] sm:$0xff]
  %v1984 = vld [vmem:[%s7 + $0x1d0] sm:$0xff]
  %v1985 = vld [vmem:[%s7 + $0x1d8] sm:$0xff]
  %v1986 = vld [vmem:[%s7 + $0x1e0] sm:$0xff]
  %v1987 = vld [vmem:[%s7 + $0x1e8] sm:$0xff]
  %v1988 = vld [vmem:[%s7 + $0x1f0] sm:$0xff]
  %v1989 = vld [vmem:[%s7 + $0x1f8] sm:$0xff]
  %v1990 = vld [vmem:[%s8] sm:$0x3]
  %v1992 = vlaneseq
  %v1993 = vshrl.u32 %v1992, 7
  %v1994 = vsub.s32 0, %v1993
  %v1995 = vrot.slane %v1990, %v1994
  %v1996 = vlaneseq
  %v1997 = vshrl.u32 %v1996, 7
  %v1998 = vsub.s32 1, %v1997
  %v1999 = vrot.slane %v1990, %v1998
  %v2066 = vunpack.c.l.b16 %v1926
  %v2067 = vunpack.c.h.b16 %v1926
  %v2068 = vunpack.c.l.b16 %v1927
  %v2069 = vunpack.c.h.b16 %v1927
  %v2070 = vunpack.c.l.b16 %v1928
  %v2071 = vunpack.c.h.b16 %v1928
  %v2072 = vunpack.c.l.b16 %v1929
  %v2073 = vunpack.c.h.b16 %v1929
  %v2074 = vunpack.c.l.b16 %v1930
  %v2075 = vunpack.c.h.b16 %v1930
  %v2076 = vunpack.c.l.b16 %v1931
  %v2077 = vunpack.c.h.b16 %v1931
  %v2078 = vunpack.c.l.b16 %v1932
  %v2079 = vunpack.c.h.b16 %v1932
  %v2080 = vunpack.c.l.b16 %v1933
  %v2081 = vunpack.c.h.b16 %v1933
  %v2082 = vunpack.c.l.b16 %v1934
  %v2083 = vunpack.c.h.b16 %v1934
  %v2084 = vunpack.c.l.b16 %v1935
  %v2085 = vunpack.c.h.b16 %v1935
  %v2086 = vunpack.c.l.b16 %v1936
  %v2087 = vunpack.c.h.b16 %v1936
  %v2088 = vunpack.c.l.b16 %v1937
  %v2089 = vunpack.c.h.b16 %v1937
  %v2090 = vunpack.c.l.b16 %v1938
  %v2091 = vunpack.c.h.b16 %v1938
  %v2092 = vunpack.c.l.b16 %v1939
  %v2093 = vunpack.c.h.b16 %v1939
  %v2094 = vunpack.c.l.b16 %v1940
  %v2095 = vunpack.c.h.b16 %v1940
  %v2096 = vunpack.c.l.b16 %v1941
  %v2097 = vunpack.c.h.b16 %v1941
  %v2098 = vunpack.c.l.b16 %v1942
  %v2099 = vunpack.c.h.b16 %v1942
  %v2100 = vunpack.c.l.b16 %v1943
  %v2101 = vunpack.c.h.b16 %v1943
  %v2102 = vunpack.c.l.b16 %v1944
  %v2103 = vunpack.c.h.b16 %v1944
  %v2104 = vunpack.c.l.b16 %v1945
  %v2105 = vunpack.c.h.b16 %v1945
  %v2106 = vunpack.c.l.b16 %v1946
  %v2107 = vunpack.c.h.b16 %v1946
  %v2108 = vunpack.c.l.b16 %v1947
  %v2109 = vunpack.c.h.b16 %v1947
  %v2110 = vunpack.c.l.b16 %v1948
  %v2111 = vunpack.c.h.b16 %v1948
  %v2112 = vunpack.c.l.b16 %v1949
  %v2113 = vunpack.c.h.b16 %v1949
  %v2114 = vunpack.c.l.b16 %v1950
  %v2115 = vunpack.c.h.b16 %v1950
  %v2116 = vunpack.c.l.b16 %v1951
  %v2117 = vunpack.c.h.b16 %v1951
  %v2118 = vunpack.c.l.b16 %v1952
  %v2119 = vunpack.c.h.b16 %v1952
  %v2120 = vunpack.c.l.b16 %v1953
  %v2121 = vunpack.c.h.b16 %v1953
  %v2122 = vunpack.c.l.b16 %v1954
  %v2123 = vunpack.c.h.b16 %v1954
  %v2124 = vunpack.c.l.b16 %v1955
  %v2125 = vunpack.c.h.b16 %v1955
  %v2126 = vunpack.c.l.b16 %v1956
  %v2127 = vunpack.c.h.b16 %v1956
  %v2128 = vunpack.c.l.b16 %v1957
  %v2129 = vunpack.c.h.b16 %v1957
  %v2130 = vunpack.c.l.b16 %v1958
  %v2131 = vunpack.c.h.b16 %v1958
  %v2132 = vunpack.c.l.b16 %v1959
  %v2133 = vunpack.c.h.b16 %v1959
  %v2134 = vunpack.c.l.b16 %v1960
  %v2135 = vunpack.c.h.b16 %v1960
  %v2136 = vunpack.c.l.b16 %v1961
  %v2137 = vunpack.c.h.b16 %v1961
  %v2138 = vunpack.c.l.b16 %v1962
  %v2139 = vunpack.c.h.b16 %v1962
  %v2140 = vunpack.c.l.b16 %v1963
  %v2141 = vunpack.c.h.b16 %v1963
  %v2142 = vunpack.c.l.b16 %v1964
  %v2143 = vunpack.c.h.b16 %v1964
  %v2144 = vunpack.c.l.b16 %v1965
  %v2145 = vunpack.c.h.b16 %v1965
  %v2146 = vunpack.c.l.b16 %v1966
  %v2147 = vunpack.c.h.b16 %v1966
  %v2148 = vunpack.c.l.b16 %v1967
  %v2149 = vunpack.c.h.b16 %v1967
  %v2150 = vunpack.c.l.b16 %v1968
  %v2151 = vunpack.c.h.b16 %v1968
  %v2152 = vunpack.c.l.b16 %v1969
  %v2153 = vunpack.c.h.b16 %v1969
  %v2154 = vunpack.c.l.b16 %v1970
  %v2155 = vunpack.c.h.b16 %v1970
  %v2156 = vunpack.c.l.b16 %v1971
  %v2157 = vunpack.c.h.b16 %v1971
  %v2158 = vunpack.c.l.b16 %v1972
  %v2159 = vunpack.c.h.b16 %v1972
  %v2160 = vunpack.c.l.b16 %v1973
  %v2161 = vunpack.c.h.b16 %v1973
  %v2162 = vunpack.c.l.b16 %v1974
  %v2163 = vunpack.c.h.b16 %v1974
  %v2164 = vunpack.c.l.b16 %v1975
  %v2165 = vunpack.c.h.b16 %v1975
  %v2166 = vunpack.c.l.b16 %v1976
  %v2167 = vunpack.c.h.b16 %v1976
  %v2168 = vunpack.c.l.b16 %v1977
  %v2169 = vunpack.c.h.b16 %v1977
  %v2170 = vunpack.c.l.b16 %v1978
  %v2171 = vunpack.c.h.b16 %v1978
  %v2172 = vunpack.c.l.b16 %v1979
  %v2173 = vunpack.c.h.b16 %v1979
  %v2174 = vunpack.c.l.b16 %v1980
  %v2175 = vunpack.c.h.b16 %v1980
  %v2176 = vunpack.c.l.b16 %v1981
  %v2177 = vunpack.c.h.b16 %v1981
  %v2178 = vunpack.c.l.b16 %v1982
  %v2179 = vunpack.c.h.b16 %v1982
  %v2180 = vunpack.c.l.b16 %v1983
  %v2181 = vunpack.c.h.b16 %v1983
  %v2182 = vunpack.c.l.b16 %v1984
  %v2183 = vunpack.c.h.b16 %v1984
  %v2184 = vunpack.c.l.b16 %v1985
  %v2185 = vunpack.c.h.b16 %v1985
  %v2186 = vunpack.c.l.b16 %v1986
  %v2187 = vunpack.c.h.b16 %v1986
  %v2188 = vunpack.c.l.b16 %v1987
  %v2189 = vunpack.c.h.b16 %v1987
  %v2190 = vunpack.c.l.b16 %v1988
  %v2191 = vunpack.c.h.b16 %v1988
  %v2192 = vunpack.c.l.b16 %v1989
  %v2193 = vunpack.c.h.b16 %v1989
  %v2194 = vpack.c.b16 %v2068, %v2066
  %v2195 = vpack.c.b16 %v2069, %v2067
  %v2196 = vpack.c.b16 %v2072, %v2070
  %v2197 = vpack.c.b16 %v2073, %v2071
  %v2198 = vpack.c.b16 %v2076, %v2074
  %v2199 = vpack.c.b16 %v2077, %v2075
  %v2200 = vpack.c.b16 %v2080, %v2078
  %v2201 = vpack.c.b16 %v2081, %v2079
  %v2202 = vpack.c.b16 %v2084, %v2082
  %v2203 = vpack.c.b16 %v2085, %v2083
  %v2204 = vpack.c.b16 %v2088, %v2086
  %v2205 = vpack.c.b16 %v2089, %v2087
  %v2206 = vpack.c.b16 %v2092, %v2090
  %v2207 = vpack.c.b16 %v2093, %v2091
  %v2208 = vpack.c.b16 %v2096, %v2094
  %v2209 = vpack.c.b16 %v2097, %v2095
  %v2210 = vpack.c.b16 %v2100, %v2098
  %v2211 = vpack.c.b16 %v2101, %v2099
  %v2212 = vpack.c.b16 %v2104, %v2102
  %v2213 = vpack.c.b16 %v2105, %v2103
  %v2214 = vpack.c.b16 %v2108, %v2106
  %v2215 = vpack.c.b16 %v2109, %v2107
  %v2216 = vpack.c.b16 %v2112, %v2110
  %v2217 = vpack.c.b16 %v2113, %v2111
  %v2218 = vpack.c.b16 %v2116, %v2114
  %v2219 = vpack.c.b16 %v2117, %v2115
  %v2220 = vpack.c.b16 %v2120, %v2118
  %v2221 = vpack.c.b16 %v2121, %v2119
  %v2222 = vpack.c.b16 %v2124, %v2122
  %v2223 = vpack.c.b16 %v2125, %v2123
  %v2224 = vpack.c.b16 %v2128, %v2126
  %v2225 = vpack.c.b16 %v2129, %v2127
  %v2226 = vpack.c.b16 %v2132, %v2130
  %v2227 = vpack.c.b16 %v2133, %v2131
  %v2228 = vpack.c.b16 %v2136, %v2134
  %v2229 = vpack.c.b16 %v2137, %v2135
  %v2230 = vpack.c.b16 %v2140, %v2138
  %v2231 = vpack.c.b16 %v2141, %v2139
  %v2232 = vpack.c.b16 %v2144, %v2142
  %v2233 = vpack.c.b16 %v2145, %v2143
  %v2234 = vpack.c.b16 %v2148, %v2146
  %v2235 = vpack.c.b16 %v2149, %v2147
  %v2236 = vpack.c.b16 %v2152, %v2150
  %v2237 = vpack.c.b16 %v2153, %v2151
  %v2238 = vpack.c.b16 %v2156, %v2154
  %v2239 = vpack.c.b16 %v2157, %v2155
  %v2240 = vpack.c.b16 %v2160, %v2158
  %v2241 = vpack.c.b16 %v2161, %v2159
  %v2242 = vpack.c.b16 %v2164, %v2162
  %v2243 = vpack.c.b16 %v2165, %v2163
  %v2244 = vpack.c.b16 %v2168, %v2166
  %v2245 = vpack.c.b16 %v2169, %v2167
  %v2246 = vpack.c.b16 %v2172, %v2170
  %v2247 = vpack.c.b16 %v2173, %v2171
  %v2248 = vpack.c.b16 %v2176, %v2174
  %v2249 = vpack.c.b16 %v2177, %v2175
  %v2250 = vpack.c.b16 %v2180, %v2178
  %v2251 = vpack.c.b16 %v2181, %v2179
  %v2252 = vpack.c.b16 %v2184, %v2182
  %v2253 = vpack.c.b16 %v2185, %v2183
  %v2254 = vpack.c.b16 %v2188, %v2186
  %v2255 = vpack.c.b16 %v2189, %v2187
  %v2256 = vpack.c.b16 %v2192, %v2190
  %v2257 = vpack.c.b16 %v2193, %v2191
  %2322 = vmatprep.subr.bf16.mxu0 %v2209
  %2323 = vmatpush1.bf16.msra.mxu0 %v2208
  %2324 = vmatprep.subr.bf16.mxu0 %v2207
  %2325 = vmatpush1.bf16.msra.mxu0 %v2206
  %2326 = vmatprep.subr.bf16.mxu0 %v2205
  %2327 = vmatpush1.bf16.msra.mxu0 %v2204
  %2328 = vmatprep.subr.bf16.mxu0 %v2203
  %2329 = vmatpush1.bf16.msra.mxu0 %v2202
  %2330 = vmatprep.subr.bf16.mxu0 %v2201
  %2331 = vmatpush1.bf16.msra.mxu0 %v2200
  %2332 = vmatprep.subr.bf16.mxu0 %v2199
  %2333 = vmatpush1.bf16.msra.mxu0 %v2198
  %2334 = vmatprep.subr.bf16.mxu0 %v2197
  %2335 = vmatpush1.bf16.msra.mxu0 %v2196
  %2336 = vmatprep.subr.bf16.mxu0 %v2195
  %2337 = vmatpush1.bf16.msra.mxu0 %v2194
  %2338 = vmatprep.subr.bf16.mxu0 %v2225
  %2339 = vmatpush2.bf16.msra.mxu0 %v2224
  %2340 = vmatprep.subr.bf16.mxu0 %v2223
  %2341 = vmatpush2.bf16.msra.mxu0 %v2222
  %2342 = vmatprep.subr.bf16.mxu0 %v2221
  %2343 = vmatpush2.bf16.msra.mxu0 %v2220
  %2344 = vmatprep.subr.bf16.mxu0 %v2219
  %2345 = vmatpush2.bf16.msra.mxu0 %v2218
  %2346 = vmatprep.subr.bf16.mxu0 %v2217
  %2347 = vmatpush2.bf16.msra.mxu0 %v2216
  %2348 = vmatprep.subr.bf16.mxu0 %v2215
  %2349 = vmatpush2.bf16.msra.mxu0 %v2214
  %2350 = vmatprep.subr.bf16.mxu0 %v2213
  %2351 = vmatpush2.bf16.msra.mxu0 %v2212
  %2352 = vmatprep.subr.bf16.mxu0 %v2211
  %2353 = vmatpush2.bf16.msra.mxu0 %v2210
  %2354 = vmatprep.mubr.bf16.mxu0 %v1923
  %2355 = vmatmul.mubr.bf16.gmra.mxu0 %v1922
  %v2356 = vpop.f32.mrf.mxu0
  %v2357 = vadd.f32 %v1995, %v2356
  %v2358 = vpop.f32.mrf.mxu0
  %v2359 = vadd.f32 %v1999, %v2358
  %v2360 = vpop.f32.mrf.mxu0
  %v2361 = vadd.f32 %v1995, %v2360
  %v2362 = vpop.f32.mrf.mxu0
  %v2363 = vadd.f32 %v1999, %v2362
  %2364 = vdwg.mxu0
  %2365 = vmatprep.subr.bf16.mxu0 %v2241
  %2366 = vmatpush1.bf16.msra.mxu0 %v2240
  %2367 = vmatprep.subr.bf16.mxu0 %v2239
  %2368 = vmatpush1.bf16.msra.mxu0 %v2238
  %2369 = vmatprep.subr.bf16.mxu0 %v2237
  %2370 = vmatpush1.bf16.msra.mxu0 %v2236
  %2371 = vmatprep.subr.bf16.mxu0 %v2235
  %2372 = vmatpush1.bf16.msra.mxu0 %v2234
  %2373 = vmatprep.subr.bf16.mxu0 %v2233
  %2374 = vmatpush1.bf16.msra.mxu0 %v2232
  %2375 = vmatprep.subr.bf16.mxu0 %v2231
  %2376 = vmatpush1.bf16.msra.mxu0 %v2230
  %2377 = vmatprep.subr.bf16.mxu0 %v2229
  %2378 = vmatpush1.bf16.msra.mxu0 %v2228
  %2379 = vmatprep.subr.bf16.mxu0 %v2227
  %2380 = vmatpush1.bf16.msra.mxu0 %v2226
  %2381 = vmatprep.subr.bf16.mxu0 %v2257
  %2382 = vmatpush2.bf16.msra.mxu0 %v2256
  %2383 = vmatprep.subr.bf16.mxu0 %v2255
  %2384 = vmatpush2.bf16.msra.mxu0 %v2254
  %2385 = vmatprep.subr.bf16.mxu0 %v2253
  %2386 = vmatpush2.bf16.msra.mxu0 %v2252
  %2387 = vmatprep.subr.bf16.mxu0 %v2251
  %2388 = vmatpush2.bf16.msra.mxu0 %v2250
  %2389 = vmatprep.subr.bf16.mxu0 %v2249
  %2390 = vmatpush2.bf16.msra.mxu0 %v2248
  %2391 = vmatprep.subr.bf16.mxu0 %v2247
  %2392 = vmatpush2.bf16.msra.mxu0 %v2246
  %2393 = vmatprep.subr.bf16.mxu0 %v2245
  %2394 = vmatpush2.bf16.msra.mxu0 %v2244
  %2395 = vmatprep.subr.bf16.mxu0 %v2243
  %2396 = vmatpush2.bf16.msra.mxu0 %v2242
  %2397 = vmatprep.mubr.bf16.mxu0 %v1925
  %2398 = vmatmul.mubr.bf16.gmra.mxu0 %v1924
  %v2399 = vpop.f32.mrf.mxu0
  %v2400 = vadd.f32 %v2357, %v2399
  %v2401 = vpop.f32.mrf.mxu0
  %v2402 = vadd.f32 %v2359, %v2401
  %v2403 = vpop.f32.mrf.mxu0
  %v2404 = vadd.f32 %v2361, %v2403
  %v2405 = vpop.f32.mrf.mxu0
  %v2406 = vadd.f32 %v2363, %v2405
  %2407 = vdwg.mxu0
  %v2408 = vmax.f32 %v2400, 0.0
  %v2409 = vmax.f32 %v2402, 0.0
  %v2410 = vmax.f32 %v2404, 0.0
  %v2411 = vmax.f32 %v2406, 0.0
  %v2412 = vpack.c.bf16 %v2410, %v2408
  %v2413 = vpack.c.bf16 %v2411, %v2409
  %v2414 = vld [vmem:[%s9] sm:$0xf]
  %v2415 = vld [vmem:[%s9 + $0x4] sm:$0xf]
  %v2416 = vld [vmem:[%s9 + $0x8] sm:$0xf]
  %v2417 = vld [vmem:[%s9 + $0xc] sm:$0xf]
  %v2418 = vld [vmem:[%s9 + $0x10] sm:$0xf]
  %v2419 = vld [vmem:[%s9 + $0x14] sm:$0xf]
  %v2420 = vld [vmem:[%s9 + $0x18] sm:$0xf]
  %v2421 = vld [vmem:[%s9 + $0x1c] sm:$0xf]
  %v2422 = vld [vmem:[%s9 + $0x20] sm:$0xf]
  %v2423 = vld [vmem:[%s9 + $0x24] sm:$0xf]
  %v2424 = vld [vmem:[%s9 + $0x28] sm:$0xf]
  %v2425 = vld [vmem:[%s9 + $0x2c] sm:$0xf]
  %v2426 = vld [vmem:[%s9 + $0x30] sm:$0xf]
  %v2427 = vld [vmem:[%s9 + $0x34] sm:$0xf]
  %v2428 = vld [vmem:[%s9 + $0x38] sm:$0xf]
  %v2429 = vld [vmem:[%s9 + $0x3c] sm:$0xf]
  %v2430 = vld [vmem:[%s9 + $0x40] sm:$0xf]
  %v2431 = vld [vmem:[%s9 + $0x44] sm:$0xf]
  %v2432 = vld [vmem:[%s9 + $0x48] sm:$0xf]
  %v2433 = vld [vmem:[%s9 + $0x4c] sm:$0xf]
  %v2434 = vld [vmem:[%s9 + $0x50] sm:$0xf]
  %v2435 = vld [vmem:[%s9 + $0x54] sm:$0xf]
  %v2436 = vld [vmem:[%s9 + $0x58] sm:$0xf]
  %v2437 = vld [vmem:[%s9 + $0x5c] sm:$0xf]
  %v2438 = vld [vmem:[%s9 + $0x60] sm:$0xf]
  %v2439 = vld [vmem:[%s9 + $0x64] sm:$0xf]
  %v2440 = vld [vmem:[%s9 + $0x68] sm:$0xf]
  %v2441 = vld [vmem:[%s9 + $0x6c] sm:$0xf]
  %v2442 = vld [vmem:[%s9 + $0x70] sm:$0xf]
  %v2443 = vld [vmem:[%s9 + $0x74] sm:$0xf]
  %v2444 = vld [vmem:[%s9 + $0x78] sm:$0xf]
  %v2445 = vld [vmem:[%s9 + $0x7c] sm:$0xf]
  %v2446 = vld [vmem:[#allocation2] sm:$0x1]
  %v2448 = vlaneseq
  %v2449 = vshrl.u32 %v2448, 7
  %v2450 = vsub.s32 0, %v2449
  %v2451 = vrot.slane %v2446, %v2450
  %v2485 = vunpack.c.l.b16 %v2414
  %v2486 = vunpack.c.l.b16 %v2415
  %v2487 = vunpack.c.l.b16 %v2416
  %v2488 = vunpack.c.l.b16 %v2417
  %v2489 = vunpack.c.l.b16 %v2418
  %v2490 = vunpack.c.l.b16 %v2419
  %v2491 = vunpack.c.l.b16 %v2420
  %v2492 = vunpack.c.l.b16 %v2421
  %v2493 = vunpack.c.l.b16 %v2422
  %v2494 = vunpack.c.l.b16 %v2423
  %v2495 = vunpack.c.l.b16 %v2424
  %v2496 = vunpack.c.l.b16 %v2425
  %v2497 = vunpack.c.l.b16 %v2426
  %v2498 = vunpack.c.l.b16 %v2427
  %v2499 = vunpack.c.l.b16 %v2428
  %v2500 = vunpack.c.l.b16 %v2429
  %v2501 = vunpack.c.l.b16 %v2430
  %v2502 = vunpack.c.l.b16 %v2431
  %v2503 = vunpack.c.l.b16 %v2432
  %v2504 = vunpack.c.l.b16 %v2433
  %v2505 = vunpack.c.l.b16 %v2434
  %v2506 = vunpack.c.l.b16 %v2435
  %v2507 = vunpack.c.l.b16 %v2436
  %v2508 = vunpack.c.l.b16 %v2437
  %v2509 = vunpack.c.l.b16 %v2438
  %v2510 = vunpack.c.l.b16 %v2439
  %v2511 = vunpack.c.l.b16 %v2440
  %v2512 = vunpack.c.l.b16 %v2441
  %v2513 = vunpack.c.l.b16 %v2442
  %v2514 = vunpack.c.l.b16 %v2443
  %v2515 = vunpack.c.l.b16 %v2444
  %v2516 = vunpack.c.l.b16 %v2445
  %v2517 = vpack.c.b16 %v2486, %v2485
  %v2518 = vpack.c.b16 %v2488, %v2487
  %v2519 = vpack.c.b16 %v2490, %v2489
  %v2520 = vpack.c.b16 %v2492, %v2491
  %v2521 = vpack.c.b16 %v2494, %v2493
  %v2522 = vpack.c.b16 %v2496, %v2495
  %v2523 = vpack.c.b16 %v2498, %v2497
  %v2524 = vpack.c.b16 %v2500, %v2499
  %v2525 = vpack.c.b16 %v2502, %v2501
  %v2526 = vpack.c.b16 %v2504, %v2503
  %v2527 = vpack.c.b16 %v2506, %v2505
  %v2528 = vpack.c.b16 %v2508, %v2507
  %v2529 = vpack.c.b16 %v2510, %v2509
  %v2530 = vpack.c.b16 %v2512, %v2511
  %v2531 = vpack.c.b16 %v2514, %v2513
  %v2532 = vpack.c.b16 %v2516, %v2515
  %2549 = vmatprep.subr.bf16.mxu0 0
  %2550 = vmatpush1.bf16.msra.mxu0 %v2524
  %2551 = vmatprep.subr.bf16.mxu0 0
  %2552 = vmatpush1.bf16.msra.mxu0 %v2523
  %2553 = vmatprep.subr.bf16.mxu0 0
  %2554 = vmatpush1.bf16.msra.mxu0 %v2522
  %2555 = vmatprep.subr.bf16.mxu0 0
  %2556 = vmatpush1.bf16.msra.mxu0 %v2521
  %2557 = vmatprep.subr.bf16.mxu0 0
  %2558 = vmatpush1.bf16.msra.mxu0 %v2520
  %2559 = vmatprep.subr.bf16.mxu0 0
  %2560 = vmatpush1.bf16.msra.mxu0 %v2519
  %2561 = vmatprep.subr.bf16.mxu0 0
  %2562 = vmatpush1.bf16.msra.mxu0 %v2518
  %2563 = vmatprep.subr.bf16.mxu0 0
  %2564 = vmatpush1.bf16.msra.mxu0 %v2517
  %2565 = vmatprep.subr.bf16.mxu0 0
  %2566 = vmatpush2.bf16.msra.mxu0 %v2532
  %2567 = vmatprep.subr.bf16.mxu0 0
  %2568 = vmatpush2.bf16.msra.mxu0 %v2531
  %2569 = vmatprep.subr.bf16.mxu0 0
  %2570 = vmatpush2.bf16.msra.mxu0 %v2530
  %2571 = vmatprep.subr.bf16.mxu0 0
  %2572 = vmatpush2.bf16.msra.mxu0 %v2529
  %2573 = vmatprep.subr.bf16.mxu0 0
  %2574 = vmatpush2.bf16.msra.mxu0 %v2528
  %2575 = vmatprep.subr.bf16.mxu0 0
  %2576 = vmatpush2.bf16.msra.mxu0 %v2527
  %2577 = vmatprep.subr.bf16.mxu0 0
  %2578 = vmatpush2.bf16.msra.mxu0 %v2526
  %2579 = vmatprep.subr.bf16.mxu0 0
  %2580 = vmatpush2.bf16.msra.mxu0 %v2525
  %2581 = vmatprep.mubr.bf16.mxu0 %v2413
  %2582 = vmatmul.mubr.bf16.gmra.mxu0 %v2412
  %v2583 = vpop.f32.mrf.mxu0
  %v2584 = vadd.f32 %v2451, %v2583
  %v2585 = vpop.f32.mrf.mxu0
  %v2586 = vpop.f32.mrf.mxu0
  %v2587 = vadd.f32 %v2451, %v2586
  %v2588 = vpop.f32.mrf.mxu0
  %2589 = vdwg.mxu0
  %v2590 = vxor.u32 %v2584, 2147483648
  %v2591 = vxor.u32 %v2587, 2147483648
  %v2592 = vmul.f32 %v2590, 1.442695
  %v2593 = vpow.pop %v2592
  %v2594 = vmul.f32 %v2591, 1.442695
  %v2595 = vpow.pop %v2594
  %v2596 = vadd.f32 %v2593, 1.0
  %v2597 = vadd.f32 %v2595, 1.0
  %v2598 = vrcp.pop %v2596
  %v2599 = vmul.f32 1.0, %v2598
  %v2600 = vrcp.pop %v2597
  %v2601 = vmul.f32 1.0, %v2600
  %vm2602 = vcmask 7168
  %2603 = vst.msk [vmem:[%s11] sm:$0xff] %vm2602, %v2599
  %2604 = vst.msk [vmem:[%s11 + $0x8] sm:$0xff] %vm2602, %v2601
  // Predicated region
  $region46: #{grasp_pose_net_forward.7} parent=0 // pred_check
    _
  $region47: #{grasp_pose_net_forward.7} parent=0 // pred_check_branch
    %2606 = sbr.rel (0) target = $region49
  $region48: #{grasp_pose_net_forward.7} parent=0 // pred_region
    _
  $region49: #{grasp_pose_net_forward.7} parent=0 // pred_fallthru
    _
  // Predicated region
  $region50: #{grasp_pose_net_forward.7} parent=0 // pred_check
    _
  $region51: #{grasp_pose_net_forward.7} parent=0 // pred_check_branch
    %2608 = sbr.rel (0) target = $region53
  $region52: #{grasp_pose_net_forward.7} parent=0 // pred_region
    _
  $region53: #{grasp_pose_net_forward.7} parent=0 // pred_fallthru
    _

// kernel: grasp_pose_net_forward.6
$region0: #{grasp_pose_net_forward.6}
  #allocation0 [shape = 'u32[]', space=smem, size = 0x4, offset = 0x4, fixed_abs, tag = 'smem constant byte address 0x4 - core index']
  #allocation1 [shape = 'u32[144,128]{1,0:T(1,128)}', space=vmem, size = 0x12000, scoped, tag = 'internal scratch']
  #allocation2 [shape = 'f32[1,1]{1,0:T(1,128)S(1)}', space=vmem, size = 0x200, scoped, tag = 'scoped memory for grasp_pose_net_forward.6']
  %s0 = inlined_call_operand.vmem [shape: bf16[16,2048], index: 0, kind: input, shape index: {}]
  %s1 = inlined_call_operand.vmem [shape: bf16[2048,256], index: 1, kind: input, shape index: {}]
  %s2 = inlined_call_operand.vmem [shape: f32[1,256], index: 2, kind: input, shape index: {}]
  %s3 = inlined_call_operand.vmem [shape: bf16[128,512], index: 3, kind: input, shape index: {}]
  %s4 = inlined_call_operand.vmem [shape: f32[1,512], index: 4, kind: input, shape index: {}]
  %s5 = inlined_call_operand.vmem [shape: bf16[512,256], index: 5, kind: input, shape index: {}]
  %s6 = inlined_call_operand.vmem [shape: f32[1,256], index: 6, kind: input, shape index: {}]
  %s7 = inlined_call_operand.vmem [shape: bf16[256,1], index: 7, kind: input, shape index: {}]
  %s8 = inlined_call_operand.<no memory space> [shape: f32[1,1], index: 8, kind: input, shape index: {}]
  %s9 = inlined_call_operand.vmem [shape: bf16[128,512], index: 9, kind: input, shape index: {}]
  %s10 = inlined_call_operand.vmem [shape: f32[1,512], index: 10, kind: input, shape index: {}]
  %s11 = inlined_call_operand.vmem [shape: bf16[512,512], index: 11, kind: input, shape index: {}]
  %s12 = inlined_call_operand.vmem [shape: f32[1,512], index: 12, kind: input, shape index: {}]
  %s13 = inlined_call_operand.vmem [shape: bf16[512,4], index: 13, kind: input, shape index: {}]
  %s14 = inlined_call_operand.vmem [shape: f32[1,4], index: 14, kind: input, shape index: {}]
  %s15 = inlined_call_operand.vmem [shape: f32[16,1], index: 15, kind: output, shape index: {0}]
  %s16 = inlined_call_operand.vmem [shape: f32[16,4], index: 16, kind: output, shape index: {1}]
  %17 = xla_tuple %s15, %s16
  %s18 = sld [smem:[#allocation0]]
  $region86: #{grasp_pose_net_forward.6} parent=0
    _
  %s20 = ssub.s32 1, %s18
  %s21 = scalar_select 0, %s20, %s18
  %v22 = vstv %s8
  %23 = vst [vmem:[#allocation2] sm:$0x1] %v22
  // Predicated region
  $region2: #{grasp_pose_net_forward.6} parent=0 // pred_check
    _
  $region3: #{grasp_pose_net_forward.6} parent=0 // pred_check_branch
    %25 = sbr.rel (0) target = $region5
  $region4: #{grasp_pose_net_forward.6} parent=0 // pred_region
    _
  $region5: #{grasp_pose_net_forward.6} parent=0 // pred_fallthru
    _
  // Predicated region
  $region6: #{grasp_pose_net_forward.6} parent=0 // pred_check
    _
  $region7: #{grasp_pose_net_forward.6} parent=0 // pred_check_branch
    %27 = sbr.rel (0) target = $region9
  $region8: #{grasp_pose_net_forward.6} parent=0 // pred_region
    _
  $region9: #{grasp_pose_net_forward.6} parent=0 // pred_fallthru
    _
  // Predicated region
  $region10: #{grasp_pose_net_forward.6} parent=0 // pred_check
    _
  $region11: #{grasp_pose_net_forward.6} parent=0 // pred_check_branch
    %29 = sbr.rel (0) target = $region13
  $region12: #{grasp_pose_net_forward.6} parent=0 // pred_region
    _
  $region13: #{grasp_pose_net_forward.6} parent=0 // pred_fallthru
    _
  // Predicated region
  $region14: #{grasp_pose_net_forward.6} parent=0 // pred_check
    _
  $region15: #{grasp_pose_net_forward.6} parent=0 // pred_check_branch
    %31 = sbr.rel (0) target = $region17
  $region16: #{grasp_pose_net_forward.6} parent=0 // pred_region
    _
  $region17: #{grasp_pose_net_forward.6} parent=0 // pred_fallthru
    _
  // Predicated region
  $region18: #{grasp_pose_net_forward.6} parent=0 // pred_check
    _
  $region19: #{grasp_pose_net_forward.6} parent=0 // pred_check_branch
    %33 = sbr.rel (0) target = $region21
  $region20: #{grasp_pose_net_forward.6} parent=0 // pred_region
    _
  $region21: #{grasp_pose_net_forward.6} parent=0 // pred_fallthru
    _
  // Predicated region
  $region22: #{grasp_pose_net_forward.6} parent=0 // pred_check
    _
  $region23: #{grasp_pose_net_forward.6} parent=0 // pred_check_branch
    %35 = sbr.rel (0) target = $region25
  $region24: #{grasp_pose_net_forward.6} parent=0 // pred_region
    _
  $region25: #{grasp_pose_net_forward.6} parent=0 // pred_fallthru
    _
  // Predicated region
  $region26: #{grasp_pose_net_forward.6} parent=0 // pred_check
    _
  $region27: #{grasp_pose_net_forward.6} parent=0 // pred_check_branch
    %37 = sbr.rel (0) target = $region29
  $region28: #{grasp_pose_net_forward.6} parent=0 // pred_region
    _
  $region29: #{grasp_pose_net_forward.6} parent=0 // pred_fallthru
    _
  // Predicated region
  $region30: #{grasp_pose_net_forward.6} parent=0 // pred_check
    _
  $region31: #{grasp_pose_net_forward.6} parent=0 // pred_check_branch
    %39 = sbr.rel (0) target = $region33
  $region32: #{grasp_pose_net_forward.6} parent=0 // pred_region
    _
  $region33: #{grasp_pose_net_forward.6} parent=0 // pred_fallthru
    _
  // Predicated region
  $region34: #{grasp_pose_net_forward.6} parent=0 // pred_check
    _
  $region35: #{grasp_pose_net_forward.6} parent=0 // pred_check_branch
    %41 = sbr.rel (0) target = $region37
  $region36: #{grasp_pose_net_forward.6} parent=0 // pred_region
    _
  $region37: #{grasp_pose_net_forward.6} parent=0 // pred_fallthru
    _
  // Predicated region
  $region38: #{grasp_pose_net_forward.6} parent=0 // pred_check
    _
  $region39: #{grasp_pose_net_forward.6} parent=0 // pred_check_branch
    %43 = sbr.rel (0) target = $region41
  $region40: #{grasp_pose_net_forward.6} parent=0 // pred_region
    _
  $region41: #{grasp_pose_net_forward.6} parent=0 // pred_fallthru
    _
  // Predicated region
  $region42: #{grasp_pose_net_forward.6} parent=0 // pred_check
    _
  $region43: #{grasp_pose_net_forward.6} parent=0 // pred_check_branch
    %45 = sbr.rel (0) target = $region45
  $region44: #{grasp_pose_net_forward.6} parent=0 // pred_region
    _
  $region45: #{grasp_pose_net_forward.6} parent=0 // pred_fallthru
    _
  // Predicated region
  $region46: #{grasp_pose_net_forward.6} parent=0 // pred_check
    _
  $region47: #{grasp_pose_net_forward.6} parent=0 // pred_check_branch
    %47 = sbr.rel (0) target = $region49
  $region48: #{grasp_pose_net_forward.6} parent=0 // pred_region
    _
  $region49: #{grasp_pose_net_forward.6} parent=0 // pred_fallthru
    _
  // Predicated region
  $region50: #{grasp_pose_net_forward.6} parent=0 // pred_check
    _
  $region51: #{grasp_pose_net_forward.6} parent=0 // pred_check_branch
    %49 = sbr.rel (0) target = $region53
  $region52: #{grasp_pose_net_forward.6} parent=0 // pred_region
    _
  $region53: #{grasp_pose_net_forward.6} parent=0 // pred_fallthru
    _
  // Predicated region
  $region54: #{grasp_pose_net_forward.6} parent=0 // pred_check
    _
  $region55: #{grasp_pose_net_forward.6} parent=0 // pred_check_branch
    %51 = sbr.rel (0) target = $region57
  $region56: #{grasp_pose_net_forward.6} parent=0 // pred_region
    _
  $region57: #{grasp_pose_net_forward.6} parent=0 // pred_fallthru
    _
  // Predicated region
  $region58: #{grasp_pose_net_forward.6} parent=0 // pred_check
    _
  $region59: #{grasp_pose_net_forward.6} parent=0 // pred_check_branch
    %53 = sbr.rel (0) target = $region61
  $region60: #{grasp_pose_net_forward.6} parent=0 // pred_region
    _
  $region61: #{grasp_pose_net_forward.6} parent=0 // pred_fallthru
    _
  %s55 = smul.u32 0, 16
  %p56 = scmp.lt.s32.totalorder %s55, 8
  // Predicated region
  $region62: #{grasp_pose_net_forward.6} parent=0 // pred_check
    %p57 = pneg %p56
  $region63: #{grasp_pose_net_forward.6} parent=0 // pred_check_branch
    %59 = sbr.rel (%p57) target = $region65
  $region64: #{grasp_pose_net_forward.6} parent=0 // pred_region
    %v60 = vld [vmem:[%s0] sm:$0xff]
    %v61 = vld [vmem:[%s0 + $0x8] sm:$0xff]
    %v62 = vld [vmem:[%s0 + $0x10] sm:$0xff]
    %v63 = vld [vmem:[%s0 + $0x18] sm:$0xff]
    %v64 = vld [vmem:[%s0 + $0x20] sm:$0xff]
    %v65 = vld [vmem:[%s0 + $0x28] sm:$0xff]
    %v66 = vld [vmem:[%s0 + $0x30] sm:$0xff]
    %v67 = vld [vmem:[%s0 + $0x38] sm:$0xff]
    %v68 = vld [vmem:[%s0 + $0x40] sm:$0xff]
    %v69 = vld [vmem:[%s0 + $0x48] sm:$0xff]
    %v70 = vld [vmem:[%s0 + $0x50] sm:$0xff]
    %v71 = vld [vmem:[%s0 + $0x58] sm:$0xff]
    %v72 = vld [vmem:[%s0 + $0x60] sm:$0xff]
    %v73 = vld [vmem:[%s0 + $0x68] sm:$0xff]
    %v74 = vld [vmem:[%s0 + $0x70] sm:$0xff]
    %v75 = vld [vmem:[%s0 + $0x78] sm:$0xff]
    %v76 = vld [vmem:[%s1] sm:$0xff]
    %v77 = vld [vmem:[%s1 + $0x8] sm:$0xff]
    %v78 = vld [vmem:[%s1 + $0x10] sm:$0xff]
    %v79 = vld [vmem:[%s1 + $0x18] sm:$0xff]
    %v80 = vld [vmem:[%s1 + $0x20] sm:$0xff]
    %v81 = vld [vmem:[%s1 + $0x28] sm:$0xff]
    %v82 = vld [vmem:[%s1 + $0x30] sm:$0xff]
    %v83 = vld [vmem:[%s1 + $0x38] sm:$0xff]
    %v84 = vld [vmem:[%s1 + $0x40] sm:$0xff]
    %v85 = vld [vmem:[%s1 + $0x48] sm:$0xff]
    %v86 = vld [vmem:[%s1 + $0x50] sm:$0xff]
    %v87 = vld [vmem:[%s1 + $0x58] sm:$0xff]
    %v88 = vld [vmem:[%s1 + $0x60] sm:$0xff]
    %v89 = vld [vmem:[%s1 + $0x68] sm:$0xff]
    %v90 = vld [vmem:[%s1 + $0x70] sm:$0xff]
    %v91 = vld [vmem:[%s1 + $0x78] sm:$0xff]
    %v92 = vld [vmem:[%s1 + $0x80] sm:$0xff]
    %v93 = vld [vmem:[%s1 + $0x88] sm:$0xff]
    %v94 = vld [vmem:[%s1 + $0x90] sm:$0xff]
    %v95 = vld [vmem:[%s1 + $0x98] sm:$0xff]
    %v96 = vld [vmem:[%s1 + $0xa0] sm:$0xff]
    %v97 = vld [vmem:[%s1 + $0xa8] sm:$0xff]
    %v98 = vld [vmem:[%s1 + $0xb0] sm:$0xff]
    %v99 = vld [vmem:[%s1 + $0xb8] sm:$0xff]
    %v100 = vld [vmem:[%s1 + $0xc0] sm:$0xff]
    %v101 = vld [vmem:[%s1 + $0xc8] sm:$0xff]
    %v102 = vld [vmem:[%s1 + $0xd0] sm:$0xff]
    %v103 = vld [vmem:[%s1 + $0xd8] sm:$0xff]
    %v104 = vld [vmem:[%s1 + $0xe0] sm:$0xff]
    %v105 = vld [vmem:[%s1 + $0xe8] sm:$0xff]
    %v106 = vld [vmem:[%s1 + $0xf0] sm:$0xff]
    %v107 = vld [vmem:[%s1 + $0xf8] sm:$0xff]
    %v108 = vld [vmem:[%s1 + $0x100] sm:$0xff]
    %v109 = vld [vmem:[%s1 + $0x108] sm:$0xff]
    %v110 = vld [vmem:[%s1 + $0x110] sm:$0xff]
    %v111 = vld [vmem:[%s1 + $0x118] sm:$0xff]
    %v112 = vld [vmem:[%s1 + $0x120] sm:$0xff]
    %v113 = vld [vmem:[%s1 + $0x128] sm:$0xff]
    %v114 = vld [vmem:[%s1 + $0x130] sm:$0xff]
    %v115 = vld [vmem:[%s1 + $0x138] sm:$0xff]
    %v116 = vld [vmem:[%s1 + $0x140] sm:$0xff]
    %v117 = vld [vmem:[%s1 + $0x148] sm:$0xff]
    %v118 = vld [vmem:[%s1 + $0x150] sm:$0xff]
    %v119 = vld [vmem:[%s1 + $0x158] sm:$0xff]
    %v120 = vld [vmem:[%s1 + $0x160] sm:$0xff]
    %v121 = vld [vmem:[%s1 + $0x168] sm:$0xff]
    %v122 = vld [vmem:[%s1 + $0x170] sm:$0xff]
    %v123 = vld [vmem:[%s1 + $0x178] sm:$0xff]
    %v124 = vld [vmem:[%s1 + $0x180] sm:$0xff]
    %v125 = vld [vmem:[%s1 + $0x188] sm:$0xff]
    %v126 = vld [vmem:[%s1 + $0x190] sm:$0xff]
    %v127 = vld [vmem:[%s1 + $0x198] sm:$0xff]
    %v128 = vld [vmem:[%s1 + $0x1a0] sm:$0xff]
    %v129 = vld [vmem:[%s1 + $0x1a8] sm:$0xff]
    %v130 = vld [vmem:[%s1 + $0x1b0] sm:$0xff]
    %v131 = vld [vmem:[%s1 + $0x1b8] sm:$0xff]
    %v132 = vld [vmem:[%s1 + $0x1c0] sm:$0xff]
    %v133 = vld [vmem:[%s1 + $0x1c8] sm:$0xff]
    %v134 = vld [vmem:[%s1 + $0x1d0] sm:$0xff]
    %v135 = vld [vmem:[%s1 + $0x1d8] sm:$0xff]
    %v136 = vld [vmem:[%s1 + $0x1e0] sm:$0xff]
    %v137 = vld [vmem:[%s1 + $0x1e8] sm:$0xff]
    %v138 = vld [vmem:[%s1 + $0x1f0] sm:$0xff]
    %v139 = vld [vmem:[%s1 + $0x1f8] sm:$0xff]
    %v140 = vld [vmem:[%s1 + $0x200] sm:$0xff]
    %v141 = vld [vmem:[%s1 + $0x208] sm:$0xff]
    %v142 = vld [vmem:[%s1 + $0x210] sm:$0xff]
    %v143 = vld [vmem:[%s1 + $0x218] sm:$0xff]
    %v144 = vld [vmem:[%s1 + $0x220] sm:$0xff]
    %v145 = vld [vmem:[%s1 + $0x228] sm:$0xff]
    %v146 = vld [vmem:[%s1 + $0x230] sm:$0xff]
    %v147 = vld [vmem:[%s1 + $0x238] sm:$0xff]
    %v148 = vld [vmem:[%s1 + $0x240] sm:$0xff]
    %v149 = vld [vmem:[%s1 + $0x248] sm:$0xff]
    %v150 = vld [vmem:[%s1 + $0x250] sm:$0xff]
    %v151 = vld [vmem:[%s1 + $0x258] sm:$0xff]
    %v152 = vld [vmem:[%s1 + $0x260] sm:$0xff]
    %v153 = vld [vmem:[%s1 + $0x268] sm:$0xff]
    %v154 = vld [vmem:[%s1 + $0x270] sm:$0xff]
    %v155 = vld [vmem:[%s1 + $0x278] sm:$0xff]
    %v156 = vld [vmem:[%s1 + $0x280] sm:$0xff]
    %v157 = vld [vmem:[%s1 + $0x288] sm:$0xff]
    %v158 = vld [vmem:[%s1 + $0x290] sm:$0xff]
    %v159 = vld [vmem:[%s1 + $0x298] sm:$0xff]
    %v160 = vld [vmem:[%s1 + $0x2a0] sm:$0xff]
    %v161 = vld [vmem:[%s1 + $0x2a8] sm:$0xff]
    %v162 = vld [vmem:[%s1 + $0x2b0] sm:$0xff]
    %v163 = vld [vmem:[%s1 + $0x2b8] sm:$0xff]
    %v164 = vld [vmem:[%s1 + $0x2c0] sm:$0xff]
    %v165 = vld [vmem:[%s1 + $0x2c8] sm:$0xff]
    %v166 = vld [vmem:[%s1 + $0x2d0] sm:$0xff]
    %v167 = vld [vmem:[%s1 + $0x2d8] sm:$0xff]
    %v168 = vld [vmem:[%s1 + $0x2e0] sm:$0xff]
    %v169 = vld [vmem:[%s1 + $0x2e8] sm:$0xff]
    %v170 = vld [vmem:[%s1 + $0x2f0] sm:$0xff]
    %v171 = vld [vmem:[%s1 + $0x2f8] sm:$0xff]
    %v172 = vld [vmem:[%s1 + $0x300] sm:$0xff]
    %v173 = vld [vmem:[%s1 + $0x308] sm:$0xff]
    %v174 = vld [vmem:[%s1 + $0x310] sm:$0xff]
    %v175 = vld [vmem:[%s1 + $0x318] sm:$0xff]
    %v176 = vld [vmem:[%s1 + $0x320] sm:$0xff]
    %v177 = vld [vmem:[%s1 + $0x328] sm:$0xff]
    %v178 = vld [vmem:[%s1 + $0x330] sm:$0xff]
    %v179 = vld [vmem:[%s1 + $0x338] sm:$0xff]
    %v180 = vld [vmem:[%s1 + $0x340] sm:$0xff]
    %v181 = vld [vmem:[%s1 + $0x348] sm:$0xff]
    %v182 = vld [vmem:[%s1 + $0x350] sm:$0xff]
    %v183 = vld [vmem:[%s1 + $0x358] sm:$0xff]
    %v184 = vld [vmem:[%s1 + $0x360] sm:$0xff]
    %v185 = vld [vmem:[%s1 + $0x368] sm:$0xff]
    %v186 = vld [vmem:[%s1 + $0x370] sm:$0xff]
    %v187 = vld [vmem:[%s1 + $0x378] sm:$0xff]
    %v188 = vld [vmem:[%s1 + $0x380] sm:$0xff]
    %v189 = vld [vmem:[%s1 + $0x388] sm:$0xff]
    %v190 = vld [vmem:[%s1 + $0x390] sm:$0xff]
    %v191 = vld [vmem:[%s1 + $0x398] sm:$0xff]
    %v192 = vld [vmem:[%s1 + $0x3a0] sm:$0xff]
    %v193 = vld [vmem:[%s1 + $0x3a8] sm:$0xff]
    %v194 = vld [vmem:[%s1 + $0x3b0] sm:$0xff]
    %v195 = vld [vmem:[%s1 + $0x3b8] sm:$0xff]
    %v196 = vld [vmem:[%s1 + $0x3c0] sm:$0xff]
    %v197 = vld [vmem:[%s1 + $0x3c8] sm:$0xff]
    %v198 = vld [vmem:[%s1 + $0x3d0] sm:$0xff]
    %v199 = vld [vmem:[%s1 + $0x3d8] sm:$0xff]
    %v200 = vld [vmem:[%s1 + $0x3e0] sm:$0xff]
    %v201 = vld [vmem:[%s1 + $0x3e8] sm:$0xff]
    %v202 = vld [vmem:[%s1 + $0x3f0] sm:$0xff]
    %v203 = vld [vmem:[%s1 + $0x3f8] sm:$0xff]
    %v204 = vld [vmem:[%s1 + $0x400] sm:$0xff]
    %v205 = vld [vmem:[%s1 + $0x408] sm:$0xff]
    %v206 = vld [vmem:[%s1 + $0x410] sm:$0xff]
    %v207 = vld [vmem:[%s1 + $0x418] sm:$0xff]
    %v208 = vld [vmem:[%s1 + $0x420] sm:$0xff]
    %v209 = vld [vmem:[%s1 + $0x428] sm:$0xff]
    %v210 = vld [vmem:[%s1 + $0x430] sm:$0xff]
    %v211 = vld [vmem:[%s1 + $0x438] sm:$0xff]
    %v212 = vld [vmem:[%s1 + $0x440] sm:$0xff]
    %v213 = vld [vmem:[%s1 + $0x448] sm:$0xff]
    %v214 = vld [vmem:[%s1 + $0x450] sm:$0xff]
    %v215 = vld [vmem:[%s1 + $0x458] sm:$0xff]
    %v216 = vld [vmem:[%s1 + $0x460] sm:$0xff]
    %v217 = vld [vmem:[%s1 + $0x468] sm:$0xff]
    %v218 = vld [vmem:[%s1 + $0x470] sm:$0xff]
    %v219 = vld [vmem:[%s1 + $0x478] sm:$0xff]
    %v220 = vld [vmem:[%s1 + $0x480] sm:$0xff]
    %v221 = vld [vmem:[%s1 + $0x488] sm:$0xff]
    %v222 = vld [vmem:[%s1 + $0x490] sm:$0xff]
    %v223 = vld [vmem:[%s1 + $0x498] sm:$0xff]
    %v224 = vld [vmem:[%s1 + $0x4a0] sm:$0xff]
    %v225 = vld [vmem:[%s1 + $0x4a8] sm:$0xff]
    %v226 = vld [vmem:[%s1 + $0x4b0] sm:$0xff]
    %v227 = vld [vmem:[%s1 + $0x4b8] sm:$0xff]
    %v228 = vld [vmem:[%s1 + $0x4c0] sm:$0xff]
    %v229 = vld [vmem:[%s1 + $0x4c8] sm:$0xff]
    %v230 = vld [vmem:[%s1 + $0x4d0] sm:$0xff]
    %v231 = vld [vmem:[%s1 + $0x4d8] sm:$0xff]
    %v232 = vld [vmem:[%s1 + $0x4e0] sm:$0xff]
    %v233 = vld [vmem:[%s1 + $0x4e8] sm:$0xff]
    %v234 = vld [vmem:[%s1 + $0x4f0] sm:$0xff]
    %v235 = vld [vmem:[%s1 + $0x4f8] sm:$0xff]
    %v236 = vld [vmem:[%s1 + $0x500] sm:$0xff]
    %v237 = vld [vmem:[%s1 + $0x508] sm:$0xff]
    %v238 = vld [vmem:[%s1 + $0x510] sm:$0xff]
    %v239 = vld [vmem:[%s1 + $0x518] sm:$0xff]
    %v240 = vld [vmem:[%s1 + $0x520] sm:$0xff]
    %v241 = vld [vmem:[%s1 + $0x528] sm:$0xff]
    %v242 = vld [vmem:[%s1 + $0x530] sm:$0xff]
    %v243 = vld [vmem:[%s1 + $0x538] sm:$0xff]
    %v244 = vld [vmem:[%s1 + $0x540] sm:$0xff]
    %v245 = vld [vmem:[%s1 + $0x548] sm:$0xff]
    %v246 = vld [vmem:[%s1 + $0x550] sm:$0xff]
    %v247 = vld [vmem:[%s1 + $0x558] sm:$0xff]
    %v248 = vld [vmem:[%s1 + $0x560] sm:$0xff]
    %v249 = vld [vmem:[%s1 + $0x568] sm:$0xff]
    %v250 = vld [vmem:[%s1 + $0x570] sm:$0xff]
    %v251 = vld [vmem:[%s1 + $0x578] sm:$0xff]
    %v252 = vld [vmem:[%s1 + $0x580] sm:$0xff]
    %v253 = vld [vmem:[%s1 + $0x588] sm:$0xff]
    %v254 = vld [vmem:[%s1 + $0x590] sm:$0xff]
    %v255 = vld [vmem:[%s1 + $0x598] sm:$0xff]
    %v256 = vld [vmem:[%s1 + $0x5a0] sm:$0xff]
    %v257 = vld [vmem:[%s1 + $0x5a8] sm:$0xff]
    %v258 = vld [vmem:[%s1 + $0x5b0] sm:$0xff]
    %v259 = vld [vmem:[%s1 + $0x5b8] sm:$0xff]
    %v260 = vld [vmem:[%s1 + $0x5c0] sm:$0xff]
    %v261 = vld [vmem:[%s1 + $0x5c8] sm:$0xff]
    %v262 = vld [vmem:[%s1 + $0x5d0] sm:$0xff]
    %v263 = vld [vmem:[%s1 + $0x5d8] sm:$0xff]
    %v264 = vld [vmem:[%s1 + $0x5e0] sm:$0xff]
    %v265 = vld [vmem:[%s1 + $0x5e8] sm:$0xff]
    %v266 = vld [vmem:[%s1 + $0x5f0] sm:$0xff]
    %v267 = vld [vmem:[%s1 + $0x5f8] sm:$0xff]
    %v268 = vld [vmem:[%s1 + $0x600] sm:$0xff]
    %v269 = vld [vmem:[%s1 + $0x608] sm:$0xff]
    %v270 = vld [vmem:[%s1 + $0x610] sm:$0xff]
    %v271 = vld [vmem:[%s1 + $0x618] sm:$0xff]
    %v272 = vld [vmem:[%s1 + $0x620] sm:$0xff]
    %v273 = vld [vmem:[%s1 + $0x628] sm:$0xff]
    %v274 = vld [vmem:[%s1 + $0x630] sm:$0xff]
    %v275 = vld [vmem:[%s1 + $0x638] sm:$0xff]
    %v276 = vld [vmem:[%s1 + $0x640] sm:$0xff]
    %v277 = vld [vmem:[%s1 + $0x648] sm:$0xff]
    %v278 = vld [vmem:[%s1 + $0x650] sm:$0xff]
    %v279 = vld [vmem:[%s1 + $0x658] sm:$0xff]
    %v280 = vld [vmem:[%s1 + $0x660] sm:$0xff]
    %v281 = vld [vmem:[%s1 + $0x668] sm:$0xff]
    %v282 = vld [vmem:[%s1 + $0x670] sm:$0xff]
    %v283 = vld [vmem:[%s1 + $0x678] sm:$0xff]
    %v284 = vld [vmem:[%s1 + $0x680] sm:$0xff]
    %v285 = vld [vmem:[%s1 + $0x688] sm:$0xff]
    %v286 = vld [vmem:[%s1 + $0x690] sm:$0xff]
    %v287 = vld [vmem:[%s1 + $0x698] sm:$0xff]
    %v288 = vld [vmem:[%s1 + $0x6a0] sm:$0xff]
    %v289 = vld [vmem:[%s1 + $0x6a8] sm:$0xff]
    %v290 = vld [vmem:[%s1 + $0x6b0] sm:$0xff]
    %v291 = vld [vmem:[%s1 + $0x6b8] sm:$0xff]
    %v292 = vld [vmem:[%s1 + $0x6c0] sm:$0xff]
    %v293 = vld [vmem:[%s1 + $0x6c8] sm:$0xff]
    %v294 = vld [vmem:[%s1 + $0x6d0] sm:$0xff]
    %v295 = vld [vmem:[%s1 + $0x6d8] sm:$0xff]
    %v296 = vld [vmem:[%s1 + $0x6e0] sm:$0xff]
    %v297 = vld [vmem:[%s1 + $0x6e8] sm:$0xff]
    %v298 = vld [vmem:[%s1 + $0x6f0] sm:$0xff]
    %v299 = vld [vmem:[%s1 + $0x6f8] sm:$0xff]
    %v300 = vld [vmem:[%s1 + $0x700] sm:$0xff]
    %v301 = vld [vmem:[%s1 + $0x708] sm:$0xff]
    %v302 = vld [vmem:[%s1 + $0x710] sm:$0xff]
    %v303 = vld [vmem:[%s1 + $0x718] sm:$0xff]
    %v304 = vld [vmem:[%s1 + $0x720] sm:$0xff]
    %v305 = vld [vmem:[%s1 + $0x728] sm:$0xff]
    %v306 = vld [vmem:[%s1 + $0x730] sm:$0xff]
    %v307 = vld [vmem:[%s1 + $0x738] sm:$0xff]
    %v308 = vld [vmem:[%s1 + $0x740] sm:$0xff]
    %v309 = vld [vmem:[%s1 + $0x748] sm:$0xff]
    %v310 = vld [vmem:[%s1 + $0x750] sm:$0xff]
    %v311 = vld [vmem:[%s1 + $0x758] sm:$0xff]
    %v312 = vld [vmem:[%s1 + $0x760] sm:$0xff]
    %v313 = vld [vmem:[%s1 + $0x768] sm:$0xff]
    %v314 = vld [vmem:[%s1 + $0x770] sm:$0xff]
    %v315 = vld [vmem:[%s1 + $0x778] sm:$0xff]
    %v316 = vld [vmem:[%s1 + $0x780] sm:$0xff]
    %v317 = vld [vmem:[%s1 + $0x788] sm:$0xff]
    %v318 = vld [vmem:[%s1 + $0x790] sm:$0xff]
    %v319 = vld [vmem:[%s1 + $0x798] sm:$0xff]
    %v320 = vld [vmem:[%s1 + $0x7a0] sm:$0xff]
    %v321 = vld [vmem:[%s1 + $0x7a8] sm:$0xff]
    %v322 = vld [vmem:[%s1 + $0x7b0] sm:$0xff]
    %v323 = vld [vmem:[%s1 + $0x7b8] sm:$0xff]
    %v324 = vld [vmem:[%s1 + $0x7c0] sm:$0xff]
    %v325 = vld [vmem:[%s1 + $0x7c8] sm:$0xff]
    %v326 = vld [vmem:[%s1 + $0x7d0] sm:$0xff]
    %v327 = vld [vmem:[%s1 + $0x7d8] sm:$0xff]
    %v328 = vld [vmem:[%s1 + $0x7e0] sm:$0xff]
    %v329 = vld [vmem:[%s1 + $0x7e8] sm:$0xff]
    %v330 = vld [vmem:[%s1 + $0x7f0] sm:$0xff]
    %v331 = vld [vmem:[%s1 + $0x7f8] sm:$0xff]
    %v332 = vld [vmem:[%s2] sm:$0x3]
    %v334 = vlaneseq
    %v335 = vshrl.u32 %v334, 7
    %v336 = vsub.s32 0, %v335
    %v337 = vrot.slane %v332, %v336
    %v338 = vlaneseq
    %v339 = vshrl.u32 %v338, 7
    %v340 = vsub.s32 1, %v339
    %v341 = vrot.slane %v332, %v340
    %v360 = vunpack.c.l.b16 %v60
    %v361 = vunpack.c.h.b16 %v60
    %v362 = vunpack.c.l.b16 %v61
    %v363 = vunpack.c.h.b16 %v61
    %v364 = vunpack.c.l.b16 %v62
    %v365 = vunpack.c.h.b16 %v62
    %v366 = vunpack.c.l.b16 %v63
    %v367 = vunpack.c.h.b16 %v63
    %v368 = vunpack.c.l.b16 %v64
    %v369 = vunpack.c.h.b16 %v64
    %v370 = vunpack.c.l.b16 %v65
    %v371 = vunpack.c.h.b16 %v65
    %v372 = vunpack.c.l.b16 %v66
    %v373 = vunpack.c.h.b16 %v66
    %v374 = vunpack.c.l.b16 %v67
    %v375 = vunpack.c.h.b16 %v67
    %v376 = vunpack.c.l.b16 %v68
    %v377 = vunpack.c.h.b16 %v68
    %v378 = vunpack.c.l.b16 %v69
    %v379 = vunpack.c.h.b16 %v69
    %v380 = vunpack.c.l.b16 %v70
    %v381 = vunpack.c.h.b16 %v70
    %v382 = vunpack.c.l.b16 %v71
    %v383 = vunpack.c.h.b16 %v71
    %v384 = vunpack.c.l.b16 %v72
    %v385 = vunpack.c.h.b16 %v72
    %v386 = vunpack.c.l.b16 %v73
    %v387 = vunpack.c.h.b16 %v73
    %v388 = vunpack.c.l.b16 %v74
    %v389 = vunpack.c.h.b16 %v74
    %v390 = vunpack.c.l.b16 %v75
    %v391 = vunpack.c.h.b16 %v75
    %v392 = vpack.c.b16 %v376, %v360
    %v393 = vpack.c.b16 %v377, %v361
    %v394 = vpack.c.b16 %v378, %v362
    %v395 = vpack.c.b16 %v379, %v363
    %v396 = vpack.c.b16 %v380, %v364
    %v397 = vpack.c.b16 %v381, %v365
    %v398 = vpack.c.b16 %v382, %v366
    %v399 = vpack.c.b16 %v383, %v367
    %v400 = vpack.c.b16 %v384, %v368
    %v401 = vpack.c.b16 %v385, %v369
    %v402 = vpack.c.b16 %v386, %v370
    %v403 = vpack.c.b16 %v387, %v371
    %v404 = vpack.c.b16 %v388, %v372
    %v405 = vpack.c.b16 %v389, %v373
    %v406 = vpack.c.b16 %v390, %v374
    %v407 = vpack.c.b16 %v391, %v375
    %v680 = vunpack.c.l.b16 %v76
    %v681 = vunpack.c.h.b16 %v76
    %v682 = vunpack.c.l.b16 %v77
    %v683 = vunpack.c.h.b16 %v77
    %v684 = vunpack.c.l.b16 %v78
    %v685 = vunpack.c.h.b16 %v78
    %v686 = vunpack.c.l.b16 %v79
    %v687 = vunpack.c.h.b16 %v79
    %v688 = vunpack.c.l.b16 %v80
    %v689 = vunpack.c.h.b16 %v80
    %v690 = vunpack.c.l.b16 %v81
    %v691 = vunpack.c.h.b16 %v81
    %v692 = vunpack.c.l.b16 %v82
    %v693 = vunpack.c.h.b16 %v82
    %v694 = vunpack.c.l.b16 %v83
    %v695 = vunpack.c.h.b16 %v83
    %v696 = vunpack.c.l.b16 %v84
    %v697 = vunpack.c.h.b16 %v84
    %v698 = vunpack.c.l.b16 %v85
    %v699 = vunpack.c.h.b16 %v85
    %v700 = vunpack.c.l.b16 %v86
    %v701 = vunpack.c.h.b16 %v86
    %v702 = vunpack.c.l.b16 %v87
    %v703 = vunpack.c.h.b16 %v87
    %v704 = vunpack.c.l.b16 %v88
    %v705 = vunpack.c.h.b16 %v88
    %v706 = vunpack.c.l.b16 %v89
    %v707 = vunpack.c.h.b16 %v89
    %v708 = vunpack.c.l.b16 %v90
    %v709 = vunpack.c.h.b16 %v90
    %v710 = vunpack.c.l.b16 %v91
    %v711 = vunpack.c.h.b16 %v91
    %v712 = vunpack.c.l.b16 %v92
    %v713 = vunpack.c.h.b16 %v92
    %v714 = vunpack.c.l.b16 %v93
    %v715 = vunpack.c.h.b16 %v93
    %v716 = vunpack.c.l.b16 %v94
    %v717 = vunpack.c.h.b16 %v94
    %v718 = vunpack.c.l.b16 %v95
    %v719 = vunpack.c.h.b16 %v95
    %v720 = vunpack.c.l.b16 %v96
    %v721 = vunpack.c.h.b16 %v96
    %v722 = vunpack.c.l.b16 %v97
    %v723 = vunpack.c.h.b16 %v97
    %v724 = vunpack.c.l.b16 %v98
    %v725 = vunpack.c.h.b16 %v98
    %v726 = vunpack.c.l.b16 %v99
    %v727 = vunpack.c.h.b16 %v99
    %v728 = vunpack.c.l.b16 %v100
    %v729 = vunpack.c.h.b16 %v100
    %v730 = vunpack.c.l.b16 %v101
    %v731 = vunpack.c.h.b16 %v101
    %v732 = vunpack.c.l.b16 %v102
    %v733 = vunpack.c.h.b16 %v102
    %v734 = vunpack.c.l.b16 %v103
    %v735 = vunpack.c.h.b16 %v103
    %v736 = vunpack.c.l.b16 %v104
    %v737 = vunpack.c.h.b16 %v104
    %v738 = vunpack.c.l.b16 %v105
    %v739 = vunpack.c.h.b16 %v105
    %v740 = vunpack.c.l.b16 %v106
    %v741 = vunpack.c.h.b16 %v106
    %v742 = vunpack.c.l.b16 %v107
    %v743 = vunpack.c.h.b16 %v107
    %v744 = vunpack.c.l.b16 %v108
    %v745 = vunpack.c.h.b16 %v108
    %v746 = vunpack.c.l.b16 %v109
    %v747 = vunpack.c.h.b16 %v109
    %v748 = vunpack.c.l.b16 %v110
    %v749 = vunpack.c.h.b16 %v110
    %v750 = vunpack.c.l.b16 %v111
    %v751 = vunpack.c.h.b16 %v111
    %v752 = vunpack.c.l.b16 %v112
    %v753 = vunpack.c.h.b16 %v112
    %v754 = vunpack.c.l.b16 %v113
    %v755 = vunpack.c.h.b16 %v113
    %v756 = vunpack.c.l.b16 %v114
    %v757 = vunpack.c.h.b16 %v114
    %v758 = vunpack.c.l.b16 %v115
    %v759 = vunpack.c.h.b16 %v115
    %v760 = vunpack.c.l.b16 %v116
    %v761 = vunpack.c.h.b16 %v116
    %v762 = vunpack.c.l.b16 %v117
    %v763 = vunpack.c.h.b16 %v117
    %v764 = vunpack.c.l.b16 %v118
    %v765 = vunpack.c.h.b16 %v118
    %v766 = vunpack.c.l.b16 %v119
    %v767 = vunpack.c.h.b16 %v119
    %v768 = vunpack.c.l.b16 %v120
    %v769 = vunpack.c.h.b16 %v120
    %v770 = vunpack.c.l.b16 %v121
    %v771 = vunpack.c.h.b16 %v121
    %v772 = vunpack.c.l.b16 %v122
    %v773 = vunpack.c.h.b16 %v122
    %v774 = vunpack.c.l.b16 %v123
    %v775 = vunpack.c.h.b16 %v123
    %v776 = vunpack.c.l.b16 %v124
    %v777 = vunpack.c.h.b16 %v124
    %v778 = vunpack.c.l.b16 %v125
    %v779 = vunpack.c.h.b16 %v125
    %v780 = vunpack.c.l.b16 %v126
    %v781 = vunpack.c.h.b16 %v126
    %v782 = vunpack.c.l.b16 %v127
    %v783 = vunpack.c.h.b16 %v127
    %v784 = vunpack.c.l.b16 %v128
    %v785 = vunpack.c.h.b16 %v128
    %v786 = vunpack.c.l.b16 %v129
    %v787 = vunpack.c.h.b16 %v129
    %v788 = vunpack.c.l.b16 %v130
    %v789 = vunpack.c.h.b16 %v130
    %v790 = vunpack.c.l.b16 %v131
    %v791 = vunpack.c.h.b16 %v131
    %v792 = vunpack.c.l.b16 %v132
    %v793 = vunpack.c.h.b16 %v132
    %v794 = vunpack.c.l.b16 %v133
    %v795 = vunpack.c.h.b16 %v133
    %v796 = vunpack.c.l.b16 %v134
    %v797 = vunpack.c.h.b16 %v134
    %v798 = vunpack.c.l.b16 %v135
    %v799 = vunpack.c.h.b16 %v135
    %v800 = vunpack.c.l.b16 %v136
    %v801 = vunpack.c.h.b16 %v136
    %v802 = vunpack.c.l.b16 %v137
    %v803 = vunpack.c.h.b16 %v137
    %v804 = vunpack.c.l.b16 %v138
    %v805 = vunpack.c.h.b16 %v138
    %v806 = vunpack.c.l.b16 %v139
    %v807 = vunpack.c.h.b16 %v139
    %v808 = vunpack.c.l.b16 %v140
    %v809 = vunpack.c.h.b16 %v140
    %v810 = vunpack.c.l.b16 %v141
    %v811 = vunpack.c.h.b16 %v141
    %v812 = vunpack.c.l.b16 %v142
    %v813 = vunpack.c.h.b16 %v142
    %v814 = vunpack.c.l.b16 %v143
    %v815 = vunpack.c.h.b16 %v143
    %v816 = vunpack.c.l.b16 %v144
    %v817 = vunpack.c.h.b16 %v144
    %v818 = vunpack.c.l.b16 %v145
    %v819 = vunpack.c.h.b16 %v145
    %v820 = vunpack.c.l.b16 %v146
    %v821 = vunpack.c.h.b16 %v146
    %v822 = vunpack.c.l.b16 %v147
    %v823 = vunpack.c.h.b16 %v147
    %v824 = vunpack.c.l.b16 %v148
    %v825 = vunpack.c.h.b16 %v148
    %v826 = vunpack.c.l.b16 %v149
    %v827 = vunpack.c.h.b16 %v149
    %v828 = vunpack.c.l.b16 %v150
    %v829 = vunpack.c.h.b16 %v150
    %v830 = vunpack.c.l.b16 %v151
    %v831 = vunpack.c.h.b16 %v151
    %v832 = vunpack.c.l.b16 %v152
    %v833 = vunpack.c.h.b16 %v152
    %v834 = vunpack.c.l.b16 %v153
    %v835 = vunpack.c.h.b16 %v153
    %v836 = vunpack.c.l.b16 %v154
    %v837 = vunpack.c.h.b16 %v154
    %v838 = vunpack.c.l.b16 %v155
    %v839 = vunpack.c.h.b16 %v155
    %v840 = vunpack.c.l.b16 %v156
    %v841 = vunpack.c.h.b16 %v156
    %v842 = vunpack.c.l.b16 %v157
    %v843 = vunpack.c.h.b16 %v157
    %v844 = vunpack.c.l.b16 %v158
    %v845 = vunpack.c.h.b16 %v158
    %v846 = vunpack.c.l.b16 %v159
    %v847 = vunpack.c.h.b16 %v159
    %v848 = vunpack.c.l.b16 %v160
    %v849 = vunpack.c.h.b16 %v160
    %v850 = vunpack.c.l.b16 %v161
    %v851 = vunpack.c.h.b16 %v161
    %v852 = vunpack.c.l.b16 %v162
    %v853 = vunpack.c.h.b16 %v162
    %v854 = vunpack.c.l.b16 %v163
    %v855 = vunpack.c.h.b16 %v163
    %v856 = vunpack.c.l.b16 %v164
    %v857 = vunpack.c.h.b16 %v164
    %v858 = vunpack.c.l.b16 %v165
    %v859 = vunpack.c.h.b16 %v165
    %v860 = vunpack.c.l.b16 %v166
    %v861 = vunpack.c.h.b16 %v166
    %v862 = vunpack.c.l.b16 %v167
    %v863 = vunpack.c.h.b16 %v167
    %v864 = vunpack.c.l.b16 %v168
    %v865 = vunpack.c.h.b16 %v168
    %v866 = vunpack.c.l.b16 %v169
    %v867 = vunpack.c.h.b16 %v169
    %v868 = vunpack.c.l.b16 %v170
    %v869 = vunpack.c.h.b16 %v170
    %v870 = vunpack.c.l.b16 %v171
    %v871 = vunpack.c.h.b16 %v171
    %v872 = vunpack.c.l.b16 %v172
    %v873 = vunpack.c.h.b16 %v172
    %v874 = vunpack.c.l.b16 %v173
    %v875 = vunpack.c.h.b16 %v173
    %v876 = vunpack.c.l.b16 %v174
    %v877 = vunpack.c.h.b16 %v174
    %v878 = vunpack.c.l.b16 %v175
    %v879 = vunpack.c.h.b16 %v175
    %v880 = vunpack.c.l.b16 %v176
    %v881 = vunpack.c.h.b16 %v176
    %v882 = vunpack.c.l.b16 %v177
    %v883 = vunpack.c.h.b16 %v177
    %v884 = vunpack.c.l.b16 %v178
    %v885 = vunpack.c.h.b16 %v178
    %v886 = vunpack.c.l.b16 %v179
    %v887 = vunpack.c.h.b16 %v179
    %v888 = vunpack.c.l.b16 %v180
    %v889 = vunpack.c.h.b16 %v180
    %v890 = vunpack.c.l.b16 %v181
    %v891 = vunpack.c.h.b16 %v181
    %v892 = vunpack.c.l.b16 %v182
    %v893 = vunpack.c.h.b16 %v182
    %v894 = vunpack.c.l.b16 %v183
    %v895 = vunpack.c.h.b16 %v183
    %v896 = vunpack.c.l.b16 %v184
    %v897 = vunpack.c.h.b16 %v184
    %v898 = vunpack.c.l.b16 %v185
    %v899 = vunpack.c.h.b16 %v185
    %v900 = vunpack.c.l.b16 %v186
    %v901 = vunpack.c.h.b16 %v186
    %v902 = vunpack.c.l.b16 %v187
    %v903 = vunpack.c.h.b16 %v187
    %v904 = vunpack.c.l.b16 %v188
    %v905 = vunpack.c.h.b16 %v188
    %v906 = vunpack.c.l.b16 %v189
    %v907 = vunpack.c.h.b16 %v189
    %v908 = vunpack.c.l.b16 %v190
    %v909 = vunpack.c.h.b16 %v190
    %v910 = vunpack.c.l.b16 %v191
    %v911 = vunpack.c.h.b16 %v191
    %v912 = vunpack.c.l.b16 %v192
    %v913 = vunpack.c.h.b16 %v192
    %v914 = vunpack.c.l.b16 %v193
    %v915 = vunpack.c.h.b16 %v193
    %v916 = vunpack.c.l.b16 %v194
    %v917 = vunpack.c.h.b16 %v194
    %v918 = vunpack.c.l.b16 %v195
    %v919 = vunpack.c.h.b16 %v195
    %v920 = vunpack.c.l.b16 %v196
    %v921 = vunpack.c.h.b16 %v196
    %v922 = vunpack.c.l.b16 %v197
    %v923 = vunpack.c.h.b16 %v197
    %v924 = vunpack.c.l.b16 %v198
    %v925 = vunpack.c.h.b16 %v198
    %v926 = vunpack.c.l.b16 %v199
    %v927 = vunpack.c.h.b16 %v199
    %v928 = vunpack.c.l.b16 %v200
    %v929 = vunpack.c.h.b16 %v200
    %v930 = vunpack.c.l.b16 %v201
    %v931 = vunpack.c.h.b16 %v201
    %v932 = vunpack.c.l.b16 %v202
    %v933 = vunpack.c.h.b16 %v202
    %v934 = vunpack.c.l.b16 %v203
    %v935 = vunpack.c.h.b16 %v203
    %v936 = vunpack.c.l.b16 %v204
    %v937 = vunpack.c.h.b16 %v204
    %v938 = vunpack.c.l.b16 %v205
    %v939 = vunpack.c.h.b16 %v205
    %v940 = vunpack.c.l.b16 %v206
    %v941 = vunpack.c.h.b16 %v206
    %v942 = vunpack.c.l.b16 %v207
    %v943 = vunpack.c.h.b16 %v207
    %v944 = vunpack.c.l.b16 %v208
    %v945 = vunpack.c.h.b16 %v208
    %v946 = vunpack.c.l.b16 %v209
    %v947 = vunpack.c.h.b16 %v209
    %v948 = vunpack.c.l.b16 %v210
    %v949 = vunpack.c.h.b16 %v210
    %v950 = vunpack.c.l.b16 %v211
    %v951 = vunpack.c.h.b16 %v211
    %v952 = vunpack.c.l.b16 %v212
    %v953 = vunpack.c.h.b16 %v212
    %v954 = vunpack.c.l.b16 %v213
    %v955 = vunpack.c.h.b16 %v213
    %v956 = vunpack.c.l.b16 %v214
    %v957 = vunpack.c.h.b16 %v214
    %v958 = vunpack.c.l.b16 %v215
    %v959 = vunpack.c.h.b16 %v215
    %v960 = vunpack.c.l.b16 %v216
    %v961 = vunpack.c.h.b16 %v216
    %v962 = vunpack.c.l.b16 %v217
    %v963 = vunpack.c.h.b16 %v217
    %v964 = vunpack.c.l.b16 %v218
    %v965 = vunpack.c.h.b16 %v218
    %v966 = vunpack.c.l.b16 %v219
    %v967 = vunpack.c.h.b16 %v219
    %v968 = vunpack.c.l.b16 %v220
    %v969 = vunpack.c.h.b16 %v220
    %v970 = vunpack.c.l.b16 %v221
    %v971 = vunpack.c.h.b16 %v221
    %v972 = vunpack.c.l.b16 %v222
    %v973 = vunpack.c.h.b16 %v222
    %v974 = vunpack.c.l.b16 %v223
    %v975 = vunpack.c.h.b16 %v223
    %v976 = vunpack.c.l.b16 %v224
    %v977 = vunpack.c.h.b16 %v224
    %v978 = vunpack.c.l.b16 %v225
    %v979 = vunpack.c.h.b16 %v225
    %v980 = vunpack.c.l.b16 %v226
    %v981 = vunpack.c.h.b16 %v226
    %v982 = vunpack.c.l.b16 %v227
    %v983 = vunpack.c.h.b16 %v227
    %v984 = vunpack.c.l.b16 %v228
    %v985 = vunpack.c.h.b16 %v228
    %v986 = vunpack.c.l.b16 %v229
    %v987 = vunpack.c.h.b16 %v229
    %v988 = vunpack.c.l.b16 %v230
    %v989 = vunpack.c.h.b16 %v230
    %v990 = vunpack.c.l.b16 %v231
    %v991 = vunpack.c.h.b16 %v231
    %v992 = vunpack.c.l.b16 %v232
    %v993 = vunpack.c.h.b16 %v232
    %v994 = vunpack.c.l.b16 %v233
    %v995 = vunpack.c.h.b16 %v233
    %v996 = vunpack.c.l.b16 %v234
    %v997 = vunpack.c.h.b16 %v234
    %v998 = vunpack.c.l.b16 %v235
    %v999 = vunpack.c.h.b16 %v235
    %v1000 = vunpack.c.l.b16 %v236
    %v1001 = vunpack.c.h.b16 %v236
    %v1002 = vunpack.c.l.b16 %v237
    %v1003 = vunpack.c.h.b16 %v237
    %v1004 = vunpack.c.l.b16 %v238
    %v1005 = vunpack.c.h.b16 %v238
    %v1006 = vunpack.c.l.b16 %v239
    %v1007 = vunpack.c.h.b16 %v239
    %v1008 = vunpack.c.l.b16 %v240
    %v1009 = vunpack.c.h.b16 %v240
    %v1010 = vunpack.c.l.b16 %v241
    %v1011 = vunpack.c.h.b16 %v241
    %v1012 = vunpack.c.l.b16 %v242
    %v1013 = vunpack.c.h.b16 %v242
    %v1014 = vunpack.c.l.b16 %v243
    %v1015 = vunpack.c.h.b16 %v243
    %v1016 = vunpack.c.l.b16 %v244
    %v1017 = vunpack.c.h.b16 %v244
    %v1018 = vunpack.c.l.b16 %v245
    %v1019 = vunpack.c.h.b16 %v245
    %v1020 = vunpack.c.l.b16 %v246
    %v1021 = vunpack.c.h.b16 %v246
    %v1022 = vunpack.c.l.b16 %v247
    %v1023 = vunpack.c.h.b16 %v247
    %v1024 = vunpack.c.l.b16 %v248
    %v1025 = vunpack.c.h.b16 %v248
    %v1026 = vunpack.c.l.b16 %v249
    %v1027 = vunpack.c.h.b16 %v249
    %v1028 = vunpack.c.l.b16 %v250
    %v1029 = vunpack.c.h.b16 %v250
    %v1030 = vunpack.c.l.b16 %v251
    %v1031 = vunpack.c.h.b16 %v251
    %v1032 = vunpack.c.l.b16 %v252
    %v1033 = vunpack.c.h.b16 %v252
    %v1034 = vunpack.c.l.b16 %v253
    %v1035 = vunpack.c.h.b16 %v253
    %v1036 = vunpack.c.l.b16 %v254
    %v1037 = vunpack.c.h.b16 %v254
    %v1038 = vunpack.c.l.b16 %v255
    %v1039 = vunpack.c.h.b16 %v255
    %v1040 = vunpack.c.l.b16 %v256
    %v1041 = vunpack.c.h.b16 %v256
    %v1042 = vunpack.c.l.b16 %v257
    %v1043 = vunpack.c.h.b16 %v257
    %v1044 = vunpack.c.l.b16 %v258
    %v1045 = vunpack.c.h.b16 %v258
    %v1046 = vunpack.c.l.b16 %v259
    %v1047 = vunpack.c.h.b16 %v259
    %v1048 = vunpack.c.l.b16 %v260
    %v1049 = vunpack.c.h.b16 %v260
    %v1050 = vunpack.c.l.b16 %v261
    %v1051 = vunpack.c.h.b16 %v261
    %v1052 = vunpack.c.l.b16 %v262
    %v1053 = vunpack.c.h.b16 %v262
    %v1054 = vunpack.c.l.b16 %v263
    %v1055 = vunpack.c.h.b16 %v263
    %v1056 = vunpack.c.l.b16 %v264
    %v1057 = vunpack.c.h.b16 %v264
    %v1058 = vunpack.c.l.b16 %v265
    %v1059 = vunpack.c.h.b16 %v265
    %v1060 = vunpack.c.l.b16 %v266
    %v1061 = vunpack.c.h.b16 %v266
    %v1062 = vunpack.c.l.b16 %v267
    %v1063 = vunpack.c.h.b16 %v267
    %v1064 = vunpack.c.l.b16 %v268
    %v1065 = vunpack.c.h.b16 %v268
    %v1066 = vunpack.c.l.b16 %v269
    %v1067 = vunpack.c.h.b16 %v269
    %v1068 = vunpack.c.l.b16 %v270
    %v1069 = vunpack.c.h.b16 %v270
    %v1070 = vunpack.c.l.b16 %v271
    %v1071 = vunpack.c.h.b16 %v271
    %v1072 = vunpack.c.l.b16 %v272
    %v1073 = vunpack.c.h.b16 %v272
    %v1074 = vunpack.c.l.b16 %v273
    %v1075 = vunpack.c.h.b16 %v273
    %v1076 = vunpack.c.l.b16 %v274
    %v1077 = vunpack.c.h.b16 %v274
    %v1078 = vunpack.c.l.b16 %v275
    %v1079 = vunpack.c.h.b16 %v275
    %v1080 = vunpack.c.l.b16 %v276
    %v1081 = vunpack.c.h.b16 %v276
    %v1082 = vunpack.c.l.b16 %v277
    %v1083 = vunpack.c.h.b16 %v277
    %v1084 = vunpack.c.l.b16 %v278
    %v1085 = vunpack.c.h.b16 %v278
    %v1086 = vunpack.c.l.b16 %v279
    %v1087 = vunpack.c.h.b16 %v279
    %v1088 = vunpack.c.l.b16 %v280
    %v1089 = vunpack.c.h.b16 %v280
    %v1090 = vunpack.c.l.b16 %v281
    %v1091 = vunpack.c.h.b16 %v281
    %v1092 = vunpack.c.l.b16 %v282
    %v1093 = vunpack.c.h.b16 %v282
    %v1094 = vunpack.c.l.b16 %v283
    %v1095 = vunpack.c.h.b16 %v283
    %v1096 = vunpack.c.l.b16 %v284
    %v1097 = vunpack.c.h.b16 %v284
    %v1098 = vunpack.c.l.b16 %v285
    %v1099 = vunpack.c.h.b16 %v285
    %v1100 = vunpack.c.l.b16 %v286
    %v1101 = vunpack.c.h.b16 %v286
    %v1102 = vunpack.c.l.b16 %v287
    %v1103 = vunpack.c.h.b16 %v287
    %v1104 = vunpack.c.l.b16 %v288
    %v1105 = vunpack.c.h.b16 %v288
    %v1106 = vunpack.c.l.b16 %v289
    %v1107 = vunpack.c.h.b16 %v289
    %v1108 = vunpack.c.l.b16 %v290
    %v1109 = vunpack.c.h.b16 %v290
    %v1110 = vunpack.c.l.b16 %v291
    %v1111 = vunpack.c.h.b16 %v291
    %v1112 = vunpack.c.l.b16 %v292
    %v1113 = vunpack.c.h.b16 %v292
    %v1114 = vunpack.c.l.b16 %v293
    %v1115 = vunpack.c.h.b16 %v293
    %v1116 = vunpack.c.l.b16 %v294
    %v1117 = vunpack.c.h.b16 %v294
    %v1118 = vunpack.c.l.b16 %v295
    %v1119 = vunpack.c.h.b16 %v295
    %v1120 = vunpack.c.l.b16 %v296
    %v1121 = vunpack.c.h.b16 %v296
    %v1122 = vunpack.c.l.b16 %v297
    %v1123 = vunpack.c.h.b16 %v297
    %v1124 = vunpack.c.l.b16 %v298
    %v1125 = vunpack.c.h.b16 %v298
    %v1126 = vunpack.c.l.b16 %v299
    %v1127 = vunpack.c.h.b16 %v299
    %v1128 = vunpack.c.l.b16 %v300
    %v1129 = vunpack.c.h.b16 %v300
    %v1130 = vunpack.c.l.b16 %v301
    %v1131 = vunpack.c.h.b16 %v301
    %v1132 = vunpack.c.l.b16 %v302
    %v1133 = vunpack.c.h.b16 %v302
    %v1134 = vunpack.c.l.b16 %v303
    %v1135 = vunpack.c.h.b16 %v303
    %v1136 = vunpack.c.l.b16 %v304
    %v1137 = vunpack.c.h.b16 %v304
    %v1138 = vunpack.c.l.b16 %v305
    %v1139 = vunpack.c.h.b16 %v305
    %v1140 = vunpack.c.l.b16 %v306
    %v1141 = vunpack.c.h.b16 %v306
    %v1142 = vunpack.c.l.b16 %v307
    %v1143 = vunpack.c.h.b16 %v307
    %v1144 = vunpack.c.l.b16 %v308
    %v1145 = vunpack.c.h.b16 %v308
    %v1146 = vunpack.c.l.b16 %v309
    %v1147 = vunpack.c.h.b16 %v309
    %v1148 = vunpack.c.l.b16 %v310
    %v1149 = vunpack.c.h.b16 %v310
    %v1150 = vunpack.c.l.b16 %v311
    %v1151 = vunpack.c.h.b16 %v311
    %v1152 = vunpack.c.l.b16 %v312
    %v1153 = vunpack.c.h.b16 %v312
    %v1154 = vunpack.c.l.b16 %v313
    %v1155 = vunpack.c.h.b16 %v313
    %v1156 = vunpack.c.l.b16 %v314
    %v1157 = vunpack.c.h.b16 %v314
    %v1158 = vunpack.c.l.b16 %v315
    %v1159 = vunpack.c.h.b16 %v315
    %v1160 = vunpack.c.l.b16 %v316
    %v1161 = vunpack.c.h.b16 %v316
    %v1162 = vunpack.c.l.b16 %v317
    %v1163 = vunpack.c.h.b16 %v317
    %v1164 = vunpack.c.l.b16 %v318
    %v1165 = vunpack.c.h.b16 %v318
    %v1166 = vunpack.c.l.b16 %v319
    %v1167 = vunpack.c.h.b16 %v319
    %v1168 = vunpack.c.l.b16 %v320
    %v1169 = vunpack.c.h.b16 %v320
    %v1170 = vunpack.c.l.b16 %v321
    %v1171 = vunpack.c.h.b16 %v321
    %v1172 = vunpack.c.l.b16 %v322
    %v1173 = vunpack.c.h.b16 %v322
    %v1174 = vunpack.c.l.b16 %v323
    %v1175 = vunpack.c.h.b16 %v323
    %v1176 = vunpack.c.l.b16 %v324
    %v1177 = vunpack.c.h.b16 %v324
    %v1178 = vunpack.c.l.b16 %v325
    %v1179 = vunpack.c.h.b16 %v325
    %v1180 = vunpack.c.l.b16 %v326
    %v1181 = vunpack.c.h.b16 %v326
    %v1182 = vunpack.c.l.b16 %v327
    %v1183 = vunpack.c.h.b16 %v327
    %v1184 = vunpack.c.l.b16 %v328
    %v1185 = vunpack.c.h.b16 %v328
    %v1186 = vunpack.c.l.b16 %v329
    %v1187 = vunpack.c.h.b16 %v329
    %v1188 = vunpack.c.l.b16 %v330
    %v1189 = vunpack.c.h.b16 %v330
    %v1190 = vunpack.c.l.b16 %v331
    %v1191 = vunpack.c.h.b16 %v331
    %v1192 = vpack.c.b16 %v682, %v680
    %v1193 = vpack.c.b16 %v683, %v681
    %v1194 = vpack.c.b16 %v686, %v684
    %v1195 = vpack.c.b16 %v687, %v685
    %v1196 = vpack.c.b16 %v690, %v688
    %v1197 = vpack.c.b16 %v691, %v689
    %v1198 = vpack.c.b16 %v694, %v692
    %v1199 = vpack.c.b16 %v695, %v693
    %v1200 = vpack.c.b16 %v698, %v696
    %v1201 = vpack.c.b16 %v699, %v697
    %v1202 = vpack.c.b16 %v702, %v700
    %v1203 = vpack.c.b16 %v703, %v701
    %v1204 = vpack.c.b16 %v706, %v704
    %v1205 = vpack.c.b16 %v707, %v705
    %v1206 = vpack.c.b16 %v710, %v708
    %v1207 = vpack.c.b16 %v711, %v709
    %v1208 = vpack.c.b16 %v714, %v712
    %v1209 = vpack.c.b16 %v715, %v713
    %v1210 = vpack.c.b16 %v718, %v716
    %v1211 = vpack.c.b16 %v719, %v717
    %v1212 = vpack.c.b16 %v722, %v720
    %v1213 = vpack.c.b16 %v723, %v721
    %v1214 = vpack.c.b16 %v726, %v724
    %v1215 = vpack.c.b16 %v727, %v725
    %v1216 = vpack.c.b16 %v730, %v728
    %v1217 = vpack.c.b16 %v731, %v729
    %v1218 = vpack.c.b16 %v734, %v732
    %v1219 = vpack.c.b16 %v735, %v733
    %v1220 = vpack.c.b16 %v738, %v736
    %v1221 = vpack.c.b16 %v739, %v737
    %v1222 = vpack.c.b16 %v742, %v740
    %v1223 = vpack.c.b16 %v743, %v741
    %v1224 = vpack.c.b16 %v746, %v744
    %v1225 = vpack.c.b16 %v747, %v745
    %v1226 = vpack.c.b16 %v750, %v748
    %v1227 = vpack.c.b16 %v751, %v749
    %v1228 = vpack.c.b16 %v754, %v752
    %v1229 = vpack.c.b16 %v755, %v753
    %v1230 = vpack.c.b16 %v758, %v756
    %v1231 = vpack.c.b16 %v759, %v757
    %v1232 = vpack.c.b16 %v762, %v760
    %v1233 = vpack.c.b16 %v763, %v761
    %v1234 = vpack.c.b16 %v766, %v764
    %v1235 = vpack.c.b16 %v767, %v765
    %v1236 = vpack.c.b16 %v770, %v768
    %v1237 = vpack.c.b16 %v771, %v769
    %v1238 = vpack.c.b16 %v774, %v772
    %v1239 = vpack.c.b16 %v775, %v773
    %v1240 = vpack.c.b16 %v778, %v776
    %v1241 = vpack.c.b16 %v779, %v777
    %v1242 = vpack.c.b16 %v782, %v780
    %v1243 = vpack.c.b16 %v783, %v781
    %v1244 = vpack.c.b16 %v786, %v784
    %v1245 = vpack.c.b16 %v787, %v785
    %v1246 = vpack.c.b16 %v790, %v788
    %v1247 = vpack.c.b16 %v791, %v789
    %v1248 = vpack.c.b16 %v794, %v792
    %v1249 = vpack.c.b16 %v795, %v793
    %v1250 = vpack.c.b16 %v798, %v796
    %v1251 = vpack.c.b16 %v799, %v797
    %v1252 = vpack.c.b16 %v802, %v800
    %v1253 = vpack.c.b16 %v803, %v801
    %v1254 = vpack.c.b16 %v806, %v804
    %v1255 = vpack.c.b16 %v807, %v805
    %v1256 = vpack.c.b16 %v810, %v808
    %v1257 = vpack.c.b16 %v811, %v809
    %v1258 = vpack.c.b16 %v814, %v812
    %v1259 = vpack.c.b16 %v815, %v813
    %v1260 = vpack.c.b16 %v818, %v816
    %v1261 = vpack.c.b16 %v819, %v817
    %v1262 = vpack.c.b16 %v822, %v820
    %v1263 = vpack.c.b16 %v823, %v821
    %v1264 = vpack.c.b16 %v826, %v824
    %v1265 = vpack.c.b16 %v827, %v825
    %v1266 = vpack.c.b16 %v830, %v828
    %v1267 = vpack.c.b16 %v831, %v829
    %v1268 = vpack.c.b16 %v834, %v832
    %v1269 = vpack.c.b16 %v835, %v833
    %v1270 = vpack.c.b16 %v838, %v836
    %v1271 = vpack.c.b16 %v839, %v837
    %v1272 = vpack.c.b16 %v842, %v840
    %v1273 = vpack.c.b16 %v843, %v841
    %v1274 = vpack.c.b16 %v846, %v844
    %v1275 = vpack.c.b16 %v847, %v845
    %v1276 = vpack.c.b16 %v850, %v848
    %v1277 = vpack.c.b16 %v851, %v849
    %v1278 = vpack.c.b16 %v854, %v852
    %v1279 = vpack.c.b16 %v855, %v853
    %v1280 = vpack.c.b16 %v858, %v856
    %v1281 = vpack.c.b16 %v859, %v857
    %v1282 = vpack.c.b16 %v862, %v860
    %v1283 = vpack.c.b16 %v863, %v861
    %v1284 = vpack.c.b16 %v866, %v864
    %v1285 = vpack.c.b16 %v867, %v865
    %v1286 = vpack.c.b16 %v870, %v868
    %v1287 = vpack.c.b16 %v871, %v869
    %v1288 = vpack.c.b16 %v874, %v872
    %v1289 = vpack.c.b16 %v875, %v873
    %v1290 = vpack.c.b16 %v878, %v876
    %v1291 = vpack.c.b16 %v879, %v877
    %v1292 = vpack.c.b16 %v882, %v880
    %v1293 = vpack.c.b16 %v883, %v881
    %v1294 = vpack.c.b16 %v886, %v884
    %v1295 = vpack.c.b16 %v887, %v885
    %v1296 = vpack.c.b16 %v890, %v888
    %v1297 = vpack.c.b16 %v891, %v889
    %v1298 = vpack.c.b16 %v894, %v892
    %v1299 = vpack.c.b16 %v895, %v893
    %v1300 = vpack.c.b16 %v898, %v896
    %v1301 = vpack.c.b16 %v899, %v897
    %v1302 = vpack.c.b16 %v902, %v900
    %v1303 = vpack.c.b16 %v903, %v901
    %v1304 = vpack.c.b16 %v906, %v904
    %v1305 = vpack.c.b16 %v907, %v905
    %v1306 = vpack.c.b16 %v910, %v908
    %v1307 = vpack.c.b16 %v911, %v909
    %v1308 = vpack.c.b16 %v914, %v912
    %v1309 = vpack.c.b16 %v915, %v913
    %v1310 = vpack.c.b16 %v918, %v916
    %v1311 = vpack.c.b16 %v919, %v917
    %v1312 = vpack.c.b16 %v922, %v920
    %v1313 = vpack.c.b16 %v923, %v921
    %v1314 = vpack.c.b16 %v926, %v924
    %v1315 = vpack.c.b16 %v927, %v925
    %v1316 = vpack.c.b16 %v930, %v928
    %v1317 = vpack.c.b16 %v931, %v929
    %v1318 = vpack.c.b16 %v934, %v932
    %v1319 = vpack.c.b16 %v935, %v933
    %v1320 = vpack.c.b16 %v938, %v936
    %v1321 = vpack.c.b16 %v939, %v937
    %v1322 = vpack.c.b16 %v942, %v940
    %v1323 = vpack.c.b16 %v943, %v941
    %v1324 = vpack.c.b16 %v946, %v944
    %v1325 = vpack.c.b16 %v947, %v945
    %v1326 = vpack.c.b16 %v950, %v948
    %v1327 = vpack.c.b16 %v951, %v949
    %v1328 = vpack.c.b16 %v954, %v952
    %v1329 = vpack.c.b16 %v955, %v953
    %v1330 = vpack.c.b16 %v958, %v956
    %v1331 = vpack.c.b16 %v959, %v957
    %v1332 = vpack.c.b16 %v962, %v960
    %v1333 = vpack.c.b16 %v963, %v961
    %v1334 = vpack.c.b16 %v966, %v964
    %v1335 = vpack.c.b16 %v967, %v965
    %v1336 = vpack.c.b16 %v970, %v968
    %v1337 = vpack.c.b16 %v971, %v969
    %v1338 = vpack.c.b16 %v974, %v972
    %v1339 = vpack.c.b16 %v975, %v973
    %v1340 = vpack.c.b16 %v978, %v976
    %v1341 = vpack.c.b16 %v979, %v977
    %v1342 = vpack.c.b16 %v982, %v980
    %v1343 = vpack.c.b16 %v983, %v981
    %v1344 = vpack.c.b16 %v986, %v984
    %v1345 = vpack.c.b16 %v987, %v985
    %v1346 = vpack.c.b16 %v990, %v988
    %v1347 = vpack.c.b16 %v991, %v989
    %v1348 = vpack.c.b16 %v994, %v992
    %v1349 = vpack.c.b16 %v995, %v993
    %v1350 = vpack.c.b16 %v998, %v996
    %v1351 = vpack.c.b16 %v999, %v997
    %v1352 = vpack.c.b16 %v1002, %v1000
    %v1353 = vpack.c.b16 %v1003, %v1001
    %v1354 = vpack.c.b16 %v1006, %v1004
    %v1355 = vpack.c.b16 %v1007, %v1005
    %v1356 = vpack.c.b16 %v1010, %v1008
    %v1357 = vpack.c.b16 %v1011, %v1009
    %v1358 = vpack.c.b16 %v1014, %v1012
    %v1359 = vpack.c.b16 %v1015, %v1013
    %v1360 = vpack.c.b16 %v1018, %v1016
    %v1361 = vpack.c.b16 %v1019, %v1017
    %v1362 = vpack.c.b16 %v1022, %v1020
    %v1363 = vpack.c.b16 %v1023, %v1021
    %v1364 = vpack.c.b16 %v1026, %v1024
    %v1365 = vpack.c.b16 %v1027, %v1025
    %v1366 = vpack.c.b16 %v1030, %v1028
    %v1367 = vpack.c.b16 %v1031, %v1029
    %v1368 = vpack.c.b16 %v1034, %v1032
    %v1369 = vpack.c.b16 %v1035, %v1033
    %v1370 = vpack.c.b16 %v1038, %v1036
    %v1371 = vpack.c.b16 %v1039, %v1037
    %v1372 = vpack.c.b16 %v1042, %v1040
    %v1373 = vpack.c.b16 %v1043, %v1041
    %v1374 = vpack.c.b16 %v1046, %v1044
    %v1375 = vpack.c.b16 %v1047, %v1045
    %v1376 = vpack.c.b16 %v1050, %v1048
    %v1377 = vpack.c.b16 %v1051, %v1049
    %v1378 = vpack.c.b16 %v1054, %v1052
    %v1379 = vpack.c.b16 %v1055, %v1053
    %v1380 = vpack.c.b16 %v1058, %v1056
    %v1381 = vpack.c.b16 %v1059, %v1057
    %v1382 = vpack.c.b16 %v1062, %v1060
    %v1383 = vpack.c.b16 %v1063, %v1061
    %v1384 = vpack.c.b16 %v1066, %v1064
    %v1385 = vpack.c.b16 %v1067, %v1065
    %v1386 = vpack.c.b16 %v1070, %v1068
    %v1387 = vpack.c.b16 %v1071, %v1069
    %v1388 = vpack.c.b16 %v1074, %v1072
    %v1389 = vpack.c.b16 %v1075, %v1073
    %v1390 = vpack.c.b16 %v1078, %v1076
    %v1391 = vpack.c.b16 %v1079, %v1077
    %v1392 = vpack.c.b16 %v1082, %v1080
    %v1393 = vpack.c.b16 %v1083, %v1081
    %v1394 = vpack.c.b16 %v1086, %v1084
    %v1395 = vpack.c.b16 %v1087, %v1085
    %v1396 = vpack.c.b16 %v1090, %v1088
    %v1397 = vpack.c.b16 %v1091, %v1089
    %v1398 = vpack.c.b16 %v1094, %v1092
    %v1399 = vpack.c.b16 %v1095, %v1093
    %v1400 = vpack.c.b16 %v1098, %v1096
    %v1401 = vpack.c.b16 %v1099, %v1097
    %v1402 = vpack.c.b16 %v1102, %v1100
    %v1403 = vpack.c.b16 %v1103, %v1101
    %v1404 = vpack.c.b16 %v1106, %v1104
    %v1405 = vpack.c.b16 %v1107, %v1105
    %v1406 = vpack.c.b16 %v1110, %v1108
    %v1407 = vpack.c.b16 %v1111, %v1109
    %v1408 = vpack.c.b16 %v1114, %v1112
    %v1409 = vpack.c.b16 %v1115, %v1113
    %v1410 = vpack.c.b16 %v1118, %v1116
    %v1411 = vpack.c.b16 %v1119, %v1117
    %v1412 = vpack.c.b16 %v1122, %v1120
    %v1413 = vpack.c.b16 %v1123, %v1121
    %v1414 = vpack.c.b16 %v1126, %v1124
    %v1415 = vpack.c.b16 %v1127, %v1125
    %v1416 = vpack.c.b16 %v1130, %v1128
    %v1417 = vpack.c.b16 %v1131, %v1129
    %v1418 = vpack.c.b16 %v1134, %v1132
    %v1419 = vpack.c.b16 %v1135, %v1133
    %v1420 = vpack.c.b16 %v1138, %v1136
    %v1421 = vpack.c.b16 %v1139, %v1137
    %v1422 = vpack.c.b16 %v1142, %v1140
    %v1423 = vpack.c.b16 %v1143, %v1141
    %v1424 = vpack.c.b16 %v1146, %v1144
    %v1425 = vpack.c.b16 %v1147, %v1145
    %v1426 = vpack.c.b16 %v1150, %v1148
    %v1427 = vpack.c.b16 %v1151, %v1149
    %v1428 = vpack.c.b16 %v1154, %v1152
    %v1429 = vpack.c.b16 %v1155, %v1153
    %v1430 = vpack.c.b16 %v1158, %v1156
    %v1431 = vpack.c.b16 %v1159, %v1157
    %v1432 = vpack.c.b16 %v1162, %v1160
    %v1433 = vpack.c.b16 %v1163, %v1161
    %v1434 = vpack.c.b16 %v1166, %v1164
    %v1435 = vpack.c.b16 %v1167, %v1165
    %v1436 = vpack.c.b16 %v1170, %v1168
    %v1437 = vpack.c.b16 %v1171, %v1169
    %v1438 = vpack.c.b16 %v1174, %v1172
    %v1439 = vpack.c.b16 %v1175, %v1173
    %v1440 = vpack.c.b16 %v1178, %v1176
    %v1441 = vpack.c.b16 %v1179, %v1177
    %v1442 = vpack.c.b16 %v1182, %v1180
    %v1443 = vpack.c.b16 %v1183, %v1181
    %v1444 = vpack.c.b16 %v1186, %v1184
    %v1445 = vpack.c.b16 %v1187, %v1185
    %v1446 = vpack.c.b16 %v1190, %v1188
    %v1447 = vpack.c.b16 %v1191, %v1189
    %1704 = vmatprep.subr.bf16.mxu0 %v1207
    %1705 = vmatpush1.bf16.msra.mxu0 %v1206
    %1706 = vmatprep.subr.bf16.mxu0 %v1205
    %1707 = vmatpush1.bf16.msra.mxu0 %v1204
    %1708 = vmatprep.subr.bf16.mxu0 %v1203
    %1709 = vmatpush1.bf16.msra.mxu0 %v1202
    %1710 = vmatprep.subr.bf16.mxu0 %v1201
    %1711 = vmatpush1.bf16.msra.mxu0 %v1200
    %1712 = vmatprep.subr.bf16.mxu0 %v1199
    %1713 = vmatpush1.bf16.msra.mxu0 %v1198
    %1714 = vmatprep.subr.bf16.mxu0 %v1197
    %1715 = vmatpush1.bf16.msra.mxu0 %v1196
    %1716 = vmatprep.subr.bf16.mxu0 %v1195
    %1717 = vmatpush1.bf16.msra.mxu0 %v1194
    %1718 = vmatprep.subr.bf16.mxu0 %v1193
    %1719 = vmatpush1.bf16.msra.mxu0 %v1192
    %1720 = vmatprep.subr.bf16.mxu0 %v1223
    %1721 = vmatpush2.bf16.msra.mxu0 %v1222
    %1722 = vmatprep.subr.bf16.mxu0 %v1221
    %1723 = vmatpush2.bf16.msra.mxu0 %v1220
    %1724 = vmatprep.subr.bf16.mxu0 %v1219
    %1725 = vmatpush2.bf16.msra.mxu0 %v1218
    %1726 = vmatprep.subr.bf16.mxu0 %v1217
    %1727 = vmatpush2.bf16.msra.mxu0 %v1216
    %1728 = vmatprep.subr.bf16.mxu0 %v1215
    %1729 = vmatpush2.bf16.msra.mxu0 %v1214
    %1730 = vmatprep.subr.bf16.mxu0 %v1213
    %1731 = vmatpush2.bf16.msra.mxu0 %v1212
    %1732 = vmatprep.subr.bf16.mxu0 %v1211
    %1733 = vmatpush2.bf16.msra.mxu0 %v1210
    %1734 = vmatprep.subr.bf16.mxu0 %v1209
    %1735 = vmatpush2.bf16.msra.mxu0 %v1208
    %1736 = vmatprep.mubr.bf16.mxu0 %v393
    %1737 = vmatmul.mubr.bf16.gmra.mxu0 %v392
    %v1738 = vpop.f32.mrf.mxu0
    %v1739 = vadd.f32 %v337, %v1738
    %v1740 = vpop.f32.mrf.mxu0
    %v1741 = vadd.f32 %v341, %v1740
    %v1742 = vpop.f32.mrf.mxu0
    %v1743 = vadd.f32 %v337, %v1742
    %v1744 = vpop.f32.mrf.mxu0
    %v1745 = vadd.f32 %v341, %v1744
    %1746 = vdwg.mxu0
    %1747 = vmatprep.subr.bf16.mxu0 %v1239
    %1748 = vmatpush1.bf16.msra.mxu0 %v1238
    %1749 = vmatprep.subr.bf16.mxu0 %v1237
    %1750 = vmatpush1.bf16.msra.mxu0 %v1236
    %1751 = vmatprep.subr.bf16.mxu0 %v1235
    %1752 = vmatpush1.bf16.msra.mxu0 %v1234
    %1753 = vmatprep.subr.bf16.mxu0 %v1233
    %1754 = vmatpush1.bf16.msra.mxu0 %v1232
    %1755 = vmatprep.subr.bf16.mxu0 %v1231
    %1756 = vmatpush1.bf16.msra.mxu0 %v1230
    %1757 = vmatprep.subr.bf16.mxu0 %v1229
    %1758 = vmatpush1.bf16.msra.mxu0 %v1228
    %1759 = vmatprep.subr.bf16.mxu0 %v1227
    %1760 = vmatpush1.bf16.msra.mxu0 %v1226
    %1761 = vmatprep.subr.bf16.mxu0 %v1225
    %1762 = vmatpush1.bf16.msra.mxu0 %v1224
    %1763 = vmatprep.subr.bf16.mxu0 %v1255
    %1764 = vmatpush2.bf16.msra.mxu0 %v1254
    %1765 = vmatprep.subr.bf16.mxu0 %v1253
    %1766 = vmatpush2.bf16.msra.mxu0 %v1252
    %1767 = vmatprep.subr.bf16.mxu0 %v1251
    %1768 = vmatpush2.bf16.msra.mxu0 %v1250
    %1769 = vmatprep.subr.bf16.mxu0 %v1249
    %1770 = vmatpush2.bf16.msra.mxu0 %v1248
    %1771 = vmatprep.subr.bf16.mxu0 %v1247
    %1772 = vmatpush2.bf16.msra.mxu0 %v1246
    %1773 = vmatprep.subr.bf16.mxu0 %v1245
    %1774 = vmatpush2.bf16.msra.mxu0 %v1244
    %1775 = vmatprep.subr.bf16.mxu0 %v1243
    %1776 = vmatpush2.bf16.msra.mxu0 %v1242
    %1777 = vmatprep.subr.bf16.mxu0 %v1241
    %1778 = vmatpush2.bf16.msra.mxu0 %v1240
    %1779 = vmatprep.mubr.bf16.mxu0 %v395
    %1780 = vmatmul.mubr.bf16.gmra.mxu0 %v394
    %v1781 = vpop.f32.mrf.mxu0
    %v1782 = vadd.f32 %v1739, %v1781
    %v1783 = vpop.f32.mrf.mxu0
    %v1784 = vadd.f32 %v1741, %v1783
    %v1785 = vpop.f32.mrf.mxu0
    %v1786 = vadd.f32 %v1743, %v1785
    %v1787 = vpop.f32.mrf.mxu0
    %v1788 = vadd.f32 %v1745, %v1787
    %1789 = vdwg.mxu0
    %1790 = vmatprep.subr.bf16.mxu0 %v1271
    %1791 = vmatpush1.bf16.msra.mxu0 %v1270
    %1792 = vmatprep.subr.bf16.mxu0 %v1269
    %1793 = vmatpush1.bf16.msra.mxu0 %v1268
    %1794 = vmatprep.subr.bf16.mxu0 %v1267
    %1795 = vmatpush1.bf16.msra.mxu0 %v1266
    %1796 = vmatprep.subr.bf16.mxu0 %v1265
    %1797 = vmatpush1.bf16.msra.mxu0 %v1264
    %1798 = vmatprep.subr.bf16.mxu0 %v1263
    %1799 = vmatpush1.bf16.msra.mxu0 %v1262
    %1800 = vmatprep.subr.bf16.mxu0 %v1261
    %1801 = vmatpush1.bf16.msra.mxu0 %v1260
    %1802 = vmatprep.subr.bf16.mxu0 %v1259
    %1803 = vmatpush1.bf16.msra.mxu0 %v1258
    %1804 = vmatprep.subr.bf16.mxu0 %v1257
    %1805 = vmatpush1.bf16.msra.mxu0 %v1256
    %1806 = vmatprep.subr.bf16.mxu0 %v1287
    %1807 = vmatpush2.bf16.msra.mxu0 %v1286
    %1808 = vmatprep.subr.bf16.mxu0 %v1285
    %1809 = vmatpush2.bf16.msra.mxu0 %v1284
    %1810 = vmatprep.subr.bf16.mxu0 %v1283
    %1811 = vmatpush2.bf16.msra.mxu0 %v1282
    %1812 = vmatprep.subr.bf16.mxu0 %v1281
    %1813 = vmatpush2.bf16.msra.mxu0 %v1280
    %1814 = vmatprep.subr.bf16.mxu0 %v1279
    %1815 = vmatpush2.bf16.msra.mxu0 %v1278
    %1816 = vmatprep.subr.bf16.mxu0 %v1277
    %1817 = vmatpush2.bf16.msra.mxu0 %v1276
    %1818 = vmatprep.subr.bf16.mxu0 %v1275
    %1819 = vmatpush2.bf16.msra.mxu0 %v1274
    %1820 = vmatprep.subr.bf16.mxu0 %v1273
    %1821 = vmatpush2.bf16.msra.mxu0 %v1272
    %1822 = vmatprep.mubr.bf16.mxu0 %v397
    %1823 = vmatmul.mubr.bf16.gmra.mxu0 %v396
    %v1824 = vpop.f32.mrf.mxu0
    %v1825 = vadd.f32 %v1782, %v1824
    %v1826 = vpop.f32.mrf.mxu0
    %v1827 = vadd.f32 %v1784, %v1826
    %v1828 = vpop.f32.mrf.mxu0
    %v1829 = vadd.f32 %v1786, %v1828
    %v1830 = vpop.f32.mrf.mxu0
    %v1831 = vadd.f32 %v1788, %v1830
    %1832 = vdwg.mxu0
    %1833 = vmatprep.subr.bf16.mxu0 %v1303
    %1834 = vmatpush1.bf16.msra.mxu0 %v1302
    %1835 = vmatprep.subr.bf16.mxu0 %v1301
    %1836 = vmatpush1.bf16.msra.mxu0 %v1300
    %1837 = vmatprep.subr.bf16.mxu0 %v1299
    %1838 = vmatpush1.bf16.msra.mxu0 %v1298
    %1839 = vmatprep.subr.bf16.mxu0 %v1297
    %1840 = vmatpush1.bf16.msra.mxu0 %v1296
    %1841 = vmatprep.subr.bf16.mxu0 %v1295
    %1842 = vmatpush1.bf16.msra.mxu0 %v1294
    %1843 = vmatprep.subr.bf16.mxu0 %v1293
    %1844 = vmatpush1.bf16.msra.mxu0 %v1292
    %1845 = vmatprep.subr.bf16.mxu0 %v1291
    %1846 = vmatpush1.bf16.msra.mxu0 %v1290
    %1847 = vmatprep.subr.bf16.mxu0 %v1289
    %1848 = vmatpush1.bf16.msra.mxu0 %v1288
    %1849 = vmatprep.subr.bf16.mxu0 %v1319
    %1850 = vmatpush2.bf16.msra.mxu0 %v1318
    %1851 = vmatprep.subr.bf16.mxu0 %v1317
    %1852 = vmatpush2.bf16.msra.mxu0 %v1316
    %1853 = vmatprep.subr.bf16.mxu0 %v1315
    %1854 = vmatpush2.bf16.msra.mxu0 %v1314
    %1855 = vmatprep.subr.bf16.mxu0 %v1313
    %1856 = vmatpush2.bf16.msra.mxu0 %v1312
    %1857 = vmatprep.subr.bf16.mxu0 %v1311
    %1858 = vmatpush2.bf16.msra.mxu0 %v1310
    %1859 = vmatprep.subr.bf16.mxu0 %v1309
    %1860 = vmatpush2.bf16.msra.mxu0 %v1308
    %1861 = vmatprep.subr.bf16.mxu0 %v1307
    %1862 = vmatpush2.bf16.msra.mxu0 %v1306
    %1863 = vmatprep.subr.bf16.mxu0 %v1305
    %1864 = vmatpush2.bf16.msra.mxu0 %v1304
    %1865 = vmatprep.mubr.bf16.mxu0 %v399
    %1866 = vmatmul.mubr.bf16.gmra.mxu0 %v398
    %v1867 = vpop.f32.mrf.mxu0
    %v1868 = vadd.f32 %v1825, %v1867
    %v1869 = vpop.f32.mrf.mxu0
    %v1870 = vadd.f32 %v1827, %v1869
    %v1871 = vpop.f32.mrf.mxu0
    %v1872 = vadd.f32 %v1829, %v1871
    %v1873 = vpop.f32.mrf.mxu0
    %v1874 = vadd.f32 %v1831, %v1873
    %1875 = vdwg.mxu0
    %1876 = vmatprep.subr.bf16.mxu0 %v1335
    %1877 = vmatpush1.bf16.msra.mxu0 %v1334
    %1878 = vmatprep.subr.bf16.mxu0 %v1333
    %1879 = vmatpush1.bf16.msra.mxu0 %v1332
    %1880 = vmatprep.subr.bf16.mxu0 %v1331
    %1881 = vmatpush1.bf16.msra.mxu0 %v1330
    %1882 = vmatprep.subr.bf16.mxu0 %v1329
    %1883 = vmatpush1.bf16.msra.mxu0 %v1328
    %1884 = vmatprep.subr.bf16.mxu0 %v1327
    %1885 = vmatpush1.bf16.msra.mxu0 %v1326
    %1886 = vmatprep.subr.bf16.mxu0 %v1325
    %1887 = vmatpush1.bf16.msra.mxu0 %v1324
    %1888 = vmatprep.subr.bf16.mxu0 %v1323
    %1889 = vmatpush1.bf16.msra.mxu0 %v1322
    %1890 = vmatprep.subr.bf16.mxu0 %v1321
    %1891 = vmatpush1.bf16.msra.mxu0 %v1320
    %1892 = vmatprep.subr.bf16.mxu0 %v1351
    %1893 = vmatpush2.bf16.msra.mxu0 %v1350
    %1894 = vmatprep.subr.bf16.mxu0 %v1349
    %1895 = vmatpush2.bf16.msra.mxu0 %v1348
    %1896 = vmatprep.subr.bf16.mxu0 %v1347
    %1897 = vmatpush2.bf16.msra.mxu0 %v1346
    %1898 = vmatprep.subr.bf16.mxu0 %v1345
    %1899 = vmatpush2.bf16.msra.mxu0 %v1344
    %1900 = vmatprep.subr.bf16.mxu0 %v1343
    %1901 = vmatpush2.bf16.msra.mxu0 %v1342
    %1902 = vmatprep.subr.bf16.mxu0 %v1341
    %1903 = vmatpush2.bf16.msra.mxu0 %v1340
    %1904 = vmatprep.subr.bf16.mxu0 %v1339
    %1905 = vmatpush2.bf16.msra.mxu0 %v1338
    %1906 = vmatprep.subr.bf16.mxu0 %v1337
    %1907 = vmatpush2.bf16.msra.mxu0 %v1336
    %1908 = vmatprep.mubr.bf16.mxu0 %v401
    %1909 = vmatmul.mubr.bf16.gmra.mxu0 %v400
    %v1910 = vpop.f32.mrf.mxu0
    %v1911 = vadd.f32 %v1868, %v1910
    %v1912 = vpop.f32.mrf.mxu0
    %v1913 = vadd.f32 %v1870, %v1912
    %v1914 = vpop.f32.mrf.mxu0
    %v1915 = vadd.f32 %v1872, %v1914
    %v1916 = vpop.f32.mrf.mxu0
    %v1917 = vadd.f32 %v1874, %v1916
    %1918 = vdwg.mxu0
    %1919 = vmatprep.subr.bf16.mxu0 %v1367
    %1920 = vmatpush1.bf16.msra.mxu0 %v1366
    %1921 = vmatprep.subr.bf16.mxu0 %v1365
    %1922 = vmatpush1.bf16.msra.mxu0 %v1364
    %1923 = vmatprep.subr.bf16.mxu0 %v1363
    %1924 = vmatpush1.bf16.msra.mxu0 %v1362
    %1925 = vmatprep.subr.bf16.mxu0 %v1361
    %1926 = vmatpush1.bf16.msra.mxu0 %v1360
    %1927 = vmatprep.subr.bf16.mxu0 %v1359
    %1928 = vmatpush1.bf16.msra.mxu0 %v1358
    %1929 = vmatprep.subr.bf16.mxu0 %v1357
    %1930 = vmatpush1.bf16.msra.mxu0 %v1356
    %1931 = vmatprep.subr.bf16.mxu0 %v1355
    %1932 = vmatpush1.bf16.msra.mxu0 %v1354
    %1933 = vmatprep.subr.bf16.mxu0 %v1353
    %1934 = vmatpush1.bf16.msra.mxu0 %v1352
    %1935 = vmatprep.subr.bf16.mxu0 %v1383
    %1936 = vmatpush2.bf16.msra.mxu0 %v1382
    %1937 = vmatprep.subr.bf16.mxu0 %v1381
    %1938 = vmatpush2.bf16.msra.mxu0 %v1380
    %1939 = vmatprep.subr.bf16.mxu0 %v1379
    %1940 = vmatpush2.bf16.msra.mxu0 %v1378
    %1941 = vmatprep.subr.bf16.mxu0 %v1377
    %1942 = vmatpush2.bf16.msra.mxu0 %v1376
    %1943 = vmatprep.subr.bf16.mxu0 %v1375
    %1944 = vmatpush2.bf16.msra.mxu0 %v1374
    %1945 = vmatprep.subr.bf16.mxu0 %v1373
    %1946 = vmatpush2.bf16.msra.mxu0 %v1372
    %1947 = vmatprep.subr.bf16.mxu0 %v1371
    %1948 = vmatpush2.bf16.msra.mxu0 %v1370
    %1949 = vmatprep.subr.bf16.mxu0 %v1369
    %1950 = vmatpush2.bf16.msra.mxu0 %v1368
    %1951 = vmatprep.mubr.bf16.mxu0 %v403
    %1952 = vmatmul.mubr.bf16.gmra.mxu0 %v402
    %v1953 = vpop.f32.mrf.mxu0
    %v1954 = vadd.f32 %v1911, %v1953
    %v1955 = vpop.f32.mrf.mxu0
    %v1956 = vadd.f32 %v1913, %v1955
    %v1957 = vpop.f32.mrf.mxu0
    %v1958 = vadd.f32 %v1915, %v1957
    %v1959 = vpop.f32.mrf.mxu0
    %v1960 = vadd.f32 %v1917, %v1959
    %1961 = vdwg.mxu0
    %1962 = vmatprep.subr.bf16.mxu0 %v1399
    %1963 = vmatpush1.bf16.msra.mxu0 %v1398
    %1964 = vmatprep.subr.bf16.mxu0 %v1397
    %1965 = vmatpush1.bf16.msra.mxu0 %v1396
    %1966 = vmatprep.subr.bf16.mxu0 %v1395
    %1967 = vmatpush1.bf16.msra.mxu0 %v1394
    %1968 = vmatprep.subr.bf16.mxu0 %v1393
    %1969 = vmatpush1.bf16.msra.mxu0 %v1392
    %1970 = vmatprep.subr.bf16.mxu0 %v1391
    %1971 = vmatpush1.bf16.msra.mxu0 %v1390
    %1972 = vmatprep.subr.bf16.mxu0 %v1389
    %1973 = vmatpush1.bf16.msra.mxu0 %v1388
    %1974 = vmatprep.subr.bf16.mxu0 %v1387
    %1975 = vmatpush1.bf16.msra.mxu0 %v1386
    %1976 = vmatprep.subr.bf16.mxu0 %v1385
    %1977 = vmatpush1.bf16.msra.mxu0 %v1384
    %1978 = vmatprep.subr.bf16.mxu0 %v1415
    %1979 = vmatpush2.bf16.msra.mxu0 %v1414
    %1980 = vmatprep.subr.bf16.mxu0 %v1413
    %1981 = vmatpush2.bf16.msra.mxu0 %v1412
    %1982 = vmatprep.subr.bf16.mxu0 %v1411
    %1983 = vmatpush2.bf16.msra.mxu0 %v1410
    %1984 = vmatprep.subr.bf16.mxu0 %v1409
    %1985 = vmatpush2.bf16.msra.mxu0 %v1408
    %1986 = vmatprep.subr.bf16.mxu0 %v1407
    %1987 = vmatpush2.bf16.msra.mxu0 %v1406
    %1988 = vmatprep.subr.bf16.mxu0 %v1405
    %1989 = vmatpush2.bf16.msra.mxu0 %v1404
    %1990 = vmatprep.subr.bf16.mxu0 %v1403
    %1991 = vmatpush2.bf16.msra.mxu0 %v1402
    %1992 = vmatprep.subr.bf16.mxu0 %v1401
    %1993 = vmatpush2.bf16.msra.mxu0 %v1400
    %1994 = vmatprep.mubr.bf16.mxu0 %v405
    %1995 = vmatmul.mubr.bf16.gmra.mxu0 %v404
    %v1996 = vpop.f32.mrf.mxu0
    %v1997 = vadd.f32 %v1954, %v1996
    %v1998 = vpop.f32.mrf.mxu0
    %v1999 = vadd.f32 %v1956, %v1998
    %v2000 = vpop.f32.mrf.mxu0
    %v2001 = vadd.f32 %v1958, %v2000
    %v2002 = vpop.f32.mrf.mxu0
    %v2003 = vadd.f32 %v1960, %v2002
    %2004 = vdwg.mxu0
    %2005 = vmatprep.subr.bf16.mxu0 %v1431
    %2006 = vmatpush1.bf16.msra.mxu0 %v1430
    %2007 = vmatprep.subr.bf16.mxu0 %v1429
    %2008 = vmatpush1.bf16.msra.mxu0 %v1428
    %2009 = vmatprep.subr.bf16.mxu0 %v1427
    %2010 = vmatpush1.bf16.msra.mxu0 %v1426
    %2011 = vmatprep.subr.bf16.mxu0 %v1425
    %2012 = vmatpush1.bf16.msra.mxu0 %v1424
    %2013 = vmatprep.subr.bf16.mxu0 %v1423
    %2014 = vmatpush1.bf16.msra.mxu0 %v1422
    %2015 = vmatprep.subr.bf16.mxu0 %v1421
    %2016 = vmatpush1.bf16.msra.mxu0 %v1420
    %2017 = vmatprep.subr.bf16.mxu0 %v1419
    %2018 = vmatpush1.bf16.msra.mxu0 %v1418
    %2019 = vmatprep.subr.bf16.mxu0 %v1417
    %2020 = vmatpush1.bf16.msra.mxu0 %v1416
    %2021 = vmatprep.subr.bf16.mxu0 %v1447
    %2022 = vmatpush2.bf16.msra.mxu0 %v1446
    %2023 = vmatprep.subr.bf16.mxu0 %v1445
    %2024 = vmatpush2.bf16.msra.mxu0 %v1444
    %2025 = vmatprep.subr.bf16.mxu0 %v1443
    %2026 = vmatpush2.bf16.msra.mxu0 %v1442
    %2027 = vmatprep.subr.bf16.mxu0 %v1441
    %2028 = vmatpush2.bf16.msra.mxu0 %v1440
    %2029 = vmatprep.subr.bf16.mxu0 %v1439
    %2030 = vmatpush2.bf16.msra.mxu0 %v1438
    %2031 = vmatprep.subr.bf16.mxu0 %v1437
    %2032 = vmatpush2.bf16.msra.mxu0 %v1436
    %2033 = vmatprep.subr.bf16.mxu0 %v1435
    %2034 = vmatpush2.bf16.msra.mxu0 %v1434
    %2035 = vmatprep.subr.bf16.mxu0 %v1433
    %2036 = vmatpush2.bf16.msra.mxu0 %v1432
    %2037 = vmatprep.mubr.bf16.mxu0 %v407
    %2038 = vmatmul.mubr.bf16.gmra.mxu0 %v406
    %v2039 = vpop.f32.mrf.mxu0
    %v2040 = vadd.f32 %v1997, %v2039
    %v2041 = vpop.f32.mrf.mxu0
    %v2042 = vadd.f32 %v1999, %v2041
    %v2043 = vpop.f32.mrf.mxu0
    %v2044 = vadd.f32 %v2001, %v2043
    %v2045 = vpop.f32.mrf.mxu0
    %v2046 = vadd.f32 %v2003, %v2045
    %2047 = vdwg.mxu0
    %v2048 = vmax.f32 %v2040, 0.0
    %v2049 = vmax.f32 %v2042, 0.0
    %v2050 = vmax.f32 %v2044, 0.0
    %v2051 = vmax.f32 %v2046, 0.0
    %v2052 = vpack.c.bf16 %v2050, %v2048
    %v2053 = vpack.c.bf16 %v2051, %v2049
    %v2054 = vld [vmem:[%s3] sm:$0xff]
    %v2055 = vld [vmem:[%s3 + $0x8] sm:$0xff]
    %v2056 = vld [vmem:[%s3 + $0x10] sm:$0xff]
    %v2057 = vld [vmem:[%s3 + $0x18] sm:$0xff]
    %v2058 = vld [vmem:[%s3 + $0x20] sm:$0xff]
    %v2059 = vld [vmem:[%s3 + $0x28] sm:$0xff]
    %v2060 = vld [vmem:[%s3 + $0x30] sm:$0xff]
    %v2061 = vld [vmem:[%s3 + $0x38] sm:$0xff]
    %v2062 = vld [vmem:[%s3 + $0x40] sm:$0xff]
    %v2063 = vld [vmem:[%s3 + $0x48] sm:$0xff]
    %v2064 = vld [vmem:[%s3 + $0x50] sm:$0xff]
    %v2065 = vld [vmem:[%s3 + $0x58] sm:$0xff]
    %v2066 = vld [vmem:[%s3 + $0x60] sm:$0xff]
    %v2067 = vld [vmem:[%s3 + $0x68] sm:$0xff]
    %v2068 = vld [vmem:[%s3 + $0x70] sm:$0xff]
    %v2069 = vld [vmem:[%s3 + $0x78] sm:$0xff]
    %v2070 = vld [vmem:[%s3 + $0x80] sm:$0xff]
    %v2071 = vld [vmem:[%s3 + $0x88] sm:$0xff]
    %v2072 = vld [vmem:[%s3 + $0x90] sm:$0xff]
    %v2073 = vld [vmem:[%s3 + $0x98] sm:$0xff]
    %v2074 = vld [vmem:[%s3 + $0xa0] sm:$0xff]
    %v2075 = vld [vmem:[%s3 + $0xa8] sm:$0xff]
    %v2076 = vld [vmem:[%s3 + $0xb0] sm:$0xff]
    %v2077 = vld [vmem:[%s3 + $0xb8] sm:$0xff]
    %v2078 = vld [vmem:[%s3 + $0xc0] sm:$0xff]
    %v2079 = vld [vmem:[%s3 + $0xc8] sm:$0xff]
    %v2080 = vld [vmem:[%s3 + $0xd0] sm:$0xff]
    %v2081 = vld [vmem:[%s3 + $0xd8] sm:$0xff]
    %v2082 = vld [vmem:[%s3 + $0xe0] sm:$0xff]
    %v2083 = vld [vmem:[%s3 + $0xe8] sm:$0xff]
    %v2084 = vld [vmem:[%s3 + $0xf0] sm:$0xff]
    %v2085 = vld [vmem:[%s3 + $0xf8] sm:$0xff]
    %v2086 = vld [vmem:[%s4] sm:$0xf]
    %v2088 = vlaneseq
    %v2089 = vshrl.u32 %v2088, 7
    %v2090 = vsub.s32 0, %v2089
    %v2091 = vrot.slane %v2086, %v2090
    %v2092 = vlaneseq
    %v2093 = vshrl.u32 %v2092, 7
    %v2094 = vsub.s32 1, %v2093
    %v2095 = vrot.slane %v2086, %v2094
    %v2096 = vlaneseq
    %v2097 = vshrl.u32 %v2096, 7
    %v2098 = vsub.s32 2, %v2097
    %v2099 = vrot.slane %v2086, %v2098
    %v2100 = vlaneseq
    %v2101 = vshrl.u32 %v2100, 7
    %v2102 = vsub.s32 3, %v2101
    %v2103 = vrot.slane %v2086, %v2102
    %v2140 = vunpack.c.l.b16 %v2054
    %v2141 = vunpack.c.h.b16 %v2054
    %v2142 = vunpack.c.l.b16 %v2055
    %v2143 = vunpack.c.h.b16 %v2055
    %v2144 = vunpack.c.l.b16 %v2056
    %v2145 = vunpack.c.h.b16 %v2056
    %v2146 = vunpack.c.l.b16 %v2057
    %v2147 = vunpack.c.h.b16 %v2057
    %v2148 = vunpack.c.l.b16 %v2058
    %v2149 = vunpack.c.h.b16 %v2058
    %v2150 = vunpack.c.l.b16 %v2059
    %v2151 = vunpack.c.h.b16 %v2059
    %v2152 = vunpack.c.l.b16 %v2060
    %v2153 = vunpack.c.h.b16 %v2060
    %v2154 = vunpack.c.l.b16 %v2061
    %v2155 = vunpack.c.h.b16 %v2061
    %v2156 = vunpack.c.l.b16 %v2062
    %v2157 = vunpack.c.h.b16 %v2062
    %v2158 = vunpack.c.l.b16 %v2063
    %v2159 = vunpack.c.h.b16 %v2063
    %v2160 = vunpack.c.l.b16 %v2064
    %v2161 = vunpack.c.h.b16 %v2064
    %v2162 = vunpack.c.l.b16 %v2065
    %v2163 = vunpack.c.h.b16 %v2065
    %v2164 = vunpack.c.l.b16 %v2066
    %v2165 = vunpack.c.h.b16 %v2066
    %v2166 = vunpack.c.l.b16 %v2067
    %v2167 = vunpack.c.h.b16 %v2067
    %v2168 = vunpack.c.l.b16 %v2068
    %v2169 = vunpack.c.h.b16 %v2068
    %v2170 = vunpack.c.l.b16 %v2069
    %v2171 = vunpack.c.h.b16 %v2069
    %v2172 = vunpack.c.l.b16 %v2070
    %v2173 = vunpack.c.h.b16 %v2070
    %v2174 = vunpack.c.l.b16 %v2071
    %v2175 = vunpack.c.h.b16 %v2071
    %v2176 = vunpack.c.l.b16 %v2072
    %v2177 = vunpack.c.h.b16 %v2072
    %v2178 = vunpack.c.l.b16 %v2073
    %v2179 = vunpack.c.h.b16 %v2073
    %v2180 = vunpack.c.l.b16 %v2074
    %v2181 = vunpack.c.h.b16 %v2074
    %v2182 = vunpack.c.l.b16 %v2075
    %v2183 = vunpack.c.h.b16 %v2075
    %v2184 = vunpack.c.l.b16 %v2076
    %v2185 = vunpack.c.h.b16 %v2076
    %v2186 = vunpack.c.l.b16 %v2077
    %v2187 = vunpack.c.h.b16 %v2077
    %v2188 = vunpack.c.l.b16 %v2078
    %v2189 = vunpack.c.h.b16 %v2078
    %v2190 = vunpack.c.l.b16 %v2079
    %v2191 = vunpack.c.h.b16 %v2079
    %v2192 = vunpack.c.l.b16 %v2080
    %v2193 = vunpack.c.h.b16 %v2080
    %v2194 = vunpack.c.l.b16 %v2081
    %v2195 = vunpack.c.h.b16 %v2081
    %v2196 = vunpack.c.l.b16 %v2082
    %v2197 = vunpack.c.h.b16 %v2082
    %v2198 = vunpack.c.l.b16 %v2083
    %v2199 = vunpack.c.h.b16 %v2083
    %v2200 = vunpack.c.l.b16 %v2084
    %v2201 = vunpack.c.h.b16 %v2084
    %v2202 = vunpack.c.l.b16 %v2085
    %v2203 = vunpack.c.h.b16 %v2085
    %v2204 = vpack.c.b16 %v2144, %v2140
    %v2205 = vpack.c.b16 %v2145, %v2141
    %v2206 = vpack.c.b16 %v2146, %v2142
    %v2207 = vpack.c.b16 %v2147, %v2143
    %v2208 = vpack.c.b16 %v2152, %v2148
    %v2209 = vpack.c.b16 %v2153, %v2149
    %v2210 = vpack.c.b16 %v2154, %v2150
    %v2211 = vpack.c.b16 %v2155, %v2151
    %v2212 = vpack.c.b16 %v2160, %v2156
    %v2213 = vpack.c.b16 %v2161, %v2157
    %v2214 = vpack.c.b16 %v2162, %v2158
    %v2215 = vpack.c.b16 %v2163, %v2159
    %v2216 = vpack.c.b16 %v2168, %v2164
    %v2217 = vpack.c.b16 %v2169, %v2165
    %v2218 = vpack.c.b16 %v2170, %v2166
    %v2219 = vpack.c.b16 %v2171, %v2167
    %v2220 = vpack.c.b16 %v2176, %v2172
    %v2221 = vpack.c.b16 %v2177, %v2173
    %v2222 = vpack.c.b16 %v2178, %v2174
    %v2223 = vpack.c.b16 %v2179, %v2175
    %v2224 = vpack.c.b16 %v2184, %v2180
    %v2225 = vpack.c.b16 %v2185, %v2181
    %v2226 = vpack.c.b16 %v2186, %v2182
    %v2227 = vpack.c.b16 %v2187, %v2183
    %v2228 = vpack.c.b16 %v2192, %v2188
    %v2229 = vpack.c.b16 %v2193, %v2189
    %v2230 = vpack.c.b16 %v2194, %v2190
    %v2231 = vpack.c.b16 %v2195, %v2191
    %v2232 = vpack.c.b16 %v2200, %v2196
    %v2233 = vpack.c.b16 %v2201, %v2197
    %v2234 = vpack.c.b16 %v2202, %v2198
    %v2235 = vpack.c.b16 %v2203, %v2199
    %2268 = vmatprep.subr.bf16.mxu0 %v2233
    %2269 = vmatpush1.bf16.msra.mxu0 %v2232
    %2270 = vmatprep.subr.bf16.mxu0 %v2229
    %2271 = vmatpush1.bf16.msra.mxu0 %v2228
    %2272 = vmatprep.subr.bf16.mxu0 %v2225
    %2273 = vmatpush1.bf16.msra.mxu0 %v2224
    %2274 = vmatprep.subr.bf16.mxu0 %v2221
    %2275 = vmatpush1.bf16.msra.mxu0 %v2220
    %2276 = vmatprep.subr.bf16.mxu0 %v2217
    %2277 = vmatpush1.bf16.msra.mxu0 %v2216
    %2278 = vmatprep.subr.bf16.mxu0 %v2213
    %2279 = vmatpush1.bf16.msra.mxu0 %v2212
    %2280 = vmatprep.subr.bf16.mxu0 %v2209
    %2281 = vmatpush1.bf16.msra.mxu0 %v2208
    %2282 = vmatprep.subr.bf16.mxu0 %v2205
    %2283 = vmatpush1.bf16.msra.mxu0 %v2204
    %2284 = vmatprep.subr.bf16.mxu0 0
    %2285 = vmatpush2.bf16.msra.mxu0 0
    %2286 = vmatprep.subr.bf16.mxu0 0
    %2287 = vmatpush2.bf16.msra.mxu0 0
    %2288 = vmatprep.subr.bf16.mxu0 0
    %2289 = vmatpush2.bf16.msra.mxu0 0
    %2290 = vmatprep.subr.bf16.mxu0 0
    %2291 = vmatpush2.bf16.msra.mxu0 0
    %2292 = vmatprep.subr.bf16.mxu0 0
    %2293 = vmatpush2.bf16.msra.mxu0 0
    %2294 = vmatprep.subr.bf16.mxu0 0
    %2295 = vmatpush2.bf16.msra.mxu0 0
    %2296 = vmatprep.subr.bf16.mxu0 0
    %2297 = vmatpush2.bf16.msra.mxu0 0
    %2298 = vmatprep.subr.bf16.mxu0 0
    %2299 = vmatpush2.bf16.msra.mxu0 0
    %2300 = vmatprep.mubr.bf16.mxu0 0
    %2301 = vmatmul.mubr.bf16.gmra.mxu0 %v2052
    %v2302 = vpop.f32.mrf.mxu0
    %v2303 = vadd.f32 %v2091, %v2302
    %v2304 = vpop.f32.mrf.mxu0
    %v2305 = vadd.f32 %v2095, %v2304
    %v2306 = vpop.f32.mrf.mxu0
    %v2307 = vadd.f32 %v2091, %v2306
    %v2308 = vpop.f32.mrf.mxu0
    %v2309 = vadd.f32 %v2095, %v2308
    %2310 = vdwg.mxu0
    %2311 = vmatprep.subr.bf16.mxu0 %v2235
    %2312 = vmatpush1.bf16.msra.mxu0 %v2234
    %2313 = vmatprep.subr.bf16.mxu0 %v2231
    %2314 = vmatpush1.bf16.msra.mxu0 %v2230
    %2315 = vmatprep.subr.bf16.mxu0 %v2227
    %2316 = vmatpush1.bf16.msra.mxu0 %v2226
    %2317 = vmatprep.subr.bf16.mxu0 %v2223
    %2318 = vmatpush1.bf16.msra.mxu0 %v2222
    %2319 = vmatprep.subr.bf16.mxu0 %v2219
    %2320 = vmatpush1.bf16.msra.mxu0 %v2218
    %2321 = vmatprep.subr.bf16.mxu0 %v2215
    %2322 = vmatpush1.bf16.msra.mxu0 %v2214
    %2323 = vmatprep.subr.bf16.mxu0 %v2211
    %2324 = vmatpush1.bf16.msra.mxu0 %v2210
    %2325 = vmatprep.subr.bf16.mxu0 %v2207
    %2326 = vmatpush1.bf16.msra.mxu0 %v2206
    %2327 = vmatprep.subr.bf16.mxu0 0
    %2328 = vmatpush2.bf16.msra.mxu0 0
    %2329 = vmatprep.subr.bf16.mxu0 0
    %2330 = vmatpush2.bf16.msra.mxu0 0
    %2331 = vmatprep.subr.bf16.mxu0 0
    %2332 = vmatpush2.bf16.msra.mxu0 0
    %2333 = vmatprep.subr.bf16.mxu0 0
    %2334 = vmatpush2.bf16.msra.mxu0 0
    %2335 = vmatprep.subr.bf16.mxu0 0
    %2336 = vmatpush2.bf16.msra.mxu0 0
    %2337 = vmatprep.subr.bf16.mxu0 0
    %2338 = vmatpush2.bf16.msra.mxu0 0
    %2339 = vmatprep.subr.bf16.mxu0 0
    %2340 = vmatpush2.bf16.msra.mxu0 0
    %2341 = vmatprep.subr.bf16.mxu0 0
    %2342 = vmatpush2.bf16.msra.mxu0 0
    %2343 = vmatprep.mubr.bf16.mxu0 0
    %2344 = vmatmul.mubr.bf16.gmra.mxu0 %v2052
    %v2345 = vpop.f32.mrf.mxu0
    %v2346 = vadd.f32 %v2099, %v2345
    %v2347 = vpop.f32.mrf.mxu0
    %v2348 = vadd.f32 %v2103, %v2347
    %v2349 = vpop.f32.mrf.mxu0
    %v2350 = vadd.f32 %v2099, %v2349
    %v2351 = vpop.f32.mrf.mxu0
    %v2352 = vadd.f32 %v2103, %v2351
    %2353 = vdwg.mxu0
    %v2354 = vmax.f32 %v2303, 0.0
    %v2355 = vmax.f32 %v2305, 0.0
    %v2356 = vmax.f32 %v2346, 0.0
    %v2357 = vmax.f32 %v2348, 0.0
    %v2358 = vmax.f32 %v2307, 0.0
    %v2359 = vmax.f32 %v2309, 0.0
    %v2360 = vmax.f32 %v2350, 0.0
    %v2361 = vmax.f32 %v2352, 0.0
    %v2362 = vpack.c.bf16 %v2358, %v2354
    %v2363 = vpack.c.bf16 %v2359, %v2355
    %v2364 = vpack.c.bf16 %v2360, %v2356
    %v2365 = vpack.c.bf16 %v2361, %v2357
    %v2366 = vld [vmem:[%s5] sm:$0xff]
    %v2367 = vld [vmem:[%s5 + $0x8] sm:$0xff]
    %v2368 = vld [vmem:[%s5 + $0x10] sm:$0xff]
    %v2369 = vld [vmem:[%s5 + $0x18] sm:$0xff]
    %v2370 = vld [vmem:[%s5 + $0x20] sm:$0xff]
    %v2371 = vld [vmem:[%s5 + $0x28] sm:$0xff]
    %v2372 = vld [vmem:[%s5 + $0x30] sm:$0xff]
    %v2373 = vld [vmem:[%s5 + $0x38] sm:$0xff]
    %v2374 = vld [vmem:[%s5 + $0x40] sm:$0xff]
    %v2375 = vld [vmem:[%s5 + $0x48] sm:$0xff]
    %v2376 = vld [vmem:[%s5 + $0x50] sm:$0xff]
    %v2377 = vld [vmem:[%s5 + $0x58] sm:$0xff]
    %v2378 = vld [vmem:[%s5 + $0x60] sm:$0xff]
    %v2379 = vld [vmem:[%s5 + $0x68] sm:$0xff]
    %v2380 = vld [vmem:[%s5 + $0x70] sm:$0xff]
    %v2381 = vld [vmem:[%s5 + $0x78] sm:$0xff]
    %v2382 = vld [vmem:[%s5 + $0x80] sm:$0xff]
    %v2383 = vld [vmem:[%s5 + $0x88] sm:$0xff]
    %v2384 = vld [vmem:[%s5 + $0x90] sm:$0xff]
    %v2385 = vld [vmem:[%s5 + $0x98] sm:$0xff]
    %v2386 = vld [vmem:[%s5 + $0xa0] sm:$0xff]
    %v2387 = vld [vmem:[%s5 + $0xa8] sm:$0xff]
    %v2388 = vld [vmem:[%s5 + $0xb0] sm:$0xff]
    %v2389 = vld [vmem:[%s5 + $0xb8] sm:$0xff]
    %v2390 = vld [vmem:[%s5 + $0xc0] sm:$0xff]
    %v2391 = vld [vmem:[%s5 + $0xc8] sm:$0xff]
    %v2392 = vld [vmem:[%s5 + $0xd0] sm:$0xff]
    %v2393 = vld [vmem:[%s5 + $0xd8] sm:$0xff]
    %v2394 = vld [vmem:[%s5 + $0xe0] sm:$0xff]
    %v2395 = vld [vmem:[%s5 + $0xe8] sm:$0xff]
    %v2396 = vld [vmem:[%s5 + $0xf0] sm:$0xff]
    %v2397 = vld [vmem:[%s5 + $0xf8] sm:$0xff]
    %v2398 = vld [vmem:[%s5 + $0x100] sm:$0xff]
    %v2399 = vld [vmem:[%s5 + $0x108] sm:$0xff]
    %v2400 = vld [vmem:[%s5 + $0x110] sm:$0xff]
    %v2401 = vld [vmem:[%s5 + $0x118] sm:$0xff]
    %v2402 = vld [vmem:[%s5 + $0x120] sm:$0xff]
    %v2403 = vld [vmem:[%s5 + $0x128] sm:$0xff]
    %v2404 = vld [vmem:[%s5 + $0x130] sm:$0xff]
    %v2405 = vld [vmem:[%s5 + $0x138] sm:$0xff]
    %v2406 = vld [vmem:[%s5 + $0x140] sm:$0xff]
    %v2407 = vld [vmem:[%s5 + $0x148] sm:$0xff]
    %v2408 = vld [vmem:[%s5 + $0x150] sm:$0xff]
    %v2409 = vld [vmem:[%s5 + $0x158] sm:$0xff]
    %v2410 = vld [vmem:[%s5 + $0x160] sm:$0xff]
    %v2411 = vld [vmem:[%s5 + $0x168] sm:$0xff]
    %v2412 = vld [vmem:[%s5 + $0x170] sm:$0xff]
    %v2413 = vld [vmem:[%s5 + $0x178] sm:$0xff]
    %v2414 = vld [vmem:[%s5 + $0x180] sm:$0xff]
    %v2415 = vld [vmem:[%s5 + $0x188] sm:$0xff]
    %v2416 = vld [vmem:[%s5 + $0x190] sm:$0xff]
    %v2417 = vld [vmem:[%s5 + $0x198] sm:$0xff]
    %v2418 = vld [vmem:[%s5 + $0x1a0] sm:$0xff]
    %v2419 = vld [vmem:[%s5 + $0x1a8] sm:$0xff]
    %v2420 = vld [vmem:[%s5 + $0x1b0] sm:$0xff]
    %v2421 = vld [vmem:[%s5 + $0x1b8] sm:$0xff]
    %v2422 = vld [vmem:[%s5 + $0x1c0] sm:$0xff]
    %v2423 = vld [vmem:[%s5 + $0x1c8] sm:$0xff]
    %v2424 = vld [vmem:[%s5 + $0x1d0] sm:$0xff]
    %v2425 = vld [vmem:[%s5 + $0x1d8] sm:$0xff]
    %v2426 = vld [vmem:[%s5 + $0x1e0] sm:$0xff]
    %v2427 = vld [vmem:[%s5 + $0x1e8] sm:$0xff]
    %v2428 = vld [vmem:[%s5 + $0x1f0] sm:$0xff]
    %v2429 = vld [vmem:[%s5 + $0x1f8] sm:$0xff]
    %v2430 = vld [vmem:[%s6] sm:$0x3]
    %v2432 = vlaneseq
    %v2433 = vshrl.u32 %v2432, 7
    %v2434 = vsub.s32 0, %v2433
    %v2435 = vrot.slane %v2430, %v2434
    %v2436 = vlaneseq
    %v2437 = vshrl.u32 %v2436, 7
    %v2438 = vsub.s32 1, %v2437
    %v2439 = vrot.slane %v2430, %v2438
    %v2506 = vunpack.c.l.b16 %v2366
    %v2507 = vunpack.c.h.b16 %v2366
    %v2508 = vunpack.c.l.b16 %v2367
    %v2509 = vunpack.c.h.b16 %v2367
    %v2510 = vunpack.c.l.b16 %v2368
    %v2511 = vunpack.c.h.b16 %v2368
    %v2512 = vunpack.c.l.b16 %v2369
    %v2513 = vunpack.c.h.b16 %v2369
    %v2514 = vunpack.c.l.b16 %v2370
    %v2515 = vunpack.c.h.b16 %v2370
    %v2516 = vunpack.c.l.b16 %v2371
    %v2517 = vunpack.c.h.b16 %v2371
    %v2518 = vunpack.c.l.b16 %v2372
    %v2519 = vunpack.c.h.b16 %v2372
    %v2520 = vunpack.c.l.b16 %v2373
    %v2521 = vunpack.c.h.b16 %v2373
    %v2522 = vunpack.c.l.b16 %v2374
    %v2523 = vunpack.c.h.b16 %v2374
    %v2524 = vunpack.c.l.b16 %v2375
    %v2525 = vunpack.c.h.b16 %v2375
    %v2526 = vunpack.c.l.b16 %v2376
    %v2527 = vunpack.c.h.b16 %v2376
    %v2528 = vunpack.c.l.b16 %v2377
    %v2529 = vunpack.c.h.b16 %v2377
    %v2530 = vunpack.c.l.b16 %v2378
    %v2531 = vunpack.c.h.b16 %v2378
    %v2532 = vunpack.c.l.b16 %v2379
    %v2533 = vunpack.c.h.b16 %v2379
    %v2534 = vunpack.c.l.b16 %v2380
    %v2535 = vunpack.c.h.b16 %v2380
    %v2536 = vunpack.c.l.b16 %v2381
    %v2537 = vunpack.c.h.b16 %v2381
    %v2538 = vunpack.c.l.b16 %v2382
    %v2539 = vunpack.c.h.b16 %v2382
    %v2540 = vunpack.c.l.b16 %v2383
    %v2541 = vunpack.c.h.b16 %v2383
    %v2542 = vunpack.c.l.b16 %v2384
    %v2543 = vunpack.c.h.b16 %v2384
    %v2544 = vunpack.c.l.b16 %v2385
    %v2545 = vunpack.c.h.b16 %v2385
    %v2546 = vunpack.c.l.b16 %v2386
    %v2547 = vunpack.c.h.b16 %v2386
    %v2548 = vunpack.c.l.b16 %v2387
    %v2549 = vunpack.c.h.b16 %v2387
    %v2550 = vunpack.c.l.b16 %v2388
    %v2551 = vunpack.c.h.b16 %v2388
    %v2552 = vunpack.c.l.b16 %v2389
    %v2553 = vunpack.c.h.b16 %v2389
    %v2554 = vunpack.c.l.b16 %v2390
    %v2555 = vunpack.c.h.b16 %v2390
    %v2556 = vunpack.c.l.b16 %v2391
    %v2557 = vunpack.c.h.b16 %v2391
    %v2558 = vunpack.c.l.b16 %v2392
    %v2559 = vunpack.c.h.b16 %v2392
    %v2560 = vunpack.c.l.b16 %v2393
    %v2561 = vunpack.c.h.b16 %v2393
    %v2562 = vunpack.c.l.b16 %v2394
    %v2563 = vunpack.c.h.b16 %v2394
    %v2564 = vunpack.c.l.b16 %v2395
    %v2565 = vunpack.c.h.b16 %v2395
    %v2566 = vunpack.c.l.b16 %v2396
    %v2567 = vunpack.c.h.b16 %v2396
    %v2568 = vunpack.c.l.b16 %v2397
    %v2569 = vunpack.c.h.b16 %v2397
    %v2570 = vunpack.c.l.b16 %v2398
    %v2571 = vunpack.c.h.b16 %v2398
    %v2572 = vunpack.c.l.b16 %v2399
    %v2573 = vunpack.c.h.b16 %v2399
    %v2574 = vunpack.c.l.b16 %v2400
    %v2575 = vunpack.c.h.b16 %v2400
    %v2576 = vunpack.c.l.b16 %v2401
    %v2577 = vunpack.c.h.b16 %v2401
    %v2578 = vunpack.c.l.b16 %v2402
    %v2579 = vunpack.c.h.b16 %v2402
    %v2580 = vunpack.c.l.b16 %v2403
    %v2581 = vunpack.c.h.b16 %v2403
    %v2582 = vunpack.c.l.b16 %v2404
    %v2583 = vunpack.c.h.b16 %v2404
    %v2584 = vunpack.c.l.b16 %v2405
    %v2585 = vunpack.c.h.b16 %v2405
    %v2586 = vunpack.c.l.b16 %v2406
    %v2587 = vunpack.c.h.b16 %v2406
    %v2588 = vunpack.c.l.b16 %v2407
    %v2589 = vunpack.c.h.b16 %v2407
    %v2590 = vunpack.c.l.b16 %v2408
    %v2591 = vunpack.c.h.b16 %v2408
    %v2592 = vunpack.c.l.b16 %v2409
    %v2593 = vunpack.c.h.b16 %v2409
    %v2594 = vunpack.c.l.b16 %v2410
    %v2595 = vunpack.c.h.b16 %v2410
    %v2596 = vunpack.c.l.b16 %v2411
    %v2597 = vunpack.c.h.b16 %v2411
    %v2598 = vunpack.c.l.b16 %v2412
    %v2599 = vunpack.c.h.b16 %v2412
    %v2600 = vunpack.c.l.b16 %v2413
    %v2601 = vunpack.c.h.b16 %v2413
    %v2602 = vunpack.c.l.b16 %v2414
    %v2603 = vunpack.c.h.b16 %v2414
    %v2604 = vunpack.c.l.b16 %v2415
    %v2605 = vunpack.c.h.b16 %v2415
    %v2606 = vunpack.c.l.b16 %v2416
    %v2607 = vunpack.c.h.b16 %v2416
    %v2608 = vunpack.c.l.b16 %v2417
    %v2609 = vunpack.c.h.b16 %v2417
    %v2610 = vunpack.c.l.b16 %v2418
    %v2611 = vunpack.c.h.b16 %v2418
    %v2612 = vunpack.c.l.b16 %v2419
    %v2613 = vunpack.c.h.b16 %v2419
    %v2614 = vunpack.c.l.b16 %v2420
    %v2615 = vunpack.c.h.b16 %v2420
    %v2616 = vunpack.c.l.b16 %v2421
    %v2617 = vunpack.c.h.b16 %v2421
    %v2618 = vunpack.c.l.b16 %v2422
    %v2619 = vunpack.c.h.b16 %v2422
    %v2620 = vunpack.c.l.b16 %v2423
    %v2621 = vunpack.c.h.b16 %v2423
    %v2622 = vunpack.c.l.b16 %v2424
    %v2623 = vunpack.c.h.b16 %v2424
    %v2624 = vunpack.c.l.b16 %v2425
    %v2625 = vunpack.c.h.b16 %v2425
    %v2626 = vunpack.c.l.b16 %v2426
    %v2627 = vunpack.c.h.b16 %v2426
    %v2628 = vunpack.c.l.b16 %v2427
    %v2629 = vunpack.c.h.b16 %v2427
    %v2630 = vunpack.c.l.b16 %v2428
    %v2631 = vunpack.c.h.b16 %v2428
    %v2632 = vunpack.c.l.b16 %v2429
    %v2633 = vunpack.c.h.b16 %v2429
    %v2634 = vpack.c.b16 %v2508, %v2506
    %v2635 = vpack.c.b16 %v2509, %v2507
    %v2636 = vpack.c.b16 %v2512, %v2510
    %v2637 = vpack.c.b16 %v2513, %v2511
    %v2638 = vpack.c.b16 %v2516, %v2514
    %v2639 = vpack.c.b16 %v2517, %v2515
    %v2640 = vpack.c.b16 %v2520, %v2518
    %v2641 = vpack.c.b16 %v2521, %v2519
    %v2642 = vpack.c.b16 %v2524, %v2522
    %v2643 = vpack.c.b16 %v2525, %v2523
    %v2644 = vpack.c.b16 %v2528, %v2526
    %v2645 = vpack.c.b16 %v2529, %v2527
    %v2646 = vpack.c.b16 %v2532, %v2530
    %v2647 = vpack.c.b16 %v2533, %v2531
    %v2648 = vpack.c.b16 %v2536, %v2534
    %v2649 = vpack.c.b16 %v2537, %v2535
    %v2650 = vpack.c.b16 %v2540, %v2538
    %v2651 = vpack.c.b16 %v2541, %v2539
    %v2652 = vpack.c.b16 %v2544, %v2542
    %v2653 = vpack.c.b16 %v2545, %v2543
    %v2654 = vpack.c.b16 %v2548, %v2546
    %v2655 = vpack.c.b16 %v2549, %v2547
    %v2656 = vpack.c.b16 %v2552, %v2550
    %v2657 = vpack.c.b16 %v2553, %v2551
    %v2658 = vpack.c.b16 %v2556, %v2554
    %v2659 = vpack.c.b16 %v2557, %v2555
    %v2660 = vpack.c.b16 %v2560, %v2558
    %v2661 = vpack.c.b16 %v2561, %v2559
    %v2662 = vpack.c.b16 %v2564, %v2562
    %v2663 = vpack.c.b16 %v2565, %v2563
    %v2664 = vpack.c.b16 %v2568, %v2566
    %v2665 = vpack.c.b16 %v2569, %v2567
    %v2666 = vpack.c.b16 %v2572, %v2570
    %v2667 = vpack.c.b16 %v2573, %v2571
    %v2668 = vpack.c.b16 %v2576, %v2574
    %v2669 = vpack.c.b16 %v2577, %v2575
    %v2670 = vpack.c.b16 %v2580, %v2578
    %v2671 = vpack.c.b16 %v2581, %v2579
    %v2672 = vpack.c.b16 %v2584, %v2582
    %v2673 = vpack.c.b16 %v2585, %v2583
    %v2674 = vpack.c.b16 %v2588, %v2586
    %v2675 = vpack.c.b16 %v2589, %v2587
    %v2676 = vpack.c.b16 %v2592, %v2590
    %v2677 = vpack.c.b16 %v2593, %v2591
    %v2678 = vpack.c.b16 %v2596, %v2594
    %v2679 = vpack.c.b16 %v2597, %v2595
    %v2680 = vpack.c.b16 %v2600, %v2598
    %v2681 = vpack.c.b16 %v2601, %v2599
    %v2682 = vpack.c.b16 %v2604, %v2602
    %v2683 = vpack.c.b16 %v2605, %v2603
    %v2684 = vpack.c.b16 %v2608, %v2606
    %v2685 = vpack.c.b16 %v2609, %v2607
    %v2686 = vpack.c.b16 %v2612, %v2610
    %v2687 = vpack.c.b16 %v2613, %v2611
    %v2688 = vpack.c.b16 %v2616, %v2614
    %v2689 = vpack.c.b16 %v2617, %v2615
    %v2690 = vpack.c.b16 %v2620, %v2618
    %v2691 = vpack.c.b16 %v2621, %v2619
    %v2692 = vpack.c.b16 %v2624, %v2622
    %v2693 = vpack.c.b16 %v2625, %v2623
    %v2694 = vpack.c.b16 %v2628, %v2626
    %v2695 = vpack.c.b16 %v2629, %v2627
    %v2696 = vpack.c.b16 %v2632, %v2630
    %v2697 = vpack.c.b16 %v2633, %v2631
    %2762 = vmatprep.subr.bf16.mxu0 %v2649
    %2763 = vmatpush1.bf16.msra.mxu0 %v2648
    %2764 = vmatprep.subr.bf16.mxu0 %v2647
    %2765 = vmatpush1.bf16.msra.mxu0 %v2646
    %2766 = vmatprep.subr.bf16.mxu0 %v2645
    %2767 = vmatpush1.bf16.msra.mxu0 %v2644
    %2768 = vmatprep.subr.bf16.mxu0 %v2643
    %2769 = vmatpush1.bf16.msra.mxu0 %v2642
    %2770 = vmatprep.subr.bf16.mxu0 %v2641
    %2771 = vmatpush1.bf16.msra.mxu0 %v2640
    %2772 = vmatprep.subr.bf16.mxu0 %v2639
    %2773 = vmatpush1.bf16.msra.mxu0 %v2638
    %2774 = vmatprep.subr.bf16.mxu0 %v2637
    %2775 = vmatpush1.bf16.msra.mxu0 %v2636
    %2776 = vmatprep.subr.bf16.mxu0 %v2635
    %2777 = vmatpush1.bf16.msra.mxu0 %v2634
    %2778 = vmatprep.subr.bf16.mxu0 %v2665
    %2779 = vmatpush2.bf16.msra.mxu0 %v2664
    %2780 = vmatprep.subr.bf16.mxu0 %v2663
    %2781 = vmatpush2.bf16.msra.mxu0 %v2662
    %2782 = vmatprep.subr.bf16.mxu0 %v2661
    %2783 = vmatpush2.bf16.msra.mxu0 %v2660
    %2784 = vmatprep.subr.bf16.mxu0 %v2659
    %2785 = vmatpush2.bf16.msra.mxu0 %v2658
    %2786 = vmatprep.subr.bf16.mxu0 %v2657
    %2787 = vmatpush2.bf16.msra.mxu0 %v2656
    %2788 = vmatprep.subr.bf16.mxu0 %v2655
    %2789 = vmatpush2.bf16.msra.mxu0 %v2654
    %2790 = vmatprep.subr.bf16.mxu0 %v2653
    %2791 = vmatpush2.bf16.msra.mxu0 %v2652
    %2792 = vmatprep.subr.bf16.mxu0 %v2651
    %2793 = vmatpush2.bf16.msra.mxu0 %v2650
    %2794 = vmatprep.mubr.bf16.mxu0 %v2363
    %2795 = vmatmul.mubr.bf16.gmra.mxu0 %v2362
    %v2796 = vpop.f32.mrf.mxu0
    %v2797 = vadd.f32 %v2435, %v2796
    %v2798 = vpop.f32.mrf.mxu0
    %v2799 = vadd.f32 %v2439, %v2798
    %v2800 = vpop.f32.mrf.mxu0
    %v2801 = vadd.f32 %v2435, %v2800
    %v2802 = vpop.f32.mrf.mxu0
    %v2803 = vadd.f32 %v2439, %v2802
    %2804 = vdwg.mxu0
    %2805 = vmatprep.subr.bf16.mxu0 %v2681
    %2806 = vmatpush1.bf16.msra.mxu0 %v2680
    %2807 = vmatprep.subr.bf16.mxu0 %v2679
    %2808 = vmatpush1.bf16.msra.mxu0 %v2678
    %2809 = vmatprep.subr.bf16.mxu0 %v2677
    %2810 = vmatpush1.bf16.msra.mxu0 %v2676
    %2811 = vmatprep.subr.bf16.mxu0 %v2675
    %2812 = vmatpush1.bf16.msra.mxu0 %v2674
    %2813 = vmatprep.subr.bf16.mxu0 %v2673
    %2814 = vmatpush1.bf16.msra.mxu0 %v2672
    %2815 = vmatprep.subr.bf16.mxu0 %v2671
    %2816 = vmatpush1.bf16.msra.mxu0 %v2670
    %2817 = vmatprep.subr.bf16.mxu0 %v2669
    %2818 = vmatpush1.bf16.msra.mxu0 %v2668
    %2819 = vmatprep.subr.bf16.mxu0 %v2667
    %2820 = vmatpush1.bf16.msra.mxu0 %v2666
    %2821 = vmatprep.subr.bf16.mxu0 %v2697
    %2822 = vmatpush2.bf16.msra.mxu0 %v2696
    %2823 = vmatprep.subr.bf16.mxu0 %v2695
    %2824 = vmatpush2.bf16.msra.mxu0 %v2694
    %2825 = vmatprep.subr.bf16.mxu0 %v2693
    %2826 = vmatpush2.bf16.msra.mxu0 %v2692
    %2827 = vmatprep.subr.bf16.mxu0 %v2691
    %2828 = vmatpush2.bf16.msra.mxu0 %v2690
    %2829 = vmatprep.subr.bf16.mxu0 %v2689
    %2830 = vmatpush2.bf16.msra.mxu0 %v2688
    %2831 = vmatprep.subr.bf16.mxu0 %v2687
    %2832 = vmatpush2.bf16.msra.mxu0 %v2686
    %2833 = vmatprep.subr.bf16.mxu0 %v2685
    %2834 = vmatpush2.bf16.msra.mxu0 %v2684
    %2835 = vmatprep.subr.bf16.mxu0 %v2683
    %2836 = vmatpush2.bf16.msra.mxu0 %v2682
    %2837 = vmatprep.mubr.bf16.mxu0 %v2365
    %2838 = vmatmul.mubr.bf16.gmra.mxu0 %v2364
    %v2839 = vpop.f32.mrf.mxu0
    %v2840 = vadd.f32 %v2797, %v2839
    %v2841 = vpop.f32.mrf.mxu0
    %v2842 = vadd.f32 %v2799, %v2841
    %v2843 = vpop.f32.mrf.mxu0
    %v2844 = vadd.f32 %v2801, %v2843
    %v2845 = vpop.f32.mrf.mxu0
    %v2846 = vadd.f32 %v2803, %v2845
    %2847 = vdwg.mxu0
    %v2848 = vmax.f32 %v2840, 0.0
    %v2849 = vmax.f32 %v2842, 0.0
    %v2850 = vmax.f32 %v2844, 0.0
    %v2851 = vmax.f32 %v2846, 0.0
    %v2852 = vpack.c.bf16 %v2850, %v2848
    %v2853 = vpack.c.bf16 %v2851, %v2849
    %v2854 = vld [vmem:[%s7] sm:$0xf]
    %v2855 = vld [vmem:[%s7 + $0x4] sm:$0xf]
    %v2856 = vld [vmem:[%s7 + $0x8] sm:$0xf]
    %v2857 = vld [vmem:[%s7 + $0xc] sm:$0xf]
    %v2858 = vld [vmem:[%s7 + $0x10] sm:$0xf]
    %v2859 = vld [vmem:[%s7 + $0x14] sm:$0xf]
    %v2860 = vld [vmem:[%s7 + $0x18] sm:$0xf]
    %v2861 = vld [vmem:[%s7 + $0x1c] sm:$0xf]
    %v2862 = vld [vmem:[%s7 + $0x20] sm:$0xf]
    %v2863 = vld [vmem:[%s7 + $0x24] sm:$0xf]
    %v2864 = vld [vmem:[%s7 + $0x28] sm:$0xf]
    %v2865 = vld [vmem:[%s7 + $0x2c] sm:$0xf]
    %v2866 = vld [vmem:[%s7 + $0x30] sm:$0xf]
    %v2867 = vld [vmem:[%s7 + $0x34] sm:$0xf]
    %v2868 = vld [vmem:[%s7 + $0x38] sm:$0xf]
    %v2869 = vld [vmem:[%s7 + $0x3c] sm:$0xf]
    %v2870 = vld [vmem:[%s7 + $0x40] sm:$0xf]
    %v2871 = vld [vmem:[%s7 + $0x44] sm:$0xf]
    %v2872 = vld [vmem:[%s7 + $0x48] sm:$0xf]
    %v2873 = vld [vmem:[%s7 + $0x4c] sm:$0xf]
    %v2874 = vld [vmem:[%s7 + $0x50] sm:$0xf]
    %v2875 = vld [vmem:[%s7 + $0x54] sm:$0xf]
    %v2876 = vld [vmem:[%s7 + $0x58] sm:$0xf]
    %v2877 = vld [vmem:[%s7 + $0x5c] sm:$0xf]
    %v2878 = vld [vmem:[%s7 + $0x60] sm:$0xf]
    %v2879 = vld [vmem:[%s7 + $0x64] sm:$0xf]
    %v2880 = vld [vmem:[%s7 + $0x68] sm:$0xf]
    %v2881 = vld [vmem:[%s7 + $0x6c] sm:$0xf]
    %v2882 = vld [vmem:[%s7 + $0x70] sm:$0xf]
    %v2883 = vld [vmem:[%s7 + $0x74] sm:$0xf]
    %v2884 = vld [vmem:[%s7 + $0x78] sm:$0xf]
    %v2885 = vld [vmem:[%s7 + $0x7c] sm:$0xf]
    %v2886 = vld [vmem:[#allocation2] sm:$0x1]
    %v2888 = vlaneseq
    %v2889 = vshrl.u32 %v2888, 7
    %v2890 = vsub.s32 0, %v2889
    %v2891 = vrot.slane %v2886, %v2890
    %v2925 = vunpack.c.l.b16 %v2854
    %v2926 = vunpack.c.l.b16 %v2855
    %v2927 = vunpack.c.l.b16 %v2856
    %v2928 = vunpack.c.l.b16 %v2857
    %v2929 = vunpack.c.l.b16 %v2858
    %v2930 = vunpack.c.l.b16 %v2859
    %v2931 = vunpack.c.l.b16 %v2860
    %v2932 = vunpack.c.l.b16 %v2861
    %v2933 = vunpack.c.l.b16 %v2862
    %v2934 = vunpack.c.l.b16 %v2863
    %v2935 = vunpack.c.l.b16 %v2864
    %v2936 = vunpack.c.l.b16 %v2865
    %v2937 = vunpack.c.l.b16 %v2866
    %v2938 = vunpack.c.l.b16 %v2867
    %v2939 = vunpack.c.l.b16 %v2868
    %v2940 = vunpack.c.l.b16 %v2869
    %v2941 = vunpack.c.l.b16 %v2870
    %v2942 = vunpack.c.l.b16 %v2871
    %v2943 = vunpack.c.l.b16 %v2872
    %v2944 = vunpack.c.l.b16 %v2873
    %v2945 = vunpack.c.l.b16 %v2874
    %v2946 = vunpack.c.l.b16 %v2875
    %v2947 = vunpack.c.l.b16 %v2876
    %v2948 = vunpack.c.l.b16 %v2877
    %v2949 = vunpack.c.l.b16 %v2878
    %v2950 = vunpack.c.l.b16 %v2879
    %v2951 = vunpack.c.l.b16 %v2880
    %v2952 = vunpack.c.l.b16 %v2881
    %v2953 = vunpack.c.l.b16 %v2882
    %v2954 = vunpack.c.l.b16 %v2883
    %v2955 = vunpack.c.l.b16 %v2884
    %v2956 = vunpack.c.l.b16 %v2885
    %v2957 = vpack.c.b16 %v2926, %v2925
    %v2958 = vpack.c.b16 %v2928, %v2927
    %v2959 = vpack.c.b16 %v2930, %v2929
    %v2960 = vpack.c.b16 %v2932, %v2931
    %v2961 = vpack.c.b16 %v2934, %v2933
    %v2962 = vpack.c.b16 %v2936, %v2935
    %v2963 = vpack.c.b16 %v2938, %v2937
    %v2964 = vpack.c.b16 %v2940, %v2939
    %v2965 = vpack.c.b16 %v2942, %v2941
    %v2966 = vpack.c.b16 %v2944, %v2943
    %v2967 = vpack.c.b16 %v2946, %v2945
    %v2968 = vpack.c.b16 %v2948, %v2947
    %v2969 = vpack.c.b16 %v2950, %v2949
    %v2970 = vpack.c.b16 %v2952, %v2951
    %v2971 = vpack.c.b16 %v2954, %v2953
    %v2972 = vpack.c.b16 %v2956, %v2955
    %2989 = vmatprep.subr.bf16.mxu0 0
    %2990 = vmatpush1.bf16.msra.mxu0 %v2964
    %2991 = vmatprep.subr.bf16.mxu0 0
    %2992 = vmatpush1.bf16.msra.mxu0 %v2963
    %2993 = vmatprep.subr.bf16.mxu0 0
    %2994 = vmatpush1.bf16.msra.mxu0 %v2962
    %2995 = vmatprep.subr.bf16.mxu0 0
    %2996 = vmatpush1.bf16.msra.mxu0 %v2961
    %2997 = vmatprep.subr.bf16.mxu0 0
    %2998 = vmatpush1.bf16.msra.mxu0 %v2960
    %2999 = vmatprep.subr.bf16.mxu0 0
    %3000 = vmatpush1.bf16.msra.mxu0 %v2959
    %3001 = vmatprep.subr.bf16.mxu0 0
    %3002 = vmatpush1.bf16.msra.mxu0 %v2958
    %3003 = vmatprep.subr.bf16.mxu0 0
    %3004 = vmatpush1.bf16.msra.mxu0 %v2957
    %3005 = vmatprep.subr.bf16.mxu0 0
    %3006 = vmatpush2.bf16.msra.mxu0 %v2972
    %3007 = vmatprep.subr.bf16.mxu0 0
    %3008 = vmatpush2.bf16.msra.mxu0 %v2971
    %3009 = vmatprep.subr.bf16.mxu0 0
    %3010 = vmatpush2.bf16.msra.mxu0 %v2970
    %3011 = vmatprep.subr.bf16.mxu0 0
    %3012 = vmatpush2.bf16.msra.mxu0 %v2969
    %3013 = vmatprep.subr.bf16.mxu0 0
    %3014 = vmatpush2.bf16.msra.mxu0 %v2968
    %3015 = vmatprep.subr.bf16.mxu0 0
    %3016 = vmatpush2.bf16.msra.mxu0 %v2967
    %3017 = vmatprep.subr.bf16.mxu0 0
    %3018 = vmatpush2.bf16.msra.mxu0 %v2966
    %3019 = vmatprep.subr.bf16.mxu0 0
    %3020 = vmatpush2.bf16.msra.mxu0 %v2965
    %3021 = vmatprep.mubr.bf16.mxu0 %v2853
    %3022 = vmatmul.mubr.bf16.gmra.mxu0 %v2852
    %v3023 = vpop.f32.mrf.mxu0
    %v3024 = vadd.f32 %v2891, %v3023
    %v3025 = vpop.f32.mrf.mxu0
    %v3026 = vpop.f32.mrf.mxu0
    %v3027 = vadd.f32 %v2891, %v3026
    %v3028 = vpop.f32.mrf.mxu0
    %3029 = vdwg.mxu0
    %v3030 = vxor.u32 %v3024, 2147483648
    %v3031 = vxor.u32 %v3027, 2147483648
    %v3032 = vmul.f32 %v3030, 1.442695
    %v3033 = vpow.pop %v3032
    %v3034 = vmul.f32 %v3031, 1.442695
    %v3035 = vpow.pop %v3034
    %v3036 = vadd.f32 %v3033, 1.0
    %v3037 = vadd.f32 %v3035, 1.0
    %v3038 = vrcp.pop %v3036
    %v3039 = vmul.f32 1.0, %v3038
    %v3040 = vrcp.pop %v3037
    %v3041 = vmul.f32 1.0, %v3040
    %vm3042 = vcmask 7168
    %3043 = vst.msk [vmem:[%s15] sm:$0xff] %vm3042, %v3039
    %3044 = vst.msk [vmem:[%s15 + $0x8] sm:$0xff] %vm3042, %v3041
    %v3045 = vld [vmem:[%s9] sm:$0xff]
    %v3046 = vld [vmem:[%s9 + $0x8] sm:$0xff]
    %v3047 = vld [vmem:[%s9 + $0x10] sm:$0xff]
    %v3048 = vld [vmem:[%s9 + $0x18] sm:$0xff]
    %v3049 = vld [vmem:[%s9 + $0x20] sm:$0xff]
    %v3050 = vld [vmem:[%s9 + $0x28] sm:$0xff]
    %v3051 = vld [vmem:[%s9 + $0x30] sm:$0xff]
    %v3052 = vld [vmem:[%s9 + $0x38] sm:$0xff]
    %v3053 = vld [vmem:[%s9 + $0x40] sm:$0xff]
    %v3054 = vld [vmem:[%s9 + $0x48] sm:$0xff]
    %v3055 = vld [vmem:[%s9 + $0x50] sm:$0xff]
    %v3056 = vld [vmem:[%s9 + $0x58] sm:$0xff]
    %v3057 = vld [vmem:[%s9 + $0x60] sm:$0xff]
    %v3058 = vld [vmem:[%s9 + $0x68] sm:$0xff]
    %v3059 = vld [vmem:[%s9 + $0x70] sm:$0xff]
    %v3060 = vld [vmem:[%s9 + $0x78] sm:$0xff]
    %v3061 = vld [vmem:[%s9 + $0x80] sm:$0xff]
    %v3062 = vld [vmem:[%s9 + $0x88] sm:$0xff]
    %v3063 = vld [vmem:[%s9 + $0x90] sm:$0xff]
    %v3064 = vld [vmem:[%s9 + $0x98] sm:$0xff]
    %v3065 = vld [vmem:[%s9 + $0xa0] sm:$0xff]
    %v3066 = vld [vmem:[%s9 + $0xa8] sm:$0xff]
    %v3067 = vld [vmem:[%s9 + $0xb0] sm:$0xff]
    %v3068 = vld [vmem:[%s9 + $0xb8] sm:$0xff]
    %v3069 = vld [vmem:[%s9 + $0xc0] sm:$0xff]
    %v3070 = vld [vmem:[%s9 + $0xc8] sm:$0xff]
    %v3071 = vld [vmem:[%s9 + $0xd0] sm:$0xff]
    %v3072 = vld [vmem:[%s9 + $0xd8] sm:$0xff]
    %v3073 = vld [vmem:[%s9 + $0xe0] sm:$0xff]
    %v3074 = vld [vmem:[%s9 + $0xe8] sm:$0xff]
    %v3075 = vld [vmem:[%s9 + $0xf0] sm:$0xff]
    %v3076 = vld [vmem:[%s9 + $0xf8] sm:$0xff]
    %v3077 = vld [vmem:[%s10] sm:$0xf]
    %v3079 = vlaneseq
    %v3080 = vshrl.u32 %v3079, 7
    %v3081 = vsub.s32 0, %v3080
    %v3082 = vrot.slane %v3077, %v3081
    %v3083 = vlaneseq
    %v3084 = vshrl.u32 %v3083, 7
    %v3085 = vsub.s32 1, %v3084
    %v3086 = vrot.slane %v3077, %v3085
    %v3087 = vlaneseq
    %v3088 = vshrl.u32 %v3087, 7
    %v3089 = vsub.s32 2, %v3088
    %v3090 = vrot.slane %v3077, %v3089
    %v3091 = vlaneseq
    %v3092 = vshrl.u32 %v3091, 7
    %v3093 = vsub.s32 3, %v3092
    %v3094 = vrot.slane %v3077, %v3093
    %v3131 = vunpack.c.l.b16 %v3045
    %v3132 = vunpack.c.h.b16 %v3045
    %v3133 = vunpack.c.l.b16 %v3046
    %v3134 = vunpack.c.h.b16 %v3046
    %v3135 = vunpack.c.l.b16 %v3047
    %v3136 = vunpack.c.h.b16 %v3047
    %v3137 = vunpack.c.l.b16 %v3048
    %v3138 = vunpack.c.h.b16 %v3048
    %v3139 = vunpack.c.l.b16 %v3049
    %v3140 = vunpack.c.h.b16 %v3049
    %v3141 = vunpack.c.l.b16 %v3050
    %v3142 = vunpack.c.h.b16 %v3050
    %v3143 = vunpack.c.l.b16 %v3051
    %v3144 = vunpack.c.h.b16 %v3051
    %v3145 = vunpack.c.l.b16 %v3052
    %v3146 = vunpack.c.h.b16 %v3052
    %v3147 = vunpack.c.l.b16 %v3053
    %v3148 = vunpack.c.h.b16 %v3053
    %v3149 = vunpack.c.l.b16 %v3054
    %v3150 = vunpack.c.h.b16 %v3054
    %v3151 = vunpack.c.l.b16 %v3055
    %v3152 = vunpack.c.h.b16 %v3055
    %v3153 = vunpack.c.l.b16 %v3056
    %v3154 = vunpack.c.h.b16 %v3056
    %v3155 = vunpack.c.l.b16 %v3057
    %v3156 = vunpack.c.h.b16 %v3057
    %v3157 = vunpack.c.l.b16 %v3058
    %v3158 = vunpack.c.h.b16 %v3058
    %v3159 = vunpack.c.l.b16 %v3059
    %v3160 = vunpack.c.h.b16 %v3059
    %v3161 = vunpack.c.l.b16 %v3060
    %v3162 = vunpack.c.h.b16 %v3060
    %v3163 = vunpack.c.l.b16 %v3061
    %v3164 = vunpack.c.h.b16 %v3061
    %v3165 = vunpack.c.l.b16 %v3062
    %v3166 = vunpack.c.h.b16 %v3062
    %v3167 = vunpack.c.l.b16 %v3063
    %v3168 = vunpack.c.h.b16 %v3063
    %v3169 = vunpack.c.l.b16 %v3064
    %v3170 = vunpack.c.h.b16 %v3064
    %v3171 = vunpack.c.l.b16 %v3065
    %v3172 = vunpack.c.h.b16 %v3065
    %v3173 = vunpack.c.l.b16 %v3066
    %v3174 = vunpack.c.h.b16 %v3066
    %v3175 = vunpack.c.l.b16 %v3067
    %v3176 = vunpack.c.h.b16 %v3067
    %v3177 = vunpack.c.l.b16 %v3068
    %v3178 = vunpack.c.h.b16 %v3068
    %v3179 = vunpack.c.l.b16 %v3069
    %v3180 = vunpack.c.h.b16 %v3069
    %v3181 = vunpack.c.l.b16 %v3070
    %v3182 = vunpack.c.h.b16 %v3070
    %v3183 = vunpack.c.l.b16 %v3071
    %v3184 = vunpack.c.h.b16 %v3071
    %v3185 = vunpack.c.l.b16 %v3072
    %v3186 = vunpack.c.h.b16 %v3072
    %v3187 = vunpack.c.l.b16 %v3073
    %v3188 = vunpack.c.h.b16 %v3073
    %v3189 = vunpack.c.l.b16 %v3074
    %v3190 = vunpack.c.h.b16 %v3074
    %v3191 = vunpack.c.l.b16 %v3075
    %v3192 = vunpack.c.h.b16 %v3075
    %v3193 = vunpack.c.l.b16 %v3076
    %v3194 = vunpack.c.h.b16 %v3076
    %v3195 = vpack.c.b16 %v3135, %v3131
    %v3196 = vpack.c.b16 %v3136, %v3132
    %v3197 = vpack.c.b16 %v3137, %v3133
    %v3198 = vpack.c.b16 %v3138, %v3134
    %v3199 = vpack.c.b16 %v3143, %v3139
    %v3200 = vpack.c.b16 %v3144, %v3140
    %v3201 = vpack.c.b16 %v3145, %v3141
    %v3202 = vpack.c.b16 %v3146, %v3142
    %v3203 = vpack.c.b16 %v3151, %v3147
    %v3204 = vpack.c.b16 %v3152, %v3148
    %v3205 = vpack.c.b16 %v3153, %v3149
    %v3206 = vpack.c.b16 %v3154, %v3150
    %v3207 = vpack.c.b16 %v3159, %v3155
    %v3208 = vpack.c.b16 %v3160, %v3156
    %v3209 = vpack.c.b16 %v3161, %v3157
    %v3210 = vpack.c.b16 %v3162, %v3158
    %v3211 = vpack.c.b16 %v3167, %v3163
    %v3212 = vpack.c.b16 %v3168, %v3164
    %v3213 = vpack.c.b16 %v3169, %v3165
    %v3214 = vpack.c.b16 %v3170, %v3166
    %v3215 = vpack.c.b16 %v3175, %v3171
    %v3216 = vpack.c.b16 %v3176, %v3172
    %v3217 = vpack.c.b16 %v3177, %v3173
    %v3218 = vpack.c.b16 %v3178, %v3174
    %v3219 = vpack.c.b16 %v3183, %v3179
    %v3220 = vpack.c.b16 %v3184, %v3180
    %v3221 = vpack.c.b16 %v3185, %v3181
    %v3222 = vpack.c.b16 %v3186, %v3182
    %v3223 = vpack.c.b16 %v3191, %v3187
    %v3224 = vpack.c.b16 %v3192, %v3188
    %v3225 = vpack.c.b16 %v3193, %v3189
    %v3226 = vpack.c.b16 %v3194, %v3190
    %3259 = vmatprep.subr.bf16.mxu0 %v3224
    %3260 = vmatpush1.bf16.msra.mxu0 %v3223
    %3261 = vmatprep.subr.bf16.mxu0 %v3220
    %3262 = vmatpush1.bf16.msra.mxu0 %v3219
    %3263 = vmatprep.subr.bf16.mxu0 %v3216
    %3264 = vmatpush1.bf16.msra.mxu0 %v3215
    %3265 = vmatprep.subr.bf16.mxu0 %v3212
    %3266 = vmatpush1.bf16.msra.mxu0 %v3211
    %3267 = vmatprep.subr.bf16.mxu0 %v3208
    %3268 = vmatpush1.bf16.msra.mxu0 %v3207
    %3269 = vmatprep.subr.bf16.mxu0 %v3204
    %3270 = vmatpush1.bf16.msra.mxu0 %v3203
    %3271 = vmatprep.subr.bf16.mxu0 %v3200
    %3272 = vmatpush1.bf16.msra.mxu0 %v3199
    %3273 = vmatprep.subr.bf16.mxu0 %v3196
    %3274 = vmatpush1.bf16.msra.mxu0 %v3195
    %3275 = vmatprep.subr.bf16.mxu0 0
    %3276 = vmatpush2.bf16.msra.mxu0 0
    %3277 = vmatprep.subr.bf16.mxu0 0
    %3278 = vmatpush2.bf16.msra.mxu0 0
    %3279 = vmatprep.subr.bf16.mxu0 0
    %3280 = vmatpush2.bf16.msra.mxu0 0
    %3281 = vmatprep.subr.bf16.mxu0 0
    %3282 = vmatpush2.bf16.msra.mxu0 0
    %3283 = vmatprep.subr.bf16.mxu0 0
    %3284 = vmatpush2.bf16.msra.mxu0 0
    %3285 = vmatprep.subr.bf16.mxu0 0
    %3286 = vmatpush2.bf16.msra.mxu0 0
    %3287 = vmatprep.subr.bf16.mxu0 0
    %3288 = vmatpush2.bf16.msra.mxu0 0
    %3289 = vmatprep.subr.bf16.mxu0 0
    %3290 = vmatpush2.bf16.msra.mxu0 0
    %3291 = vmatprep.mubr.bf16.mxu0 0
    %3292 = vmatmul.mubr.bf16.gmra.mxu0 %v2053
    %v3293 = vpop.f32.mrf.mxu0
    %v3294 = vadd.f32 %v3082, %v3293
    %v3295 = vpop.f32.mrf.mxu0
    %v3296 = vadd.f32 %v3086, %v3295
    %v3297 = vpop.f32.mrf.mxu0
    %v3298 = vadd.f32 %v3082, %v3297
    %v3299 = vpop.f32.mrf.mxu0
    %v3300 = vadd.f32 %v3086, %v3299
    %3301 = vdwg.mxu0
    %3302 = vmatprep.subr.bf16.mxu0 %v3226
    %3303 = vmatpush1.bf16.msra.mxu0 %v3225
    %3304 = vmatprep.subr.bf16.mxu0 %v3222
    %3305 = vmatpush1.bf16.msra.mxu0 %v3221
    %3306 = vmatprep.subr.bf16.mxu0 %v3218
    %3307 = vmatpush1.bf16.msra.mxu0 %v3217
    %3308 = vmatprep.subr.bf16.mxu0 %v3214
    %3309 = vmatpush1.bf16.msra.mxu0 %v3213
    %3310 = vmatprep.subr.bf16.mxu0 %v3210
    %3311 = vmatpush1.bf16.msra.mxu0 %v3209
    %3312 = vmatprep.subr.bf16.mxu0 %v3206
    %3313 = vmatpush1.bf16.msra.mxu0 %v3205
    %3314 = vmatprep.subr.bf16.mxu0 %v3202
    %3315 = vmatpush1.bf16.msra.mxu0 %v3201
    %3316 = vmatprep.subr.bf16.mxu0 %v3198
    %3317 = vmatpush1.bf16.msra.mxu0 %v3197
    %3318 = vmatprep.subr.bf16.mxu0 0
    %3319 = vmatpush2.bf16.msra.mxu0 0
    %3320 = vmatprep.subr.bf16.mxu0 0
    %3321 = vmatpush2.bf16.msra.mxu0 0
    %3322 = vmatprep.subr.bf16.mxu0 0
    %3323 = vmatpush2.bf16.msra.mxu0 0
    %3324 = vmatprep.subr.bf16.mxu0 0
    %3325 = vmatpush2.bf16.msra.mxu0 0
    %3326 = vmatprep.subr.bf16.mxu0 0
    %3327 = vmatpush2.bf16.msra.mxu0 0
    %3328 = vmatprep.subr.bf16.mxu0 0
    %3329 = vmatpush2.bf16.msra.mxu0 0
    %3330 = vmatprep.subr.bf16.mxu0 0
    %3331 = vmatpush2.bf16.msra.mxu0 0
    %3332 = vmatprep.subr.bf16.mxu0 0
    %3333 = vmatpush2.bf16.msra.mxu0 0
    %3334 = vmatprep.mubr.bf16.mxu0 0
    %3335 = vmatmul.mubr.bf16.gmra.mxu0 %v2053
    %v3336 = vpop.f32.mrf.mxu0
    %v3337 = vadd.f32 %v3090, %v3336
    %v3338 = vpop.f32.mrf.mxu0
    %v3339 = vadd.f32 %v3094, %v3338
    %v3340 = vpop.f32.mrf.mxu0
    %v3341 = vadd.f32 %v3090, %v3340
    %v3342 = vpop.f32.mrf.mxu0
    %v3343 = vadd.f32 %v3094, %v3342
    %3344 = vdwg.mxu0
    %v3345 = vmax.f32 %v3294, 0.0
    %v3346 = vmax.f32 %v3296, 0.0
    %v3347 = vmax.f32 %v3337, 0.0
    %v3348 = vmax.f32 %v3339, 0.0
    %v3349 = vmax.f32 %v3298, 0.0
    %v3350 = vmax.f32 %v3300, 0.0
    %v3351 = vmax.f32 %v3341, 0.0
    %v3352 = vmax.f32 %v3343, 0.0
    %v3353 = vpack.c.bf16 %v3349, %v3345
    %v3354 = vpack.c.bf16 %v3350, %v3346
    %v3355 = vpack.c.bf16 %v3351, %v3347
    %v3356 = vpack.c.bf16 %v3352, %v3348
    %v3357 = vld [vmem:[%s11] sm:$0xff]
    %v3358 = vld [vmem:[%s11 + $0x8] sm:$0xff]
    %v3359 = vld [vmem:[%s11 + $0x10] sm:$0xff]
    %v3360 = vld [vmem:[%s11 + $0x18] sm:$0xff]
    %v3361 = vld [vmem:[%s11 + $0x20] sm:$0xff]
    %v3362 = vld [vmem:[%s11 + $0x28] sm:$0xff]
    %v3363 = vld [vmem:[%s11 + $0x30] sm:$0xff]
    %v3364 = vld [vmem:[%s11 + $0x38] sm:$0xff]
    %v3365 = vld [vmem:[%s11 + $0x40] sm:$0xff]
    %v3366 = vld [vmem:[%s11 + $0x48] sm:$0xff]
    %v3367 = vld [vmem:[%s11 + $0x50] sm:$0xff]
    %v3368 = vld [vmem:[%s11 + $0x58] sm:$0xff]
    %v3369 = vld [vmem:[%s11 + $0x60] sm:$0xff]
    %v3370 = vld [vmem:[%s11 + $0x68] sm:$0xff]
    %v3371 = vld [vmem:[%s11 + $0x70] sm:$0xff]
    %v3372 = vld [vmem:[%s11 + $0x78] sm:$0xff]
    %v3373 = vld [vmem:[%s11 + $0x80] sm:$0xff]
    %v3374 = vld [vmem:[%s11 + $0x88] sm:$0xff]
    %v3375 = vld [vmem:[%s11 + $0x90] sm:$0xff]
    %v3376 = vld [vmem:[%s11 + $0x98] sm:$0xff]
    %v3377 = vld [vmem:[%s11 + $0xa0] sm:$0xff]
    %v3378 = vld [vmem:[%s11 + $0xa8] sm:$0xff]
    %v3379 = vld [vmem:[%s11 + $0xb0] sm:$0xff]
    %v3380 = vld [vmem:[%s11 + $0xb8] sm:$0xff]
    %v3381 = vld [vmem:[%s11 + $0xc0] sm:$0xff]
    %v3382 = vld [vmem:[%s11 + $0xc8] sm:$0xff]
    %v3383 = vld [vmem:[%s11 + $0xd0] sm:$0xff]
    %v3384 = vld [vmem:[%s11 + $0xd8] sm:$0xff]
    %v3385 = vld [vmem:[%s11 + $0xe0] sm:$0xff]
    %v3386 = vld [vmem:[%s11 + $0xe8] sm:$0xff]
    %v3387 = vld [vmem:[%s11 + $0xf0] sm:$0xff]
    %v3388 = vld [vmem:[%s11 + $0xf8] sm:$0xff]
    %v3389 = vld [vmem:[%s11 + $0x100] sm:$0xff]
    %v3390 = vld [vmem:[%s11 + $0x108] sm:$0xff]
    %v3391 = vld [vmem:[%s11 + $0x110] sm:$0xff]
    %v3392 = vld [vmem:[%s11 + $0x118] sm:$0xff]
    %v3393 = vld [vmem:[%s11 + $0x120] sm:$0xff]
    %v3394 = vld [vmem:[%s11 + $0x128] sm:$0xff]
    %v3395 = vld [vmem:[%s11 + $0x130] sm:$0xff]
    %v3396 = vld [vmem:[%s11 + $0x138] sm:$0xff]
    %v3397 = vld [vmem:[%s11 + $0x140] sm:$0xff]
    %v3398 = vld [vmem:[%s11 + $0x148] sm:$0xff]
    %v3399 = vld [vmem:[%s11 + $0x150] sm:$0xff]
    %v3400 = vld [vmem:[%s11 + $0x158] sm:$0xff]
    %v3401 = vld [vmem:[%s11 + $0x160] sm:$0xff]
    %v3402 = vld [vmem:[%s11 + $0x168] sm:$0xff]
    %v3403 = vld [vmem:[%s11 + $0x170] sm:$0xff]
    %v3404 = vld [vmem:[%s11 + $0x178] sm:$0xff]
    %v3405 = vld [vmem:[%s11 + $0x180] sm:$0xff]
    %v3406 = vld [vmem:[%s11 + $0x188] sm:$0xff]
    %v3407 = vld [vmem:[%s11 + $0x190] sm:$0xff]
    %v3408 = vld [vmem:[%s11 + $0x198] sm:$0xff]
    %v3409 = vld [vmem:[%s11 + $0x1a0] sm:$0xff]
    %v3410 = vld [vmem:[%s11 + $0x1a8] sm:$0xff]
    %v3411 = vld [vmem:[%s11 + $0x1b0] sm:$0xff]
    %v3412 = vld [vmem:[%s11 + $0x1b8] sm:$0xff]
    %v3413 = vld [vmem:[%s11 + $0x1c0] sm:$0xff]
    %v3414 = vld [vmem:[%s11 + $0x1c8] sm:$0xff]
    %v3415 = vld [vmem:[%s11 + $0x1d0] sm:$0xff]
    %v3416 = vld [vmem:[%s11 + $0x1d8] sm:$0xff]
    %v3417 = vld [vmem:[%s11 + $0x1e0] sm:$0xff]
    %v3418 = vld [vmem:[%s11 + $0x1e8] sm:$0xff]
    %v3419 = vld [vmem:[%s11 + $0x1f0] sm:$0xff]
    %v3420 = vld [vmem:[%s11 + $0x1f8] sm:$0xff]
    %v3421 = vld [vmem:[%s11 + $0x200] sm:$0xff]
    %v3422 = vld [vmem:[%s11 + $0x208] sm:$0xff]
    %v3423 = vld [vmem:[%s11 + $0x210] sm:$0xff]
    %v3424 = vld [vmem:[%s11 + $0x218] sm:$0xff]
    %v3425 = vld [vmem:[%s11 + $0x220] sm:$0xff]
    %v3426 = vld [vmem:[%s11 + $0x228] sm:$0xff]
    %v3427 = vld [vmem:[%s11 + $0x230] sm:$0xff]
    %v3428 = vld [vmem:[%s11 + $0x238] sm:$0xff]
    %v3429 = vld [vmem:[%s11 + $0x240] sm:$0xff]
    %v3430 = vld [vmem:[%s11 + $0x248] sm:$0xff]
    %v3431 = vld [vmem:[%s11 + $0x250] sm:$0xff]
    %v3432 = vld [vmem:[%s11 + $0x258] sm:$0xff]
    %v3433 = vld [vmem:[%s11 + $0x260] sm:$0xff]
    %v3434 = vld [vmem:[%s11 + $0x268] sm:$0xff]
    %v3435 = vld [vmem:[%s11 + $0x270] sm:$0xff]
    %v3436 = vld [vmem:[%s11 + $0x278] sm:$0xff]
    %v3437 = vld [vmem:[%s11 + $0x280] sm:$0xff]
    %v3438 = vld [vmem:[%s11 + $0x288] sm:$0xff]
    %v3439 = vld [vmem:[%s11 + $0x290] sm:$0xff]
    %v3440 = vld [vmem:[%s11 + $0x298] sm:$0xff]
    %v3441 = vld [vmem:[%s11 + $0x2a0] sm:$0xff]
    %v3442 = vld [vmem:[%s11 + $0x2a8] sm:$0xff]
    %v3443 = vld [vmem:[%s11 + $0x2b0] sm:$0xff]
    %v3444 = vld [vmem:[%s11 + $0x2b8] sm:$0xff]
    %v3445 = vld [vmem:[%s11 + $0x2c0] sm:$0xff]
    %v3446 = vld [vmem:[%s11 + $0x2c8] sm:$0xff]
    %v3447 = vld [vmem:[%s11 + $0x2d0] sm:$0xff]
    %v3448 = vld [vmem:[%s11 + $0x2d8] sm:$0xff]
    %v3449 = vld [vmem:[%s11 + $0x2e0] sm:$0xff]
    %v3450 = vld [vmem:[%s11 + $0x2e8] sm:$0xff]
    %v3451 = vld [vmem:[%s11 + $0x2f0] sm:$0xff]
    %v3452 = vld [vmem:[%s11 + $0x2f8] sm:$0xff]
    %v3453 = vld [vmem:[%s11 + $0x300] sm:$0xff]
    %v3454 = vld [vmem:[%s11 + $0x308] sm:$0xff]
    %v3455 = vld [vmem:[%s11 + $0x310] sm:$0xff]
    %v3456 = vld [vmem:[%s11 + $0x318] sm:$0xff]
    %v3457 = vld [vmem:[%s11 + $0x320] sm:$0xff]
    %v3458 = vld [vmem:[%s11 + $0x328] sm:$0xff]
    %v3459 = vld [vmem:[%s11 + $0x330] sm:$0xff]
    %v3460 = vld [vmem:[%s11 + $0x338] sm:$0xff]
    %v3461 = vld [vmem:[%s11 + $0x340] sm:$0xff]
    %v3462 = vld [vmem:[%s11 + $0x348] sm:$0xff]
    %v3463 = vld [vmem:[%s11 + $0x350] sm:$0xff]
    %v3464 = vld [vmem:[%s11 + $0x358] sm:$0xff]
    %v3465 = vld [vmem:[%s11 + $0x360] sm:$0xff]
    %v3466 = vld [vmem:[%s11 + $0x368] sm:$0xff]
    %v3467 = vld [vmem:[%s11 + $0x370] sm:$0xff]
    %v3468 = vld [vmem:[%s11 + $0x378] sm:$0xff]
    %v3469 = vld [vmem:[%s11 + $0x380] sm:$0xff]
    %v3470 = vld [vmem:[%s11 + $0x388] sm:$0xff]
    %v3471 = vld [vmem:[%s11 + $0x390] sm:$0xff]
    %v3472 = vld [vmem:[%s11 + $0x398] sm:$0xff]
    %v3473 = vld [vmem:[%s11 + $0x3a0] sm:$0xff]
    %v3474 = vld [vmem:[%s11 + $0x3a8] sm:$0xff]
    %v3475 = vld [vmem:[%s11 + $0x3b0] sm:$0xff]
    %v3476 = vld [vmem:[%s11 + $0x3b8] sm:$0xff]
    %v3477 = vld [vmem:[%s11 + $0x3c0] sm:$0xff]
    %v3478 = vld [vmem:[%s11 + $0x3c8] sm:$0xff]
    %v3479 = vld [vmem:[%s11 + $0x3d0] sm:$0xff]
    %v3480 = vld [vmem:[%s11 + $0x3d8] sm:$0xff]
    %v3481 = vld [vmem:[%s11 + $0x3e0] sm:$0xff]
    %v3482 = vld [vmem:[%s11 + $0x3e8] sm:$0xff]
    %v3483 = vld [vmem:[%s11 + $0x3f0] sm:$0xff]
    %v3484 = vld [vmem:[%s11 + $0x3f8] sm:$0xff]
    %v3485 = vld [vmem:[%s12] sm:$0xf]
    %v3487 = vlaneseq
    %v3488 = vshrl.u32 %v3487, 7
    %v3489 = vsub.s32 0, %v3488
    %v3490 = vrot.slane %v3485, %v3489
    %v3491 = vlaneseq
    %v3492 = vshrl.u32 %v3491, 7
    %v3493 = vsub.s32 1, %v3492
    %v3494 = vrot.slane %v3485, %v3493
    %v3495 = vlaneseq
    %v3496 = vshrl.u32 %v3495, 7
    %v3497 = vsub.s32 2, %v3496
    %v3498 = vrot.slane %v3485, %v3497
    %v3499 = vlaneseq
    %v3500 = vshrl.u32 %v3499, 7
    %v3501 = vsub.s32 3, %v3500
    %v3502 = vrot.slane %v3485, %v3501
    %v3635 = vunpack.c.l.b16 %v3357
    %v3636 = vunpack.c.h.b16 %v3357
    %v3637 = vunpack.c.l.b16 %v3358
    %v3638 = vunpack.c.h.b16 %v3358
    %v3639 = vunpack.c.l.b16 %v3359
    %v3640 = vunpack.c.h.b16 %v3359
    %v3641 = vunpack.c.l.b16 %v3360
    %v3642 = vunpack.c.h.b16 %v3360
    %v3643 = vunpack.c.l.b16 %v3361
    %v3644 = vunpack.c.h.b16 %v3361
    %v3645 = vunpack.c.l.b16 %v3362
    %v3646 = vunpack.c.h.b16 %v3362
    %v3647 = vunpack.c.l.b16 %v3363
    %v3648 = vunpack.c.h.b16 %v3363
    %v3649 = vunpack.c.l.b16 %v3364
    %v3650 = vunpack.c.h.b16 %v3364
    %v3651 = vunpack.c.l.b16 %v3365
    %v3652 = vunpack.c.h.b16 %v3365
    %v3653 = vunpack.c.l.b16 %v3366
    %v3654 = vunpack.c.h.b16 %v3366
    %v3655 = vunpack.c.l.b16 %v3367
    %v3656 = vunpack.c.h.b16 %v3367
    %v3657 = vunpack.c.l.b16 %v3368
    %v3658 = vunpack.c.h.b16 %v3368
    %v3659 = vunpack.c.l.b16 %v3369
    %v3660 = vunpack.c.h.b16 %v3369
    %v3661 = vunpack.c.l.b16 %v3370
    %v3662 = vunpack.c.h.b16 %v3370
    %v3663 = vunpack.c.l.b16 %v3371
    %v3664 = vunpack.c.h.b16 %v3371
    %v3665 = vunpack.c.l.b16 %v3372
    %v3666 = vunpack.c.h.b16 %v3372
    %v3667 = vunpack.c.l.b16 %v3373
    %v3668 = vunpack.c.h.b16 %v3373
    %v3669 = vunpack.c.l.b16 %v3374
    %v3670 = vunpack.c.h.b16 %v3374
    %v3671 = vunpack.c.l.b16 %v3375
    %v3672 = vunpack.c.h.b16 %v3375
    %v3673 = vunpack.c.l.b16 %v3376
    %v3674 = vunpack.c.h.b16 %v3376
    %v3675 = vunpack.c.l.b16 %v3377
    %v3676 = vunpack.c.h.b16 %v3377
    %v3677 = vunpack.c.l.b16 %v3378
    %v3678 = vunpack.c.h.b16 %v3378
    %v3679 = vunpack.c.l.b16 %v3379
    %v3680 = vunpack.c.h.b16 %v3379
    %v3681 = vunpack.c.l.b16 %v3380
    %v3682 = vunpack.c.h.b16 %v3380
    %v3683 = vunpack.c.l.b16 %v3381
    %v3684 = vunpack.c.h.b16 %v3381
    %v3685 = vunpack.c.l.b16 %v3382
    %v3686 = vunpack.c.h.b16 %v3382
    %v3687 = vunpack.c.l.b16 %v3383
    %v3688 = vunpack.c.h.b16 %v3383
    %v3689 = vunpack.c.l.b16 %v3384
    %v3690 = vunpack.c.h.b16 %v3384
    %v3691 = vunpack.c.l.b16 %v3385
    %v3692 = vunpack.c.h.b16 %v3385
    %v3693 = vunpack.c.l.b16 %v3386
    %v3694 = vunpack.c.h.b16 %v3386
    %v3695 = vunpack.c.l.b16 %v3387
    %v3696 = vunpack.c.h.b16 %v3387
    %v3697 = vunpack.c.l.b16 %v3388
    %v3698 = vunpack.c.h.b16 %v3388
    %v3699 = vunpack.c.l.b16 %v3389
    %v3700 = vunpack.c.h.b16 %v3389
    %v3701 = vunpack.c.l.b16 %v3390
    %v3702 = vunpack.c.h.b16 %v3390
    %v3703 = vunpack.c.l.b16 %v3391
    %v3704 = vunpack.c.h.b16 %v3391
    %v3705 = vunpack.c.l.b16 %v3392
    %v3706 = vunpack.c.h.b16 %v3392
    %v3707 = vunpack.c.l.b16 %v3393
    %v3708 = vunpack.c.h.b16 %v3393
    %v3709 = vunpack.c.l.b16 %v3394
    %v3710 = vunpack.c.h.b16 %v3394
    %v3711 = vunpack.c.l.b16 %v3395
    %v3712 = vunpack.c.h.b16 %v3395
    %v3713 = vunpack.c.l.b16 %v3396
    %v3714 = vunpack.c.h.b16 %v3396
    %v3715 = vunpack.c.l.b16 %v3397
    %v3716 = vunpack.c.h.b16 %v3397
    %v3717 = vunpack.c.l.b16 %v3398
    %v3718 = vunpack.c.h.b16 %v3398
    %v3719 = vunpack.c.l.b16 %v3399
    %v3720 = vunpack.c.h.b16 %v3399
    %v3721 = vunpack.c.l.b16 %v3400
    %v3722 = vunpack.c.h.b16 %v3400
    %v3723 = vunpack.c.l.b16 %v3401
    %v3724 = vunpack.c.h.b16 %v3401
    %v3725 = vunpack.c.l.b16 %v3402
    %v3726 = vunpack.c.h.b16 %v3402
    %v3727 = vunpack.c.l.b16 %v3403
    %v3728 = vunpack.c.h.b16 %v3403
    %v3729 = vunpack.c.l.b16 %v3404
    %v3730 = vunpack.c.h.b16 %v3404
    %v3731 = vunpack.c.l.b16 %v3405
    %v3732 = vunpack.c.h.b16 %v3405
    %v3733 = vunpack.c.l.b16 %v3406
    %v3734 = vunpack.c.h.b16 %v3406
    %v3735 = vunpack.c.l.b16 %v3407
    %v3736 = vunpack.c.h.b16 %v3407
    %v3737 = vunpack.c.l.b16 %v3408
    %v3738 = vunpack.c.h.b16 %v3408
    %v3739 = vunpack.c.l.b16 %v3409
    %v3740 = vunpack.c.h.b16 %v3409
    %v3741 = vunpack.c.l.b16 %v3410
    %v3742 = vunpack.c.h.b16 %v3410
    %v3743 = vunpack.c.l.b16 %v3411
    %v3744 = vunpack.c.h.b16 %v3411
    %v3745 = vunpack.c.l.b16 %v3412
    %v3746 = vunpack.c.h.b16 %v3412
    %v3747 = vunpack.c.l.b16 %v3413
    %v3748 = vunpack.c.h.b16 %v3413
    %v3749 = vunpack.c.l.b16 %v3414
    %v3750 = vunpack.c.h.b16 %v3414
    %v3751 = vunpack.c.l.b16 %v3415
    %v3752 = vunpack.c.h.b16 %v3415
    %v3753 = vunpack.c.l.b16 %v3416
    %v3754 = vunpack.c.h.b16 %v3416
    %v3755 = vunpack.c.l.b16 %v3417
    %v3756 = vunpack.c.h.b16 %v3417
    %v3757 = vunpack.c.l.b16 %v3418
    %v3758 = vunpack.c.h.b16 %v3418
    %v3759 = vunpack.c.l.b16 %v3419
    %v3760 = vunpack.c.h.b16 %v3419
    %v3761 = vunpack.c.l.b16 %v3420
    %v3762 = vunpack.c.h.b16 %v3420
    %v3763 = vunpack.c.l.b16 %v3421
    %v3764 = vunpack.c.h.b16 %v3421
    %v3765 = vunpack.c.l.b16 %v3422
    %v3766 = vunpack.c.h.b16 %v3422
    %v3767 = vunpack.c.l.b16 %v3423
    %v3768 = vunpack.c.h.b16 %v3423
    %v3769 = vunpack.c.l.b16 %v3424
    %v3770 = vunpack.c.h.b16 %v3424
    %v3771 = vunpack.c.l.b16 %v3425
    %v3772 = vunpack.c.h.b16 %v3425
    %v3773 = vunpack.c.l.b16 %v3426
    %v3774 = vunpack.c.h.b16 %v3426
    %v3775 = vunpack.c.l.b16 %v3427
    %v3776 = vunpack.c.h.b16 %v3427
    %v3777 = vunpack.c.l.b16 %v3428
    %v3778 = vunpack.c.h.b16 %v3428
    %v3779 = vunpack.c.l.b16 %v3429
    %v3780 = vunpack.c.h.b16 %v3429
    %v3781 = vunpack.c.l.b16 %v3430
    %v3782 = vunpack.c.h.b16 %v3430
    %v3783 = vunpack.c.l.b16 %v3431
    %v3784 = vunpack.c.h.b16 %v3431
    %v3785 = vunpack.c.l.b16 %v3432
    %v3786 = vunpack.c.h.b16 %v3432
    %v3787 = vunpack.c.l.b16 %v3433
    %v3788 = vunpack.c.h.b16 %v3433
    %v3789 = vunpack.c.l.b16 %v3434
    %v3790 = vunpack.c.h.b16 %v3434
    %v3791 = vunpack.c.l.b16 %v3435
    %v3792 = vunpack.c.h.b16 %v3435
    %v3793 = vunpack.c.l.b16 %v3436
    %v3794 = vunpack.c.h.b16 %v3436
    %v3795 = vunpack.c.l.b16 %v3437
    %v3796 = vunpack.c.h.b16 %v3437
    %v3797 = vunpack.c.l.b16 %v3438
    %v3798 = vunpack.c.h.b16 %v3438
    %v3799 = vunpack.c.l.b16 %v3439
    %v3800 = vunpack.c.h.b16 %v3439
    %v3801 = vunpack.c.l.b16 %v3440
    %v3802 = vunpack.c.h.b16 %v3440
    %v3803 = vunpack.c.l.b16 %v3441
    %v3804 = vunpack.c.h.b16 %v3441
    %v3805 = vunpack.c.l.b16 %v3442
    %v3806 = vunpack.c.h.b16 %v3442
    %v3807 = vunpack.c.l.b16 %v3443
    %v3808 = vunpack.c.h.b16 %v3443
    %v3809 = vunpack.c.l.b16 %v3444
    %v3810 = vunpack.c.h.b16 %v3444
    %v3811 = vunpack.c.l.b16 %v3445
    %v3812 = vunpack.c.h.b16 %v3445
    %v3813 = vunpack.c.l.b16 %v3446
    %v3814 = vunpack.c.h.b16 %v3446
    %v3815 = vunpack.c.l.b16 %v3447
    %v3816 = vunpack.c.h.b16 %v3447
    %v3817 = vunpack.c.l.b16 %v3448
    %v3818 = vunpack.c.h.b16 %v3448
    %v3819 = vunpack.c.l.b16 %v3449
    %v3820 = vunpack.c.h.b16 %v3449
    %v3821 = vunpack.c.l.b16 %v3450
    %v3822 = vunpack.c.h.b16 %v3450
    %v3823 = vunpack.c.l.b16 %v3451
    %v3824 = vunpack.c.h.b16 %v3451
    %v3825 = vunpack.c.l.b16 %v3452
    %v3826 = vunpack.c.h.b16 %v3452
    %v3827 = vunpack.c.l.b16 %v3453
    %v3828 = vunpack.c.h.b16 %v3453
    %v3829 = vunpack.c.l.b16 %v3454
    %v3830 = vunpack.c.h.b16 %v3454
    %v3831 = vunpack.c.l.b16 %v3455
    %v3832 = vunpack.c.h.b16 %v3455
    %v3833 = vunpack.c.l.b16 %v3456
    %v3834 = vunpack.c.h.b16 %v3456
    %v3835 = vunpack.c.l.b16 %v3457
    %v3836 = vunpack.c.h.b16 %v3457
    %v3837 = vunpack.c.l.b16 %v3458
    %v3838 = vunpack.c.h.b16 %v3458
    %v3839 = vunpack.c.l.b16 %v3459
    %v3840 = vunpack.c.h.b16 %v3459
    %v3841 = vunpack.c.l.b16 %v3460
    %v3842 = vunpack.c.h.b16 %v3460
    %v3843 = vunpack.c.l.b16 %v3461
    %v3844 = vunpack.c.h.b16 %v3461
    %v3845 = vunpack.c.l.b16 %v3462
    %v3846 = vunpack.c.h.b16 %v3462
    %v3847 = vunpack.c.l.b16 %v3463
    %v3848 = vunpack.c.h.b16 %v3463
    %v3849 = vunpack.c.l.b16 %v3464
    %v3850 = vunpack.c.h.b16 %v3464
    %v3851 = vunpack.c.l.b16 %v3465
    %v3852 = vunpack.c.h.b16 %v3465
    %v3853 = vunpack.c.l.b16 %v3466
    %v3854 = vunpack.c.h.b16 %v3466
    %v3855 = vunpack.c.l.b16 %v3467
    %v3856 = vunpack.c.h.b16 %v3467
    %v3857 = vunpack.c.l.b16 %v3468
    %v3858 = vunpack.c.h.b16 %v3468
    %v3859 = vunpack.c.l.b16 %v3469
    %v3860 = vunpack.c.h.b16 %v3469
    %v3861 = vunpack.c.l.b16 %v3470
    %v3862 = vunpack.c.h.b16 %v3470
    %v3863 = vunpack.c.l.b16 %v3471
    %v3864 = vunpack.c.h.b16 %v3471
    %v3865 = vunpack.c.l.b16 %v3472
    %v3866 = vunpack.c.h.b16 %v3472
    %v3867 = vunpack.c.l.b16 %v3473
    %v3868 = vunpack.c.h.b16 %v3473
    %v3869 = vunpack.c.l.b16 %v3474
    %v3870 = vunpack.c.h.b16 %v3474
    %v3871 = vunpack.c.l.b16 %v3475
    %v3872 = vunpack.c.h.b16 %v3475
    %v3873 = vunpack.c.l.b16 %v3476
    %v3874 = vunpack.c.h.b16 %v3476
    %v3875 = vunpack.c.l.b16 %v3477
    %v3876 = vunpack.c.h.b16 %v3477
    %v3877 = vunpack.c.l.b16 %v3478
    %v3878 = vunpack.c.h.b16 %v3478
    %v3879 = vunpack.c.l.b16 %v3479
    %v3880 = vunpack.c.h.b16 %v3479
    %v3881 = vunpack.c.l.b16 %v3480
    %v3882 = vunpack.c.h.b16 %v3480
    %v3883 = vunpack.c.l.b16 %v3481
    %v3884 = vunpack.c.h.b16 %v3481
    %v3885 = vunpack.c.l.b16 %v3482
    %v3886 = vunpack.c.h.b16 %v3482
    %v3887 = vunpack.c.l.b16 %v3483
    %v3888 = vunpack.c.h.b16 %v3483
    %v3889 = vunpack.c.l.b16 %v3484
    %v3890 = vunpack.c.h.b16 %v3484
    %v3891 = vpack.c.b16 %v3639, %v3635
    %v3892 = vpack.c.b16 %v3640, %v3636
    %v3893 = vpack.c.b16 %v3641, %v3637
    %v3894 = vpack.c.b16 %v3642, %v3638
    %v3895 = vpack.c.b16 %v3647, %v3643
    %v3896 = vpack.c.b16 %v3648, %v3644
    %v3897 = vpack.c.b16 %v3649, %v3645
    %v3898 = vpack.c.b16 %v3650, %v3646
    %v3899 = vpack.c.b16 %v3655, %v3651
    %v3900 = vpack.c.b16 %v3656, %v3652
    %v3901 = vpack.c.b16 %v3657, %v3653
    %v3902 = vpack.c.b16 %v3658, %v3654
    %v3903 = vpack.c.b16 %v3663, %v3659
    %v3904 = vpack.c.b16 %v3664, %v3660
    %v3905 = vpack.c.b16 %v3665, %v3661
    %v3906 = vpack.c.b16 %v3666, %v3662
    %v3907 = vpack.c.b16 %v3671, %v3667
    %v3908 = vpack.c.b16 %v3672, %v3668
    %v3909 = vpack.c.b16 %v3673, %v3669
    %v3910 = vpack.c.b16 %v3674, %v3670
    %v3911 = vpack.c.b16 %v3679, %v3675
    %v3912 = vpack.c.b16 %v3680, %v3676
    %v3913 = vpack.c.b16 %v3681, %v3677
    %v3914 = vpack.c.b16 %v3682, %v3678
    %v3915 = vpack.c.b16 %v3687, %v3683
    %v3916 = vpack.c.b16 %v3688, %v3684
    %v3917 = vpack.c.b16 %v3689, %v3685
    %v3918 = vpack.c.b16 %v3690, %v3686
    %v3919 = vpack.c.b16 %v3695, %v3691
    %v3920 = vpack.c.b16 %v3696, %v3692
    %v3921 = vpack.c.b16 %v3697, %v3693
    %v3922 = vpack.c.b16 %v3698, %v3694
    %v3923 = vpack.c.b16 %v3703, %v3699
    %v3924 = vpack.c.b16 %v3704, %v3700
    %v3925 = vpack.c.b16 %v3705, %v3701
    %v3926 = vpack.c.b16 %v3706, %v3702
    %v3927 = vpack.c.b16 %v3711, %v3707
    %v3928 = vpack.c.b16 %v3712, %v3708
    %v3929 = vpack.c.b16 %v3713, %v3709
    %v3930 = vpack.c.b16 %v3714, %v3710
    %v3931 = vpack.c.b16 %v3719, %v3715
    %v3932 = vpack.c.b16 %v3720, %v3716
    %v3933 = vpack.c.b16 %v3721, %v3717
    %v3934 = vpack.c.b16 %v3722, %v3718
    %v3935 = vpack.c.b16 %v3727, %v3723
    %v3936 = vpack.c.b16 %v3728, %v3724
    %v3937 = vpack.c.b16 %v3729, %v3725
    %v3938 = vpack.c.b16 %v3730, %v3726
    %v3939 = vpack.c.b16 %v3735, %v3731
    %v3940 = vpack.c.b16 %v3736, %v3732
    %v3941 = vpack.c.b16 %v3737, %v3733
    %v3942 = vpack.c.b16 %v3738, %v3734
    %v3943 = vpack.c.b16 %v3743, %v3739
    %v3944 = vpack.c.b16 %v3744, %v3740
    %v3945 = vpack.c.b16 %v3745, %v3741
    %v3946 = vpack.c.b16 %v3746, %v3742
    %v3947 = vpack.c.b16 %v3751, %v3747
    %v3948 = vpack.c.b16 %v3752, %v3748
    %v3949 = vpack.c.b16 %v3753, %v3749
    %v3950 = vpack.c.b16 %v3754, %v3750
    %v3951 = vpack.c.b16 %v3759, %v3755
    %v3952 = vpack.c.b16 %v3760, %v3756
    %v3953 = vpack.c.b16 %v3761, %v3757
    %v3954 = vpack.c.b16 %v3762, %v3758
    %v3955 = vpack.c.b16 %v3767, %v3763
    %v3956 = vpack.c.b16 %v3768, %v3764
    %v3957 = vpack.c.b16 %v3769, %v3765
    %v3958 = vpack.c.b16 %v3770, %v3766
    %v3959 = vpack.c.b16 %v3775, %v3771
    %v3960 = vpack.c.b16 %v3776, %v3772
    %v3961 = vpack.c.b16 %v3777, %v3773
    %v3962 = vpack.c.b16 %v3778, %v3774
    %v3963 = vpack.c.b16 %v3783, %v3779
    %v3964 = vpack.c.b16 %v3784, %v3780
    %v3965 = vpack.c.b16 %v3785, %v3781
    %v3966 = vpack.c.b16 %v3786, %v3782
    %v3967 = vpack.c.b16 %v3791, %v3787
    %v3968 = vpack.c.b16 %v3792, %v3788
    %v3969 = vpack.c.b16 %v3793, %v3789
    %v3970 = vpack.c.b16 %v3794, %v3790
    %v3971 = vpack.c.b16 %v3799, %v3795
    %v3972 = vpack.c.b16 %v3800, %v3796
    %v3973 = vpack.c.b16 %v3801, %v3797
    %v3974 = vpack.c.b16 %v3802, %v3798
    %v3975 = vpack.c.b16 %v3807, %v3803
    %v3976 = vpack.c.b16 %v3808, %v3804
    %v3977 = vpack.c.b16 %v3809, %v3805
    %v3978 = vpack.c.b16 %v3810, %v3806
    %v3979 = vpack.c.b16 %v3815, %v3811
    %v3980 = vpack.c.b16 %v3816, %v3812
    %v3981 = vpack.c.b16 %v3817, %v3813
    %v3982 = vpack.c.b16 %v3818, %v3814
    %v3983 = vpack.c.b16 %v3823, %v3819
    %v3984 = vpack.c.b16 %v3824, %v3820
    %v3985 = vpack.c.b16 %v3825, %v3821
    %v3986 = vpack.c.b16 %v3826, %v3822
    %v3987 = vpack.c.b16 %v3831, %v3827
    %v3988 = vpack.c.b16 %v3832, %v3828
    %v3989 = vpack.c.b16 %v3833, %v3829
    %v3990 = vpack.c.b16 %v3834, %v3830
    %v3991 = vpack.c.b16 %v3839, %v3835
    %v3992 = vpack.c.b16 %v3840, %v3836
    %v3993 = vpack.c.b16 %v3841, %v3837
    %v3994 = vpack.c.b16 %v3842, %v3838
    %v3995 = vpack.c.b16 %v3847, %v3843
    %v3996 = vpack.c.b16 %v3848, %v3844
    %v3997 = vpack.c.b16 %v3849, %v3845
    %v3998 = vpack.c.b16 %v3850, %v3846
    %v3999 = vpack.c.b16 %v3855, %v3851
    %v4000 = vpack.c.b16 %v3856, %v3852
    %v4001 = vpack.c.b16 %v3857, %v3853
    %v4002 = vpack.c.b16 %v3858, %v3854
    %v4003 = vpack.c.b16 %v3863, %v3859
    %v4004 = vpack.c.b16 %v3864, %v3860
    %v4005 = vpack.c.b16 %v3865, %v3861
    %v4006 = vpack.c.b16 %v3866, %v3862
    %v4007 = vpack.c.b16 %v3871, %v3867
    %v4008 = vpack.c.b16 %v3872, %v3868
    %v4009 = vpack.c.b16 %v3873, %v3869
    %v4010 = vpack.c.b16 %v3874, %v3870
    %v4011 = vpack.c.b16 %v3879, %v3875
    %v4012 = vpack.c.b16 %v3880, %v3876
    %v4013 = vpack.c.b16 %v3881, %v3877
    %v4014 = vpack.c.b16 %v3882, %v3878
    %v4015 = vpack.c.b16 %v3887, %v3883
    %v4016 = vpack.c.b16 %v3888, %v3884
    %v4017 = vpack.c.b16 %v3889, %v3885
    %v4018 = vpack.c.b16 %v3890, %v3886
    %4147 = vmatprep.subr.bf16.mxu0 %v3920
    %4148 = vmatpush1.bf16.msra.mxu0 %v3919
    %4149 = vmatprep.subr.bf16.mxu0 %v3916
    %4150 = vmatpush1.bf16.msra.mxu0 %v3915
    %4151 = vmatprep.subr.bf16.mxu0 %v3912
    %4152 = vmatpush1.bf16.msra.mxu0 %v3911
    %4153 = vmatprep.subr.bf16.mxu0 %v3908
    %4154 = vmatpush1.bf16.msra.mxu0 %v3907
    %4155 = vmatprep.subr.bf16.mxu0 %v3904
    %4156 = vmatpush1.bf16.msra.mxu0 %v3903
    %4157 = vmatprep.subr.bf16.mxu0 %v3900
    %4158 = vmatpush1.bf16.msra.mxu0 %v3899
    %4159 = vmatprep.subr.bf16.mxu0 %v3896
    %4160 = vmatpush1.bf16.msra.mxu0 %v3895
    %4161 = vmatprep.subr.bf16.mxu0 %v3892
    %4162 = vmatpush1.bf16.msra.mxu0 %v3891
    %4163 = vmatprep.subr.bf16.mxu0 %v3952
    %4164 = vmatpush2.bf16.msra.mxu0 %v3951
    %4165 = vmatprep.subr.bf16.mxu0 %v3948
    %4166 = vmatpush2.bf16.msra.mxu0 %v3947
    %4167 = vmatprep.subr.bf16.mxu0 %v3944
    %4168 = vmatpush2.bf16.msra.mxu0 %v3943
    %4169 = vmatprep.subr.bf16.mxu0 %v3940
    %4170 = vmatpush2.bf16.msra.mxu0 %v3939
    %4171 = vmatprep.subr.bf16.mxu0 %v3936
    %4172 = vmatpush2.bf16.msra.mxu0 %v3935
    %4173 = vmatprep.subr.bf16.mxu0 %v3932
    %4174 = vmatpush2.bf16.msra.mxu0 %v3931
    %4175 = vmatprep.subr.bf16.mxu0 %v3928
    %4176 = vmatpush2.bf16.msra.mxu0 %v3927
    %4177 = vmatprep.subr.bf16.mxu0 %v3924
    %4178 = vmatpush2.bf16.msra.mxu0 %v3923
    %4179 = vmatprep.mubr.bf16.mxu0 %v3354
    %4180 = vmatmul.mubr.bf16.gmra.mxu0 %v3353
    %v4181 = vpop.f32.mrf.mxu0
    %v4182 = vadd.f32 %v3490, %v4181
    %v4183 = vpop.f32.mrf.mxu0
    %v4184 = vadd.f32 %v3494, %v4183
    %v4185 = vpop.f32.mrf.mxu0
    %v4186 = vadd.f32 %v3490, %v4185
    %v4187 = vpop.f32.mrf.mxu0
    %v4188 = vadd.f32 %v3494, %v4187
    %4189 = vdwg.mxu0
    %4190 = vmatprep.subr.bf16.mxu0 %v3984
    %4191 = vmatpush1.bf16.msra.mxu0 %v3983
    %4192 = vmatprep.subr.bf16.mxu0 %v3980
    %4193 = vmatpush1.bf16.msra.mxu0 %v3979
    %4194 = vmatprep.subr.bf16.mxu0 %v3976
    %4195 = vmatpush1.bf16.msra.mxu0 %v3975
    %4196 = vmatprep.subr.bf16.mxu0 %v3972
    %4197 = vmatpush1.bf16.msra.mxu0 %v3971
    %4198 = vmatprep.subr.bf16.mxu0 %v3968
    %4199 = vmatpush1.bf16.msra.mxu0 %v3967
    %4200 = vmatprep.subr.bf16.mxu0 %v3964
    %4201 = vmatpush1.bf16.msra.mxu0 %v3963
    %4202 = vmatprep.subr.bf16.mxu0 %v3960
    %4203 = vmatpush1.bf16.msra.mxu0 %v3959
    %4204 = vmatprep.subr.bf16.mxu0 %v3956
    %4205 = vmatpush1.bf16.msra.mxu0 %v3955
    %4206 = vmatprep.subr.bf16.mxu0 %v4016
    %4207 = vmatpush2.bf16.msra.mxu0 %v4015
    %4208 = vmatprep.subr.bf16.mxu0 %v4012
    %4209 = vmatpush2.bf16.msra.mxu0 %v4011
    %4210 = vmatprep.subr.bf16.mxu0 %v4008
    %4211 = vmatpush2.bf16.msra.mxu0 %v4007
    %4212 = vmatprep.subr.bf16.mxu0 %v4004
    %4213 = vmatpush2.bf16.msra.mxu0 %v4003
    %4214 = vmatprep.subr.bf16.mxu0 %v4000
    %4215 = vmatpush2.bf16.msra.mxu0 %v3999
    %4216 = vmatprep.subr.bf16.mxu0 %v3996
    %4217 = vmatpush2.bf16.msra.mxu0 %v3995
    %4218 = vmatprep.subr.bf16.mxu0 %v3992
    %4219 = vmatpush2.bf16.msra.mxu0 %v3991
    %4220 = vmatprep.subr.bf16.mxu0 %v3988
    %4221 = vmatpush2.bf16.msra.mxu0 %v3987
    %4222 = vmatprep.mubr.bf16.mxu0 %v3356
    %4223 = vmatmul.mubr.bf16.gmra.mxu0 %v3355
    %v4224 = vpop.f32.mrf.mxu0
    %v4225 = vadd.f32 %v4182, %v4224
    %v4226 = vpop.f32.mrf.mxu0
    %v4227 = vadd.f32 %v4184, %v4226
    %v4228 = vpop.f32.mrf.mxu0
    %v4229 = vadd.f32 %v4186, %v4228
    %v4230 = vpop.f32.mrf.mxu0
    %v4231 = vadd.f32 %v4188, %v4230
    %4232 = vdwg.mxu0
    %4233 = vmatprep.subr.bf16.mxu0 %v3922
    %4234 = vmatpush1.bf16.msra.mxu0 %v3921
    %4235 = vmatprep.subr.bf16.mxu0 %v3918
    %4236 = vmatpush1.bf16.msra.mxu0 %v3917
    %4237 = vmatprep.subr.bf16.mxu0 %v3914
    %4238 = vmatpush1.bf16.msra.mxu0 %v3913
    %4239 = vmatprep.subr.bf16.mxu0 %v3910
    %4240 = vmatpush1.bf16.msra.mxu0 %v3909
    %4241 = vmatprep.subr.bf16.mxu0 %v3906
    %4242 = vmatpush1.bf16.msra.mxu0 %v3905
    %4243 = vmatprep.subr.bf16.mxu0 %v3902
    %4244 = vmatpush1.bf16.msra.mxu0 %v3901
    %4245 = vmatprep.subr.bf16.mxu0 %v3898
    %4246 = vmatpush1.bf16.msra.mxu0 %v3897
    %4247 = vmatprep.subr.bf16.mxu0 %v3894
    %4248 = vmatpush1.bf16.msra.mxu0 %v3893
    %4249 = vmatprep.subr.bf16.mxu0 %v3954
    %4250 = vmatpush2.bf16.msra.mxu0 %v3953
    %4251 = vmatprep.subr.bf16.mxu0 %v3950
    %4252 = vmatpush2.bf16.msra.mxu0 %v3949
    %4253 = vmatprep.subr.bf16.mxu0 %v3946
    %4254 = vmatpush2.bf16.msra.mxu0 %v3945
    %4255 = vmatprep.subr.bf16.mxu0 %v3942
    %4256 = vmatpush2.bf16.msra.mxu0 %v3941
    %4257 = vmatprep.subr.bf16.mxu0 %v3938
    %4258 = vmatpush2.bf16.msra.mxu0 %v3937
    %4259 = vmatprep.subr.bf16.mxu0 %v3934
    %4260 = vmatpush2.bf16.msra.mxu0 %v3933
    %4261 = vmatprep.subr.bf16.mxu0 %v3930
    %4262 = vmatpush2.bf16.msra.mxu0 %v3929
    %4263 = vmatprep.subr.bf16.mxu0 %v3926
    %4264 = vmatpush2.bf16.msra.mxu0 %v3925
    %4265 = vmatprep.mubr.bf16.mxu0 %v3354
    %4266 = vmatmul.mubr.bf16.gmra.mxu0 %v3353
    %v4267 = vpop.f32.mrf.mxu0
    %v4268 = vadd.f32 %v3498, %v4267
    %v4269 = vpop.f32.mrf.mxu0
    %v4270 = vadd.f32 %v3502, %v4269
    %v4271 = vpop.f32.mrf.mxu0
    %v4272 = vadd.f32 %v3498, %v4271
    %v4273 = vpop.f32.mrf.mxu0
    %v4274 = vadd.f32 %v3502, %v4273
    %4275 = vdwg.mxu0
    %4276 = vmatprep.subr.bf16.mxu0 %v3986
    %4277 = vmatpush1.bf16.msra.mxu0 %v3985
    %4278 = vmatprep.subr.bf16.mxu0 %v3982
    %4279 = vmatpush1.bf16.msra.mxu0 %v3981
    %4280 = vmatprep.subr.bf16.mxu0 %v3978
    %4281 = vmatpush1.bf16.msra.mxu0 %v3977
    %4282 = vmatprep.subr.bf16.mxu0 %v3974
    %4283 = vmatpush1.bf16.msra.mxu0 %v3973
    %4284 = vmatprep.subr.bf16.mxu0 %v3970
    %4285 = vmatpush1.bf16.msra.mxu0 %v3969
    %4286 = vmatprep.subr.bf16.mxu0 %v3966
    %4287 = vmatpush1.bf16.msra.mxu0 %v3965
    %4288 = vmatprep.subr.bf16.mxu0 %v3962
    %4289 = vmatpush1.bf16.msra.mxu0 %v3961
    %4290 = vmatprep.subr.bf16.mxu0 %v3958
    %4291 = vmatpush1.bf16.msra.mxu0 %v3957
    %4292 = vmatprep.subr.bf16.mxu0 %v4018
    %4293 = vmatpush2.bf16.msra.mxu0 %v4017
    %4294 = vmatprep.subr.bf16.mxu0 %v4014
    %4295 = vmatpush2.bf16.msra.mxu0 %v4013
    %4296 = vmatprep.subr.bf16.mxu0 %v4010
    %4297 = vmatpush2.bf16.msra.mxu0 %v4009
    %4298 = vmatprep.subr.bf16.mxu0 %v4006
    %4299 = vmatpush2.bf16.msra.mxu0 %v4005
    %4300 = vmatprep.subr.bf16.mxu0 %v4002
    %4301 = vmatpush2.bf16.msra.mxu0 %v4001
    %4302 = vmatprep.subr.bf16.mxu0 %v3998
    %4303 = vmatpush2.bf16.msra.mxu0 %v3997
    %4304 = vmatprep.subr.bf16.mxu0 %v3994
    %4305 = vmatpush2.bf16.msra.mxu0 %v3993
    %4306 = vmatprep.subr.bf16.mxu0 %v3990
    %4307 = vmatpush2.bf16.msra.mxu0 %v3989
    %4308 = vmatprep.mubr.bf16.mxu0 %v3356
    %4309 = vmatmul.mubr.bf16.gmra.mxu0 %v3355
    %v4310 = vpop.f32.mrf.mxu0
    %v4311 = vadd.f32 %v4268, %v4310
    %v4312 = vpop.f32.mrf.mxu0
    %v4313 = vadd.f32 %v4270, %v4312
    %v4314 = vpop.f32.mrf.mxu0
    %v4315 = vadd.f32 %v4272, %v4314
    %v4316 = vpop.f32.mrf.mxu0
    %v4317 = vadd.f32 %v4274, %v4316
    %4318 = vdwg.mxu0
    %v4319 = vmax.f32 %v4225, 0.0
    %v4320 = vmax.f32 %v4227, 0.0
    %v4321 = vmax.f32 %v4311, 0.0
    %v4322 = vmax.f32 %v4313, 0.0
    %v4323 = vmax.f32 %v4229, 0.0
    %v4324 = vmax.f32 %v4231, 0.0
    %v4325 = vmax.f32 %v4315, 0.0
    %v4326 = vmax.f32 %v4317, 0.0
    %v4327 = vpack.c.bf16 %v4323, %v4319
    %v4328 = vpack.c.bf16 %v4324, %v4320
    %v4329 = vpack.c.bf16 %v4325, %v4321
    %v4330 = vpack.c.bf16 %v4326, %v4322
    %v4331 = vld [vmem:[%s13] sm:$0xf]
    %v4332 = vld [vmem:[%s13 + $0x4] sm:$0xf]
    %v4333 = vld [vmem:[%s13 + $0x8] sm:$0xf]
    %v4334 = vld [vmem:[%s13 + $0xc] sm:$0xf]
    %v4335 = vld [vmem:[%s13 + $0x10] sm:$0xf]
    %v4336 = vld [vmem:[%s13 + $0x14] sm:$0xf]
    %v4337 = vld [vmem:[%s13 + $0x18] sm:$0xf]
    %v4338 = vld [vmem:[%s13 + $0x1c] sm:$0xf]
    %v4339 = vld [vmem:[%s13 + $0x20] sm:$0xf]
    %v4340 = vld [vmem:[%s13 + $0x24] sm:$0xf]
    %v4341 = vld [vmem:[%s13 + $0x28] sm:$0xf]
    %v4342 = vld [vmem:[%s13 + $0x2c] sm:$0xf]
    %v4343 = vld [vmem:[%s13 + $0x30] sm:$0xf]
    %v4344 = vld [vmem:[%s13 + $0x34] sm:$0xf]
    %v4345 = vld [vmem:[%s13 + $0x38] sm:$0xf]
    %v4346 = vld [vmem:[%s13 + $0x3c] sm:$0xf]
    %v4347 = vld [vmem:[%s13 + $0x40] sm:$0xf]
    %v4348 = vld [vmem:[%s13 + $0x44] sm:$0xf]
    %v4349 = vld [vmem:[%s13 + $0x48] sm:$0xf]
    %v4350 = vld [vmem:[%s13 + $0x4c] sm:$0xf]
    %v4351 = vld [vmem:[%s13 + $0x50] sm:$0xf]
    %v4352 = vld [vmem:[%s13 + $0x54] sm:$0xf]
    %v4353 = vld [vmem:[%s13 + $0x58] sm:$0xf]
    %v4354 = vld [vmem:[%s13 + $0x5c] sm:$0xf]
    %v4355 = vld [vmem:[%s13 + $0x60] sm:$0xf]
    %v4356 = vld [vmem:[%s13 + $0x64] sm:$0xf]
    %v4357 = vld [vmem:[%s13 + $0x68] sm:$0xf]
    %v4358 = vld [vmem:[%s13 + $0x6c] sm:$0xf]
    %v4359 = vld [vmem:[%s13 + $0x70] sm:$0xf]
    %v4360 = vld [vmem:[%s13 + $0x74] sm:$0xf]
    %v4361 = vld [vmem:[%s13 + $0x78] sm:$0xf]
    %v4362 = vld [vmem:[%s13 + $0x7c] sm:$0xf]
    %v4363 = vld [vmem:[%s13 + $0x80] sm:$0xf]
    %v4364 = vld [vmem:[%s13 + $0x84] sm:$0xf]
    %v4365 = vld [vmem:[%s13 + $0x88] sm:$0xf]
    %v4366 = vld [vmem:[%s13 + $0x8c] sm:$0xf]
    %v4367 = vld [vmem:[%s13 + $0x90] sm:$0xf]
    %v4368 = vld [vmem:[%s13 + $0x94] sm:$0xf]
    %v4369 = vld [vmem:[%s13 + $0x98] sm:$0xf]
    %v4370 = vld [vmem:[%s13 + $0x9c] sm:$0xf]
    %v4371 = vld [vmem:[%s13 + $0xa0] sm:$0xf]
    %v4372 = vld [vmem:[%s13 + $0xa4] sm:$0xf]
    %v4373 = vld [vmem:[%s13 + $0xa8] sm:$0xf]
    %v4374 = vld [vmem:[%s13 + $0xac] sm:$0xf]
    %v4375 = vld [vmem:[%s13 + $0xb0] sm:$0xf]
    %v4376 = vld [vmem:[%s13 + $0xb4] sm:$0xf]
    %v4377 = vld [vmem:[%s13 + $0xb8] sm:$0xf]
    %v4378 = vld [vmem:[%s13 + $0xbc] sm:$0xf]
    %v4379 = vld [vmem:[%s13 + $0xc0] sm:$0xf]
    %v4380 = vld [vmem:[%s13 + $0xc4] sm:$0xf]
    %v4381 = vld [vmem:[%s13 + $0xc8] sm:$0xf]
    %v4382 = vld [vmem:[%s13 + $0xcc] sm:$0xf]
    %v4383 = vld [vmem:[%s13 + $0xd0] sm:$0xf]
    %v4384 = vld [vmem:[%s13 + $0xd4] sm:$0xf]
    %v4385 = vld [vmem:[%s13 + $0xd8] sm:$0xf]
    %v4386 = vld [vmem:[%s13 + $0xdc] sm:$0xf]
    %v4387 = vld [vmem:[%s13 + $0xe0] sm:$0xf]
    %v4388 = vld [vmem:[%s13 + $0xe4] sm:$0xf]
    %v4389 = vld [vmem:[%s13 + $0xe8] sm:$0xf]
    %v4390 = vld [vmem:[%s13 + $0xec] sm:$0xf]
    %v4391 = vld [vmem:[%s13 + $0xf0] sm:$0xf]
    %v4392 = vld [vmem:[%s13 + $0xf4] sm:$0xf]
    %v4393 = vld [vmem:[%s13 + $0xf8] sm:$0xf]
    %v4394 = vld [vmem:[%s13 + $0xfc] sm:$0xf]
    %v4395 = vld [vmem:[%s14] sm:$0x1]
    %v4397 = vlaneseq
    %v4398 = vshrl.u32 %v4397, 7
    %v4399 = vsub.s32 0, %v4398
    %v4400 = vrot.slane %v4395, %v4399
    %v4466 = vunpack.c.l.b16 %v4331
    %v4467 = vunpack.c.l.b16 %v4332
    %v4468 = vunpack.c.l.b16 %v4333
    %v4469 = vunpack.c.l.b16 %v4334
    %v4470 = vunpack.c.l.b16 %v4335
    %v4471 = vunpack.c.l.b16 %v4336
    %v4472 = vunpack.c.l.b16 %v4337
    %v4473 = vunpack.c.l.b16 %v4338
    %v4474 = vunpack.c.l.b16 %v4339
    %v4475 = vunpack.c.l.b16 %v4340
    %v4476 = vunpack.c.l.b16 %v4341
    %v4477 = vunpack.c.l.b16 %v4342
    %v4478 = vunpack.c.l.b16 %v4343
    %v4479 = vunpack.c.l.b16 %v4344
    %v4480 = vunpack.c.l.b16 %v4345
    %v4481 = vunpack.c.l.b16 %v4346
    %v4482 = vunpack.c.l.b16 %v4347
    %v4483 = vunpack.c.l.b16 %v4348
    %v4484 = vunpack.c.l.b16 %v4349
    %v4485 = vunpack.c.l.b16 %v4350
    %v4486 = vunpack.c.l.b16 %v4351
    %v4487 = vunpack.c.l.b16 %v4352
    %v4488 = vunpack.c.l.b16 %v4353
    %v4489 = vunpack.c.l.b16 %v4354
    %v4490 = vunpack.c.l.b16 %v4355
    %v4491 = vunpack.c.l.b16 %v4356
    %v4492 = vunpack.c.l.b16 %v4357
    %v4493 = vunpack.c.l.b16 %v4358
    %v4494 = vunpack.c.l.b16 %v4359
    %v4495 = vunpack.c.l.b16 %v4360
    %v4496 = vunpack.c.l.b16 %v4361
    %v4497 = vunpack.c.l.b16 %v4362
    %v4498 = vunpack.c.l.b16 %v4363
    %v4499 = vunpack.c.l.b16 %v4364
    %v4500 = vunpack.c.l.b16 %v4365
    %v4501 = vunpack.c.l.b16 %v4366
    %v4502 = vunpack.c.l.b16 %v4367
    %v4503 = vunpack.c.l.b16 %v4368
    %v4504 = vunpack.c.l.b16 %v4369
    %v4505 = vunpack.c.l.b16 %v4370
    %v4506 = vunpack.c.l.b16 %v4371
    %v4507 = vunpack.c.l.b16 %v4372
    %v4508 = vunpack.c.l.b16 %v4373
    %v4509 = vunpack.c.l.b16 %v4374
    %v4510 = vunpack.c.l.b16 %v4375
    %v4511 = vunpack.c.l.b16 %v4376
    %v4512 = vunpack.c.l.b16 %v4377
    %v4513 = vunpack.c.l.b16 %v4378
    %v4514 = vunpack.c.l.b16 %v4379
    %v4515 = vunpack.c.l.b16 %v4380
    %v4516 = vunpack.c.l.b16 %v4381
    %v4517 = vunpack.c.l.b16 %v4382
    %v4518 = vunpack.c.l.b16 %v4383
    %v4519 = vunpack.c.l.b16 %v4384
    %v4520 = vunpack.c.l.b16 %v4385
    %v4521 = vunpack.c.l.b16 %v4386
    %v4522 = vunpack.c.l.b16 %v4387
    %v4523 = vunpack.c.l.b16 %v4388
    %v4524 = vunpack.c.l.b16 %v4389
    %v4525 = vunpack.c.l.b16 %v4390
    %v4526 = vunpack.c.l.b16 %v4391
    %v4527 = vunpack.c.l.b16 %v4392
    %v4528 = vunpack.c.l.b16 %v4393
    %v4529 = vunpack.c.l.b16 %v4394
    %v4530 = vpack.c.b16 %v4467, %v4466
    %v4531 = vpack.c.b16 %v4469, %v4468
    %v4532 = vpack.c.b16 %v4471, %v4470
    %v4533 = vpack.c.b16 %v4473, %v4472
    %v4534 = vpack.c.b16 %v4475, %v4474
    %v4535 = vpack.c.b16 %v4477, %v4476
    %v4536 = vpack.c.b16 %v4479, %v4478
    %v4537 = vpack.c.b16 %v4481, %v4480
    %v4538 = vpack.c.b16 %v4483, %v4482
    %v4539 = vpack.c.b16 %v4485, %v4484
    %v4540 = vpack.c.b16 %v4487, %v4486
    %v4541 = vpack.c.b16 %v4489, %v4488
    %v4542 = vpack.c.b16 %v4491, %v4490
    %v4543 = vpack.c.b16 %v4493, %v4492
    %v4544 = vpack.c.b16 %v4495, %v4494
    %v4545 = vpack.c.b16 %v4497, %v4496
    %v4546 = vpack.c.b16 %v4499, %v4498
    %v4547 = vpack.c.b16 %v4501, %v4500
    %v4548 = vpack.c.b16 %v4503, %v4502
    %v4549 = vpack.c.b16 %v4505, %v4504
    %v4550 = vpack.c.b16 %v4507, %v4506
    %v4551 = vpack.c.b16 %v4509, %v4508
    %v4552 = vpack.c.b16 %v4511, %v4510
    %v4553 = vpack.c.b16 %v4513, %v4512
    %v4554 = vpack.c.b16 %v4515, %v4514
    %v4555 = vpack.c.b16 %v4517, %v4516
    %v4556 = vpack.c.b16 %v4519, %v4518
    %v4557 = vpack.c.b16 %v4521, %v4520
    %v4558 = vpack.c.b16 %v4523, %v4522
    %v4559 = vpack.c.b16 %v4525, %v4524
    %v4560 = vpack.c.b16 %v4527, %v4526
    %v4561 = vpack.c.b16 %v4529, %v4528
    %4594 = vmatprep.subr.bf16.mxu0 0
    %4595 = vmatpush1.bf16.msra.mxu0 %v4537
    %4596 = vmatprep.subr.bf16.mxu0 0
    %4597 = vmatpush1.bf16.msra.mxu0 %v4536
    %4598 = vmatprep.subr.bf16.mxu0 0
    %4599 = vmatpush1.bf16.msra.mxu0 %v4535
    %4600 = vmatprep.subr.bf16.mxu0 0
    %4601 = vmatpush1.bf16.msra.mxu0 %v4534
    %4602 = vmatprep.subr.bf16.mxu0 0
    %4603 = vmatpush1.bf16.msra.mxu0 %v4533
    %4604 = vmatprep.subr.bf16.mxu0 0
    %4605 = vmatpush1.bf16.msra.mxu0 %v4532
    %4606 = vmatprep.subr.bf16.mxu0 0
    %4607 = vmatpush1.bf16.msra.mxu0 %v4531
    %4608 = vmatprep.subr.bf16.mxu0 0
    %4609 = vmatpush1.bf16.msra.mxu0 %v4530
    %4610 = vmatprep.subr.bf16.mxu0 0
    %4611 = vmatpush2.bf16.msra.mxu0 %v4545
    %4612 = vmatprep.subr.bf16.mxu0 0
    %4613 = vmatpush2.bf16.msra.mxu0 %v4544
    %4614 = vmatprep.subr.bf16.mxu0 0
    %4615 = vmatpush2.bf16.msra.mxu0 %v4543
    %4616 = vmatprep.subr.bf16.mxu0 0
    %4617 = vmatpush2.bf16.msra.mxu0 %v4542
    %4618 = vmatprep.subr.bf16.mxu0 0
    %4619 = vmatpush2.bf16.msra.mxu0 %v4541
    %4620 = vmatprep.subr.bf16.mxu0 0
    %4621 = vmatpush2.bf16.msra.mxu0 %v4540
    %4622 = vmatprep.subr.bf16.mxu0 0
    %4623 = vmatpush2.bf16.msra.mxu0 %v4539
    %4624 = vmatprep.subr.bf16.mxu0 0
    %4625 = vmatpush2.bf16.msra.mxu0 %v4538
    %4626 = vmatprep.mubr.bf16.mxu0 %v4328
    %4627 = vmatmul.mubr.bf16.gmra.mxu0 %v4327
    %v4628 = vpop.f32.mrf.mxu0
    %v4629 = vadd.f32 %v4400, %v4628
    %v4630 = vpop.f32.mrf.mxu0
    %v4631 = vpop.f32.mrf.mxu0
    %v4632 = vadd.f32 %v4400, %v4631
    %v4633 = vpop.f32.mrf.mxu0
    %4634 = vdwg.mxu0
    %4635 = vmatprep.subr.bf16.mxu0 0
    %4636 = vmatpush1.bf16.msra.mxu0 %v4553
    %4637 = vmatprep.subr.bf16.mxu0 0
    %4638 = vmatpush1.bf16.msra.mxu0 %v4552
    %4639 = vmatprep.subr.bf16.mxu0 0
    %4640 = vmatpush1.bf16.msra.mxu0 %v4551
    %4641 = vmatprep.subr.bf16.mxu0 0
    %4642 = vmatpush1.bf16.msra.mxu0 %v4550
    %4643 = vmatprep.subr.bf16.mxu0 0
    %4644 = vmatpush1.bf16.msra.mxu0 %v4549
    %4645 = vmatprep.subr.bf16.mxu0 0
    %4646 = vmatpush1.bf16.msra.mxu0 %v4548
    %4647 = vmatprep.subr.bf16.mxu0 0
    %4648 = vmatpush1.bf16.msra.mxu0 %v4547
    %4649 = vmatprep.subr.bf16.mxu0 0
    %4650 = vmatpush1.bf16.msra.mxu0 %v4546
    %4651 = vmatprep.subr.bf16.mxu0 0
    %4652 = vmatpush2.bf16.msra.mxu0 %v4561
    %4653 = vmatprep.subr.bf16.mxu0 0
    %4654 = vmatpush2.bf16.msra.mxu0 %v4560
    %4655 = vmatprep.subr.bf16.mxu0 0
    %4656 = vmatpush2.bf16.msra.mxu0 %v4559
    %4657 = vmatprep.subr.bf16.mxu0 0
    %4658 = vmatpush2.bf16.msra.mxu0 %v4558
    %4659 = vmatprep.subr.bf16.mxu0 0
    %4660 = vmatpush2.bf16.msra.mxu0 %v4557
    %4661 = vmatprep.subr.bf16.mxu0 0
    %4662 = vmatpush2.bf16.msra.mxu0 %v4556
    %4663 = vmatprep.subr.bf16.mxu0 0
    %4664 = vmatpush2.bf16.msra.mxu0 %v4555
    %4665 = vmatprep.subr.bf16.mxu0 0
    %4666 = vmatpush2.bf16.msra.mxu0 %v4554
    %4667 = vmatprep.mubr.bf16.mxu0 %v4330
    %4668 = vmatmul.mubr.bf16.gmra.mxu0 %v4329
    %v4669 = vpop.f32.mrf.mxu0
    %v4670 = vadd.f32 %v4629, %v4669
    %v4671 = vpop.f32.mrf.mxu0
    %v4672 = vpop.f32.mrf.mxu0
    %v4673 = vadd.f32 %v4632, %v4672
    %v4674 = vpop.f32.mrf.mxu0
    %4675 = vdwg.mxu0
    %vm4676 = vcmask 31744
    %4677 = vst.msk [vmem:[%s16] sm:$0xff] %vm4676, %v4670
    %4678 = vst.msk [vmem:[%s16 + $0x8] sm:$0xff] %vm4676, %v4673
  $region65: #{grasp_pose_net_forward.6} parent=0 // pred_fallthru
    _
  %p4679 = scmp.ge.s32.totalorder %s55, 8
  // Predicated region
  $region66: #{grasp_pose_net_forward.6} parent=0 // pred_check
    %p4680 = pneg %p4679
  $region67: #{grasp_pose_net_forward.6} parent=0 // pred_check_branch
    %4682 = sbr.rel (%p4680) target = $region69
  $region68: #{grasp_pose_net_forward.6} parent=0 // pred_region
    %v4683 = vld [vmem:[%s0] sm:$0xff]
    %v4684 = vld [vmem:[%s0 + $0x8] sm:$0xff]
    %v4685 = vld [vmem:[%s0 + $0x10] sm:$0xff]
    %v4686 = vld [vmem:[%s0 + $0x18] sm:$0xff]
    %v4687 = vld [vmem:[%s0 + $0x20] sm:$0xff]
    %v4688 = vld [vmem:[%s0 + $0x28] sm:$0xff]
    %v4689 = vld [vmem:[%s0 + $0x30] sm:$0xff]
    %v4690 = vld [vmem:[%s0 + $0x38] sm:$0xff]
    %v4691 = vld [vmem:[%s0 + $0x40] sm:$0xff]
    %v4692 = vld [vmem:[%s0 + $0x48] sm:$0xff]
    %v4693 = vld [vmem:[%s0 + $0x50] sm:$0xff]
    %v4694 = vld [vmem:[%s0 + $0x58] sm:$0xff]
    %v4695 = vld [vmem:[%s0 + $0x60] sm:$0xff]
    %v4696 = vld [vmem:[%s0 + $0x68] sm:$0xff]
    %v4697 = vld [vmem:[%s0 + $0x70] sm:$0xff]
    %v4698 = vld [vmem:[%s0 + $0x78] sm:$0xff]
    %v4699 = vld [vmem:[%s1] sm:$0xf]
    %v4700 = vld [vmem:[%s1 + $0x8] sm:$0xf]
    %v4701 = vld [vmem:[%s1 + $0x10] sm:$0xf]
    %v4702 = vld [vmem:[%s1 + $0x18] sm:$0xf]
    %v4703 = vld [vmem:[%s1 + $0x20] sm:$0xf]
    %v4704 = vld [vmem:[%s1 + $0x28] sm:$0xf]
    %v4705 = vld [vmem:[%s1 + $0x30] sm:$0xf]
    %v4706 = vld [vmem:[%s1 + $0x38] sm:$0xf]
    %v4707 = vld [vmem:[%s1 + $0x40] sm:$0xf]
    %v4708 = vld [vmem:[%s1 + $0x48] sm:$0xf]
    %v4709 = vld [vmem:[%s1 + $0x50] sm:$0xf]
    %v4710 = vld [vmem:[%s1 + $0x58] sm:$0xf]
    %v4711 = vld [vmem:[%s1 + $0x60] sm:$0xf]
    %v4712 = vld [vmem:[%s1 + $0x68] sm:$0xf]
    %v4713 = vld [vmem:[%s1 + $0x70] sm:$0xf]
    %v4714 = vld [vmem:[%s1 + $0x78] sm:$0xf]
    %v4715 = vld [vmem:[%s1 + $0x80] sm:$0xf]
    %v4716 = vld [vmem:[%s1 + $0x88] sm:$0xf]
    %v4717 = vld [vmem:[%s1 + $0x90] sm:$0xf]
    %v4718 = vld [vmem:[%s1 + $0x98] sm:$0xf]
    %v4719 = vld [vmem:[%s1 + $0xa0] sm:$0xf]
    %v4720 = vld [vmem:[%s1 + $0xa8] sm:$0xf]
    %v4721 = vld [vmem:[%s1 + $0xb0] sm:$0xf]
    %v4722 = vld [vmem:[%s1 + $0xb8] sm:$0xf]
    %v4723 = vld [vmem:[%s1 + $0xc0] sm:$0xf]
    %v4724 = vld [vmem:[%s1 + $0xc8] sm:$0xf]
    %v4725 = vld [vmem:[%s1 + $0xd0] sm:$0xf]
    %v4726 = vld [vmem:[%s1 + $0xd8] sm:$0xf]
    %v4727 = vld [vmem:[%s1 + $0xe0] sm:$0xf]
    %v4728 = vld [vmem:[%s1 + $0xe8] sm:$0xf]
    %v4729 = vld [vmem:[%s1 + $0xf0] sm:$0xf]
    %v4730 = vld [vmem:[%s1 + $0xf8] sm:$0xf]
    %v4731 = vld [vmem:[%s1 + $0x100] sm:$0xf]
    %v4732 = vld [vmem:[%s1 + $0x108] sm:$0xf]
    %v4733 = vld [vmem:[%s1 + $0x110] sm:$0xf]
    %v4734 = vld [vmem:[%s1 + $0x118] sm:$0xf]
    %v4735 = vld [vmem:[%s1 + $0x120] sm:$0xf]
    %v4736 = vld [vmem:[%s1 + $0x128] sm:$0xf]
    %v4737 = vld [vmem:[%s1 + $0x130] sm:$0xf]
    %v4738 = vld [vmem:[%s1 + $0x138] sm:$0xf]
    %v4739 = vld [vmem:[%s1 + $0x140] sm:$0xf]
    %v4740 = vld [vmem:[%s1 + $0x148] sm:$0xf]
    %v4741 = vld [vmem:[%s1 + $0x150] sm:$0xf]
    %v4742 = vld [vmem:[%s1 + $0x158] sm:$0xf]
    %v4743 = vld [vmem:[%s1 + $0x160] sm:$0xf]
    %v4744 = vld [vmem:[%s1 + $0x168] sm:$0xf]
    %v4745 = vld [vmem:[%s1 + $0x170] sm:$0xf]
    %v4746 = vld [vmem:[%s1 + $0x178] sm:$0xf]
    %v4747 = vld [vmem:[%s1 + $0x180] sm:$0xf]
    %v4748 = vld [vmem:[%s1 + $0x188] sm:$0xf]
    %v4749 = vld [vmem:[%s1 + $0x190] sm:$0xf]
    %v4750 = vld [vmem:[%s1 + $0x198] sm:$0xf]
    %v4751 = vld [vmem:[%s1 + $0x1a0] sm:$0xf]
    %v4752 = vld [vmem:[%s1 + $0x1a8] sm:$0xf]
    %v4753 = vld [vmem:[%s1 + $0x1b0] sm:$0xf]
    %v4754 = vld [vmem:[%s1 + $0x1b8] sm:$0xf]
    %v4755 = vld [vmem:[%s1 + $0x1c0] sm:$0xf]
    %v4756 = vld [vmem:[%s1 + $0x1c8] sm:$0xf]
    %v4757 = vld [vmem:[%s1 + $0x1d0] sm:$0xf]
    %v4758 = vld [vmem:[%s1 + $0x1d8] sm:$0xf]
    %v4759 = vld [vmem:[%s1 + $0x1e0] sm:$0xf]
    %v4760 = vld [vmem:[%s1 + $0x1e8] sm:$0xf]
    %v4761 = vld [vmem:[%s1 + $0x1f0] sm:$0xf]
    %v4762 = vld [vmem:[%s1 + $0x1f8] sm:$0xf]
    %v4763 = vld [vmem:[%s1 + $0x200] sm:$0xf]
    %v4764 = vld [vmem:[%s1 + $0x208] sm:$0xf]
    %v4765 = vld [vmem:[%s1 + $0x210] sm:$0xf]
    %v4766 = vld [vmem:[%s1 + $0x218] sm:$0xf]
    %v4767 = vld [vmem:[%s1 + $0x220] sm:$0xf]
    %v4768 = vld [vmem:[%s1 + $0x228] sm:$0xf]
    %v4769 = vld [vmem:[%s1 + $0x230] sm:$0xf]
    %v4770 = vld [vmem:[%s1 + $0x238] sm:$0xf]
    %v4771 = vld [vmem:[%s1 + $0x240] sm:$0xf]
    %v4772 = vld [vmem:[%s1 + $0x248] sm:$0xf]
    %v4773 = vld [vmem:[%s1 + $0x250] sm:$0xf]
    %v4774 = vld [vmem:[%s1 + $0x258] sm:$0xf]
    %v4775 = vld [vmem:[%s1 + $0x260] sm:$0xf]
    %v4776 = vld [vmem:[%s1 + $0x268] sm:$0xf]
    %v4777 = vld [vmem:[%s1 + $0x270] sm:$0xf]
    %v4778 = vld [vmem:[%s1 + $0x278] sm:$0xf]
    %v4779 = vld [vmem:[%s1 + $0x280] sm:$0xf]
    %v4780 = vld [vmem:[%s1 + $0x288] sm:$0xf]
    %v4781 = vld [vmem:[%s1 + $0x290] sm:$0xf]
    %v4782 = vld [vmem:[%s1 + $0x298] sm:$0xf]
    %v4783 = vld [vmem:[%s1 + $0x2a0] sm:$0xf]
    %v4784 = vld [vmem:[%s1 + $0x2a8] sm:$0xf]
    %v4785 = vld [vmem:[%s1 + $0x2b0] sm:$0xf]
    %v4786 = vld [vmem:[%s1 + $0x2b8] sm:$0xf]
    %v4787 = vld [vmem:[%s1 + $0x2c0] sm:$0xf]
    %v4788 = vld [vmem:[%s1 + $0x2c8] sm:$0xf]
    %v4789 = vld [vmem:[%s1 + $0x2d0] sm:$0xf]
    %v4790 = vld [vmem:[%s1 + $0x2d8] sm:$0xf]
    %v4791 = vld [vmem:[%s1 + $0x2e0] sm:$0xf]
    %v4792 = vld [vmem:[%s1 + $0x2e8] sm:$0xf]
    %v4793 = vld [vmem:[%s1 + $0x2f0] sm:$0xf]
    %v4794 = vld [vmem:[%s1 + $0x2f8] sm:$0xf]
    %v4795 = vld [vmem:[%s1 + $0x300] sm:$0xf]
    %v4796 = vld [vmem:[%s1 + $0x308] sm:$0xf]
    %v4797 = vld [vmem:[%s1 + $0x310] sm:$0xf]
    %v4798 = vld [vmem:[%s1 + $0x318] sm:$0xf]
    %v4799 = vld [vmem:[%s1 + $0x320] sm:$0xf]
    %v4800 = vld [vmem:[%s1 + $0x328] sm:$0xf]
    %v4801 = vld [vmem:[%s1 + $0x330] sm:$0xf]
    %v4802 = vld [vmem:[%s1 + $0x338] sm:$0xf]
    %v4803 = vld [vmem:[%s1 + $0x340] sm:$0xf]
    %v4804 = vld [vmem:[%s1 + $0x348] sm:$0xf]
    %v4805 = vld [vmem:[%s1 + $0x350] sm:$0xf]
    %v4806 = vld [vmem:[%s1 + $0x358] sm:$0xf]
    %v4807 = vld [vmem:[%s1 + $0x360] sm:$0xf]
    %v4808 = vld [vmem:[%s1 + $0x368] sm:$0xf]
    %v4809 = vld [vmem:[%s1 + $0x370] sm:$0xf]
    %v4810 = vld [vmem:[%s1 + $0x378] sm:$0xf]
    %v4811 = vld [vmem:[%s1 + $0x380] sm:$0xf]
    %v4812 = vld [vmem:[%s1 + $0x388] sm:$0xf]
    %v4813 = vld [vmem:[%s1 + $0x390] sm:$0xf]
    %v4814 = vld [vmem:[%s1 + $0x398] sm:$0xf]
    %v4815 = vld [vmem:[%s1 + $0x3a0] sm:$0xf]
    %v4816 = vld [vmem:[%s1 + $0x3a8] sm:$0xf]
    %v4817 = vld [vmem:[%s1 + $0x3b0] sm:$0xf]
    %v4818 = vld [vmem:[%s1 + $0x3b8] sm:$0xf]
    %v4819 = vld [vmem:[%s1 + $0x3c0] sm:$0xf]
    %v4820 = vld [vmem:[%s1 + $0x3c8] sm:$0xf]
    %v4821 = vld [vmem:[%s1 + $0x3d0] sm:$0xf]
    %v4822 = vld [vmem:[%s1 + $0x3d8] sm:$0xf]
    %v4823 = vld [vmem:[%s1 + $0x3e0] sm:$0xf]
    %v4824 = vld [vmem:[%s1 + $0x3e8] sm:$0xf]
    %v4825 = vld [vmem:[%s1 + $0x3f0] sm:$0xf]
    %v4826 = vld [vmem:[%s1 + $0x3f8] sm:$0xf]
    %v4827 = vld [vmem:[%s1 + $0x400] sm:$0xf]
    %v4828 = vld [vmem:[%s1 + $0x408] sm:$0xf]
    %v4829 = vld [vmem:[%s1 + $0x410] sm:$0xf]
    %v4830 = vld [vmem:[%s1 + $0x418] sm:$0xf]
    %v4831 = vld [vmem:[%s1 + $0x420] sm:$0xf]
    %v4832 = vld [vmem:[%s1 + $0x428] sm:$0xf]
    %v4833 = vld [vmem:[%s1 + $0x430] sm:$0xf]
    %v4834 = vld [vmem:[%s1 + $0x438] sm:$0xf]
    %v4835 = vld [vmem:[%s1 + $0x440] sm:$0xf]
    %v4836 = vld [vmem:[%s1 + $0x448] sm:$0xf]
    %v4837 = vld [vmem:[%s1 + $0x450] sm:$0xf]
    %v4838 = vld [vmem:[%s1 + $0x458] sm:$0xf]
    %v4839 = vld [vmem:[%s1 + $0x460] sm:$0xf]
    %v4840 = vld [vmem:[%s1 + $0x468] sm:$0xf]
    %v4841 = vld [vmem:[%s1 + $0x470] sm:$0xf]
    %v4842 = vld [vmem:[%s1 + $0x478] sm:$0xf]
    %v4843 = vld [vmem:[%s1 + $0x480] sm:$0xf]
    %v4844 = vld [vmem:[%s1 + $0x488] sm:$0xf]
    %v4845 = vld [vmem:[%s1 + $0x490] sm:$0xf]
    %v4846 = vld [vmem:[%s1 + $0x498] sm:$0xf]
    %v4847 = vld [vmem:[%s1 + $0x4a0] sm:$0xf]
    %v4848 = vld [vmem:[%s1 + $0x4a8] sm:$0xf]
    %v4849 = vld [vmem:[%s1 + $0x4b0] sm:$0xf]
    %v4850 = vld [vmem:[%s1 + $0x4b8] sm:$0xf]
    %v4851 = vld [vmem:[%s1 + $0x4c0] sm:$0xf]
    %v4852 = vld [vmem:[%s1 + $0x4c8] sm:$0xf]
    %v4853 = vld [vmem:[%s1 + $0x4d0] sm:$0xf]
    %v4854 = vld [vmem:[%s1 + $0x4d8] sm:$0xf]
    %v4855 = vld [vmem:[%s1 + $0x4e0] sm:$0xf]
    %v4856 = vld [vmem:[%s1 + $0x4e8] sm:$0xf]
    %v4857 = vld [vmem:[%s1 + $0x4f0] sm:$0xf]
    %v4858 = vld [vmem:[%s1 + $0x4f8] sm:$0xf]
    %v4859 = vld [vmem:[%s1 + $0x500] sm:$0xf]
    %v4860 = vld [vmem:[%s1 + $0x508] sm:$0xf]
    %v4861 = vld [vmem:[%s1 + $0x510] sm:$0xf]
    %v4862 = vld [vmem:[%s1 + $0x518] sm:$0xf]
    %v4863 = vld [vmem:[%s1 + $0x520] sm:$0xf]
    %v4864 = vld [vmem:[%s1 + $0x528] sm:$0xf]
    %v4865 = vld [vmem:[%s1 + $0x530] sm:$0xf]
    %v4866 = vld [vmem:[%s1 + $0x538] sm:$0xf]
    %v4867 = vld [vmem:[%s1 + $0x540] sm:$0xf]
    %v4868 = vld [vmem:[%s1 + $0x548] sm:$0xf]
    %v4869 = vld [vmem:[%s1 + $0x550] sm:$0xf]
    %v4870 = vld [vmem:[%s1 + $0x558] sm:$0xf]
    %v4871 = vld [vmem:[%s1 + $0x560] sm:$0xf]
    %v4872 = vld [vmem:[%s1 + $0x568] sm:$0xf]
    %v4873 = vld [vmem:[%s1 + $0x570] sm:$0xf]
    %v4874 = vld [vmem:[%s1 + $0x578] sm:$0xf]
    %v4875 = vld [vmem:[%s1 + $0x580] sm:$0xf]
    %v4876 = vld [vmem:[%s1 + $0x588] sm:$0xf]
    %v4877 = vld [vmem:[%s1 + $0x590] sm:$0xf]
    %v4878 = vld [vmem:[%s1 + $0x598] sm:$0xf]
    %v4879 = vld [vmem:[%s1 + $0x5a0] sm:$0xf]
    %v4880 = vld [vmem:[%s1 + $0x5a8] sm:$0xf]
    %v4881 = vld [vmem:[%s1 + $0x5b0] sm:$0xf]
    %v4882 = vld [vmem:[%s1 + $0x5b8] sm:$0xf]
    %v4883 = vld [vmem:[%s1 + $0x5c0] sm:$0xf]
    %v4884 = vld [vmem:[%s1 + $0x5c8] sm:$0xf]
    %v4885 = vld [vmem:[%s1 + $0x5d0] sm:$0xf]
    %v4886 = vld [vmem:[%s1 + $0x5d8] sm:$0xf]
    %v4887 = vld [vmem:[%s1 + $0x5e0] sm:$0xf]
    %v4888 = vld [vmem:[%s1 + $0x5e8] sm:$0xf]
    %v4889 = vld [vmem:[%s1 + $0x5f0] sm:$0xf]
    %v4890 = vld [vmem:[%s1 + $0x5f8] sm:$0xf]
    %v4891 = vld [vmem:[%s1 + $0x600] sm:$0xf]
    %v4892 = vld [vmem:[%s1 + $0x608] sm:$0xf]
    %v4893 = vld [vmem:[%s1 + $0x610] sm:$0xf]
    %v4894 = vld [vmem:[%s1 + $0x618] sm:$0xf]
    %v4895 = vld [vmem:[%s1 + $0x620] sm:$0xf]
    %v4896 = vld [vmem:[%s1 + $0x628] sm:$0xf]
    %v4897 = vld [vmem:[%s1 + $0x630] sm:$0xf]
    %v4898 = vld [vmem:[%s1 + $0x638] sm:$0xf]
    %v4899 = vld [vmem:[%s1 + $0x640] sm:$0xf]
    %v4900 = vld [vmem:[%s1 + $0x648] sm:$0xf]
    %v4901 = vld [vmem:[%s1 + $0x650] sm:$0xf]
    %v4902 = vld [vmem:[%s1 + $0x658] sm:$0xf]
    %v4903 = vld [vmem:[%s1 + $0x660] sm:$0xf]
    %v4904 = vld [vmem:[%s1 + $0x668] sm:$0xf]
    %v4905 = vld [vmem:[%s1 + $0x670] sm:$0xf]
    %v4906 = vld [vmem:[%s1 + $0x678] sm:$0xf]
    %v4907 = vld [vmem:[%s1 + $0x680] sm:$0xf]
    %v4908 = vld [vmem:[%s1 + $0x688] sm:$0xf]
    %v4909 = vld [vmem:[%s1 + $0x690] sm:$0xf]
    %v4910 = vld [vmem:[%s1 + $0x698] sm:$0xf]
    %v4911 = vld [vmem:[%s1 + $0x6a0] sm:$0xf]
    %v4912 = vld [vmem:[%s1 + $0x6a8] sm:$0xf]
    %v4913 = vld [vmem:[%s1 + $0x6b0] sm:$0xf]
    %v4914 = vld [vmem:[%s1 + $0x6b8] sm:$0xf]
    %v4915 = vld [vmem:[%s1 + $0x6c0] sm:$0xf]
    %v4916 = vld [vmem:[%s1 + $0x6c8] sm:$0xf]
    %v4917 = vld [vmem:[%s1 + $0x6d0] sm:$0xf]
    %v4918 = vld [vmem:[%s1 + $0x6d8] sm:$0xf]
    %v4919 = vld [vmem:[%s1 + $0x6e0] sm:$0xf]
    %v4920 = vld [vmem:[%s1 + $0x6e8] sm:$0xf]
    %v4921 = vld [vmem:[%s1 + $0x6f0] sm:$0xf]
    %v4922 = vld [vmem:[%s1 + $0x6f8] sm:$0xf]
    %v4923 = vld [vmem:[%s1 + $0x700] sm:$0xf]
    %v4924 = vld [vmem:[%s1 + $0x708] sm:$0xf]
    %v4925 = vld [vmem:[%s1 + $0x710] sm:$0xf]
    %v4926 = vld [vmem:[%s1 + $0x718] sm:$0xf]
    %v4927 = vld [vmem:[%s1 + $0x720] sm:$0xf]
    %v4928 = vld [vmem:[%s1 + $0x728] sm:$0xf]
    %v4929 = vld [vmem:[%s1 + $0x730] sm:$0xf]
    %v4930 = vld [vmem:[%s1 + $0x738] sm:$0xf]
    %v4931 = vld [vmem:[%s1 + $0x740] sm:$0xf]
    %v4932 = vld [vmem:[%s1 + $0x748] sm:$0xf]
    %v4933 = vld [vmem:[%s1 + $0x750] sm:$0xf]
    %v4934 = vld [vmem:[%s1 + $0x758] sm:$0xf]
    %v4935 = vld [vmem:[%s1 + $0x760] sm:$0xf]
    %v4936 = vld [vmem:[%s1 + $0x768] sm:$0xf]
    %v4937 = vld [vmem:[%s1 + $0x770] sm:$0xf]
    %v4938 = vld [vmem:[%s1 + $0x778] sm:$0xf]
    %v4939 = vld [vmem:[%s1 + $0x780] sm:$0xf]
    %v4940 = vld [vmem:[%s1 + $0x788] sm:$0xf]
    %v4941 = vld [vmem:[%s1 + $0x790] sm:$0xf]
    %v4942 = vld [vmem:[%s1 + $0x798] sm:$0xf]
    %v4943 = vld [vmem:[%s1 + $0x7a0] sm:$0xf]
    %v4944 = vld [vmem:[%s1 + $0x7a8] sm:$0xf]
    %v4945 = vld [vmem:[%s1 + $0x7b0] sm:$0xf]
    %v4946 = vld [vmem:[%s1 + $0x7b8] sm:$0xf]
    %v4947 = vld [vmem:[%s1 + $0x7c0] sm:$0xf]
    %v4948 = vld [vmem:[%s1 + $0x7c8] sm:$0xf]
    %v4949 = vld [vmem:[%s1 + $0x7d0] sm:$0xf]
    %v4950 = vld [vmem:[%s1 + $0x7d8] sm:$0xf]
    %v4951 = vld [vmem:[%s1 + $0x7e0] sm:$0xf]
    %v4952 = vld [vmem:[%s1 + $0x7e8] sm:$0xf]
    %v4953 = vld [vmem:[%s1 + $0x7f0] sm:$0xf]
    %v4954 = vld [vmem:[%s1 + $0x7f8] sm:$0xf]
    %v4955 = vld [vmem:[%s2] sm:$0x1]
    %v4957 = vlaneseq
    %v4958 = vshrl.u32 %v4957, 7
    %v4959 = vsub.s32 0, %v4958
    %v4960 = vrot.slane %v4955, %v4959
    %v4978 = vunpack.c.l.b16 %v4683
    %v4979 = vunpack.c.h.b16 %v4683
    %v4980 = vunpack.c.l.b16 %v4684
    %v4981 = vunpack.c.h.b16 %v4684
    %v4982 = vunpack.c.l.b16 %v4685
    %v4983 = vunpack.c.h.b16 %v4685
    %v4984 = vunpack.c.l.b16 %v4686
    %v4985 = vunpack.c.h.b16 %v4686
    %v4986 = vunpack.c.l.b16 %v4687
    %v4987 = vunpack.c.h.b16 %v4687
    %v4988 = vunpack.c.l.b16 %v4688
    %v4989 = vunpack.c.h.b16 %v4688
    %v4990 = vunpack.c.l.b16 %v4689
    %v4991 = vunpack.c.h.b16 %v4689
    %v4992 = vunpack.c.l.b16 %v4690
    %v4993 = vunpack.c.h.b16 %v4690
    %v4994 = vunpack.c.l.b16 %v4691
    %v4995 = vunpack.c.h.b16 %v4691
    %v4996 = vunpack.c.l.b16 %v4692
    %v4997 = vunpack.c.h.b16 %v4692
    %v4998 = vunpack.c.l.b16 %v4693
    %v4999 = vunpack.c.h.b16 %v4693
    %v5000 = vunpack.c.l.b16 %v4694
    %v5001 = vunpack.c.h.b16 %v4694
    %v5002 = vunpack.c.l.b16 %v4695
    %v5003 = vunpack.c.h.b16 %v4695
    %v5004 = vunpack.c.l.b16 %v4696
    %v5005 = vunpack.c.h.b16 %v4696
    %v5006 = vunpack.c.l.b16 %v4697
    %v5007 = vunpack.c.h.b16 %v4697
    %v5008 = vunpack.c.l.b16 %v4698
    %v5009 = vunpack.c.h.b16 %v4698
    %v5010 = vpack.c.b16 %v4994, %v4978
    %v5011 = vpack.c.b16 %v4995, %v4979
    %v5012 = vpack.c.b16 %v4996, %v4980
    %v5013 = vpack.c.b16 %v4997, %v4981
    %v5014 = vpack.c.b16 %v4998, %v4982
    %v5015 = vpack.c.b16 %v4999, %v4983
    %v5016 = vpack.c.b16 %v5000, %v4984
    %v5017 = vpack.c.b16 %v5001, %v4985
    %v5018 = vpack.c.b16 %v5002, %v4986
    %v5019 = vpack.c.b16 %v5003, %v4987
    %v5020 = vpack.c.b16 %v5004, %v4988
    %v5021 = vpack.c.b16 %v5005, %v4989
    %v5022 = vpack.c.b16 %v5006, %v4990
    %v5023 = vpack.c.b16 %v5007, %v4991
    %v5024 = vpack.c.b16 %v5008, %v4992
    %v5025 = vpack.c.b16 %v5009, %v4993
    %v5298 = vunpack.c.l.b16 %v4699
    %v5299 = vunpack.c.l.b16 %v4700
    %v5300 = vunpack.c.l.b16 %v4701
    %v5301 = vunpack.c.l.b16 %v4702
    %v5302 = vunpack.c.l.b16 %v4703
    %v5303 = vunpack.c.l.b16 %v4704
    %v5304 = vunpack.c.l.b16 %v4705
    %v5305 = vunpack.c.l.b16 %v4706
    %v5306 = vunpack.c.l.b16 %v4707
    %v5307 = vunpack.c.l.b16 %v4708
    %v5308 = vunpack.c.l.b16 %v4709
    %v5309 = vunpack.c.l.b16 %v4710
    %v5310 = vunpack.c.l.b16 %v4711
    %v5311 = vunpack.c.l.b16 %v4712
    %v5312 = vunpack.c.l.b16 %v4713
    %v5313 = vunpack.c.l.b16 %v4714
    %v5314 = vunpack.c.l.b16 %v4715
    %v5315 = vunpack.c.l.b16 %v4716
    %v5316 = vunpack.c.l.b16 %v4717
    %v5317 = vunpack.c.l.b16 %v4718
    %v5318 = vunpack.c.l.b16 %v4719
    %v5319 = vunpack.c.l.b16 %v4720
    %v5320 = vunpack.c.l.b16 %v4721
    %v5321 = vunpack.c.l.b16 %v4722
    %v5322 = vunpack.c.l.b16 %v4723
    %v5323 = vunpack.c.l.b16 %v4724
    %v5324 = vunpack.c.l.b16 %v4725
    %v5325 = vunpack.c.l.b16 %v4726
    %v5326 = vunpack.c.l.b16 %v4727
    %v5327 = vunpack.c.l.b16 %v4728
    %v5328 = vunpack.c.l.b16 %v4729
    %v5329 = vunpack.c.l.b16 %v4730
    %v5330 = vunpack.c.l.b16 %v4731
    %v5331 = vunpack.c.l.b16 %v4732
    %v5332 = vunpack.c.l.b16 %v4733
    %v5333 = vunpack.c.l.b16 %v4734
    %v5334 = vunpack.c.l.b16 %v4735
    %v5335 = vunpack.c.l.b16 %v4736
    %v5336 = vunpack.c.l.b16 %v4737
    %v5337 = vunpack.c.l.b16 %v4738
    %v5338 = vunpack.c.l.b16 %v4739
    %v5339 = vunpack.c.l.b16 %v4740
    %v5340 = vunpack.c.l.b16 %v4741
    %v5341 = vunpack.c.l.b16 %v4742
    %v5342 = vunpack.c.l.b16 %v4743
    %v5343 = vunpack.c.l.b16 %v4744
    %v5344 = vunpack.c.l.b16 %v4745
    %v5345 = vunpack.c.l.b16 %v4746
    %v5346 = vunpack.c.l.b16 %v4747
    %v5347 = vunpack.c.l.b16 %v4748
    %v5348 = vunpack.c.l.b16 %v4749
    %v5349 = vunpack.c.l.b16 %v4750
    %v5350 = vunpack.c.l.b16 %v4751
    %v5351 = vunpack.c.l.b16 %v4752
    %v5352 = vunpack.c.l.b16 %v4753
    %v5353 = vunpack.c.l.b16 %v4754
    %v5354 = vunpack.c.l.b16 %v4755
    %v5355 = vunpack.c.l.b16 %v4756
    %v5356 = vunpack.c.l.b16 %v4757
    %v5357 = vunpack.c.l.b16 %v4758
    %v5358 = vunpack.c.l.b16 %v4759
    %v5359 = vunpack.c.l.b16 %v4760
    %v5360 = vunpack.c.l.b16 %v4761
    %v5361 = vunpack.c.l.b16 %v4762
    %v5362 = vunpack.c.l.b16 %v4763
    %v5363 = vunpack.c.l.b16 %v4764
    %v5364 = vunpack.c.l.b16 %v4765
    %v5365 = vunpack.c.l.b16 %v4766
    %v5366 = vunpack.c.l.b16 %v4767
    %v5367 = vunpack.c.l.b16 %v4768
    %v5368 = vunpack.c.l.b16 %v4769
    %v5369 = vunpack.c.l.b16 %v4770
    %v5370 = vunpack.c.l.b16 %v4771
    %v5371 = vunpack.c.l.b16 %v4772
    %v5372 = vunpack.c.l.b16 %v4773
    %v5373 = vunpack.c.l.b16 %v4774
    %v5374 = vunpack.c.l.b16 %v4775
    %v5375 = vunpack.c.l.b16 %v4776
    %v5376 = vunpack.c.l.b16 %v4777
    %v5377 = vunpack.c.l.b16 %v4778
    %v5378 = vunpack.c.l.b16 %v4779
    %v5379 = vunpack.c.l.b16 %v4780
    %v5380 = vunpack.c.l.b16 %v4781
    %v5381 = vunpack.c.l.b16 %v4782
    %v5382 = vunpack.c.l.b16 %v4783
    %v5383 = vunpack.c.l.b16 %v4784
    %v5384 = vunpack.c.l.b16 %v4785
    %v5385 = vunpack.c.l.b16 %v4786
    %v5386 = vunpack.c.l.b16 %v4787
    %v5387 = vunpack.c.l.b16 %v4788
    %v5388 = vunpack.c.l.b16 %v4789
    %v5389 = vunpack.c.l.b16 %v4790
    %v5390 = vunpack.c.l.b16 %v4791
    %v5391 = vunpack.c.l.b16 %v4792
    %v5392 = vunpack.c.l.b16 %v4793
    %v5393 = vunpack.c.l.b16 %v4794
    %v5394 = vunpack.c.l.b16 %v4795
    %v5395 = vunpack.c.l.b16 %v4796
    %v5396 = vunpack.c.l.b16 %v4797
    %v5397 = vunpack.c.l.b16 %v4798
    %v5398 = vunpack.c.l.b16 %v4799
    %v5399 = vunpack.c.l.b16 %v4800
    %v5400 = vunpack.c.l.b16 %v4801
    %v5401 = vunpack.c.l.b16 %v4802
    %v5402 = vunpack.c.l.b16 %v4803
    %v5403 = vunpack.c.l.b16 %v4804
    %v5404 = vunpack.c.l.b16 %v4805
    %v5405 = vunpack.c.l.b16 %v4806
    %v5406 = vunpack.c.l.b16 %v4807
    %v5407 = vunpack.c.l.b16 %v4808
    %v5408 = vunpack.c.l.b16 %v4809
    %v5409 = vunpack.c.l.b16 %v4810
    %v5410 = vunpack.c.l.b16 %v4811
    %v5411 = vunpack.c.l.b16 %v4812
    %v5412 = vunpack.c.l.b16 %v4813
    %v5413 = vunpack.c.l.b16 %v4814
    %v5414 = vunpack.c.l.b16 %v4815
    %v5415 = vunpack.c.l.b16 %v4816
    %v5416 = vunpack.c.l.b16 %v4817
    %v5417 = vunpack.c.l.b16 %v4818
    %v5418 = vunpack.c.l.b16 %v4819
    %v5419 = vunpack.c.l.b16 %v4820
    %v5420 = vunpack.c.l.b16 %v4821
    %v5421 = vunpack.c.l.b16 %v4822
    %v5422 = vunpack.c.l.b16 %v4823
    %v5423 = vunpack.c.l.b16 %v4824
    %v5424 = vunpack.c.l.b16 %v4825
    %v5425 = vunpack.c.l.b16 %v4826
    %v5426 = vunpack.c.l.b16 %v4827
    %v5427 = vunpack.c.l.b16 %v4828
    %v5428 = vunpack.c.l.b16 %v4829
    %v5429 = vunpack.c.l.b16 %v4830
    %v5430 = vunpack.c.l.b16 %v4831
    %v5431 = vunpack.c.l.b16 %v4832
    %v5432 = vunpack.c.l.b16 %v4833
    %v5433 = vunpack.c.l.b16 %v4834
    %v5434 = vunpack.c.l.b16 %v4835
    %v5435 = vunpack.c.l.b16 %v4836
    %v5436 = vunpack.c.l.b16 %v4837
    %v5437 = vunpack.c.l.b16 %v4838
    %v5438 = vunpack.c.l.b16 %v4839
    %v5439 = vunpack.c.l.b16 %v4840
    %v5440 = vunpack.c.l.b16 %v4841
    %v5441 = vunpack.c.l.b16 %v4842
    %v5442 = vunpack.c.l.b16 %v4843
    %v5443 = vunpack.c.l.b16 %v4844
    %v5444 = vunpack.c.l.b16 %v4845
    %v5445 = vunpack.c.l.b16 %v4846
    %v5446 = vunpack.c.l.b16 %v4847
    %v5447 = vunpack.c.l.b16 %v4848
    %v5448 = vunpack.c.l.b16 %v4849
    %v5449 = vunpack.c.l.b16 %v4850
    %v5450 = vunpack.c.l.b16 %v4851
    %v5451 = vunpack.c.l.b16 %v4852
    %v5452 = vunpack.c.l.b16 %v4853
    %v5453 = vunpack.c.l.b16 %v4854
    %v5454 = vunpack.c.l.b16 %v4855
    %v5455 = vunpack.c.l.b16 %v4856
    %v5456 = vunpack.c.l.b16 %v4857
    %v5457 = vunpack.c.l.b16 %v4858
    %v5458 = vunpack.c.l.b16 %v4859
    %v5459 = vunpack.c.l.b16 %v4860
    %v5460 = vunpack.c.l.b16 %v4861
    %v5461 = vunpack.c.l.b16 %v4862
    %v5462 = vunpack.c.l.b16 %v4863
    %v5463 = vunpack.c.l.b16 %v4864
    %v5464 = vunpack.c.l.b16 %v4865
    %v5465 = vunpack.c.l.b16 %v4866
    %v5466 = vunpack.c.l.b16 %v4867
    %v5467 = vunpack.c.l.b16 %v4868
    %v5468 = vunpack.c.l.b16 %v4869
    %v5469 = vunpack.c.l.b16 %v4870
    %v5470 = vunpack.c.l.b16 %v4871
    %v5471 = vunpack.c.l.b16 %v4872
    %v5472 = vunpack.c.l.b16 %v4873
    %v5473 = vunpack.c.l.b16 %v4874
    %v5474 = vunpack.c.l.b16 %v4875
    %v5475 = vunpack.c.l.b16 %v4876
    %v5476 = vunpack.c.l.b16 %v4877
    %v5477 = vunpack.c.l.b16 %v4878
    %v5478 = vunpack.c.l.b16 %v4879
    %v5479 = vunpack.c.l.b16 %v4880
    %v5480 = vunpack.c.l.b16 %v4881
    %v5481 = vunpack.c.l.b16 %v4882
    %v5482 = vunpack.c.l.b16 %v4883
    %v5483 = vunpack.c.l.b16 %v4884
    %v5484 = vunpack.c.l.b16 %v4885
    %v5485 = vunpack.c.l.b16 %v4886
    %v5486 = vunpack.c.l.b16 %v4887
    %v5487 = vunpack.c.l.b16 %v4888
    %v5488 = vunpack.c.l.b16 %v4889
    %v5489 = vunpack.c.l.b16 %v4890
    %v5490 = vunpack.c.l.b16 %v4891
    %v5491 = vunpack.c.l.b16 %v4892
    %v5492 = vunpack.c.l.b16 %v4893
    %v5493 = vunpack.c.l.b16 %v4894
    %v5494 = vunpack.c.l.b16 %v4895
    %v5495 = vunpack.c.l.b16 %v4896
    %v5496 = vunpack.c.l.b16 %v4897
    %v5497 = vunpack.c.l.b16 %v4898
    %v5498 = vunpack.c.l.b16 %v4899
    %v5499 = vunpack.c.l.b16 %v4900
    %v5500 = vunpack.c.l.b16 %v4901
    %v5501 = vunpack.c.l.b16 %v4902
    %v5502 = vunpack.c.l.b16 %v4903
    %v5503 = vunpack.c.l.b16 %v4904
    %v5504 = vunpack.c.l.b16 %v4905
    %v5505 = vunpack.c.l.b16 %v4906
    %v5506 = vunpack.c.l.b16 %v4907
    %v5507 = vunpack.c.l.b16 %v4908
    %v5508 = vunpack.c.l.b16 %v4909
    %v5509 = vunpack.c.l.b16 %v4910
    %v5510 = vunpack.c.l.b16 %v4911
    %v5511 = vunpack.c.l.b16 %v4912
    %v5512 = vunpack.c.l.b16 %v4913
    %v5513 = vunpack.c.l.b16 %v4914
    %v5514 = vunpack.c.l.b16 %v4915
    %v5515 = vunpack.c.l.b16 %v4916
    %v5516 = vunpack.c.l.b16 %v4917
    %v5517 = vunpack.c.l.b16 %v4918
    %v5518 = vunpack.c.l.b16 %v4919
    %v5519 = vunpack.c.l.b16 %v4920
    %v5520 = vunpack.c.l.b16 %v4921
    %v5521 = vunpack.c.l.b16 %v4922
    %v5522 = vunpack.c.l.b16 %v4923
    %v5523 = vunpack.c.l.b16 %v4924
    %v5524 = vunpack.c.l.b16 %v4925
    %v5525 = vunpack.c.l.b16 %v4926
    %v5526 = vunpack.c.l.b16 %v4927
    %v5527 = vunpack.c.l.b16 %v4928
    %v5528 = vunpack.c.l.b16 %v4929
    %v5529 = vunpack.c.l.b16 %v4930
    %v5530 = vunpack.c.l.b16 %v4931
    %v5531 = vunpack.c.l.b16 %v4932
    %v5532 = vunpack.c.l.b16 %v4933
    %v5533 = vunpack.c.l.b16 %v4934
    %v5534 = vunpack.c.l.b16 %v4935
    %v5535 = vunpack.c.l.b16 %v4936
    %v5536 = vunpack.c.l.b16 %v4937
    %v5537 = vunpack.c.l.b16 %v4938
    %v5538 = vunpack.c.l.b16 %v4939
    %v5539 = vunpack.c.l.b16 %v4940
    %v5540 = vunpack.c.l.b16 %v4941
    %v5541 = vunpack.c.l.b16 %v4942
    %v5542 = vunpack.c.l.b16 %v4943
    %v5543 = vunpack.c.l.b16 %v4944
    %v5544 = vunpack.c.l.b16 %v4945
    %v5545 = vunpack.c.l.b16 %v4946
    %v5546 = vunpack.c.l.b16 %v4947
    %v5547 = vunpack.c.l.b16 %v4948
    %v5548 = vunpack.c.l.b16 %v4949
    %v5549 = vunpack.c.l.b16 %v4950
    %v5550 = vunpack.c.l.b16 %v4951
    %v5551 = vunpack.c.l.b16 %v4952
    %v5552 = vunpack.c.l.b16 %v4953
    %v5553 = vunpack.c.l.b16 %v4954
    %v5554 = vpack.c.b16 %v5299, %v5298
    %v5555 = vpack.c.b16 %v5301, %v5300
    %v5556 = vpack.c.b16 %v5303, %v5302
    %v5557 = vpack.c.b16 %v5305, %v5304
    %v5558 = vpack.c.b16 %v5307, %v5306
    %v5559 = vpack.c.b16 %v5309, %v5308
    %v5560 = vpack.c.b16 %v5311, %v5310
    %v5561 = vpack.c.b16 %v5313, %v5312
    %v5562 = vpack.c.b16 %v5315, %v5314
    %v5563 = vpack.c.b16 %v5317, %v5316
    %v5564 = vpack.c.b16 %v5319, %v5318
    %v5565 = vpack.c.b16 %v5321, %v5320
    %v5566 = vpack.c.b16 %v5323, %v5322
    %v5567 = vpack.c.b16 %v5325, %v5324
    %v5568 = vpack.c.b16 %v5327, %v5326
    %v5569 = vpack.c.b16 %v5329, %v5328
    %v5570 = vpack.c.b16 %v5331, %v5330
    %v5571 = vpack.c.b16 %v5333, %v5332
    %v5572 = vpack.c.b16 %v5335, %v5334
    %v5573 = vpack.c.b16 %v5337, %v5336
    %v5574 = vpack.c.b16 %v5339, %v5338
    %v5575 = vpack.c.b16 %v5341, %v5340
    %v5576 = vpack.c.b16 %v5343, %v5342
    %v5577 = vpack.c.b16 %v5345, %v5344
    %v5578 = vpack.c.b16 %v5347, %v5346
    %v5579 = vpack.c.b16 %v5349, %v5348
    %v5580 = vpack.c.b16 %v5351, %v5350
    %v5581 = vpack.c.b16 %v5353, %v5352
    %v5582 = vpack.c.b16 %v5355, %v5354
    %v5583 = vpack.c.b16 %v5357, %v5356
    %v5584 = vpack.c.b16 %v5359, %v5358
    %v5585 = vpack.c.b16 %v5361, %v5360
    %v5586 = vpack.c.b16 %v5363, %v5362
    %v5587 = vpack.c.b16 %v5365, %v5364
    %v5588 = vpack.c.b16 %v5367, %v5366
    %v5589 = vpack.c.b16 %v5369, %v5368
    %v5590 = vpack.c.b16 %v5371, %v5370
    %v5591 = vpack.c.b16 %v5373, %v5372
    %v5592 = vpack.c.b16 %v5375, %v5374
    %v5593 = vpack.c.b16 %v5377, %v5376
    %v5594 = vpack.c.b16 %v5379, %v5378
    %v5595 = vpack.c.b16 %v5381, %v5380
    %v5596 = vpack.c.b16 %v5383, %v5382
    %v5597 = vpack.c.b16 %v5385, %v5384
    %v5598 = vpack.c.b16 %v5387, %v5386
    %v5599 = vpack.c.b16 %v5389, %v5388
    %v5600 = vpack.c.b16 %v5391, %v5390
    %v5601 = vpack.c.b16 %v5393, %v5392
    %v5602 = vpack.c.b16 %v5395, %v5394
    %v5603 = vpack.c.b16 %v5397, %v5396
    %v5604 = vpack.c.b16 %v5399, %v5398
    %v5605 = vpack.c.b16 %v5401, %v5400
    %v5606 = vpack.c.b16 %v5403, %v5402
    %v5607 = vpack.c.b16 %v5405, %v5404
    %v5608 = vpack.c.b16 %v5407, %v5406
    %v5609 = vpack.c.b16 %v5409, %v5408
    %v5610 = vpack.c.b16 %v5411, %v5410
    %v5611 = vpack.c.b16 %v5413, %v5412
    %v5612 = vpack.c.b16 %v5415, %v5414
    %v5613 = vpack.c.b16 %v5417, %v5416
    %v5614 = vpack.c.b16 %v5419, %v5418
    %v5615 = vpack.c.b16 %v5421, %v5420
    %v5616 = vpack.c.b16 %v5423, %v5422
    %v5617 = vpack.c.b16 %v5425, %v5424
    %v5618 = vpack.c.b16 %v5427, %v5426
    %v5619 = vpack.c.b16 %v5429, %v5428
    %v5620 = vpack.c.b16 %v5431, %v5430
    %v5621 = vpack.c.b16 %v5433, %v5432
    %v5622 = vpack.c.b16 %v5435, %v5434
    %v5623 = vpack.c.b16 %v5437, %v5436
    %v5624 = vpack.c.b16 %v5439, %v5438
    %v5625 = vpack.c.b16 %v5441, %v5440
    %v5626 = vpack.c.b16 %v5443, %v5442
    %v5627 = vpack.c.b16 %v5445, %v5444
    %v5628 = vpack.c.b16 %v5447, %v5446
    %v5629 = vpack.c.b16 %v5449, %v5448
    %v5630 = vpack.c.b16 %v5451, %v5450
    %v5631 = vpack.c.b16 %v5453, %v5452
    %v5632 = vpack.c.b16 %v5455, %v5454
    %v5633 = vpack.c.b16 %v5457, %v5456
    %v5634 = vpack.c.b16 %v5459, %v5458
    %v5635 = vpack.c.b16 %v5461, %v5460
    %v5636 = vpack.c.b16 %v5463, %v5462
    %v5637 = vpack.c.b16 %v5465, %v5464
    %v5638 = vpack.c.b16 %v5467, %v5466
    %v5639 = vpack.c.b16 %v5469, %v5468
    %v5640 = vpack.c.b16 %v5471, %v5470
    %v5641 = vpack.c.b16 %v5473, %v5472
    %v5642 = vpack.c.b16 %v5475, %v5474
    %v5643 = vpack.c.b16 %v5477, %v5476
    %v5644 = vpack.c.b16 %v5479, %v5478
    %v5645 = vpack.c.b16 %v5481, %v5480
    %v5646 = vpack.c.b16 %v5483, %v5482
    %v5647 = vpack.c.b16 %v5485, %v5484
    %v5648 = vpack.c.b16 %v5487, %v5486
    %v5649 = vpack.c.b16 %v5489, %v5488
    %v5650 = vpack.c.b16 %v5491, %v5490
    %v5651 = vpack.c.b16 %v5493, %v5492
    %v5652 = vpack.c.b16 %v5495, %v5494
    %v5653 = vpack.c.b16 %v5497, %v5496
    %v5654 = vpack.c.b16 %v5499, %v5498
    %v5655 = vpack.c.b16 %v5501, %v5500
    %v5656 = vpack.c.b16 %v5503, %v5502
    %v5657 = vpack.c.b16 %v5505, %v5504
    %v5658 = vpack.c.b16 %v5507, %v5506
    %v5659 = vpack.c.b16 %v5509, %v5508
    %v5660 = vpack.c.b16 %v5511, %v5510
    %v5661 = vpack.c.b16 %v5513, %v5512
    %v5662 = vpack.c.b16 %v5515, %v5514
    %v5663 = vpack.c.b16 %v5517, %v5516
    %v5664 = vpack.c.b16 %v5519, %v5518
    %v5665 = vpack.c.b16 %v5521, %v5520
    %v5666 = vpack.c.b16 %v5523, %v5522
    %v5667 = vpack.c.b16 %v5525, %v5524
    %v5668 = vpack.c.b16 %v5527, %v5526
    %v5669 = vpack.c.b16 %v5529, %v5528
    %v5670 = vpack.c.b16 %v5531, %v5530
    %v5671 = vpack.c.b16 %v5533, %v5532
    %v5672 = vpack.c.b16 %v5535, %v5534
    %v5673 = vpack.c.b16 %v5537, %v5536
    %v5674 = vpack.c.b16 %v5539, %v5538
    %v5675 = vpack.c.b16 %v5541, %v5540
    %v5676 = vpack.c.b16 %v5543, %v5542
    %v5677 = vpack.c.b16 %v5545, %v5544
    %v5678 = vpack.c.b16 %v5547, %v5546
    %v5679 = vpack.c.b16 %v5549, %v5548
    %v5680 = vpack.c.b16 %v5551, %v5550
    %v5681 = vpack.c.b16 %v5553, %v5552
    %5810 = vmatprep.subr.bf16.mxu0 0
    %5811 = vmatpush1.bf16.msra.mxu0 %v5561
    %5812 = vmatprep.subr.bf16.mxu0 0
    %5813 = vmatpush1.bf16.msra.mxu0 %v5560
    %5814 = vmatprep.subr.bf16.mxu0 0
    %5815 = vmatpush1.bf16.msra.mxu0 %v5559
    %5816 = vmatprep.subr.bf16.mxu0 0
    %5817 = vmatpush1.bf16.msra.mxu0 %v5558
    %5818 = vmatprep.subr.bf16.mxu0 0
    %5819 = vmatpush1.bf16.msra.mxu0 %v5557
    %5820 = vmatprep.subr.bf16.mxu0 0
    %5821 = vmatpush1.bf16.msra.mxu0 %v5556
    %5822 = vmatprep.subr.bf16.mxu0 0
    %5823 = vmatpush1.bf16.msra.mxu0 %v5555
    %5824 = vmatprep.subr.bf16.mxu0 0
    %5825 = vmatpush1.bf16.msra.mxu0 %v5554
    %5826 = vmatprep.subr.bf16.mxu0 0
    %5827 = vmatpush2.bf16.msra.mxu0 %v5569
    %5828 = vmatprep.subr.bf16.mxu0 0
    %5829 = vmatpush2.bf16.msra.mxu0 %v5568
    %5830 = vmatprep.subr.bf16.mxu0 0
    %5831 = vmatpush2.bf16.msra.mxu0 %v5567
    %5832 = vmatprep.subr.bf16.mxu0 0
    %5833 = vmatpush2.bf16.msra.mxu0 %v5566
    %5834 = vmatprep.subr.bf16.mxu0 0
    %5835 = vmatpush2.bf16.msra.mxu0 %v5565
    %5836 = vmatprep.subr.bf16.mxu0 0
    %5837 = vmatpush2.bf16.msra.mxu0 %v5564
    %5838 = vmatprep.subr.bf16.mxu0 0
    %5839 = vmatpush2.bf16.msra.mxu0 %v5563
    %5840 = vmatprep.subr.bf16.mxu0 0
    %5841 = vmatpush2.bf16.msra.mxu0 %v5562
    %5842 = vmatprep.mubr.bf16.mxu0 %v5011
    %5843 = vmatmul.mubr.bf16.gmra.mxu0 %v5010
    %v5844 = vpop.f32.mrf.mxu0
    %v5845 = vadd.f32 %v4960, %v5844
    %v5846 = vpop.f32.mrf.mxu0
    %v5847 = vpop.f32.mrf.mxu0
    %v5848 = vadd.f32 %v4960, %v5847
    %v5849 = vpop.f32.mrf.mxu0
    %5850 = vdwg.mxu0
    %5851 = vmatprep.subr.bf16.mxu0 0
    %5852 = vmatpush1.bf16.msra.mxu0 %v5577
    %5853 = vmatprep.subr.bf16.mxu0 0
    %5854 = vmatpush1.bf16.msra.mxu0 %v5576
    %5855 = vmatprep.subr.bf16.mxu0 0
    %5856 = vmatpush1.bf16.msra.mxu0 %v5575
    %5857 = vmatprep.subr.bf16.mxu0 0
    %5858 = vmatpush1.bf16.msra.mxu0 %v5574
    %5859 = vmatprep.subr.bf16.mxu0 0
    %5860 = vmatpush1.bf16.msra.mxu0 %v5573
    %5861 = vmatprep.subr.bf16.mxu0 0
    %5862 = vmatpush1.bf16.msra.mxu0 %v5572
    %5863 = vmatprep.subr.bf16.mxu0 0
    %5864 = vmatpush1.bf16.msra.mxu0 %v5571
    %5865 = vmatprep.subr.bf16.mxu0 0
    %5866 = vmatpush1.bf16.msra.mxu0 %v5570
    %5867 = vmatprep.subr.bf16.mxu0 0
    %5868 = vmatpush2.bf16.msra.mxu0 %v5585
    %5869 = vmatprep.subr.bf16.mxu0 0
    %5870 = vmatpush2.bf16.msra.mxu0 %v5584
    %5871 = vmatprep.subr.bf16.mxu0 0
    %5872 = vmatpush2.bf16.msra.mxu0 %v5583
    %5873 = vmatprep.subr.bf16.mxu0 0
    %5874 = vmatpush2.bf16.msra.mxu0 %v5582
    %5875 = vmatprep.subr.bf16.mxu0 0
    %5876 = vmatpush2.bf16.msra.mxu0 %v5581
    %5877 = vmatprep.subr.bf16.mxu0 0
    %5878 = vmatpush2.bf16.msra.mxu0 %v5580
    %5879 = vmatprep.subr.bf16.mxu0 0
    %5880 = vmatpush2.bf16.msra.mxu0 %v5579
    %5881 = vmatprep.subr.bf16.mxu0 0
    %5882 = vmatpush2.bf16.msra.mxu0 %v5578
    %5883 = vmatprep.mubr.bf16.mxu0 %v5013
    %5884 = vmatmul.mubr.bf16.gmra.mxu0 %v5012
    %v5885 = vpop.f32.mrf.mxu0
    %v5886 = vadd.f32 %v5845, %v5885
    %v5887 = vpop.f32.mrf.mxu0
    %v5888 = vpop.f32.mrf.mxu0
    %v5889 = vadd.f32 %v5848, %v5888
    %v5890 = vpop.f32.mrf.mxu0
    %5891 = vdwg.mxu0
    %5892 = vmatprep.subr.bf16.mxu0 0
    %5893 = vmatpush1.bf16.msra.mxu0 %v5593
    %5894 = vmatprep.subr.bf16.mxu0 0
    %5895 = vmatpush1.bf16.msra.mxu0 %v5592
    %5896 = vmatprep.subr.bf16.mxu0 0
    %5897 = vmatpush1.bf16.msra.mxu0 %v5591
    %5898 = vmatprep.subr.bf16.mxu0 0
    %5899 = vmatpush1.bf16.msra.mxu0 %v5590
    %5900 = vmatprep.subr.bf16.mxu0 0
    %5901 = vmatpush1.bf16.msra.mxu0 %v5589
    %5902 = vmatprep.subr.bf16.mxu0 0
    %5903 = vmatpush1.bf16.msra.mxu0 %v5588
    %5904 = vmatprep.subr.bf16.mxu0 0
    %5905 = vmatpush1.bf16.msra.mxu0 %v5587
    %5906 = vmatprep.subr.bf16.mxu0 0
    %5907 = vmatpush1.bf16.msra.mxu0 %v5586
    %5908 = vmatprep.subr.bf16.mxu0 0
    %5909 = vmatpush2.bf16.msra.mxu0 %v5601
    %5910 = vmatprep.subr.bf16.mxu0 0
    %5911 = vmatpush2.bf16.msra.mxu0 %v5600
    %5912 = vmatprep.subr.bf16.mxu0 0
    %5913 = vmatpush2.bf16.msra.mxu0 %v5599
    %5914 = vmatprep.subr.bf16.mxu0 0
    %5915 = vmatpush2.bf16.msra.mxu0 %v5598
    %5916 = vmatprep.subr.bf16.mxu0 0
    %5917 = vmatpush2.bf16.msra.mxu0 %v5597
    %5918 = vmatprep.subr.bf16.mxu0 0
    %5919 = vmatpush2.bf16.msra.mxu0 %v5596
    %5920 = vmatprep.subr.bf16.mxu0 0
    %5921 = vmatpush2.bf16.msra.mxu0 %v5595
    %5922 = vmatprep.subr.bf16.mxu0 0
    %5923 = vmatpush2.bf16.msra.mxu0 %v5594
    %5924 = vmatprep.mubr.bf16.mxu0 %v5015
    %5925 = vmatmul.mubr.bf16.gmra.mxu0 %v5014
    %v5926 = vpop.f32.mrf.mxu0
    %v5927 = vadd.f32 %v5886, %v5926
    %v5928 = vpop.f32.mrf.mxu0
    %v5929 = vpop.f32.mrf.mxu0
    %v5930 = vadd.f32 %v5889, %v5929
    %v5931 = vpop.f32.mrf.mxu0
    %5932 = vdwg.mxu0
    %5933 = vmatprep.subr.bf16.mxu0 0
    %5934 = vmatpush1.bf16.msra.mxu0 %v5609
    %5935 = vmatprep.subr.bf16.mxu0 0
    %5936 = vmatpush1.bf16.msra.mxu0 %v5608
    %5937 = vmatprep.subr.bf16.mxu0 0
    %5938 = vmatpush1.bf16.msra.mxu0 %v5607
    %5939 = vmatprep.subr.bf16.mxu0 0
    %5940 = vmatpush1.bf16.msra.mxu0 %v5606
    %5941 = vmatprep.subr.bf16.mxu0 0
    %5942 = vmatpush1.bf16.msra.mxu0 %v5605
    %5943 = vmatprep.subr.bf16.mxu0 0
    %5944 = vmatpush1.bf16.msra.mxu0 %v5604
    %5945 = vmatprep.subr.bf16.mxu0 0
    %5946 = vmatpush1.bf16.msra.mxu0 %v5603
    %5947 = vmatprep.subr.bf16.mxu0 0
    %5948 = vmatpush1.bf16.msra.mxu0 %v5602
    %5949 = vmatprep.subr.bf16.mxu0 0
    %5950 = vmatpush2.bf16.msra.mxu0 %v5617
    %5951 = vmatprep.subr.bf16.mxu0 0
    %5952 = vmatpush2.bf16.msra.mxu0 %v5616
    %5953 = vmatprep.subr.bf16.mxu0 0
    %5954 = vmatpush2.bf16.msra.mxu0 %v5615
    %5955 = vmatprep.subr.bf16.mxu0 0
    %5956 = vmatpush2.bf16.msra.mxu0 %v5614
    %5957 = vmatprep.subr.bf16.mxu0 0
    %5958 = vmatpush2.bf16.msra.mxu0 %v5613
    %5959 = vmatprep.subr.bf16.mxu0 0
    %5960 = vmatpush2.bf16.msra.mxu0 %v5612
    %5961 = vmatprep.subr.bf16.mxu0 0
    %5962 = vmatpush2.bf16.msra.mxu0 %v5611
    %5963 = vmatprep.subr.bf16.mxu0 0
    %5964 = vmatpush2.bf16.msra.mxu0 %v5610
    %5965 = vmatprep.mubr.bf16.mxu0 %v5017
    %5966 = vmatmul.mubr.bf16.gmra.mxu0 %v5016
    %v5967 = vpop.f32.mrf.mxu0
    %v5968 = vadd.f32 %v5927, %v5967
    %v5969 = vpop.f32.mrf.mxu0
    %v5970 = vpop.f32.mrf.mxu0
    %v5971 = vadd.f32 %v5930, %v5970
    %v5972 = vpop.f32.mrf.mxu0
    %5973 = vdwg.mxu0
    %5974 = vmatprep.subr.bf16.mxu0 0
    %5975 = vmatpush1.bf16.msra.mxu0 %v5625
    %5976 = vmatprep.subr.bf16.mxu0 0
    %5977 = vmatpush1.bf16.msra.mxu0 %v5624
    %5978 = vmatprep.subr.bf16.mxu0 0
    %5979 = vmatpush1.bf16.msra.mxu0 %v5623
    %5980 = vmatprep.subr.bf16.mxu0 0
    %5981 = vmatpush1.bf16.msra.mxu0 %v5622
    %5982 = vmatprep.subr.bf16.mxu0 0
    %5983 = vmatpush1.bf16.msra.mxu0 %v5621
    %5984 = vmatprep.subr.bf16.mxu0 0
    %5985 = vmatpush1.bf16.msra.mxu0 %v5620
    %5986 = vmatprep.subr.bf16.mxu0 0
    %5987 = vmatpush1.bf16.msra.mxu0 %v5619
    %5988 = vmatprep.subr.bf16.mxu0 0
    %5989 = vmatpush1.bf16.msra.mxu0 %v5618
    %5990 = vmatprep.subr.bf16.mxu0 0
    %5991 = vmatpush2.bf16.msra.mxu0 %v5633
    %5992 = vmatprep.subr.bf16.mxu0 0
    %5993 = vmatpush2.bf16.msra.mxu0 %v5632
    %5994 = vmatprep.subr.bf16.mxu0 0
    %5995 = vmatpush2.bf16.msra.mxu0 %v5631
    %5996 = vmatprep.subr.bf16.mxu0 0
    %5997 = vmatpush2.bf16.msra.mxu0 %v5630
    %5998 = vmatprep.subr.bf16.mxu0 0
    %5999 = vmatpush2.bf16.msra.mxu0 %v5629
    %6000 = vmatprep.subr.bf16.mxu0 0
    %6001 = vmatpush2.bf16.msra.mxu0 %v5628
    %6002 = vmatprep.subr.bf16.mxu0 0
    %6003 = vmatpush2.bf16.msra.mxu0 %v5627
    %6004 = vmatprep.subr.bf16.mxu0 0
    %6005 = vmatpush2.bf16.msra.mxu0 %v5626
    %6006 = vmatprep.mubr.bf16.mxu0 %v5019
    %6007 = vmatmul.mubr.bf16.gmra.mxu0 %v5018
    %v6008 = vpop.f32.mrf.mxu0
    %v6009 = vadd.f32 %v5968, %v6008
    %v6010 = vpop.f32.mrf.mxu0
    %v6011 = vpop.f32.mrf.mxu0
    %v6012 = vadd.f32 %v5971, %v6011
    %v6013 = vpop.f32.mrf.mxu0
    %6014 = vdwg.mxu0
    %6015 = vmatprep.subr.bf16.mxu0 0
    %6016 = vmatpush1.bf16.msra.mxu0 %v5641
    %6017 = vmatprep.subr.bf16.mxu0 0
    %6018 = vmatpush1.bf16.msra.mxu0 %v5640
    %6019 = vmatprep.subr.bf16.mxu0 0
    %6020 = vmatpush1.bf16.msra.mxu0 %v5639
    %6021 = vmatprep.subr.bf16.mxu0 0
    %6022 = vmatpush1.bf16.msra.mxu0 %v5638
    %6023 = vmatprep.subr.bf16.mxu0 0
    %6024 = vmatpush1.bf16.msra.mxu0 %v5637
    %6025 = vmatprep.subr.bf16.mxu0 0
    %6026 = vmatpush1.bf16.msra.mxu0 %v5636
    %6027 = vmatprep.subr.bf16.mxu0 0
    %6028 = vmatpush1.bf16.msra.mxu0 %v5635
    %6029 = vmatprep.subr.bf16.mxu0 0
    %6030 = vmatpush1.bf16.msra.mxu0 %v5634
    %6031 = vmatprep.subr.bf16.mxu0 0
    %6032 = vmatpush2.bf16.msra.mxu0 %v5649
    %6033 = vmatprep.subr.bf16.mxu0 0
    %6034 = vmatpush2.bf16.msra.mxu0 %v5648
    %6035 = vmatprep.subr.bf16.mxu0 0
    %6036 = vmatpush2.bf16.msra.mxu0 %v5647
    %6037 = vmatprep.subr.bf16.mxu0 0
    %6038 = vmatpush2.bf16.msra.mxu0 %v5646
    %6039 = vmatprep.subr.bf16.mxu0 0
    %6040 = vmatpush2.bf16.msra.mxu0 %v5645
    %6041 = vmatprep.subr.bf16.mxu0 0
    %6042 = vmatpush2.bf16.msra.mxu0 %v5644
    %6043 = vmatprep.subr.bf16.mxu0 0
    %6044 = vmatpush2.bf16.msra.mxu0 %v5643
    %6045 = vmatprep.subr.bf16.mxu0 0
    %6046 = vmatpush2.bf16.msra.mxu0 %v5642
    %6047 = vmatprep.mubr.bf16.mxu0 %v5021
    %6048 = vmatmul.mubr.bf16.gmra.mxu0 %v5020
    %v6049 = vpop.f32.mrf.mxu0
    %v6050 = vadd.f32 %v6009, %v6049
    %v6051 = vpop.f32.mrf.mxu0
    %v6052 = vpop.f32.mrf.mxu0
    %v6053 = vadd.f32 %v6012, %v6052
    %v6054 = vpop.f32.mrf.mxu0
    %6055 = vdwg.mxu0
    %6056 = vmatprep.subr.bf16.mxu0 0
    %6057 = vmatpush1.bf16.msra.mxu0 %v5657
    %6058 = vmatprep.subr.bf16.mxu0 0
    %6059 = vmatpush1.bf16.msra.mxu0 %v5656
    %6060 = vmatprep.subr.bf16.mxu0 0
    %6061 = vmatpush1.bf16.msra.mxu0 %v5655
    %6062 = vmatprep.subr.bf16.mxu0 0
    %6063 = vmatpush1.bf16.msra.mxu0 %v5654
    %6064 = vmatprep.subr.bf16.mxu0 0
    %6065 = vmatpush1.bf16.msra.mxu0 %v5653
    %6066 = vmatprep.subr.bf16.mxu0 0
    %6067 = vmatpush1.bf16.msra.mxu0 %v5652
    %6068 = vmatprep.subr.bf16.mxu0 0
    %6069 = vmatpush1.bf16.msra.mxu0 %v5651
    %6070 = vmatprep.subr.bf16.mxu0 0
    %6071 = vmatpush1.bf16.msra.mxu0 %v5650
    %6072 = vmatprep.subr.bf16.mxu0 0
    %6073 = vmatpush2.bf16.msra.mxu0 %v5665
    %6074 = vmatprep.subr.bf16.mxu0 0
    %6075 = vmatpush2.bf16.msra.mxu0 %v5664
    %6076 = vmatprep.subr.bf16.mxu0 0
    %6077 = vmatpush2.bf16.msra.mxu0 %v5663
    %6078 = vmatprep.subr.bf16.mxu0 0
    %6079 = vmatpush2.bf16.msra.mxu0 %v5662
    %6080 = vmatprep.subr.bf16.mxu0 0
    %6081 = vmatpush2.bf16.msra.mxu0 %v5661
    %6082 = vmatprep.subr.bf16.mxu0 0
    %6083 = vmatpush2.bf16.msra.mxu0 %v5660
    %6084 = vmatprep.subr.bf16.mxu0 0
    %6085 = vmatpush2.bf16.msra.mxu0 %v5659
    %6086 = vmatprep.subr.bf16.mxu0 0
    %6087 = vmatpush2.bf16.msra.mxu0 %v5658
    %6088 = vmatprep.mubr.bf16.mxu0 %v5023
    %6089 = vmatmul.mubr.bf16.gmra.mxu0 %v5022
    %v6090 = vpop.f32.mrf.mxu0
    %v6091 = vadd.f32 %v6050, %v6090
    %v6092 = vpop.f32.mrf.mxu0
    %v6093 = vpop.f32.mrf.mxu0
    %v6094 = vadd.f32 %v6053, %v6093
    %v6095 = vpop.f32.mrf.mxu0
    %6096 = vdwg.mxu0
    %6097 = vmatprep.subr.bf16.mxu0 0
    %6098 = vmatpush1.bf16.msra.mxu0 %v5673
    %6099 = vmatprep.subr.bf16.mxu0 0
    %6100 = vmatpush1.bf16.msra.mxu0 %v5672
    %6101 = vmatprep.subr.bf16.mxu0 0
    %6102 = vmatpush1.bf16.msra.mxu0 %v5671
    %6103 = vmatprep.subr.bf16.mxu0 0
    %6104 = vmatpush1.bf16.msra.mxu0 %v5670
    %6105 = vmatprep.subr.bf16.mxu0 0
    %6106 = vmatpush1.bf16.msra.mxu0 %v5669
    %6107 = vmatprep.subr.bf16.mxu0 0
    %6108 = vmatpush1.bf16.msra.mxu0 %v5668
    %6109 = vmatprep.subr.bf16.mxu0 0
    %6110 = vmatpush1.bf16.msra.mxu0 %v5667
    %6111 = vmatprep.subr.bf16.mxu0 0
    %6112 = vmatpush1.bf16.msra.mxu0 %v5666
    %6113 = vmatprep.subr.bf16.mxu0 0
    %6114 = vmatpush2.bf16.msra.mxu0 %v5681
    %6115 = vmatprep.subr.bf16.mxu0 0
    %6116 = vmatpush2.bf16.msra.mxu0 %v5680
    %6117 = vmatprep.subr.bf16.mxu0 0
    %6118 = vmatpush2.bf16.msra.mxu0 %v5679
    %6119 = vmatprep.subr.bf16.mxu0 0
    %6120 = vmatpush2.bf16.msra.mxu0 %v5678
    %6121 = vmatprep.subr.bf16.mxu0 0
    %6122 = vmatpush2.bf16.msra.mxu0 %v5677
    %6123 = vmatprep.subr.bf16.mxu0 0
    %6124 = vmatpush2.bf16.msra.mxu0 %v5676
    %6125 = vmatprep.subr.bf16.mxu0 0
    %6126 = vmatpush2.bf16.msra.mxu0 %v5675
    %6127 = vmatprep.subr.bf16.mxu0 0
    %6128 = vmatpush2.bf16.msra.mxu0 %v5674
    %6129 = vmatprep.mubr.bf16.mxu0 %v5025
    %6130 = vmatmul.mubr.bf16.gmra.mxu0 %v5024
    %v6131 = vpop.f32.mrf.mxu0
    %v6132 = vadd.f32 %v6091, %v6131
    %v6133 = vpop.f32.mrf.mxu0
    %v6134 = vpop.f32.mrf.mxu0
    %v6135 = vadd.f32 %v6094, %v6134
    %v6136 = vpop.f32.mrf.mxu0
    %6137 = vdwg.mxu0
    %v6138 = vmax.f32 %v6132, 0.0
    %v6139 = vmax.f32 %v6135, 0.0
    %v6140 = vpack.c.bf16 %v6139, %v6138
    %v6141 = vld [vmem:[%s3] sm:$0xff]
    %v6142 = vld [vmem:[%s3 + $0x8] sm:$0xff]
    %v6143 = vld [vmem:[%s3 + $0x10] sm:$0xff]
    %v6144 = vld [vmem:[%s3 + $0x18] sm:$0xff]
    %v6145 = vld [vmem:[%s3 + $0x20] sm:$0xff]
    %v6146 = vld [vmem:[%s3 + $0x28] sm:$0xff]
    %v6147 = vld [vmem:[%s3 + $0x30] sm:$0xff]
    %v6148 = vld [vmem:[%s3 + $0x38] sm:$0xff]
    %v6149 = vld [vmem:[%s3 + $0x40] sm:$0xff]
    %v6150 = vld [vmem:[%s3 + $0x48] sm:$0xff]
    %v6151 = vld [vmem:[%s3 + $0x50] sm:$0xff]
    %v6152 = vld [vmem:[%s3 + $0x58] sm:$0xff]
    %v6153 = vld [vmem:[%s3 + $0x60] sm:$0xff]
    %v6154 = vld [vmem:[%s3 + $0x68] sm:$0xff]
    %v6155 = vld [vmem:[%s3 + $0x70] sm:$0xff]
    %v6156 = vld [vmem:[%s3 + $0x78] sm:$0xff]
    %v6157 = vld [vmem:[%s3 + $0x80] sm:$0xff]
    %v6158 = vld [vmem:[%s3 + $0x88] sm:$0xff]
    %v6159 = vld [vmem:[%s3 + $0x90] sm:$0xff]
    %v6160 = vld [vmem:[%s3 + $0x98] sm:$0xff]
    %v6161 = vld [vmem:[%s3 + $0xa0] sm:$0xff]
    %v6162 = vld [vmem:[%s3 + $0xa8] sm:$0xff]
    %v6163 = vld [vmem:[%s3 + $0xb0] sm:$0xff]
    %v6164 = vld [vmem:[%s3 + $0xb8] sm:$0xff]
    %v6165 = vld [vmem:[%s3 + $0xc0] sm:$0xff]
    %v6166 = vld [vmem:[%s3 + $0xc8] sm:$0xff]
    %v6167 = vld [vmem:[%s3 + $0xd0] sm:$0xff]
    %v6168 = vld [vmem:[%s3 + $0xd8] sm:$0xff]
    %v6169 = vld [vmem:[%s3 + $0xe0] sm:$0xff]
    %v6170 = vld [vmem:[%s3 + $0xe8] sm:$0xff]
    %v6171 = vld [vmem:[%s3 + $0xf0] sm:$0xff]
    %v6172 = vld [vmem:[%s3 + $0xf8] sm:$0xff]
    %v6173 = vld [vmem:[%s4] sm:$0xf]
    %v6175 = vlaneseq
    %v6176 = vshrl.u32 %v6175, 7
    %v6177 = vsub.s32 0, %v6176
    %v6178 = vrot.slane %v6173, %v6177
    %v6179 = vlaneseq
    %v6180 = vshrl.u32 %v6179, 7
    %v6181 = vsub.s32 1, %v6180
    %v6182 = vrot.slane %v6173, %v6181
    %v6183 = vlaneseq
    %v6184 = vshrl.u32 %v6183, 7
    %v6185 = vsub.s32 2, %v6184
    %v6186 = vrot.slane %v6173, %v6185
    %v6187 = vlaneseq
    %v6188 = vshrl.u32 %v6187, 7
    %v6189 = vsub.s32 3, %v6188
    %v6190 = vrot.slane %v6173, %v6189
    %v6227 = vunpack.c.l.b16 %v6141
    %v6228 = vunpack.c.h.b16 %v6141
    %v6229 = vunpack.c.l.b16 %v6142
    %v6230 = vunpack.c.h.b16 %v6142
    %v6231 = vunpack.c.l.b16 %v6143
    %v6232 = vunpack.c.h.b16 %v6143
    %v6233 = vunpack.c.l.b16 %v6144
    %v6234 = vunpack.c.h.b16 %v6144
    %v6235 = vunpack.c.l.b16 %v6145
    %v6236 = vunpack.c.h.b16 %v6145
    %v6237 = vunpack.c.l.b16 %v6146
    %v6238 = vunpack.c.h.b16 %v6146
    %v6239 = vunpack.c.l.b16 %v6147
    %v6240 = vunpack.c.h.b16 %v6147
    %v6241 = vunpack.c.l.b16 %v6148
    %v6242 = vunpack.c.h.b16 %v6148
    %v6243 = vunpack.c.l.b16 %v6149
    %v6244 = vunpack.c.h.b16 %v6149
    %v6245 = vunpack.c.l.b16 %v6150
    %v6246 = vunpack.c.h.b16 %v6150
    %v6247 = vunpack.c.l.b16 %v6151
    %v6248 = vunpack.c.h.b16 %v6151
    %v6249 = vunpack.c.l.b16 %v6152
    %v6250 = vunpack.c.h.b16 %v6152
    %v6251 = vunpack.c.l.b16 %v6153
    %v6252 = vunpack.c.h.b16 %v6153
    %v6253 = vunpack.c.l.b16 %v6154
    %v6254 = vunpack.c.h.b16 %v6154
    %v6255 = vunpack.c.l.b16 %v6155
    %v6256 = vunpack.c.h.b16 %v6155
    %v6257 = vunpack.c.l.b16 %v6156
    %v6258 = vunpack.c.h.b16 %v6156
    %v6259 = vunpack.c.l.b16 %v6157
    %v6260 = vunpack.c.h.b16 %v6157
    %v6261 = vunpack.c.l.b16 %v6158
    %v6262 = vunpack.c.h.b16 %v6158
    %v6263 = vunpack.c.l.b16 %v6159
    %v6264 = vunpack.c.h.b16 %v6159
    %v6265 = vunpack.c.l.b16 %v6160
    %v6266 = vunpack.c.h.b16 %v6160
    %v6267 = vunpack.c.l.b16 %v6161
    %v6268 = vunpack.c.h.b16 %v6161
    %v6269 = vunpack.c.l.b16 %v6162
    %v6270 = vunpack.c.h.b16 %v6162
    %v6271 = vunpack.c.l.b16 %v6163
    %v6272 = vunpack.c.h.b16 %v6163
    %v6273 = vunpack.c.l.b16 %v6164
    %v6274 = vunpack.c.h.b16 %v6164
    %v6275 = vunpack.c.l.b16 %v6165
    %v6276 = vunpack.c.h.b16 %v6165
    %v6277 = vunpack.c.l.b16 %v6166
    %v6278 = vunpack.c.h.b16 %v6166
    %v6279 = vunpack.c.l.b16 %v6167
    %v6280 = vunpack.c.h.b16 %v6167
    %v6281 = vunpack.c.l.b16 %v6168
    %v6282 = vunpack.c.h.b16 %v6168
    %v6283 = vunpack.c.l.b16 %v6169
    %v6284 = vunpack.c.h.b16 %v6169
    %v6285 = vunpack.c.l.b16 %v6170
    %v6286 = vunpack.c.h.b16 %v6170
    %v6287 = vunpack.c.l.b16 %v6171
    %v6288 = vunpack.c.h.b16 %v6171
    %v6289 = vunpack.c.l.b16 %v6172
    %v6290 = vunpack.c.h.b16 %v6172
    %v6291 = vpack.c.b16 %v6231, %v6227
    %v6292 = vpack.c.b16 %v6232, %v6228
    %v6293 = vpack.c.b16 %v6233, %v6229
    %v6294 = vpack.c.b16 %v6234, %v6230
    %v6295 = vpack.c.b16 %v6239, %v6235
    %v6296 = vpack.c.b16 %v6240, %v6236
    %v6297 = vpack.c.b16 %v6241, %v6237
    %v6298 = vpack.c.b16 %v6242, %v6238
    %v6299 = vpack.c.b16 %v6247, %v6243
    %v6300 = vpack.c.b16 %v6248, %v6244
    %v6301 = vpack.c.b16 %v6249, %v6245
    %v6302 = vpack.c.b16 %v6250, %v6246
    %v6303 = vpack.c.b16 %v6255, %v6251
    %v6304 = vpack.c.b16 %v6256, %v6252
    %v6305 = vpack.c.b16 %v6257, %v6253
    %v6306 = vpack.c.b16 %v6258, %v6254
    %v6307 = vpack.c.b16 %v6263, %v6259
    %v6308 = vpack.c.b16 %v6264, %v6260
    %v6309 = vpack.c.b16 %v6265, %v6261
    %v6310 = vpack.c.b16 %v6266, %v6262
    %v6311 = vpack.c.b16 %v6271, %v6267
    %v6312 = vpack.c.b16 %v6272, %v6268
    %v6313 = vpack.c.b16 %v6273, %v6269
    %v6314 = vpack.c.b16 %v6274, %v6270
    %v6315 = vpack.c.b16 %v6279, %v6275
    %v6316 = vpack.c.b16 %v6280, %v6276
    %v6317 = vpack.c.b16 %v6281, %v6277
    %v6318 = vpack.c.b16 %v6282, %v6278
    %v6319 = vpack.c.b16 %v6287, %v6283
    %v6320 = vpack.c.b16 %v6288, %v6284
    %v6321 = vpack.c.b16 %v6289, %v6285
    %v6322 = vpack.c.b16 %v6290, %v6286
    %6355 = vmatprep.subr.bf16.mxu0 %v6320
    %6356 = vmatpush1.bf16.msra.mxu0 %v6319
    %6357 = vmatprep.subr.bf16.mxu0 %v6316
    %6358 = vmatpush1.bf16.msra.mxu0 %v6315
    %6359 = vmatprep.subr.bf16.mxu0 %v6312
    %6360 = vmatpush1.bf16.msra.mxu0 %v6311
    %6361 = vmatprep.subr.bf16.mxu0 %v6308
    %6362 = vmatpush1.bf16.msra.mxu0 %v6307
    %6363 = vmatprep.subr.bf16.mxu0 %v6304
    %6364 = vmatpush1.bf16.msra.mxu0 %v6303
    %6365 = vmatprep.subr.bf16.mxu0 %v6300
    %6366 = vmatpush1.bf16.msra.mxu0 %v6299
    %6367 = vmatprep.subr.bf16.mxu0 %v6296
    %6368 = vmatpush1.bf16.msra.mxu0 %v6295
    %6369 = vmatprep.subr.bf16.mxu0 %v6292
    %6370 = vmatpush1.bf16.msra.mxu0 %v6291
    %6371 = vmatprep.subr.bf16.mxu0 0
    %6372 = vmatpush2.bf16.msra.mxu0 0
    %6373 = vmatprep.subr.bf16.mxu0 0
    %6374 = vmatpush2.bf16.msra.mxu0 0
    %6375 = vmatprep.subr.bf16.mxu0 0
    %6376 = vmatpush2.bf16.msra.mxu0 0
    %6377 = vmatprep.subr.bf16.mxu0 0
    %6378 = vmatpush2.bf16.msra.mxu0 0
    %6379 = vmatprep.subr.bf16.mxu0 0
    %6380 = vmatpush2.bf16.msra.mxu0 0
    %6381 = vmatprep.subr.bf16.mxu0 0
    %6382 = vmatpush2.bf16.msra.mxu0 0
    %6383 = vmatprep.subr.bf16.mxu0 0
    %6384 = vmatpush2.bf16.msra.mxu0 0
    %6385 = vmatprep.subr.bf16.mxu0 0
    %6386 = vmatpush2.bf16.msra.mxu0 0
    %6387 = vmatprep.mubr.bf16.mxu0 0
    %6388 = vmatmul.mubr.bf16.gmra.mxu0 %v6140
    %v6389 = vpop.f32.mrf.mxu0
    %v6390 = vadd.f32 %v6178, %v6389
    %v6391 = vpop.f32.mrf.mxu0
    %v6392 = vadd.f32 %v6182, %v6391
    %v6393 = vpop.f32.mrf.mxu0
    %v6394 = vadd.f32 %v6178, %v6393
    %v6395 = vpop.f32.mrf.mxu0
    %v6396 = vadd.f32 %v6182, %v6395
    %6397 = vdwg.mxu0
    %6398 = vmatprep.subr.bf16.mxu0 %v6322
    %6399 = vmatpush1.bf16.msra.mxu0 %v6321
    %6400 = vmatprep.subr.bf16.mxu0 %v6318
    %6401 = vmatpush1.bf16.msra.mxu0 %v6317
    %6402 = vmatprep.subr.bf16.mxu0 %v6314
    %6403 = vmatpush1.bf16.msra.mxu0 %v6313
    %6404 = vmatprep.subr.bf16.mxu0 %v6310
    %6405 = vmatpush1.bf16.msra.mxu0 %v6309
    %6406 = vmatprep.subr.bf16.mxu0 %v6306
    %6407 = vmatpush1.bf16.msra.mxu0 %v6305
    %6408 = vmatprep.subr.bf16.mxu0 %v6302
    %6409 = vmatpush1.bf16.msra.mxu0 %v6301
    %6410 = vmatprep.subr.bf16.mxu0 %v6298
    %6411 = vmatpush1.bf16.msra.mxu0 %v6297
    %6412 = vmatprep.subr.bf16.mxu0 %v6294
    %6413 = vmatpush1.bf16.msra.mxu0 %v6293
    %6414 = vmatprep.subr.bf16.mxu0 0
    %6415 = vmatpush2.bf16.msra.mxu0 0
    %6416 = vmatprep.subr.bf16.mxu0 0
    %6417 = vmatpush2.bf16.msra.mxu0 0
    %6418 = vmatprep.subr.bf16.mxu0 0
    %6419 = vmatpush2.bf16.msra.mxu0 0
    %6420 = vmatprep.subr.bf16.mxu0 0
    %6421 = vmatpush2.bf16.msra.mxu0 0
    %6422 = vmatprep.subr.bf16.mxu0 0
    %6423 = vmatpush2.bf16.msra.mxu0 0
    %6424 = vmatprep.subr.bf16.mxu0 0
    %6425 = vmatpush2.bf16.msra.mxu0 0
    %6426 = vmatprep.subr.bf16.mxu0 0
    %6427 = vmatpush2.bf16.msra.mxu0 0
    %6428 = vmatprep.subr.bf16.mxu0 0
    %6429 = vmatpush2.bf16.msra.mxu0 0
    %6430 = vmatprep.mubr.bf16.mxu0 0
    %6431 = vmatmul.mubr.bf16.gmra.mxu0 %v6140
    %v6432 = vpop.f32.mrf.mxu0
    %v6433 = vadd.f32 %v6186, %v6432
    %v6434 = vpop.f32.mrf.mxu0
    %v6435 = vadd.f32 %v6190, %v6434
    %v6436 = vpop.f32.mrf.mxu0
    %v6437 = vadd.f32 %v6186, %v6436
    %v6438 = vpop.f32.mrf.mxu0
    %v6439 = vadd.f32 %v6190, %v6438
    %6440 = vdwg.mxu0
    %v6441 = vmax.f32 %v6390, 0.0
    %v6442 = vmax.f32 %v6392, 0.0
    %v6443 = vmax.f32 %v6433, 0.0
    %v6444 = vmax.f32 %v6435, 0.0
    %v6445 = vmax.f32 %v6394, 0.0
    %v6446 = vmax.f32 %v6396, 0.0
    %v6447 = vmax.f32 %v6437, 0.0
    %v6448 = vmax.f32 %v6439, 0.0
    %v6449 = vpack.c.bf16 %v6445, %v6441
    %v6450 = vpack.c.bf16 %v6446, %v6442
    %v6451 = vpack.c.bf16 %v6447, %v6443
    %v6452 = vpack.c.bf16 %v6448, %v6444
    %v6453 = vld [vmem:[%s5] sm:$0xff]
    %v6454 = vld [vmem:[%s5 + $0x8] sm:$0xff]
    %v6455 = vld [vmem:[%s5 + $0x10] sm:$0xff]
    %v6456 = vld [vmem:[%s5 + $0x18] sm:$0xff]
    %v6457 = vld [vmem:[%s5 + $0x20] sm:$0xff]
    %v6458 = vld [vmem:[%s5 + $0x28] sm:$0xff]
    %v6459 = vld [vmem:[%s5 + $0x30] sm:$0xff]
    %v6460 = vld [vmem:[%s5 + $0x38] sm:$0xff]
    %v6461 = vld [vmem:[%s5 + $0x40] sm:$0xff]
    %v6462 = vld [vmem:[%s5 + $0x48] sm:$0xff]
    %v6463 = vld [vmem:[%s5 + $0x50] sm:$0xff]
    %v6464 = vld [vmem:[%s5 + $0x58] sm:$0xff]
    %v6465 = vld [vmem:[%s5 + $0x60] sm:$0xff]
    %v6466 = vld [vmem:[%s5 + $0x68] sm:$0xff]
    %v6467 = vld [vmem:[%s5 + $0x70] sm:$0xff]
    %v6468 = vld [vmem:[%s5 + $0x78] sm:$0xff]
    %v6469 = vld [vmem:[%s5 + $0x80] sm:$0xff]
    %v6470 = vld [vmem:[%s5 + $0x88] sm:$0xff]
    %v6471 = vld [vmem:[%s5 + $0x90] sm:$0xff]
    %v6472 = vld [vmem:[%s5 + $0x98] sm:$0xff]
    %v6473 = vld [vmem:[%s5 + $0xa0] sm:$0xff]
    %v6474 = vld [vmem:[%s5 + $0xa8] sm:$0xff]
    %v6475 = vld [vmem:[%s5 + $0xb0] sm:$0xff]
    %v6476 = vld [vmem:[%s5 + $0xb8] sm:$0xff]
    %v6477 = vld [vmem:[%s5 + $0xc0] sm:$0xff]
    %v6478 = vld [vmem:[%s5 + $0xc8] sm:$0xff]
    %v6479 = vld [vmem:[%s5 + $0xd0] sm:$0xff]
    %v6480 = vld [vmem:[%s5 + $0xd8] sm:$0xff]
    %v6481 = vld [vmem:[%s5 + $0xe0] sm:$0xff]
    %v6482 = vld [vmem:[%s5 + $0xe8] sm:$0xff]
    %v6483 = vld [vmem:[%s5 + $0xf0] sm:$0xff]
    %v6484 = vld [vmem:[%s5 + $0xf8] sm:$0xff]
    %v6485 = vld [vmem:[%s5 + $0x100] sm:$0xff]
    %v6486 = vld [vmem:[%s5 + $0x108] sm:$0xff]
    %v6487 = vld [vmem:[%s5 + $0x110] sm:$0xff]
    %v6488 = vld [vmem:[%s5 + $0x118] sm:$0xff]
    %v6489 = vld [vmem:[%s5 + $0x120] sm:$0xff]
    %v6490 = vld [vmem:[%s5 + $0x128] sm:$0xff]
    %v6491 = vld [vmem:[%s5 + $0x130] sm:$0xff]
    %v6492 = vld [vmem:[%s5 + $0x138] sm:$0xff]
    %v6493 = vld [vmem:[%s5 + $0x140] sm:$0xff]
    %v6494 = vld [vmem:[%s5 + $0x148] sm:$0xff]
    %v6495 = vld [vmem:[%s5 + $0x150] sm:$0xff]
    %v6496 = vld [vmem:[%s5 + $0x158] sm:$0xff]
    %v6497 = vld [vmem:[%s5 + $0x160] sm:$0xff]
    %v6498 = vld [vmem:[%s5 + $0x168] sm:$0xff]
    %v6499 = vld [vmem:[%s5 + $0x170] sm:$0xff]
    %v6500 = vld [vmem:[%s5 + $0x178] sm:$0xff]
    %v6501 = vld [vmem:[%s5 + $0x180] sm:$0xff]
    %v6502 = vld [vmem:[%s5 + $0x188] sm:$0xff]
    %v6503 = vld [vmem:[%s5 + $0x190] sm:$0xff]
    %v6504 = vld [vmem:[%s5 + $0x198] sm:$0xff]
    %v6505 = vld [vmem:[%s5 + $0x1a0] sm:$0xff]
    %v6506 = vld [vmem:[%s5 + $0x1a8] sm:$0xff]
    %v6507 = vld [vmem:[%s5 + $0x1b0] sm:$0xff]
    %v6508 = vld [vmem:[%s5 + $0x1b8] sm:$0xff]
    %v6509 = vld [vmem:[%s5 + $0x1c0] sm:$0xff]
    %v6510 = vld [vmem:[%s5 + $0x1c8] sm:$0xff]
    %v6511 = vld [vmem:[%s5 + $0x1d0] sm:$0xff]
    %v6512 = vld [vmem:[%s5 + $0x1d8] sm:$0xff]
    %v6513 = vld [vmem:[%s5 + $0x1e0] sm:$0xff]
    %v6514 = vld [vmem:[%s5 + $0x1e8] sm:$0xff]
    %v6515 = vld [vmem:[%s5 + $0x1f0] sm:$0xff]
    %v6516 = vld [vmem:[%s5 + $0x1f8] sm:$0xff]
    %v6517 = vld [vmem:[%s6] sm:$0x3]
    %v6519 = vlaneseq
    %v6520 = vshrl.u32 %v6519, 7
    %v6521 = vsub.s32 0, %v6520
    %v6522 = vrot.slane %v6517, %v6521
    %v6523 = vlaneseq
    %v6524 = vshrl.u32 %v6523, 7
    %v6525 = vsub.s32 1, %v6524
    %v6526 = vrot.slane %v6517, %v6525
    %v6593 = vunpack.c.l.b16 %v6453
    %v6594 = vunpack.c.h.b16 %v6453
    %v6595 = vunpack.c.l.b16 %v6454
    %v6596 = vunpack.c.h.b16 %v6454
    %v6597 = vunpack.c.l.b16 %v6455
    %v6598 = vunpack.c.h.b16 %v6455
    %v6599 = vunpack.c.l.b16 %v6456
    %v6600 = vunpack.c.h.b16 %v6456
    %v6601 = vunpack.c.l.b16 %v6457
    %v6602 = vunpack.c.h.b16 %v6457
    %v6603 = vunpack.c.l.b16 %v6458
    %v6604 = vunpack.c.h.b16 %v6458
    %v6605 = vunpack.c.l.b16 %v6459
    %v6606 = vunpack.c.h.b16 %v6459
    %v6607 = vunpack.c.l.b16 %v6460
    %v6608 = vunpack.c.h.b16 %v6460
    %v6609 = vunpack.c.l.b16 %v6461
    %v6610 = vunpack.c.h.b16 %v6461
    %v6611 = vunpack.c.l.b16 %v6462
    %v6612 = vunpack.c.h.b16 %v6462
    %v6613 = vunpack.c.l.b16 %v6463
    %v6614 = vunpack.c.h.b16 %v6463
    %v6615 = vunpack.c.l.b16 %v6464
    %v6616 = vunpack.c.h.b16 %v6464
    %v6617 = vunpack.c.l.b16 %v6465
    %v6618 = vunpack.c.h.b16 %v6465
    %v6619 = vunpack.c.l.b16 %v6466
    %v6620 = vunpack.c.h.b16 %v6466
    %v6621 = vunpack.c.l.b16 %v6467
    %v6622 = vunpack.c.h.b16 %v6467
    %v6623 = vunpack.c.l.b16 %v6468
    %v6624 = vunpack.c.h.b16 %v6468
    %v6625 = vunpack.c.l.b16 %v6469
    %v6626 = vunpack.c.h.b16 %v6469
    %v6627 = vunpack.c.l.b16 %v6470
    %v6628 = vunpack.c.h.b16 %v6470
    %v6629 = vunpack.c.l.b16 %v6471
    %v6630 = vunpack.c.h.b16 %v6471
    %v6631 = vunpack.c.l.b16 %v6472
    %v6632 = vunpack.c.h.b16 %v6472
    %v6633 = vunpack.c.l.b16 %v6473
    %v6634 = vunpack.c.h.b16 %v6473
    %v6635 = vunpack.c.l.b16 %v6474
    %v6636 = vunpack.c.h.b16 %v6474
    %v6637 = vunpack.c.l.b16 %v6475
    %v6638 = vunpack.c.h.b16 %v6475
    %v6639 = vunpack.c.l.b16 %v6476
    %v6640 = vunpack.c.h.b16 %v6476
    %v6641 = vunpack.c.l.b16 %v6477
    %v6642 = vunpack.c.h.b16 %v6477
    %v6643 = vunpack.c.l.b16 %v6478
    %v6644 = vunpack.c.h.b16 %v6478
    %v6645 = vunpack.c.l.b16 %v6479
    %v6646 = vunpack.c.h.b16 %v6479
    %v6647 = vunpack.c.l.b16 %v6480
    %v6648 = vunpack.c.h.b16 %v6480
    %v6649 = vunpack.c.l.b16 %v6481
    %v6650 = vunpack.c.h.b16 %v6481
    %v6651 = vunpack.c.l.b16 %v6482
    %v6652 = vunpack.c.h.b16 %v6482
    %v6653 = vunpack.c.l.b16 %v6483
    %v6654 = vunpack.c.h.b16 %v6483
    %v6655 = vunpack.c.l.b16 %v6484
    %v6656 = vunpack.c.h.b16 %v6484
    %v6657 = vunpack.c.l.b16 %v6485
    %v6658 = vunpack.c.h.b16 %v6485
    %v6659 = vunpack.c.l.b16 %v6486
    %v6660 = vunpack.c.h.b16 %v6486
    %v6661 = vunpack.c.l.b16 %v6487
    %v6662 = vunpack.c.h.b16 %v6487
    %v6663 = vunpack.c.l.b16 %v6488
    %v6664 = vunpack.c.h.b16 %v6488
    %v6665 = vunpack.c.l.b16 %v6489
    %v6666 = vunpack.c.h.b16 %v6489
    %v6667 = vunpack.c.l.b16 %v6490
    %v6668 = vunpack.c.h.b16 %v6490
    %v6669 = vunpack.c.l.b16 %v6491
    %v6670 = vunpack.c.h.b16 %v6491
    %v6671 = vunpack.c.l.b16 %v6492
    %v6672 = vunpack.c.h.b16 %v6492
    %v6673 = vunpack.c.l.b16 %v6493
    %v6674 = vunpack.c.h.b16 %v6493
    %v6675 = vunpack.c.l.b16 %v6494
    %v6676 = vunpack.c.h.b16 %v6494
    %v6677 = vunpack.c.l.b16 %v6495
    %v6678 = vunpack.c.h.b16 %v6495
    %v6679 = vunpack.c.l.b16 %v6496
    %v6680 = vunpack.c.h.b16 %v6496
    %v6681 = vunpack.c.l.b16 %v6497
    %v6682 = vunpack.c.h.b16 %v6497
    %v6683 = vunpack.c.l.b16 %v6498
    %v6684 = vunpack.c.h.b16 %v6498
    %v6685 = vunpack.c.l.b16 %v6499
    %v6686 = vunpack.c.h.b16 %v6499
    %v6687 = vunpack.c.l.b16 %v6500
    %v6688 = vunpack.c.h.b16 %v6500
    %v6689 = vunpack.c.l.b16 %v6501
    %v6690 = vunpack.c.h.b16 %v6501
    %v6691 = vunpack.c.l.b16 %v6502
    %v6692 = vunpack.c.h.b16 %v6502
    %v6693 = vunpack.c.l.b16 %v6503
    %v6694 = vunpack.c.h.b16 %v6503
    %v6695 = vunpack.c.l.b16 %v6504
    %v6696 = vunpack.c.h.b16 %v6504
    %v6697 = vunpack.c.l.b16 %v6505
    %v6698 = vunpack.c.h.b16 %v6505
    %v6699 = vunpack.c.l.b16 %v6506
    %v6700 = vunpack.c.h.b16 %v6506
    %v6701 = vunpack.c.l.b16 %v6507
    %v6702 = vunpack.c.h.b16 %v6507
    %v6703 = vunpack.c.l.b16 %v6508
    %v6704 = vunpack.c.h.b16 %v6508
    %v6705 = vunpack.c.l.b16 %v6509
    %v6706 = vunpack.c.h.b16 %v6509
    %v6707 = vunpack.c.l.b16 %v6510
    %v6708 = vunpack.c.h.b16 %v6510
    %v6709 = vunpack.c.l.b16 %v6511
    %v6710 = vunpack.c.h.b16 %v6511
    %v6711 = vunpack.c.l.b16 %v6512
    %v6712 = vunpack.c.h.b16 %v6512
    %v6713 = vunpack.c.l.b16 %v6513
    %v6714 = vunpack.c.h.b16 %v6513
    %v6715 = vunpack.c.l.b16 %v6514
    %v6716 = vunpack.c.h.b16 %v6514
    %v6717 = vunpack.c.l.b16 %v6515
    %v6718 = vunpack.c.h.b16 %v6515
    %v6719 = vunpack.c.l.b16 %v6516
    %v6720 = vunpack.c.h.b16 %v6516
    %v6721 = vpack.c.b16 %v6595, %v6593
    %v6722 = vpack.c.b16 %v6596, %v6594
    %v6723 = vpack.c.b16 %v6599, %v6597
    %v6724 = vpack.c.b16 %v6600, %v6598
    %v6725 = vpack.c.b16 %v6603, %v6601
    %v6726 = vpack.c.b16 %v6604, %v6602
    %v6727 = vpack.c.b16 %v6607, %v6605
    %v6728 = vpack.c.b16 %v6608, %v6606
    %v6729 = vpack.c.b16 %v6611, %v6609
    %v6730 = vpack.c.b16 %v6612, %v6610
    %v6731 = vpack.c.b16 %v6615, %v6613
    %v6732 = vpack.c.b16 %v6616, %v6614
    %v6733 = vpack.c.b16 %v6619, %v6617
    %v6734 = vpack.c.b16 %v6620, %v6618
    %v6735 = vpack.c.b16 %v6623, %v6621
    %v6736 = vpack.c.b16 %v6624, %v6622
    %v6737 = vpack.c.b16 %v6627, %v6625
    %v6738 = vpack.c.b16 %v6628, %v6626
    %v6739 = vpack.c.b16 %v6631, %v6629
    %v6740 = vpack.c.b16 %v6632, %v6630
    %v6741 = vpack.c.b16 %v6635, %v6633
    %v6742 = vpack.c.b16 %v6636, %v6634
    %v6743 = vpack.c.b16 %v6639, %v6637
    %v6744 = vpack.c.b16 %v6640, %v6638
    %v6745 = vpack.c.b16 %v6643, %v6641
    %v6746 = vpack.c.b16 %v6644, %v6642
    %v6747 = vpack.c.b16 %v6647, %v6645
    %v6748 = vpack.c.b16 %v6648, %v6646
    %v6749 = vpack.c.b16 %v6651, %v6649
    %v6750 = vpack.c.b16 %v6652, %v6650
    %v6751 = vpack.c.b16 %v6655, %v6653
    %v6752 = vpack.c.b16 %v6656, %v6654
    %v6753 = vpack.c.b16 %v6659, %v6657
    %v6754 = vpack.c.b16 %v6660, %v6658
    %v6755 = vpack.c.b16 %v6663, %v6661
    %v6756 = vpack.c.b16 %v6664, %v6662
    %v6757 = vpack.c.b16 %v6667, %v6665
    %v6758 = vpack.c.b16 %v6668, %v6666
    %v6759 = vpack.c.b16 %v6671, %v6669
    %v6760 = vpack.c.b16 %v6672, %v6670
    %v6761 = vpack.c.b16 %v6675, %v6673
    %v6762 = vpack.c.b16 %v6676, %v6674
    %v6763 = vpack.c.b16 %v6679, %v6677
    %v6764 = vpack.c.b16 %v6680, %v6678
    %v6765 = vpack.c.b16 %v6683, %v6681
    %v6766 = vpack.c.b16 %v6684, %v6682
    %v6767 = vpack.c.b16 %v6687, %v6685
    %v6768 = vpack.c.b16 %v6688, %v6686
    %v6769 = vpack.c.b16 %v6691, %v6689
    %v6770 = vpack.c.b16 %v6692, %v6690
    %v6771 = vpack.c.b16 %v6695, %v6693
    %v6772 = vpack.c.b16 %v6696, %v6694
    %v6773 = vpack.c.b16 %v6699, %v6697
    %v6774 = vpack.c.b16 %v6700, %v6698
    %v6775 = vpack.c.b16 %v6703, %v6701
    %v6776 = vpack.c.b16 %v6704, %v6702
    %v6777 = vpack.c.b16 %v6707, %v6705
    %v6778 = vpack.c.b16 %v6708, %v6706
    %v6779 = vpack.c.b16 %v6711, %v6709
    %v6780 = vpack.c.b16 %v6712, %v6710
    %v6781 = vpack.c.b16 %v6715, %v6713
    %v6782 = vpack.c.b16 %v6716, %v6714
    %v6783 = vpack.c.b16 %v6719, %v6717
    %v6784 = vpack.c.b16 %v6720, %v6718
    %6849 = vmatprep.subr.bf16.mxu0 %v6736
    %6850 = vmatpush1.bf16.msra.mxu0 %v6735
    %6851 = vmatprep.subr.bf16.mxu0 %v6734
    %6852 = vmatpush1.bf16.msra.mxu0 %v6733
    %6853 = vmatprep.subr.bf16.mxu0 %v6732
    %6854 = vmatpush1.bf16.msra.mxu0 %v6731
    %6855 = vmatprep.subr.bf16.mxu0 %v6730
    %6856 = vmatpush1.bf16.msra.mxu0 %v6729
    %6857 = vmatprep.subr.bf16.mxu0 %v6728
    %6858 = vmatpush1.bf16.msra.mxu0 %v6727
    %6859 = vmatprep.subr.bf16.mxu0 %v6726
    %6860 = vmatpush1.bf16.msra.mxu0 %v6725
    %6861 = vmatprep.subr.bf16.mxu0 %v6724
    %6862 = vmatpush1.bf16.msra.mxu0 %v6723
    %6863 = vmatprep.subr.bf16.mxu0 %v6722
    %6864 = vmatpush1.bf16.msra.mxu0 %v6721
    %6865 = vmatprep.subr.bf16.mxu0 %v6752
    %6866 = vmatpush2.bf16.msra.mxu0 %v6751
    %6867 = vmatprep.subr.bf16.mxu0 %v6750
    %6868 = vmatpush2.bf16.msra.mxu0 %v6749
    %6869 = vmatprep.subr.bf16.mxu0 %v6748
    %6870 = vmatpush2.bf16.msra.mxu0 %v6747
    %6871 = vmatprep.subr.bf16.mxu0 %v6746
    %6872 = vmatpush2.bf16.msra.mxu0 %v6745
    %6873 = vmatprep.subr.bf16.mxu0 %v6744
    %6874 = vmatpush2.bf16.msra.mxu0 %v6743
    %6875 = vmatprep.subr.bf16.mxu0 %v6742
    %6876 = vmatpush2.bf16.msra.mxu0 %v6741
    %6877 = vmatprep.subr.bf16.mxu0 %v6740
    %6878 = vmatpush2.bf16.msra.mxu0 %v6739
    %6879 = vmatprep.subr.bf16.mxu0 %v6738
    %6880 = vmatpush2.bf16.msra.mxu0 %v6737
    %6881 = vmatprep.mubr.bf16.mxu0 %v6450
    %6882 = vmatmul.mubr.bf16.gmra.mxu0 %v6449
    %v6883 = vpop.f32.mrf.mxu0
    %v6884 = vadd.f32 %v6522, %v6883
    %v6885 = vpop.f32.mrf.mxu0
    %v6886 = vadd.f32 %v6526, %v6885
    %v6887 = vpop.f32.mrf.mxu0
    %v6888 = vadd.f32 %v6522, %v6887
    %v6889 = vpop.f32.mrf.mxu0
    %v6890 = vadd.f32 %v6526, %v6889
    %6891 = vdwg.mxu0
    %6892 = vmatprep.subr.bf16.mxu0 %v6768
    %6893 = vmatpush1.bf16.msra.mxu0 %v6767
    %6894 = vmatprep.subr.bf16.mxu0 %v6766
    %6895 = vmatpush1.bf16.msra.mxu0 %v6765
    %6896 = vmatprep.subr.bf16.mxu0 %v6764
    %6897 = vmatpush1.bf16.msra.mxu0 %v6763
    %6898 = vmatprep.subr.bf16.mxu0 %v6762
    %6899 = vmatpush1.bf16.msra.mxu0 %v6761
    %6900 = vmatprep.subr.bf16.mxu0 %v6760
    %6901 = vmatpush1.bf16.msra.mxu0 %v6759
    %6902 = vmatprep.subr.bf16.mxu0 %v6758
    %6903 = vmatpush1.bf16.msra.mxu0 %v6757
    %6904 = vmatprep.subr.bf16.mxu0 %v6756
    %6905 = vmatpush1.bf16.msra.mxu0 %v6755
    %6906 = vmatprep.subr.bf16.mxu0 %v6754
    %6907 = vmatpush1.bf16.msra.mxu0 %v6753
    %6908 = vmatprep.subr.bf16.mxu0 %v6784
    %6909 = vmatpush2.bf16.msra.mxu0 %v6783
    %6910 = vmatprep.subr.bf16.mxu0 %v6782
    %6911 = vmatpush2.bf16.msra.mxu0 %v6781
    %6912 = vmatprep.subr.bf16.mxu0 %v6780
    %6913 = vmatpush2.bf16.msra.mxu0 %v6779
    %6914 = vmatprep.subr.bf16.mxu0 %v6778
    %6915 = vmatpush2.bf16.msra.mxu0 %v6777
    %6916 = vmatprep.subr.bf16.mxu0 %v6776
    %6917 = vmatpush2.bf16.msra.mxu0 %v6775
    %6918 = vmatprep.subr.bf16.mxu0 %v6774
    %6919 = vmatpush2.bf16.msra.mxu0 %v6773
    %6920 = vmatprep.subr.bf16.mxu0 %v6772
    %6921 = vmatpush2.bf16.msra.mxu0 %v6771
    %6922 = vmatprep.subr.bf16.mxu0 %v6770
    %6923 = vmatpush2.bf16.msra.mxu0 %v6769
    %6924 = vmatprep.mubr.bf16.mxu0 %v6452
    %6925 = vmatmul.mubr.bf16.gmra.mxu0 %v6451
    %v6926 = vpop.f32.mrf.mxu0
    %v6927 = vadd.f32 %v6884, %v6926
    %v6928 = vpop.f32.mrf.mxu0
    %v6929 = vadd.f32 %v6886, %v6928
    %v6930 = vpop.f32.mrf.mxu0
    %v6931 = vadd.f32 %v6888, %v6930
    %v6932 = vpop.f32.mrf.mxu0
    %v6933 = vadd.f32 %v6890, %v6932
    %6934 = vdwg.mxu0
    %v6935 = vmax.f32 %v6927, 0.0
    %v6936 = vmax.f32 %v6929, 0.0
    %v6937 = vmax.f32 %v6931, 0.0
    %v6938 = vmax.f32 %v6933, 0.0
    %v6939 = vpack.c.bf16 %v6937, %v6935
    %v6940 = vpack.c.bf16 %v6938, %v6936
    %v6941 = vld [vmem:[%s7] sm:$0xf]
    %v6942 = vld [vmem:[%s7 + $0x4] sm:$0xf]
    %v6943 = vld [vmem:[%s7 + $0x8] sm:$0xf]
    %v6944 = vld [vmem:[%s7 + $0xc] sm:$0xf]
    %v6945 = vld [vmem:[%s7 + $0x10] sm:$0xf]
    %v6946 = vld [vmem:[%s7 + $0x14] sm:$0xf]
    %v6947 = vld [vmem:[%s7 + $0x18] sm:$0xf]
    %v6948 = vld [vmem:[%s7 + $0x1c] sm:$0xf]
    %v6949 = vld [vmem:[%s7 + $0x20] sm:$0xf]
    %v6950 = vld [vmem:[%s7 + $0x24] sm:$0xf]
    %v6951 = vld [vmem:[%s7 + $0x28] sm:$0xf]
    %v6952 = vld [vmem:[%s7 + $0x2c] sm:$0xf]
    %v6953 = vld [vmem:[%s7 + $0x30] sm:$0xf]
    %v6954 = vld [vmem:[%s7 + $0x34] sm:$0xf]
    %v6955 = vld [vmem:[%s7 + $0x38] sm:$0xf]
    %v6956 = vld [vmem:[%s7 + $0x3c] sm:$0xf]
    %v6957 = vld [vmem:[%s7 + $0x40] sm:$0xf]
    %v6958 = vld [vmem:[%s7 + $0x44] sm:$0xf]
    %v6959 = vld [vmem:[%s7 + $0x48] sm:$0xf]
    %v6960 = vld [vmem:[%s7 + $0x4c] sm:$0xf]
    %v6961 = vld [vmem:[%s7 + $0x50] sm:$0xf]
    %v6962 = vld [vmem:[%s7 + $0x54] sm:$0xf]
    %v6963 = vld [vmem:[%s7 + $0x58] sm:$0xf]
    %v6964 = vld [vmem:[%s7 + $0x5c] sm:$0xf]
    %v6965 = vld [vmem:[%s7 + $0x60] sm:$0xf]
    %v6966 = vld [vmem:[%s7 + $0x64] sm:$0xf]
    %v6967 = vld [vmem:[%s7 + $0x68] sm:$0xf]
    %v6968 = vld [vmem:[%s7 + $0x6c] sm:$0xf]
    %v6969 = vld [vmem:[%s7 + $0x70] sm:$0xf]
    %v6970 = vld [vmem:[%s7 + $0x74] sm:$0xf]
    %v6971 = vld [vmem:[%s7 + $0x78] sm:$0xf]
    %v6972 = vld [vmem:[%s7 + $0x7c] sm:$0xf]
    %v6973 = vld [vmem:[#allocation2] sm:$0x1]
    %v6975 = vlaneseq
    %v6976 = vshrl.u32 %v6975, 7
    %v6977 = vsub.s32 0, %v6976
    %v6978 = vrot.slane %v6973, %v6977
    %v7012 = vunpack.c.l.b16 %v6941
    %v7013 = vunpack.c.l.b16 %v6942
    %v7014 = vunpack.c.l.b16 %v6943
    %v7015 = vunpack.c.l.b16 %v6944
    %v7016 = vunpack.c.l.b16 %v6945
    %v7017 = vunpack.c.l.b16 %v6946
    %v7018 = vunpack.c.l.b16 %v6947
    %v7019 = vunpack.c.l.b16 %v6948
    %v7020 = vunpack.c.l.b16 %v6949
    %v7021 = vunpack.c.l.b16 %v6950
    %v7022 = vunpack.c.l.b16 %v6951
    %v7023 = vunpack.c.l.b16 %v6952
    %v7024 = vunpack.c.l.b16 %v6953
    %v7025 = vunpack.c.l.b16 %v6954
    %v7026 = vunpack.c.l.b16 %v6955
    %v7027 = vunpack.c.l.b16 %v6956
    %v7028 = vunpack.c.l.b16 %v6957
    %v7029 = vunpack.c.l.b16 %v6958
    %v7030 = vunpack.c.l.b16 %v6959
    %v7031 = vunpack.c.l.b16 %v6960
    %v7032 = vunpack.c.l.b16 %v6961
    %v7033 = vunpack.c.l.b16 %v6962
    %v7034 = vunpack.c.l.b16 %v6963
    %v7035 = vunpack.c.l.b16 %v6964
    %v7036 = vunpack.c.l.b16 %v6965
    %v7037 = vunpack.c.l.b16 %v6966
    %v7038 = vunpack.c.l.b16 %v6967
    %v7039 = vunpack.c.l.b16 %v6968
    %v7040 = vunpack.c.l.b16 %v6969
    %v7041 = vunpack.c.l.b16 %v6970
    %v7042 = vunpack.c.l.b16 %v6971
    %v7043 = vunpack.c.l.b16 %v6972
    %v7044 = vpack.c.b16 %v7013, %v7012
    %v7045 = vpack.c.b16 %v7015, %v7014
    %v7046 = vpack.c.b16 %v7017, %v7016
    %v7047 = vpack.c.b16 %v7019, %v7018
    %v7048 = vpack.c.b16 %v7021, %v7020
    %v7049 = vpack.c.b16 %v7023, %v7022
    %v7050 = vpack.c.b16 %v7025, %v7024
    %v7051 = vpack.c.b16 %v7027, %v7026
    %v7052 = vpack.c.b16 %v7029, %v7028
    %v7053 = vpack.c.b16 %v7031, %v7030
    %v7054 = vpack.c.b16 %v7033, %v7032
    %v7055 = vpack.c.b16 %v7035, %v7034
    %v7056 = vpack.c.b16 %v7037, %v7036
    %v7057 = vpack.c.b16 %v7039, %v7038
    %v7058 = vpack.c.b16 %v7041, %v7040
    %v7059 = vpack.c.b16 %v7043, %v7042
    %7076 = vmatprep.subr.bf16.mxu0 0
    %7077 = vmatpush1.bf16.msra.mxu0 %v7051
    %7078 = vmatprep.subr.bf16.mxu0 0
    %7079 = vmatpush1.bf16.msra.mxu0 %v7050
    %7080 = vmatprep.subr.bf16.mxu0 0
    %7081 = vmatpush1.bf16.msra.mxu0 %v7049
    %7082 = vmatprep.subr.bf16.mxu0 0
    %7083 = vmatpush1.bf16.msra.mxu0 %v7048
    %7084 = vmatprep.subr.bf16.mxu0 0
    %7085 = vmatpush1.bf16.msra.mxu0 %v7047
    %7086 = vmatprep.subr.bf16.mxu0 0
    %7087 = vmatpush1.bf16.msra.mxu0 %v7046
    %7088 = vmatprep.subr.bf16.mxu0 0
    %7089 = vmatpush1.bf16.msra.mxu0 %v7045
    %7090 = vmatprep.subr.bf16.mxu0 0
    %7091 = vmatpush1.bf16.msra.mxu0 %v7044
    %7092 = vmatprep.subr.bf16.mxu0 0
    %7093 = vmatpush2.bf16.msra.mxu0 %v7059
    %7094 = vmatprep.subr.bf16.mxu0 0
    %7095 = vmatpush2.bf16.msra.mxu0 %v7058
    %7096 = vmatprep.subr.bf16.mxu0 0
    %7097 = vmatpush2.bf16.msra.mxu0 %v7057
    %7098 = vmatprep.subr.bf16.mxu0 0
    %7099 = vmatpush2.bf16.msra.mxu0 %v7056
    %7100 = vmatprep.subr.bf16.mxu0 0
    %7101 = vmatpush2.bf16.msra.mxu0 %v7055
    %7102 = vmatprep.subr.bf16.mxu0 0
    %7103 = vmatpush2.bf16.msra.mxu0 %v7054
    %7104 = vmatprep.subr.bf16.mxu0 0
    %7105 = vmatpush2.bf16.msra.mxu0 %v7053
    %7106 = vmatprep.subr.bf16.mxu0 0
    %7107 = vmatpush2.bf16.msra.mxu0 %v7052
    %7108 = vmatprep.mubr.bf16.mxu0 %v6940
    %7109 = vmatmul.mubr.bf16.gmra.mxu0 %v6939
    %v7110 = vpop.f32.mrf.mxu0
    %v7111 = vadd.f32 %v6978, %v7110
    %v7112 = vpop.f32.mrf.mxu0
    %v7113 = vpop.f32.mrf.mxu0
    %v7114 = vadd.f32 %v6978, %v7113
    %v7115 = vpop.f32.mrf.mxu0
    %7116 = vdwg.mxu0
    %v7117 = vxor.u32 %v7111, 2147483648
    %v7118 = vxor.u32 %v7114, 2147483648
    %v7119 = vmul.f32 %v7117, 1.442695
    %v7120 = vpow.pop %v7119
    %v7121 = vmul.f32 %v7118, 1.442695
    %v7122 = vpow.pop %v7121
    %v7123 = vadd.f32 %v7120, 1.0
    %v7124 = vadd.f32 %v7122, 1.0
    %v7125 = vrcp.pop %v7123
    %v7126 = vmul.f32 1.0, %v7125
    %v7127 = vrcp.pop %v7124
    %v7128 = vmul.f32 1.0, %v7127
    %vm7129 = vcmask 7168
    %7130 = vst.msk [vmem:[%s15] sm:$0xff] %vm7129, %v7126
    %7131 = vst.msk [vmem:[%s15 + $0x8] sm:$0xff] %vm7129, %v7128
  $region69: #{grasp_pose_net_forward.6} parent=0 // pred_fallthru
    _
  // Predicated region
  $region70: #{grasp_pose_net_forward.6} parent=0 // pred_check
    _
  $region71: #{grasp_pose_net_forward.6} parent=0 // pred_check_branch
    %7133 = sbr.rel (0) target = $region73
  $region72: #{grasp_pose_net_forward.6} parent=0 // pred_region
    _
  $region73: #{grasp_pose_net_forward.6} parent=0 // pred_fallthru
    _
  // Predicated region
  $region74: #{grasp_pose_net_forward.6} parent=0 // pred_check
    _
  $region75: #{grasp_pose_net_forward.6} parent=0 // pred_check_branch
    %7135 = sbr.rel (0) target = $region77
  $region76: #{grasp_pose_net_forward.6} parent=0 // pred_region
    _
  $region77: #{grasp_pose_net_forward.6} parent=0 // pred_fallthru
    _
  // Predicated region
  $region78: #{grasp_pose_net_forward.6} parent=0 // pred_check
    _
  $region79: #{grasp_pose_net_forward.6} parent=0 // pred_check_branch
    %7137 = sbr.rel (0) target = $region81
  $region80: #{grasp_pose_net_forward.6} parent=0 // pred_region
    _
  $region81: #{grasp_pose_net_forward.6} parent=0 // pred_fallthru
    _
  // Predicated region
  $region82: #{grasp_pose_net_forward.6} parent=0 // pred_check
    _
  $region83: #{grasp_pose_net_forward.6} parent=0 // pred_check_branch
    %7139 = sbr.rel (0) target = $region85
  $region84: #{grasp_pose_net_forward.6} parent=0 // pred_region
    _
  $region85: #{grasp_pose_net_forward.6} parent=0 // pred_fallthru
    _

</llo_original>
